<compile_context>
chip_gen: v7x
topology: tpu7x:2x2x1
jax: 0.10.0
libtpu: 0.0.40
codegen_flags: <defaults>
</compile_context>

<pallas_src>
import jax
import jax.numpy as jnp
from jax.experimental import pallas as pl
from jax.experimental.pallas import tpu as pltpu

BN_EPS = 1e-5


# ---------------------------------------------------------------------------
# Kernel 1: 1x1 conv + bias + ReLU, PixelShuffle(2) fused into the stores
# ---------------------------------------------------------------------------
def _shuffle_conv_kernel(x_ref, w_ref, b_ref, o_ref):
    tr, wd, cin = x_ref.shape[1], x_ref.shape[2], x_ref.shape[3]
    ch = o_ref.shape[3] // 2                                 # c_half
    x2d = x_ref[0].reshape(tr * wd, cin).astype(jnp.bfloat16)
    y = jnp.dot(x2d, w_ref[...], preferred_element_type=jnp.float32)
    y = jnp.maximum(y + b_ref[...], 0.0)                     # bias + ReLU in f32
    y3 = y.reshape(tr, wd, 4 * ch)                           # lane dim untouched
    # Weight columns were pre-grouped by sub-pixel g = i*2 + j, so the pixel
    # shuffle is just 4 channel-sliced stores into the (h, i, w, j*ch+c) slab.
    for g in range(4):
        i, j = g // 2, g % 2
        o_ref[:, i, :, j * ch:(j + 1) * ch] = (
            y3[:, :, g * ch:(g + 1) * ch].astype(o_ref.dtype))


def _pick_row_tile(h, w, target_m=1024):
    # Biggest divisor of H whose M = rows*W stays around ~1K (pipelined tiles).
    for d in range(h, 0, -1):
        if h % d == 0 and d * w <= target_m:
            return d
    return 1


def shuffle_upsample(up_in, w, b, out_dtype=jnp.bfloat16, row_tile=None):
    """PixelShuffle_ICNR (blur=False): 1x1 conv -> ReLU -> PixelShuffle(2)."""
    n, h, wd, cin = up_in.shape
    c4 = w.shape[1]
    ch = c4 // 4
    tr = _pick_row_tile(h, wd) if row_tile is None else row_tile
    # Permute columns so kernel output channel g*ch + c corresponds to torch
    # PixelShuffle channel c*4 + (i*2 + j), with g = i*2 + j.
    k = jnp.arange(c4)
    idx = (k % ch) * 4 + (k // ch)
    w_p = w[:, idx].astype(jnp.bfloat16)
    b_p = b.reshape(1, c4)[:, idx].astype(jnp.float32)
    out = pl.pallas_call(
        _shuffle_conv_kernel,
        out_shape=jax.ShapeDtypeStruct((n * h, 2, wd, 2 * ch), out_dtype),
        grid=(n, h // tr),
        in_specs=[
            pl.BlockSpec((1, tr, wd, cin), lambda b_, r: (b_, r, 0, 0)),
            pl.BlockSpec((cin, c4), lambda b_, r: (0, 0)),
            pl.BlockSpec((1, c4), lambda b_, r: (0, 0)),
        ],
        out_specs=pl.BlockSpec((tr, 2, wd, 2 * ch),
                               lambda b_, r: (b_ * (h // tr) + r, 0, 0, 0)),
        compiler_params=pltpu.CompilerParams(
            dimension_semantics=("parallel", "parallel")),
    )(up_in, w_p, b_p)
    # Free reshape (pure adjacent-dim merge of a contiguous array).
    return out.reshape(n, 2 * h, 2 * wd, ch)


# ---------------------------------------------------------------------------
# Shared 3x3-conv core: zero-haloed VMEM input -> merged-K im2col matmul
#                        -> ReLU -> folded inference BatchNorm
# ---------------------------------------------------------------------------
def _im2col_conv_relu_bn(pad_ref, patch_ref, w_ref, scale_ref, shift_ref, o_ref):
    hh, wh, cout = o_ref.shape[1], o_ref.shape[2], o_ref.shape[3]
    c = pad_ref.shape[2]
    ap = pad_ref[...]
    # im2col with merged K: 9 shifted taps packed side by side -> one big
    # (hh*wh, 9c) x (9c, cout) MXU matmul instead of 9 small K=c matmuls.
    for k in range(9):
        dy, dx = k // 3, k % 3
        patch_ref[:, k * c:(k + 1) * c] = (
            ap[dy:dy + hh, dx:dx + wh, :].reshape(hh * wh, c))
    y = jnp.dot(patch_ref[...], w_ref[...], preferred_element_type=jnp.float32)
    y = jnp.maximum(y, 0.0)                                  # conv -> act -> bn
    y = y * scale_ref[...] + shift_ref[...]                  # folded BatchNorm
    o_ref[0] = y.reshape(hh, wh, cout).astype(o_ref.dtype)


# Kernel 2: BN(s) + concat + ReLU fused with conv_layer1 (conv3x3 -> ReLU -> BN)
def _fused_cat_conv3x3_kernel(up_ref, s_ref, ss_ref, sb_ref, w_ref,
                              sc_ref, sh_ref, o_ref, pad_ref, patch_ref):
    hh, wh = o_ref.shape[1], o_ref.shape[2]
    c1 = up_ref.shape[3]
    c2 = s_ref.shape[3]
    # ReLU(concat([up_out, BN(s)])) assembled straight into the zero-haloed
    # VMEM scratch -- cat_x and the padded image never round-trip HBM.
    up = jnp.maximum(up_ref[0].astype(jnp.float32), 0.0)
    s_act = jnp.maximum(s_ref[0] * ss_ref[...] + sb_ref[...], 0.0)
    pad_ref[...] = jnp.zeros_like(pad_ref)
    pad_ref[1:hh + 1, 1:wh + 1, 0:c1] = up.astype(pad_ref.dtype)
    pad_ref[1:hh + 1, 1:wh + 1, c1:c1 + c2] = s_act.astype(pad_ref.dtype)
    _im2col_conv_relu_bn(pad_ref, patch_ref, w_ref, sc_ref, sh_ref, o_ref)


# Kernel 3: conv_layer2 (conv3x3 -> ReLU -> BN)
def _conv3x3_relu_bn_kernel(x_ref, w_ref, sc_ref, sh_ref, o_ref,
                            pad_ref, patch_ref):
    hh, wh = x_ref.shape[1], x_ref.shape[2]
    pad_ref[...] = jnp.zeros_like(pad_ref)
    pad_ref[1:hh + 1, 1:wh + 1, :] = x_ref[0].astype(pad_ref.dtype)
    _im2col_conv_relu_bn(pad_ref, patch_ref, w_ref, sc_ref, sh_ref, o_ref)


# ---------------------------------------------------------------------------
# Wrappers
# ---------------------------------------------------------------------------
def _fold_bn(gamma, beta, mean, var):
    scale = gamma / jnp.sqrt(var + BN_EPS)
    shift = beta - mean * scale
    return scale.astype(jnp.float32), shift.astype(jnp.float32)


def fused_bn_cat_conv3x3(up_out, s, bn_g, bn_b, bn_m, bn_v, conv_w,
                         g1, b1, m1, v1, out_dtype=jnp.bfloat16):
    n, hh, wh, c1 = up_out.shape
    c2 = s.shape[3]
    c = c1 + c2
    cout = conv_w.shape[3]
    ss, sb = _fold_bn(bn_g, bn_b, bn_m, bn_v)
    sc, sh = _fold_bn(g1, b1, m1, v1)
    w9 = conv_w.reshape(9 * c, cout).astype(jnp.bfloat16)
    return pl.pallas_call(
        _fused_cat_conv3x3_kernel,
        out_shape=jax.ShapeDtypeStruct((n, hh, wh, cout), out_dtype),
        grid=(n,),
        in_specs=[
            pl.BlockSpec((1, hh, wh, c1), lambda i: (i, 0, 0, 0)),
            pl.BlockSpec((1, hh, wh, c2), lambda i: (i, 0, 0, 0)),
            pl.BlockSpec((1, 1, c2), lambda i: (0, 0, 0)),
            pl.BlockSpec((1, 1, c2), lambda i: (0, 0, 0)),
            pl.BlockSpec((9 * c, cout), lambda i: (0, 0)),
            pl.BlockSpec((1, cout), lambda i: (0, 0)),
            pl.BlockSpec((1, cout), lambda i: (0, 0)),
        ],
        out_specs=pl.BlockSpec((1, hh, wh, cout), lambda i: (i, 0, 0, 0)),
        scratch_shapes=[pltpu.VMEM((hh + 2, wh + 2, c), jnp.bfloat16),
                        pltpu.VMEM((hh * wh, 9 * c), jnp.bfloat16)],
        compiler_params=pltpu.CompilerParams(dimension_semantics=("parallel",)),
    )(up_out, s, ss.reshape(1, 1, c2), sb.reshape(1, 1, c2),
      w9, sc.reshape(1, cout), sh.reshape(1, cout))


def conv3x3_relu_bn(x, conv_w, g, b, m, v, out_dtype=jnp.float32):
    n, hh, wh, c = x.shape
    cout = conv_w.shape[3]
    sc, sh = _fold_bn(g, b, m, v)
    w9 = conv_w.reshape(9 * c, cout).astype(jnp.bfloat16)
    return pl.pallas_call(
        _conv3x3_relu_bn_kernel,
        out_shape=jax.ShapeDtypeStruct((n, hh, wh, cout), out_dtype),
        grid=(n,),
        in_specs=[
            pl.BlockSpec((1, hh, wh, c), lambda i: (i, 0, 0, 0)),
            pl.BlockSpec((9 * c, cout), lambda i: (0, 0)),
            pl.BlockSpec((1, cout), lambda i: (0, 0)),
            pl.BlockSpec((1, cout), lambda i: (0, 0)),
        ],
        out_specs=pl.BlockSpec((1, hh, wh, cout), lambda i: (i, 0, 0, 0)),
        scratch_shapes=[pltpu.VMEM((hh + 2, wh + 2, c), jnp.bfloat16),
                        pltpu.VMEM((hh * wh, 9 * c), jnp.bfloat16)],
        compiler_params=pltpu.CompilerParams(dimension_semantics=("parallel",)),
    )(x, w9, sc.reshape(1, cout), sh.reshape(1, cout))


def unet_block_forward(up_in, s, p):
    up_out = shuffle_upsample(up_in, p["shuf_w"], p["shuf_b"])
    # TODO(synk): nearest-neighbour F.interpolate fallback (spatial mismatch
    # between up_out and s) is not implemented; shapes must already match.
    h1 = fused_bn_cat_conv3x3(
        up_out, s, p["bn_g"], p["bn_b"], p["bn_m"], p["bn_v"],
        p["conv1_w"], p["bn1_g"], p["bn1_b"], p["bn1_m"], p["bn1_v"])
    return conv3x3_relu_bn(h1, p["conv2_w"], p["bn2_g"], p["bn2_b"],
                           p["bn2_m"], p["bn2_v"], out_dtype=up_in.dtype)


# Pure-JAX reference (f32) used only for a loose numerical sanity check.
def unet_block_reference(up_in, s, p):
    n, h, w, _ = up_in.shape
    ch = p["shuf_w"].shape[1] // 4
    y = jnp.maximum(jnp.einsum("nhwc,cd->nhwd", up_in, p["shuf_w"])
                    + p["shuf_b"], 0.0)
    y = y.reshape(n, h, w, ch, 2, 2)
    up_out = jnp.transpose(y, (0, 1, 4, 2, 5, 3)).reshape(n, 2 * h, 2 * w, ch)
    s_bn = (s - p["bn_m"]) / jnp.sqrt(p["bn_v"] + BN_EPS) * p["bn_g"] + p["bn_b"]
    cat = jnp.maximum(jnp.concatenate([up_out, s_bn], axis=-1), 0.0)

    def convbn(x, cw, g, b, m, v):
        z = jax.lax.conv_general_dilated(
            x, cw, window_strides=(1, 1), padding="SAME",
            dimension_numbers=("NHWC", "HWIO", "NHWC"))
        z = jnp.maximum(z, 0.0)
        return (z - m) / jnp.sqrt(v + BN_EPS) * g + b

    h1 = convbn(cat, p["conv1_w"], p["bn1_g"], p["bn1_b"], p["bn1_m"], p["bn1_v"])
    return convbn(h1, p["conv2_w"], p["bn2_g"], p["bn2_b"], p["bn2_m"], p["bn2_v"])


if __name__ == "__main__":
    key = jax.random.PRNGKey(0)
    N, H, W = 2, 8, 8
    up_in_c, x_in_c = 32, 16
    c_half = up_in_c // 2
    ni = c_half + x_in_c          # 32
    nf = ni                       # final_div=True
    f32 = jnp.float32
    ks = jax.random.split(key, 16)

    up_in = jax.random.normal(ks[0], (N, H, W, up_in_c), f32)
    s_hook = jax.random.normal(ks[1], (N, 2 * H, 2 * W, x_in_c), f32)  # hook.stored

    params = {
        # PixelShuffle_ICNR 1x1 conv (weight-norm conv folded to weight + bias)
        "shuf_w": 0.1 * jax.random.normal(ks[2], (up_in_c, c_half * 4), f32),
        "shuf_b": 0.1 * jax.random.normal(ks[3], (1, c_half * 4), f32),
        # batchnorm_2d(x_in_c): fastai init weight=1, bias=1e-3; running stats
        "bn_g": jnp.ones((x_in_c,), f32),
        "bn_b": jnp.full((x_in_c,), 1e-3, f32),
        "bn_m": 0.1 * jax.random.normal(ks[4], (x_in_c,), f32),
        "bn_v": 1.0 + 0.1 * jnp.abs(jax.random.normal(ks[5], (x_in_c,), f32)),
        # conv_layer 1: 3x3 conv (no bias) -> ReLU -> BN(nf)
        "conv1_w": 0.1 * jax.random.normal(ks[6], (3, 3, ni, nf), f32),
        "bn1_g": 1.0 + 0.1 * jax.random.normal(ks[7], (nf,), f32),
        "bn1_b": 0.1 * jax.random.normal(ks[8], (nf,), f32),
        "bn1_m": 0.1 * jax.random.normal(ks[9], (nf,), f32),
        "bn1_v": 1.0 + 0.1 * jnp.abs(jax.random.normal(ks[10], (nf,), f32)),
        # conv_layer 2: 3x3 conv (no bias) -> ReLU -> BN(nf)
        "conv2_w": 0.1 * jax.random.normal(ks[11], (3, 3, nf, nf), f32),
        "bn2_g": 1.0 + 0.1 * jax.random.normal(ks[12], (nf,), f32),
        "bn2_b": 0.1 * jax.random.normal(ks[13], (nf,), f32),
        "bn2_m": 0.1 * jax.random.normal(ks[14], (nf,), f32),
        "bn2_v": 1.0 + 0.1 * jnp.abs(jax.random.normal(ks[15], (nf,), f32)),
    }

    out = jax.jit(unet_block_forward)(up_in, s_hook, params)
    jax.block_until_ready(out)
    assert out.shape == (N, 2 * H, 2 * W, nf), out.shape
    assert bool(jnp.all(jnp.isfinite(out)))

    # Loose sanity check vs a pure-JAX f32 reference (bf16 matmuls inside the
    # Pallas kernels -> allow ~1e-1 absolute slack).
    ref = jax.jit(unet_block_reference)(up_in, s_hook, params)
    err = float(jnp.max(jnp.abs(out - ref)))
    assert err < 1e-1, err

    print("KERNEL_OK")
</pallas_src>

<mosaic_0001>
module attributes {stable_mosaic.version = 11 : i64} {
  func.func @_shuffle_conv_kernel(%arg0: i32, %arg1: i32, %arg2: memref<1x8x8x32xf32, #tpu.memory_space<vmem>>, %arg3: memref<32x64xbf16, #tpu.memory_space<vmem>>, %arg4: memref<1x64xf32, #tpu.memory_space<vmem>>, %arg5: memref<8x2x8x32xbf16, #tpu.memory_space<vmem>>) attributes {dimension_semantics = [#tpu.dimension_semantics<parallel>, #tpu.dimension_semantics<parallel>], iteration_bounds = array<i64: 2, 1>, scalar_prefetch = 0 : i64, scratch_operands = 0 : i64, tpu.core_type = #tpu.core_type<tc>, window_params = [{transform_indices = @transform_0, window_bounds = array<i64: 1, 8, 8, 32>}, {pipeline_mode = #tpu.pipeline_mode<synchronous>, transform_indices = @transform_1, window_bounds = array<i64: 32, 64>}, {pipeline_mode = #tpu.pipeline_mode<synchronous>, transform_indices = @transform_2, window_bounds = array<i64: 1, 64>}, {transform_indices = @transform_3, window_bounds = array<i64: 8, 2, 8, 32>}]} {
    %c0 = arith.constant 0 : index
    %c0_0 = arith.constant 0 : index
    %c0_1 = arith.constant 0 : index
    %c0_2 = arith.constant 0 : index
    %0 = vector.load %arg2[%c0, %c0_0, %c0_1, %c0_2] : memref<1x8x8x32xf32, #tpu.memory_space<vmem>>, vector<1x8x8x32xf32>
    %1 = vector.shape_cast %0 : vector<1x8x8x32xf32> to vector<8x8x32xf32>
    %2 = vector.shape_cast %1 : vector<8x8x32xf32> to vector<64x32xf32>
    %3 = arith.truncf %2 : vector<64x32xf32> to vector<64x32xbf16>
    %c0_3 = arith.constant 0 : index
    %c0_4 = arith.constant 0 : index
    %4 = vector.load %arg3[%c0_3, %c0_4] : memref<32x64xbf16, #tpu.memory_space<vmem>>, vector<32x64xbf16>
    %cst = arith.constant dense<0.000000e+00> : vector<64x64xf32>
    %5 = tpu.matmul %3, %4, %cst {dimension_numbers = #tpu.dot_dimension_numbers<[1], [0], [0], [1], [0, 0, 1, 1], [], []>} : vector<64x32xbf16>, vector<32x64xbf16>, vector<64x64xf32> -> vector<64x64xf32>
    %c0_5 = arith.constant 0 : index
    %c0_6 = arith.constant 0 : index
    %6 = vector.load %arg4[%c0_5, %c0_6] : memref<1x64xf32, #tpu.memory_space<vmem>>, vector<1x64xf32>
    %7 = vector.broadcast %6 : vector<1x64xf32> to vector<64x64xf32>
    %8 = arith.addf %5, %7 : vector<64x64xf32>
    %cst_7 = arith.constant 0.000000e+00 : f32
    %9 = vector.broadcast %cst_7 : f32 to vector<64x64xf32>
    %10 = arith.maximumf %8, %9 : vector<64x64xf32>
    %11 = vector.shape_cast %10 : vector<64x64xf32> to vector<8x8x64xf32>
    %12 = vector.extract_strided_slice %11 {offsets = [0, 0, 0], sizes = [8, 8, 16], strides = [1, 1, 1]} : vector<8x8x64xf32> to vector<8x8x16xf32>
    %13 = arith.truncf %12 : vector<8x8x16xf32> to vector<8x8x16xbf16>
    %c0_8 = arith.constant 0 : index
    %c0_9 = arith.constant 0 : index
    %c0_10 = arith.constant 0 : index
    %c0_11 = arith.constant 0 : index
    %14 = vector.load %arg5[%c0_8, %c0_9, %c0_10, %c0_11] : memref<8x2x8x32xbf16, #tpu.memory_space<vmem>>, vector<8x1x8x16xbf16>
    %15 = vector.shape_cast %14 : vector<8x1x8x16xbf16> to vector<8x8x16xbf16>
    %16 = vector.shape_cast %13 : vector<8x8x16xbf16> to vector<8x1x8x16xbf16>
    tpu.vector_store %arg5[%c0_8, %c0_9, %c0_10, %c0_11], %16 {strides = array<i32>} : memref<8x2x8x32xbf16, #tpu.memory_space<vmem>>, vector<8x1x8x16xbf16>,
    %17 = vector.extract_strided_slice %11 {offsets = [0, 0, 16], sizes = [8, 8, 16], strides = [1, 1, 1]} : vector<8x8x64xf32> to vector<8x8x16xf32>
    %18 = arith.truncf %17 : vector<8x8x16xf32> to vector<8x8x16xbf16>
    %c0_12 = arith.constant 0 : index
    %c0_13 = arith.constant 0 : index
    %c0_14 = arith.constant 0 : index
    %c16 = arith.constant 16 : index
    %19 = vector.load %arg5[%c0_12, %c0_13, %c0_14, %c16] : memref<8x2x8x32xbf16, #tpu.memory_space<vmem>>, vector<8x1x8x16xbf16>
    %20 = vector.shape_cast %19 : vector<8x1x8x16xbf16> to vector<8x8x16xbf16>
    %21 = vector.shape_cast %18 : vector<8x8x16xbf16> to vector<8x1x8x16xbf16>
    tpu.vector_store %arg5[%c0_12, %c0_13, %c0_14, %c16], %21 {strides = array<i32>} : memref<8x2x8x32xbf16, #tpu.memory_space<vmem>>, vector<8x1x8x16xbf16>,
    %22 = vector.extract_strided_slice %11 {offsets = [0, 0, 32], sizes = [8, 8, 16], strides = [1, 1, 1]} : vector<8x8x64xf32> to vector<8x8x16xf32>
    %23 = arith.truncf %22 : vector<8x8x16xf32> to vector<8x8x16xbf16>
    %c0_15 = arith.constant 0 : index
    %c1 = arith.constant 1 : index
    %c0_16 = arith.constant 0 : index
    %c0_17 = arith.constant 0 : index
    %24 = vector.load %arg5[%c0_15, %c1, %c0_16, %c0_17] : memref<8x2x8x32xbf16, #tpu.memory_space<vmem>>, vector<8x1x8x16xbf16>
    %25 = vector.shape_cast %24 : vector<8x1x8x16xbf16> to vector<8x8x16xbf16>
    %26 = vector.shape_cast %23 : vector<8x8x16xbf16> to vector<8x1x8x16xbf16>
    tpu.vector_store %arg5[%c0_15, %c1, %c0_16, %c0_17], %26 {strides = array<i32>} : memref<8x2x8x32xbf16, #tpu.memory_space<vmem>>, vector<8x1x8x16xbf16>,
    %27 = vector.extract_strided_slice %11 {offsets = [0, 0, 48], sizes = [8, 8, 16], strides = [1, 1, 1]} : vector<8x8x64xf32> to vector<8x8x16xf32>
    %28 = arith.truncf %27 : vector<8x8x16xf32> to vector<8x8x16xbf16>
    %c0_18 = arith.constant 0 : index
    %c1_19 = arith.constant 1 : index
    %c0_20 = arith.constant 0 : index
    %c16_21 = arith.constant 16 : index
    %29 = vector.load %arg5[%c0_18, %c1_19, %c0_20, %c16_21] : memref<8x2x8x32xbf16, #tpu.memory_space<vmem>>, vector<8x1x8x16xbf16>
    %30 = vector.shape_cast %29 : vector<8x1x8x16xbf16> to vector<8x8x16xbf16>
    %31 = vector.shape_cast %28 : vector<8x8x16xbf16> to vector<8x1x8x16xbf16>
    tpu.vector_store %arg5[%c0_18, %c1_19, %c0_20, %c16_21], %31 {strides = array<i32>} : memref<8x2x8x32xbf16, #tpu.memory_space<vmem>>, vector<8x1x8x16xbf16>,
    return
  }
  func.func @transform_0(%arg0: i32, %arg1: i32) -> (i32, i32, i32, i32) {
    %c0_i32 = arith.constant 0 : i32
    %c0_i32_0 = arith.constant 0 : i32
    %c0_i32_1 = arith.constant 0 : i32
    return %arg0, %arg1, %c0_i32, %c0_i32_0 : i32, i32, i32, i32
  }
  func.func @transform_1(%arg0: i32, %arg1: i32) -> (i32, i32) {
    %c0_i32 = arith.constant 0 : i32
    %c0_i32_0 = arith.constant 0 : i32
    %c0_i32_1 = arith.constant 0 : i32
    return %c0_i32, %c0_i32_0 : i32, i32
  }
  func.func @transform_2(%arg0: i32, %arg1: i32) -> (i32, i32) {
    %c0_i32 = arith.constant 0 : i32
    %c0_i32_0 = arith.constant 0 : i32
    %c0_i32_1 = arith.constant 0 : i32
    return %c0_i32, %c0_i32_0 : i32, i32
  }
  func.func @transform_3(%arg0: i32, %arg1: i32) -> (i32, i32, i32, i32) {
    %c1_i32 = arith.constant 1 : i32
    %0 = arith.muli %arg0, %c1_i32 : i32
    %1 = arith.addi %0, %arg1 : i32
    %c0_i32 = arith.constant 0 : i32
    %c0_i32_0 = arith.constant 0 : i32
    %c0_i32_1 = arith.constant 0 : i32
    %c0_i32_2 = arith.constant 0 : i32
    return %1, %c0_i32, %c0_i32_0, %c0_i32_1 : i32, i32, i32, i32
  }
}

module attributes {stable_mosaic.version = 11 : i64} {
  func.func @_conv3x3_relu_bn_kernel(%arg0: i32, %arg1: memref<1x16x16x32xbf16, #tpu.memory_space<vmem>>, %arg2: memref<288x32xbf16, #tpu.memory_space<vmem>>, %arg3: memref<1x32xf32, #tpu.memory_space<vmem>>, %arg4: memref<1x32xf32, #tpu.memory_space<vmem>>, %arg5: memref<1x16x16x32xf32, #tpu.memory_space<vmem>>, %arg6: memref<18x18x32xbf16, #tpu.memory_space<vmem>>, %arg7: memref<256x288xbf16, #tpu.memory_space<vmem>>) attributes {dimension_semantics = [#tpu.dimension_semantics<parallel>], iteration_bounds = array<i64: 2>, scalar_prefetch = 0 : i64, scratch_operands = 2 : i64, tpu.core_type = #tpu.core_type<tc>, window_params = [{transform_indices = @transform_0, window_bounds = array<i64: 1, 16, 16, 32>}, {pipeline_mode = #tpu.pipeline_mode<synchronous>, transform_indices = @transform_1, window_bounds = array<i64: 288, 32>}, {pipeline_mode = #tpu.pipeline_mode<synchronous>, transform_indices = @transform_2, window_bounds = array<i64: 1, 32>}, {pipeline_mode = #tpu.pipeline_mode<synchronous>, transform_indices = @transform_3, window_bounds = array<i64: 1, 32>}, {transform_indices = @transform_4, window_bounds = array<i64: 1, 16, 16, 32>}]} {
    %cst = arith.constant 0.000000e+00 : bf16
    %0 = vector.broadcast %cst : bf16 to vector<18x18x32xbf16>
    %c0 = arith.constant 0 : index
    %c0_0 = arith.constant 0 : index
    %c0_1 = arith.constant 0 : index
    %1 = vector.load %arg6[%c0, %c0_0, %c0_1] : memref<18x18x32xbf16, #tpu.memory_space<vmem>>, vector<18x18x32xbf16>
    tpu.vector_store %arg6[%c0, %c0_0, %c0_1], %0 {strides = array<i32>} : memref<18x18x32xbf16, #tpu.memory_space<vmem>>, vector<18x18x32xbf16>,
    %c0_2 = arith.constant 0 : index
    %c0_3 = arith.constant 0 : index
    %c0_4 = arith.constant 0 : index
    %c0_5 = arith.constant 0 : index
    %2 = vector.load %arg1[%c0_2, %c0_3, %c0_4, %c0_5] : memref<1x16x16x32xbf16, #tpu.memory_space<vmem>>, vector<1x16x16x32xbf16>
    %3 = vector.shape_cast %2 : vector<1x16x16x32xbf16> to vector<16x16x32xbf16>
    %c1 = arith.constant 1 : index
    %c1_6 = arith.constant 1 : index
    %c0_7 = arith.constant 0 : index
    %4 = vector.load %arg6[%c1, %c1_6, %c0_7] : memref<18x18x32xbf16, #tpu.memory_space<vmem>>, vector<16x16x32xbf16>
    tpu.vector_store %arg6[%c1, %c1_6, %c0_7], %3 {strides = array<i32>} : memref<18x18x32xbf16, #tpu.memory_space<vmem>>, vector<16x16x32xbf16>,
    %c0_8 = arith.constant 0 : index
    %c0_9 = arith.constant 0 : index
    %c0_10 = arith.constant 0 : index
    %5 = vector.load %arg6[%c0_8, %c0_9, %c0_10] : memref<18x18x32xbf16, #tpu.memory_space<vmem>>, vector<18x18x32xbf16>
    %6 = vector.extract_strided_slice %5 {offsets = [0, 0, 0], sizes = [16, 16, 32], strides = [1, 1, 1]} : vector<18x18x32xbf16> to vector<16x16x32xbf16>
    %7 = vector.shape_cast %6 : vector<16x16x32xbf16> to vector<256x32xbf16>
    %c0_11 = arith.constant 0 : index
    %c0_12 = arith.constant 0 : index
    %8 = vector.load %arg7[%c0_11, %c0_12] : memref<256x288xbf16, #tpu.memory_space<vmem>>, vector<256x32xbf16>
    tpu.vector_store %arg7[%c0_11, %c0_12], %7 {strides = array<i32>} : memref<256x288xbf16, #tpu.memory_space<vmem>>, vector<256x32xbf16>,
    %9 = vector.extract_strided_slice %5 {offsets = [0, 1, 0], sizes = [16, 16, 32], strides = [1, 1, 1]} : vector<18x18x32xbf16> to vector<16x16x32xbf16>
    %10 = vector.shape_cast %9 : vector<16x16x32xbf16> to vector<256x32xbf16>
    %c0_13 = arith.constant 0 : index
    %c32 = arith.constant 32 : index
    %11 = vector.load %arg7[%c0_13, %c32] : memref<256x288xbf16, #tpu.memory_space<vmem>>, vector<256x32xbf16>
    tpu.vector_store %arg7[%c0_13, %c32], %10 {strides = array<i32>} : memref<256x288xbf16, #tpu.memory_space<vmem>>, vector<256x32xbf16>,
    %12 = vector.extract_strided_slice %5 {offsets = [0, 2, 0], sizes = [16, 16, 32], strides = [1, 1, 1]} : vector<18x18x32xbf16> to vector<16x16x32xbf16>
    %13 = vector.shape_cast %12 : vector<16x16x32xbf16> to vector<256x32xbf16>
    %c0_14 = arith.constant 0 : index
    %c64 = arith.constant 64 : index
    %14 = vector.load %arg7[%c0_14, %c64] : memref<256x288xbf16, #tpu.memory_space<vmem>>, vector<256x32xbf16>
    tpu.vector_store %arg7[%c0_14, %c64], %13 {strides = array<i32>} : memref<256x288xbf16, #tpu.memory_space<vmem>>, vector<256x32xbf16>,
    %15 = vector.extract_strided_slice %5 {offsets = [1, 0, 0], sizes = [16, 16, 32], strides = [1, 1, 1]} : vector<18x18x32xbf16> to vector<16x16x32xbf16>
    %16 = vector.shape_cast %15 : vector<16x16x32xbf16> to vector<256x32xbf16>
    %c0_15 = arith.constant 0 : index
    %c96 = arith.constant 96 : index
    %17 = vector.load %arg7[%c0_15, %c96] : memref<256x288xbf16, #tpu.memory_space<vmem>>, vector<256x32xbf16>
    tpu.vector_store %arg7[%c0_15, %c96], %16 {strides = array<i32>} : memref<256x288xbf16, #tpu.memory_space<vmem>>, vector<256x32xbf16>,
    %18 = vector.extract_strided_slice %5 {offsets = [1, 1, 0], sizes = [16, 16, 32], strides = [1, 1, 1]} : vector<18x18x32xbf16> to vector<16x16x32xbf16>
    %19 = vector.shape_cast %18 : vector<16x16x32xbf16> to vector<256x32xbf16>
    %c0_16 = arith.constant 0 : index
    %c128 = arith.constant 128 : index
    %20 = vector.load %arg7[%c0_16, %c128] : memref<256x288xbf16, #tpu.memory_space<vmem>>, vector<256x32xbf16>
    tpu.vector_store %arg7[%c0_16, %c128], %19 {strides = array<i32>} : memref<256x288xbf16, #tpu.memory_space<vmem>>, vector<256x32xbf16>,
    %21 = vector.extract_strided_slice %5 {offsets = [1, 2, 0], sizes = [16, 16, 32], strides = [1, 1, 1]} : vector<18x18x32xbf16> to vector<16x16x32xbf16>
    %22 = vector.shape_cast %21 : vector<16x16x32xbf16> to vector<256x32xbf16>
    %c0_17 = arith.constant 0 : index
    %c160 = arith.constant 160 : index
    %23 = vector.load %arg7[%c0_17, %c160] : memref<256x288xbf16, #tpu.memory_space<vmem>>, vector<256x32xbf16>
    tpu.vector_store %arg7[%c0_17, %c160], %22 {strides = array<i32>} : memref<256x288xbf16, #tpu.memory_space<vmem>>, vector<256x32xbf16>,
    %24 = vector.extract_strided_slice %5 {offsets = [2, 0, 0], sizes = [16, 16, 32], strides = [1, 1, 1]} : vector<18x18x32xbf16> to vector<16x16x32xbf16>
    %25 = vector.shape_cast %24 : vector<16x16x32xbf16> to vector<256x32xbf16>
    %c0_18 = arith.constant 0 : index
    %c192 = arith.constant 192 : index
    %26 = vector.load %arg7[%c0_18, %c192] : memref<256x288xbf16, #tpu.memory_space<vmem>>, vector<256x32xbf16>
    tpu.vector_store %arg7[%c0_18, %c192], %25 {strides = array<i32>} : memref<256x288xbf16, #tpu.memory_space<vmem>>, vector<256x32xbf16>,
    %27 = vector.extract_strided_slice %5 {offsets = [2, 1, 0], sizes = [16, 16, 32], strides = [1, 1, 1]} : vector<18x18x32xbf16> to vector<16x16x32xbf16>
    %28 = vector.shape_cast %27 : vector<16x16x32xbf16> to vector<256x32xbf16>
    %c0_19 = arith.constant 0 : index
    %c224 = arith.constant 224 : index
    %29 = vector.load %arg7[%c0_19, %c224] : memref<256x288xbf16, #tpu.memory_space<vmem>>, vector<256x32xbf16>
    tpu.vector_store %arg7[%c0_19, %c224], %28 {strides = array<i32>} : memref<256x288xbf16, #tpu.memory_space<vmem>>, vector<256x32xbf16>,
    %30 = vector.extract_strided_slice %5 {offsets = [2, 2, 0], sizes = [16, 16, 32], strides = [1, 1, 1]} : vector<18x18x32xbf16> to vector<16x16x32xbf16>
    %31 = vector.shape_cast %30 : vector<16x16x32xbf16> to vector<256x32xbf16>
    %c0_20 = arith.constant 0 : index
    %c256 = arith.constant 256 : index
    %32 = vector.load %arg7[%c0_20, %c256] : memref<256x288xbf16, #tpu.memory_space<vmem>>, vector<256x32xbf16>
    tpu.vector_store %arg7[%c0_20, %c256], %31 {strides = array<i32>} : memref<256x288xbf16, #tpu.memory_space<vmem>>, vector<256x32xbf16>,
    %c0_21 = arith.constant 0 : index
    %c0_22 = arith.constant 0 : index
    %33 = vector.load %arg7[%c0_21, %c0_22] : memref<256x288xbf16, #tpu.memory_space<vmem>>, vector<256x288xbf16>
    %c0_23 = arith.constant 0 : index
    %c0_24 = arith.constant 0 : index
    %34 = vector.load %arg2[%c0_23, %c0_24] : memref<288x32xbf16, #tpu.memory_space<vmem>>, vector<288x32xbf16>
    %cst_25 = arith.constant dense<0.000000e+00> : vector<256x32xf32>
    %35 = tpu.matmul %33, %34, %cst_25 {dimension_numbers = #tpu.dot_dimension_numbers<[1], [0], [0], [1], [0, 0, 1, 1], [], []>} : vector<256x288xbf16>, vector<288x32xbf16>, vector<256x32xf32> -> vector<256x32xf32>
    %cst_26 = arith.constant 0.000000e+00 : f32
    %36 = vector.broadcast %cst_26 : f32 to vector<256x32xf32>
    %37 = arith.maximumf %35, %36 : vector<256x32xf32>
    %c0_27 = arith.constant 0 : index
    %c0_28 = arith.constant 0 : index
    %38 = vector.load %arg3[%c0_27, %c0_28] : memref<1x32xf32, #tpu.memory_space<vmem>>, vector<1x32xf32>
    %39 = vector.broadcast %38 : vector<1x32xf32> to vector<256x32xf32>
    %40 = arith.mulf %37, %39 : vector<256x32xf32>
    %c0_29 = arith.constant 0 : index
    %c0_30 = arith.constant 0 : index
    %41 = vector.load %arg4[%c0_29, %c0_30] : memref<1x32xf32, #tpu.memory_space<vmem>>, vector<1x32xf32>
    %42 = vector.broadcast %41 : vector<1x32xf32> to vector<256x32xf32>
    %43 = arith.addf %40, %42 : vector<256x32xf32>
    %44 = vector.shape_cast %43 : vector<256x32xf32> to vector<16x16x32xf32>
    %c0_31 = arith.constant 0 : index
    %c0_32 = arith.constant 0 : index
    %c0_33 = arith.constant 0 : index
    %c0_34 = arith.constant 0 : index
    %45 = vector.load %arg5[%c0_31, %c0_32, %c0_33, %c0_34] : memref<1x16x16x32xf32, #tpu.memory_space<vmem>>, vector<1x16x16x32xf32>
    %46 = vector.shape_cast %45 : vector<1x16x16x32xf32> to vector<16x16x32xf32>
    %47 = vector.shape_cast %44 : vector<16x16x32xf32> to vector<1x16x16x32xf32>
    tpu.vector_store %arg5[%c0_31, %c0_32, %c0_33, %c0_34], %47 {strides = array<i32>} : memref<1x16x16x32xf32, #tpu.memory_space<vmem>>, vector<1x16x16x32xf32>,
    return
  }
  func.func @transform_0(%arg0: i32) -> (i32, i32, i32, i32) {
    %c0_i32 = arith.constant 0 : i32
    %c0_i32_0 = arith.constant 0 : i32
    %c0_i32_1 = arith.constant 0 : i32
    %c0_i32_2 = arith.constant 0 : i32
    return %arg0, %c0_i32, %c0_i32_0, %c0_i32_1 : i32, i32, i32, i32
  }
  func.func @transform_1(%arg0: i32) -> (i32, i32) {
    %c0_i32 = arith.constant 0 : i32
    %c0_i32_0 = arith.constant 0 : i32
    %c0_i32_1 = arith.constant 0 : i32
    return %c0_i32, %c0_i32_0 : i32, i32
  }
  func.func @transform_2(%arg0: i32) -> (i32, i32) {
    %c0_i32 = arith.constant 0 : i32
    %c0_i32_0 = arith.constant 0 : i32
    %c0_i32_1 = arith.constant 0 : i32
    return %c0_i32, %c0_i32_0 : i32, i32
  }
  func.func @transform_3(%arg0: i32) -> (i32, i32) {
    %c0_i32 = arith.constant 0 : i32
    %c0_i32_0 = arith.constant 0 : i32
    %c0_i32_1 = arith.constant 0 : i32
    return %c0_i32, %c0_i32_0 : i32, i32
  }
  func.func @transform_4(%arg0: i32) -> (i32, i32, i32, i32) {
    %c0_i32 = arith.constant 0 : i32
    %c0_i32_0 = arith.constant 0 : i32
    %c0_i32_1 = arith.constant 0 : i32
    %c0_i32_2 = arith.constant 0 : i32
    return %arg0, %c0_i32, %c0_i32_0, %c0_i32_1 : i32, i32, i32, i32
  }
}

module attributes {stable_mosaic.version = 11 : i64} {
  func.func @_fused_cat_conv3x3_kernel(%arg0: i32, %arg1: memref<1x16x16x16xbf16, #tpu.memory_space<vmem>>, %arg2: memref<1x16x16x16xf32, #tpu.memory_space<vmem>>, %arg3: memref<1x1x16xf32, #tpu.memory_space<vmem>>, %arg4: memref<1x1x16xf32, #tpu.memory_space<vmem>>, %arg5: memref<288x32xbf16, #tpu.memory_space<vmem>>, %arg6: memref<1x32xf32, #tpu.memory_space<vmem>>, %arg7: memref<1x32xf32, #tpu.memory_space<vmem>>, %arg8: memref<1x16x16x32xbf16, #tpu.memory_space<vmem>>, %arg9: memref<18x18x32xbf16, #tpu.memory_space<vmem>>, %arg10: memref<256x288xbf16, #tpu.memory_space<vmem>>) attributes {dimension_semantics = [#tpu.dimension_semantics<parallel>], iteration_bounds = array<i64: 2>, scalar_prefetch = 0 : i64, scratch_operands = 2 : i64, tpu.core_type = #tpu.core_type<tc>, window_params = [{transform_indices = @transform_0, window_bounds = array<i64: 1, 16, 16, 16>}, {transform_indices = @transform_1, window_bounds = array<i64: 1, 16, 16, 16>}, {pipeline_mode = #tpu.pipeline_mode<synchronous>, transform_indices = @transform_2, window_bounds = array<i64: 1, 1, 16>}, {pipeline_mode = #tpu.pipeline_mode<synchronous>, transform_indices = @transform_3, window_bounds = array<i64: 1, 1, 16>}, {pipeline_mode = #tpu.pipeline_mode<synchronous>, transform_indices = @transform_4, window_bounds = array<i64: 288, 32>}, {pipeline_mode = #tpu.pipeline_mode<synchronous>, transform_indices = @transform_5, window_bounds = array<i64: 1, 32>}, {pipeline_mode = #tpu.pipeline_mode<synchronous>, transform_indices = @transform_6, window_bounds = array<i64: 1, 32>}, {transform_indices = @transform_7, window_bounds = array<i64: 1, 16, 16, 32>}]} {
    %c0 = arith.constant 0 : index
    %c0_0 = arith.constant 0 : index
    %c0_1 = arith.constant 0 : index
    %c0_2 = arith.constant 0 : index
    %0 = vector.load %arg1[%c0, %c0_0, %c0_1, %c0_2] : memref<1x16x16x16xbf16, #tpu.memory_space<vmem>>, vector<1x16x16x16xbf16>
    %1 = vector.shape_cast %0 : vector<1x16x16x16xbf16> to vector<16x16x16xbf16>
    %2 = arith.extf %1 : vector<16x16x16xbf16> to vector<16x16x16xf32>
    %cst = arith.constant 0.000000e+00 : f32
    %3 = vector.broadcast %cst : f32 to vector<16x16x16xf32>
    %4 = arith.maximumf %2, %3 : vector<16x16x16xf32>
    %c0_3 = arith.constant 0 : index
    %c0_4 = arith.constant 0 : index
    %c0_5 = arith.constant 0 : index
    %c0_6 = arith.constant 0 : index
    %5 = vector.load %arg2[%c0_3, %c0_4, %c0_5, %c0_6] : memref<1x16x16x16xf32, #tpu.memory_space<vmem>>, vector<1x16x16x16xf32>
    %6 = vector.shape_cast %5 : vector<1x16x16x16xf32> to vector<16x16x16xf32>
    %c0_7 = arith.constant 0 : index
    %c0_8 = arith.constant 0 : index
    %c0_9 = arith.constant 0 : index
    %7 = vector.load %arg3[%c0_7, %c0_8, %c0_9] : memref<1x1x16xf32, #tpu.memory_space<vmem>>, vector<1x1x16xf32>
    %8 = vector.broadcast %7 : vector<1x1x16xf32> to vector<16x16x16xf32>
    %9 = arith.mulf %6, %8 : vector<16x16x16xf32>
    %c0_10 = arith.constant 0 : index
    %c0_11 = arith.constant 0 : index
    %c0_12 = arith.constant 0 : index
    %10 = vector.load %arg4[%c0_10, %c0_11, %c0_12] : memref<1x1x16xf32, #tpu.memory_space<vmem>>, vector<1x1x16xf32>
    %11 = vector.broadcast %10 : vector<1x1x16xf32> to vector<16x16x16xf32>
    %12 = arith.addf %9, %11 : vector<16x16x16xf32>
    %cst_13 = arith.constant 0.000000e+00 : f32
    %13 = vector.broadcast %cst_13 : f32 to vector<16x16x16xf32>
    %14 = arith.maximumf %12, %13 : vector<16x16x16xf32>
    %cst_14 = arith.constant 0.000000e+00 : bf16
    %15 = vector.broadcast %cst_14 : bf16 to vector<18x18x32xbf16>
    %c0_15 = arith.constant 0 : index
    %c0_16 = arith.constant 0 : index
    %c0_17 = arith.constant 0 : index
    %16 = vector.load %arg9[%c0_15, %c0_16, %c0_17] : memref<18x18x32xbf16, #tpu.memory_space<vmem>>, vector<18x18x32xbf16>
    tpu.vector_store %arg9[%c0_15, %c0_16, %c0_17], %15 {strides = array<i32>} : memref<18x18x32xbf16, #tpu.memory_space<vmem>>, vector<18x18x32xbf16>,
    %17 = arith.truncf %4 : vector<16x16x16xf32> to vector<16x16x16xbf16>
    %c1 = arith.constant 1 : index
    %c1_18 = arith.constant 1 : index
    %c0_19 = arith.constant 0 : index
    %18 = vector.load %arg9[%c1, %c1_18, %c0_19] : memref<18x18x32xbf16, #tpu.memory_space<vmem>>, vector<16x16x16xbf16>
    tpu.vector_store %arg9[%c1, %c1_18, %c0_19], %17 {strides = array<i32>} : memref<18x18x32xbf16, #tpu.memory_space<vmem>>, vector<16x16x16xbf16>,
    %19 = arith.truncf %14 : vector<16x16x16xf32> to vector<16x16x16xbf16>
    %c1_20 = arith.constant 1 : index
    %c1_21 = arith.constant 1 : index
    %c16 = arith.constant 16 : index
    %20 = vector.load %arg9[%c1_20, %c1_21, %c16] : memref<18x18x32xbf16, #tpu.memory_space<vmem>>, vector<16x16x16xbf16>
    tpu.vector_store %arg9[%c1_20, %c1_21, %c16], %19 {strides = array<i32>} : memref<18x18x32xbf16, #tpu.memory_space<vmem>>, vector<16x16x16xbf16>,
    %c0_22 = arith.constant 0 : index
    %c0_23 = arith.constant 0 : index
    %c0_24 = arith.constant 0 : index
    %21 = vector.load %arg9[%c0_22, %c0_23, %c0_24] : memref<18x18x32xbf16, #tpu.memory_space<vmem>>, vector<18x18x32xbf16>
    %22 = vector.extract_strided_slice %21 {offsets = [0, 0, 0], sizes = [16, 16, 32], strides = [1, 1, 1]} : vector<18x18x32xbf16> to vector<16x16x32xbf16>
    %23 = vector.shape_cast %22 : vector<16x16x32xbf16> to vector<256x32xbf16>
    %c0_25 = arith.constant 0 : index
    %c0_26 = arith.constant 0 : index
    %24 = vector.load %arg10[%c0_25, %c0_26] : memref<256x288xbf16, #tpu.memory_space<vmem>>, vector<256x32xbf16>
    tpu.vector_store %arg10[%c0_25, %c0_26], %23 {strides = array<i32>} : memref<256x288xbf16, #tpu.memory_space<vmem>>, vector<256x32xbf16>,
    %25 = vector.extract_strided_slice %21 {offsets = [0, 1, 0], sizes = [16, 16, 32], strides = [1, 1, 1]} : vector<18x18x32xbf16> to vector<16x16x32xbf16>
    %26 = vector.shape_cast %25 : vector<16x16x32xbf16> to vector<256x32xbf16>
    %c0_27 = arith.constant 0 : index
    %c32 = arith.constant 32 : index
    %27 = vector.load %arg10[%c0_27, %c32] : memref<256x288xbf16, #tpu.memory_space<vmem>>, vector<256x32xbf16>
    tpu.vector_store %arg10[%c0_27, %c32], %26 {strides = array<i32>} : memref<256x288xbf16, #tpu.memory_space<vmem>>, vector<256x32xbf16>,
    %28 = vector.extract_strided_slice %21 {offsets = [0, 2, 0], sizes = [16, 16, 32], strides = [1, 1, 1]} : vector<18x18x32xbf16> to vector<16x16x32xbf16>
    %29 = vector.shape_cast %28 : vector<16x16x32xbf16> to vector<256x32xbf16>
    %c0_28 = arith.constant 0 : index
    %c64 = arith.constant 64 : index
    %30 = vector.load %arg10[%c0_28, %c64] : memref<256x288xbf16, #tpu.memory_space<vmem>>, vector<256x32xbf16>
    tpu.vector_store %arg10[%c0_28, %c64], %29 {strides = array<i32>} : memref<256x288xbf16, #tpu.memory_space<vmem>>, vector<256x32xbf16>,
    %31 = vector.extract_strided_slice %21 {offsets = [1, 0, 0], sizes = [16, 16, 32], strides = [1, 1, 1]} : vector<18x18x32xbf16> to vector<16x16x32xbf16>
    %32 = vector.shape_cast %31 : vector<16x16x32xbf16> to vector<256x32xbf16>
    %c0_29 = arith.constant 0 : index
    %c96 = arith.constant 96 : index
    %33 = vector.load %arg10[%c0_29, %c96] : memref<256x288xbf16, #tpu.memory_space<vmem>>, vector<256x32xbf16>
    tpu.vector_store %arg10[%c0_29, %c96], %32 {strides = array<i32>} : memref<256x288xbf16, #tpu.memory_space<vmem>>, vector<256x32xbf16>,
    %34 = vector.extract_strided_slice %21 {offsets = [1, 1, 0], sizes = [16, 16, 32], strides = [1, 1, 1]} : vector<18x18x32xbf16> to vector<16x16x32xbf16>
    %35 = vector.shape_cast %34 : vector<16x16x32xbf16> to vector<256x32xbf16>
    %c0_30 = arith.constant 0 : index
    %c128 = arith.constant 128 : index
    %36 = vector.load %arg10[%c0_30, %c128] : memref<256x288xbf16, #tpu.memory_space<vmem>>, vector<256x32xbf16>
    tpu.vector_store %arg10[%c0_30, %c128], %35 {strides = array<i32>} : memref<256x288xbf16, #tpu.memory_space<vmem>>, vector<256x32xbf16>,
    %37 = vector.extract_strided_slice %21 {offsets = [1, 2, 0], sizes = [16, 16, 32], strides = [1, 1, 1]} : vector<18x18x32xbf16> to vector<16x16x32xbf16>
    %38 = vector.shape_cast %37 : vector<16x16x32xbf16> to vector<256x32xbf16>
    %c0_31 = arith.constant 0 : index
    %c160 = arith.constant 160 : index
    %39 = vector.load %arg10[%c0_31, %c160] : memref<256x288xbf16, #tpu.memory_space<vmem>>, vector<256x32xbf16>
    tpu.vector_store %arg10[%c0_31, %c160], %38 {strides = array<i32>} : memref<256x288xbf16, #tpu.memory_space<vmem>>, vector<256x32xbf16>,
    %40 = vector.extract_strided_slice %21 {offsets = [2, 0, 0], sizes = [16, 16, 32], strides = [1, 1, 1]} : vector<18x18x32xbf16> to vector<16x16x32xbf16>
    %41 = vector.shape_cast %40 : vector<16x16x32xbf16> to vector<256x32xbf16>
    %c0_32 = arith.constant 0 : index
    %c192 = arith.constant 192 : index
    %42 = vector.load %arg10[%c0_32, %c192] : memref<256x288xbf16, #tpu.memory_space<vmem>>, vector<256x32xbf16>
    tpu.vector_store %arg10[%c0_32, %c192], %41 {strides = array<i32>} : memref<256x288xbf16, #tpu.memory_space<vmem>>, vector<256x32xbf16>,
    %43 = vector.extract_strided_slice %21 {offsets = [2, 1, 0], sizes = [16, 16, 32], strides = [1, 1, 1]} : vector<18x18x32xbf16> to vector<16x16x32xbf16>
    %44 = vector.shape_cast %43 : vector<16x16x32xbf16> to vector<256x32xbf16>
    %c0_33 = arith.constant 0 : index
    %c224 = arith.constant 224 : index
    %45 = vector.load %arg10[%c0_33, %c224] : memref<256x288xbf16, #tpu.memory_space<vmem>>, vector<256x32xbf16>
    tpu.vector_store %arg10[%c0_33, %c224], %44 {strides = array<i32>} : memref<256x288xbf16, #tpu.memory_space<vmem>>, vector<256x32xbf16>,
    %46 = vector.extract_strided_slice %21 {offsets = [2, 2, 0], sizes = [16, 16, 32], strides = [1, 1, 1]} : vector<18x18x32xbf16> to vector<16x16x32xbf16>
    %47 = vector.shape_cast %46 : vector<16x16x32xbf16> to vector<256x32xbf16>
    %c0_34 = arith.constant 0 : index
    %c256 = arith.constant 256 : index
    %48 = vector.load %arg10[%c0_34, %c256] : memref<256x288xbf16, #tpu.memory_space<vmem>>, vector<256x32xbf16>
    tpu.vector_store %arg10[%c0_34, %c256], %47 {strides = array<i32>} : memref<256x288xbf16, #tpu.memory_space<vmem>>, vector<256x32xbf16>,
    %c0_35 = arith.constant 0 : index
    %c0_36 = arith.constant 0 : index
    %49 = vector.load %arg10[%c0_35, %c0_36] : memref<256x288xbf16, #tpu.memory_space<vmem>>, vector<256x288xbf16>
    %c0_37 = arith.constant 0 : index
    %c0_38 = arith.constant 0 : index
    %50 = vector.load %arg5[%c0_37, %c0_38] : memref<288x32xbf16, #tpu.memory_space<vmem>>, vector<288x32xbf16>
    %cst_39 = arith.constant dense<0.000000e+00> : vector<256x32xf32>
    %51 = tpu.matmul %49, %50, %cst_39 {dimension_numbers = #tpu.dot_dimension_numbers<[1], [0], [0], [1], [0, 0, 1, 1], [], []>} : vector<256x288xbf16>, vector<288x32xbf16>, vector<256x32xf32> -> vector<256x32xf32>
    %cst_40 = arith.constant 0.000000e+00 : f32
    %52 = vector.broadcast %cst_40 : f32 to vector<256x32xf32>
    %53 = arith.maximumf %51, %52 : vector<256x32xf32>
    %c0_41 = arith.constant 0 : index
    %c0_42 = arith.constant 0 : index
    %54 = vector.load %arg6[%c0_41, %c0_42] : memref<1x32xf32, #tpu.memory_space<vmem>>, vector<1x32xf32>
    %55 = vector.broadcast %54 : vector<1x32xf32> to vector<256x32xf32>
    %56 = arith.mulf %53, %55 : vector<256x32xf32>
    %c0_43 = arith.constant 0 : index
    %c0_44 = arith.constant 0 : index
    %57 = vector.load %arg7[%c0_43, %c0_44] : memref<1x32xf32, #tpu.memory_space<vmem>>, vector<1x32xf32>
    %58 = vector.broadcast %57 : vector<1x32xf32> to vector<256x32xf32>
    %59 = arith.addf %56, %58 : vector<256x32xf32>
    %60 = vector.shape_cast %59 : vector<256x32xf32> to vector<16x16x32xf32>
    %61 = arith.truncf %60 : vector<16x16x32xf32> to vector<16x16x32xbf16>
    %c0_45 = arith.constant 0 : index
    %c0_46 = arith.constant 0 : index
    %c0_47 = arith.constant 0 : index
    %c0_48 = arith.constant 0 : index
    %62 = vector.load %arg8[%c0_45, %c0_46, %c0_47, %c0_48] : memref<1x16x16x32xbf16, #tpu.memory_space<vmem>>, vector<1x16x16x32xbf16>
    %63 = vector.shape_cast %62 : vector<1x16x16x32xbf16> to vector<16x16x32xbf16>
    %64 = vector.shape_cast %61 : vector<16x16x32xbf16> to vector<1x16x16x32xbf16>
    tpu.vector_store %arg8[%c0_45, %c0_46, %c0_47, %c0_48], %64 {strides = array<i32>} : memref<1x16x16x32xbf16, #tpu.memory_space<vmem>>, vector<1x16x16x32xbf16>,
    return
  }
  func.func @transform_0(%arg0: i32) -> (i32, i32, i32, i32) {
    %c0_i32 = arith.constant 0 : i32
    %c0_i32_0 = arith.constant 0 : i32
    %c0_i32_1 = arith.constant 0 : i32
    %c0_i32_2 = arith.constant 0 : i32
    return %arg0, %c0_i32, %c0_i32_0, %c0_i32_1 : i32, i32, i32, i32
  }
  func.func @transform_1(%arg0: i32) -> (i32, i32, i32, i32) {
    %c0_i32 = arith.constant 0 : i32
    %c0_i32_0 = arith.constant 0 : i32
    %c0_i32_1 = arith.constant 0 : i32
    %c0_i32_2 = arith.constant 0 : i32
    return %arg0, %c0_i32, %c0_i32_0, %c0_i32_1 : i32, i32, i32, i32
  }
  func.func @transform_2(%arg0: i32) -> (i32, i32, i32) {
    %c0_i32 = arith.constant 0 : i32
    %c0_i32_0 = arith.constant 0 : i32
    %c0_i32_1 = arith.constant 0 : i32
    %c0_i32_2 = arith.constant 0 : i32
    return %c0_i32, %c0_i32_0, %c0_i32_1 : i32, i32, i32
  }
  func.func @transform_3(%arg0: i32) -> (i32, i32, i32) {
    %c0_i32 = arith.constant 0 : i32
    %c0_i32_0 = arith.constant 0 : i32
    %c0_i32_1 = arith.constant 0 : i32
    %c0_i32_2 = arith.constant 0 : i32
    return %c0_i32, %c0_i32_0, %c0_i32_1 : i32, i32, i32
  }
  func.func @transform_4(%arg0: i32) -> (i32, i32) {
    %c0_i32 = arith.constant 0 : i32
    %c0_i32_0 = arith.constant 0 : i32
    %c0_i32_1 = arith.constant 0 : i32
    return %c0_i32, %c0_i32_0 : i32, i32
  }
  func.func @transform_5(%arg0: i32) -> (i32, i32) {
    %c0_i32 = arith.constant 0 : i32
    %c0_i32_0 = arith.constant 0 : i32
    %c0_i32_1 = arith.constant 0 : i32
    return %c0_i32, %c0_i32_0 : i32, i32
  }
  func.func @transform_6(%arg0: i32) -> (i32, i32) {
    %c0_i32 = arith.constant 0 : i32
    %c0_i32_0 = arith.constant 0 : i32
    %c0_i32_1 = arith.constant 0 : i32
    return %c0_i32, %c0_i32_0 : i32, i32
  }
  func.func @transform_7(%arg0: i32) -> (i32, i32, i32, i32) {
    %c0_i32 = arith.constant 0 : i32
    %c0_i32_0 = arith.constant 0 : i32
    %c0_i32_1 = arith.constant 0 : i32
    %c0_i32_2 = arith.constant 0 : i32
    return %arg0, %c0_i32, %c0_i32_0, %c0_i32_1 : i32, i32, i32, i32
  }
}

</mosaic_0001>

<llo_original>
// kernel: unet_block_forward.3
$region0: #{unet_block_forward.3}
  #allocation0 [shape = 'u32[]', space=smem, size = 0x4, offset = 0x4, fixed_abs, tag = 'smem constant byte address 0x4 - core index']
  #allocation1 [shape = 'u32[144,128]{1,0:T(1,128)}', space=vmem, size = 0x12000, scoped, tag = 'internal scratch']
  %s0 = inlined_call_operand.vmem [shape: f32[2,8,8,32], index: 0, kind: input, shape index: {}]
  %s1 = inlined_call_operand.vmem [shape: bf16[32,64], index: 1, kind: input, shape index: {}]
  %s2 = inlined_call_operand.vmem [shape: f32[1,64], index: 2, kind: input, shape index: {}]
  %s3 = inlined_call_operand.vmem [shape: bf16[16,2,8,32], index: 3, kind: output, shape index: {}]
  %s4 = sld [smem:[#allocation0]]
  $region45: #{unet_block_forward.3} parent=0
    _
  %s6 = ssub.s32 1, %s4
  %s7 = scalar_select 0, %s6, %s4
  loop: start=0, step=1, limit=4
  $region2: #{unet_block_forward.3} parent=0 // loop_pre_header
    _
  $region3: #{unet_block_forward.3} parent=0 // loop_header
    %s9 = sphi 0, %s13
    %p10 = scmp.ge.s32.totalorder %s9, 4
    %s16 = sphi 0, %s28
    %s17 = sphi 0, %s24
    %s18 = sphi 0, %s16
    %s19 = sphi 0, %s17
    %s20 = sphi 0, %s18
    %s21 = sphi 0, %s19
    %s33 = sphi 0, %s35
    %s36 = sphi 0, %s33
    %s37 = sphi 0, %s36
    %s53 = sphi 0, %s37
    %s57 = sphi 0, %s57
    %s59 = sphi 0, %s57
    %s60 = sphi 0, %s59
    %s74 = sphi 0, %s60
    %s78 = sphi 0, %s78
    %s80 = sphi 0, %s78
    %s81 = sphi 0, %s80
    %s95 = sphi 0, %s81
    %s103 = sphi 0, %s105
    %s106 = sphi 0, %s103
    %s107 = sphi 0, %s106
    %s123 = sphi 0, %s107
  $region4: #{unet_block_forward.3} parent=0 // loop_header_branch
    %12 = sbr.rel (%p10) target = $region8
  $region5: #{unet_block_forward.3} parent=0 // loop_body
    %s14 = ssub.s32 %s9, 1
    %s15 = ssub.s32 %s9, 2
    %s22 = sadd.s32 1, %s17
    %p23 = scmp.ge.s32.totalorder %s22, 1
    %s24 = scalar_select %p23, 0, %s22
    %s25 = sadd.s32 1, %s16
    %s26 = scalar_select %p23, %s25, %s16
    %p27 = scmp.ge.s32.totalorder %s26, 2
    %s28 = scalar_select %p27, 0, %s26
    %s29 = ssub.s32 %s16, %s28
    %s30 = ssub.s32 %s17, %s24
    %s31 = sor.u32 %s29, %s30
    %p32 = scmp.eq.s32.totalorder %s31, 0
    %s34 = sadd.s32 %s33, 1
    %s35 = scalar_select %p32, %s33, %s34
    %p38 = pneg %p32
    %p39 = scmp.eq.s32.totalorder %s9, 1
    %p40 = por %p38, %p39
    %p41 = scmp.ne.s32.totalorder %s33, %s36
    %p42 = scmp.eq.s32.totalorder %s9, 0
    %p43 = por %p41, %p42
    %p44 = scmp.ne.s32.totalorder %s33, %s36
    %p45 = scmp.eq.s32.totalorder %s14, 1
    %p46 = por %p44, %p45
    %p47 = scmp.ne.s32.totalorder %s36, %s37
    %p48 = scmp.eq.s32.totalorder %s14, 0
    %p49 = por %p47, %p48
    %p50 = scmp.ne.s32.totalorder %s36, %s37
    %p51 = scmp.eq.s32.totalorder %s15, 1
    %p52 = por %p50, %p51
    %p54 = scmp.ne.s32.totalorder %s37, %s53
    %p55 = scmp.eq.s32.totalorder %s15, 0
    %p56 = por %p54, %p55
    %s58 = sadd.s32 %s57, 1
    %p61 = scmp.eq.s32.totalorder %s9, 1
    %p62 = scmp.ne.s32.totalorder %s57, %s59
    %p63 = scmp.eq.s32.totalorder %s9, 0
    %p64 = por %p62, %p63
    %p65 = scmp.ne.s32.totalorder %s57, %s59
    %p66 = scmp.eq.s32.totalorder %s14, 1
    %p67 = por %p65, %p66
    %p68 = scmp.ne.s32.totalorder %s59, %s60
    %p69 = scmp.eq.s32.totalorder %s14, 0
    %p70 = por %p68, %p69
    %p71 = scmp.ne.s32.totalorder %s59, %s60
    %p72 = scmp.eq.s32.totalorder %s15, 1
    %p73 = por %p71, %p72
    %p75 = scmp.ne.s32.totalorder %s60, %s74
    %p76 = scmp.eq.s32.totalorder %s15, 0
    %p77 = por %p75, %p76
    %s79 = sadd.s32 %s78, 1
    %p82 = scmp.eq.s32.totalorder %s9, 1
    %p83 = scmp.ne.s32.totalorder %s78, %s80
    %p84 = scmp.eq.s32.totalorder %s9, 0
    %p85 = por %p83, %p84
    %p86 = scmp.ne.s32.totalorder %s78, %s80
    %p87 = scmp.eq.s32.totalorder %s14, 1
    %p88 = por %p86, %p87
    %p89 = scmp.ne.s32.totalorder %s80, %s81
    %p90 = scmp.eq.s32.totalorder %s14, 0
    %p91 = por %p89, %p90
    %p92 = scmp.ne.s32.totalorder %s80, %s81
    %p93 = scmp.eq.s32.totalorder %s15, 1
    %p94 = por %p92, %p93
    %p96 = scmp.ne.s32.totalorder %s81, %s95
    %p97 = scmp.eq.s32.totalorder %s15, 0
    %p98 = por %p96, %p97
    %s99 = sadd.s32 %s16, %s17
    %s100 = sadd.s32 %s28, %s24
    %s101 = ssub.s32 %s99, %s100
    %p102 = scmp.eq.s32.totalorder %s101, 0
    %s104 = sadd.s32 %s103, 1
    %s105 = scalar_select %p102, %s103, %s104
    %p108 = pneg %p102
    %p109 = scmp.eq.s32.totalorder %s9, 1
    %p110 = por %p108, %p109
    %p111 = scmp.ne.s32.totalorder %s103, %s106
    %p112 = scmp.eq.s32.totalorder %s9, 0
    %p113 = por %p111, %p112
    %p114 = scmp.ne.s32.totalorder %s103, %s106
    %p115 = scmp.eq.s32.totalorder %s14, 1
    %p116 = por %p114, %p115
    %p117 = scmp.ne.s32.totalorder %s106, %s107
    %p118 = scmp.eq.s32.totalorder %s14, 0
    %p119 = por %p117, %p118
    %p120 = scmp.ne.s32.totalorder %s106, %s107
    %p121 = scmp.eq.s32.totalorder %s15, 1
    %p122 = por %p120, %p121
    %p124 = scmp.ne.s32.totalorder %s107, %s123
    %p125 = scmp.eq.s32.totalorder %s15, 0
    %p126 = por %p124, %p125
    %p127 = scmp.le.s32.totalorder 1, %s9
    %p128 = scmp.lt.s32.totalorder %s9, 3
    %p129 = pnand %p127, %p128
    %p130 = pneg %p129
    // Predicated region
    $region9: #{unet_block_forward.3} parent=5 // pred_check
      _
    $region10: #{unet_block_forward.3} parent=5 // pred_check_branch
      %132 = sbr.rel (%p129) target = $region12
    $region11: #{unet_block_forward.3} parent=5 // pred_region
      %s133 = ssub.s32 %s9, 1
      // Predicated region
      $region13: #{unet_block_forward.3} parent=11 // pred_check
        %p134 = pneg %p70
      $region14: #{unet_block_forward.3} parent=11 // pred_check_branch
        %136 = sbr.rel (%p134) target = $region16
      $region15: #{unet_block_forward.3} parent=11 // pred_region
        _
      $region16: #{unet_block_forward.3} parent=11 // pred_fallthru
        _
      // Predicated region
      $region17: #{unet_block_forward.3} parent=11 // pred_check
        %p137 = pneg %p91
      $region18: #{unet_block_forward.3} parent=11 // pred_check_branch
        %139 = sbr.rel (%p137) target = $region20
      $region19: #{unet_block_forward.3} parent=11 // pred_region
        _
      $region20: #{unet_block_forward.3} parent=11 // pred_fallthru
        _
    $region12: #{unet_block_forward.3} parent=5 // pred_fallthru
      _
    %p140 = scmp.lt.s32.totalorder %s9, 2
    // Predicated region
    $region21: #{unet_block_forward.3} parent=5 // pred_check
      %p141 = pneg %p140
    $region22: #{unet_block_forward.3} parent=5 // pred_check_branch
      %143 = sbr.rel (%p141) target = $region24
    $region23: #{unet_block_forward.3} parent=5 // pred_region
      // Predicated region
      $region25: #{unet_block_forward.3} parent=23 // pred_check
        %p144 = pneg %p43
      $region26: #{unet_block_forward.3} parent=23 // pred_check_branch
        %146 = sbr.rel (%p144) target = $region28
      $region27: #{unet_block_forward.3} parent=23 // pred_region
        %s147 = smul.u32 8, %s17
        %p148 = scmp.lt.s32.totalorder %s16, 1
        %s149 = scalar_select %p148, %s16, 1
        %p150 = scmp.lt.s32.totalorder %s147, 7
        %s151 = scalar_select %p150, %s147, 7
        %s152 = smul.addr %s149, 8
        %s153 = sadd.s32 %s151, %s152
        %s154 = smul.addr %s153, 8
        %s155 = scalar_lea.vmem %s0, %s154
        %s156 = smul.u32 8, %s17
      $region28: #{unet_block_forward.3} parent=23 // pred_fallthru
        _
    $region24: #{unet_block_forward.3} parent=5 // pred_fallthru
      _
    %p157 = scmp.le.s32.totalorder 1, %s9
    %p158 = scmp.lt.s32.totalorder %s9, 3
    %p159 = pnand %p157, %p158
    %p160 = pneg %p159
    // Predicated region
    $region29: #{unet_block_forward.3} parent=5 // pred_check
      _
    $region30: #{unet_block_forward.3} parent=5 // pred_check_branch
      %162 = sbr.rel (%p159) target = $region32
    $region31: #{unet_block_forward.3} parent=5 // pred_region
      %s163 = ssub.s32 %s9, 1
      %s164 = smul.u32 8, %s19
      %p165 = scmp.lt.s32.totalorder %s18, 1
      %s166 = scalar_select %p165, %s18, 1
      %p167 = scmp.lt.s32.totalorder %s164, 7
      %s168 = scalar_select %p167, %s164, 7
      %s169 = smul.addr %s166, 8
      %s170 = sadd.s32 %s168, %s169
      %s171 = smul.addr %s170, 8
      %s172 = scalar_lea.vmem %s0, %s171
      %p173 = pneg %p49
      %p174 = pneg %p46
      %p175 = pneg %p70
      %p176 = pneg %p67
      %p177 = pneg %p91
      %p178 = pneg %p88
      %p179 = pneg %p119
      %p180 = pneg %p116
      %s181 = sadd.s32 %s18, %s19
      %s182 = smul.u32 8, %s181
      %p183 = scmp.lt.s32.totalorder %s182, 15
      %s184 = scalar_select %p183, %s182, 15
      %s185 = smul.addr %s184, 2
      %s186 = smul.addr %s185, 4
      %s187 = scalar_lea.vmem %s3, %s186
      %s188 = smul.u32 8, %s19
      %p189 = scmp.lt.s32.totalorder %s18, 1
      %s190 = scalar_select %p189, %s18, 1
      %p191 = scmp.lt.s32.totalorder %s188, 7
      %s192 = scalar_select %p191, %s188, 7
      %s193 = smul.addr %s190, 8
      %s194 = sadd.s32 %s192, %s193
      %s195 = smul.addr %s194, 8
      %s196 = scalar_lea.vmem %s0, %s195
      %s197 = smul.u32 8, %s19
      %s198 = sadd.s32 %s18, %s19
      %s199 = smul.u32 8, %s198
      %p200 = scmp.lt.s32.totalorder %s199, 15
      %s201 = scalar_select %p200, %s199, 15
      %s202 = smul.addr %s201, 2
      %s203 = smul.addr %s202, 4
      %s204 = scalar_lea.vmem %s3, %s203
      %s205 = sadd.s32 %s18, %s19
      %s206 = smul.u32 8, %s205
      %v208 = vld [vmem:[%s196] sm:$0xff]
      %v209 = vld [vmem:[%s196 + $0x8] sm:$0xff]
      %v210 = vld [vmem:[%s196 + $0x10] sm:$0xff]
      %v211 = vld [vmem:[%s196 + $0x18] sm:$0xff]
      %v212 = vld [vmem:[%s196 + $0x20] sm:$0xff]
      %v213 = vld [vmem:[%s196 + $0x28] sm:$0xff]
      %v214 = vld [vmem:[%s196 + $0x30] sm:$0xff]
      %v215 = vld [vmem:[%s196 + $0x38] sm:$0xff]
      %v216 = vpack.c.bf16 %v209, %v208
      %v217 = vpack.c.bf16 %v211, %v210
      %v218 = vpack.c.bf16 %v213, %v212
      %v219 = vpack.c.bf16 %v215, %v214
      %v220 = vld [vmem:[%s1] sm:$0xf]
      %v221 = vld [vmem:[%s1 + $0x4] sm:$0xf]
      %v222 = vld [vmem:[%s1 + $0x8] sm:$0xf]
      %v223 = vld [vmem:[%s1 + $0xc] sm:$0xf]
      %v224 = vld [vmem:[%s2] sm:$0x1]
      %v226 = vlaneseq
      %v227 = vshrl.u32 %v226, 7
      %v228 = vsub.s32 0, %v227
      %v229 = vrot.slane %v224, %v228
      %v235 = vunpack.c.l.b16 %v220
      %v236 = vunpack.c.l.b16 %v221
      %v237 = vunpack.c.l.b16 %v222
      %v238 = vunpack.c.l.b16 %v223
      %v239 = vpack.c.b16 %v236, %v235
      %v240 = vpack.c.b16 %v238, %v237
      %vm243 = vcmask 261120
      %v245 = vsel %vm243, %v216, 0
      %v248 = vsel %vm243, %v217, 0
      %v251 = vsel %vm243, %v218, 0
      %v254 = vsel %vm243, %v219, 0
      %256 = vmatprep.subr.bf16.mxu0 0
      %257 = vmatpush1.bf16.msra.mxu0 %v239
      %258 = vmatprep.subr.bf16.mxu0 0
      %259 = vmatpush1.bf16.msra.mxu0 %v240
      %260 = vmatprep.subr.bf16.mxu0 0
      %261 = vmatpush1.bf16.msra.mxu0 0
      %262 = vmatprep.subr.bf16.mxu0 0
      %263 = vmatpush1.bf16.msra.mxu0 0
      %264 = vmatprep.subr.bf16.mxu0 0
      %265 = vmatpush1.bf16.msra.mxu0 0
      %266 = vmatprep.subr.bf16.mxu0 0
      %267 = vmatpush1.bf16.msra.mxu0 0
      %268 = vmatprep.subr.bf16.mxu0 0
      %269 = vmatpush1.bf16.msra.mxu0 0
      %270 = vmatprep.subr.bf16.mxu0 0
      %271 = vmatpush1.bf16.msra.mxu0 0
      %272 = vmatprep.subr.bf16.mxu0 0
      %273 = vmatpush1.bf16.msra.mxu0 0
      %274 = vmatprep.subr.bf16.mxu0 0
      %275 = vmatpush1.bf16.msra.mxu0 0
      %276 = vmatprep.subr.bf16.mxu0 0
      %277 = vmatpush1.bf16.msra.mxu0 0
      %278 = vmatprep.subr.bf16.mxu0 0
      %279 = vmatpush1.bf16.msra.mxu0 0
      %280 = vmatprep.subr.bf16.mxu0 0
      %281 = vmatpush1.bf16.msra.mxu0 0
      %282 = vmatprep.subr.bf16.mxu0 0
      %283 = vmatpush1.bf16.msra.mxu0 0
      %284 = vmatprep.subr.bf16.mxu0 0
      %285 = vmatpush1.bf16.msra.mxu0 0
      %286 = vmatprep.subr.bf16.mxu0 0
      %287 = vmatpush1.bf16.msra.mxu0 0
      %288 = vmatprep.mubr.bf16.mxu0 0
      %289 = vmatmul.mubr.bf16.gmra.mrb[0].mxu0 %v245
      %v290 = vpop.f32.mrb[0].mxu0
      %v291 = vadd.f32 %v229, %v290
      %v292 = vpop.f32.mrb[0].mxu0
      %v293 = vpop.f32.mrb[0].mxu0
      %v294 = vadd.f32 %v229, %v293
      %v295 = vpop.f32.mrb[0].mxu0
      %296 = vmatprep.mubr.bf16.mxu0 0
      %297 = vmatmul.mubr.bf16.gmra.mrb[0].mxu0 %v248
      %v298 = vpop.f32.mrb[0].mxu0
      %v299 = vadd.f32 %v229, %v298
      %v300 = vpop.f32.mrb[0].mxu0
      %v301 = vpop.f32.mrb[0].mxu0
      %v302 = vadd.f32 %v229, %v301
      %v303 = vpop.f32.mrb[0].mxu0
      %304 = vmatprep.mubr.bf16.mxu0 0
      %305 = vmatmul.mubr.bf16.gmra.mrb[0].mxu0 %v251
      %v306 = vpop.f32.mrb[0].mxu0
      %v307 = vadd.f32 %v229, %v306
      %v308 = vpop.f32.mrb[0].mxu0
      %v309 = vpop.f32.mrb[0].mxu0
      %v310 = vadd.f32 %v229, %v309
      %v311 = vpop.f32.mrb[0].mxu0
      %312 = vmatprep.mubr.bf16.mxu0 0
      %313 = vmatmul.mubr.bf16.gmra.mrb[0].mxu0 %v254
      %v314 = vpop.f32.mrb[0].mxu0
      %v315 = vadd.f32 %v229, %v314
      %v316 = vpop.f32.mrb[0].mxu0
      %v317 = vpop.f32.mrb[0].mxu0
      %v318 = vadd.f32 %v229, %v317
      %v319 = vpop.f32.mrb[0].mxu0
      %320 = vdwg.mxu0
      %v321 = vmax.f32 %v291, 0.0
      %v322 = vmax.f32 %v294, 0.0
      %v323 = vmax.f32 %v299, 0.0
      %v324 = vmax.f32 %v302, 0.0
      %v325 = vmax.f32 %v307, 0.0
      %v326 = vmax.f32 %v310, 0.0
      %v327 = vmax.f32 %v315, 0.0
      %v328 = vmax.f32 %v318, 0.0
      %v329 = vpack.c.bf16 %v321, %v321
      %v330 = vpack.c.bf16 %v322, %v322
      %v331 = vpack.c.bf16 %v323, %v323
      %v332 = vpack.c.bf16 %v324, %v324
      %v333 = vpack.c.bf16 %v325, %v325
      %v334 = vpack.c.bf16 %v326, %v326
      %v335 = vpack.c.bf16 %v327, %v327
      %v336 = vpack.c.bf16 %v328, %v328
      %vm337 = vcmask 125952
      %338 = vst.msk [vmem:[%s204] sm:$0xf] %vm337, %v329
      %339 = vst.msk [vmem:[%s204 + $0x8] sm:$0xf] %vm337, %v330
      %340 = vst.msk [vmem:[%s204 + $0x10] sm:$0xf] %vm337, %v331
      %341 = vst.msk [vmem:[%s204 + $0x18] sm:$0xf] %vm337, %v332
      %342 = vst.msk [vmem:[%s204 + $0x20] sm:$0xf] %vm337, %v333
      %343 = vst.msk [vmem:[%s204 + $0x28] sm:$0xf] %vm337, %v334
      %344 = vst.msk [vmem:[%s204 + $0x30] sm:$0xf] %vm337, %v335
      %345 = vst.msk [vmem:[%s204 + $0x38] sm:$0xf] %vm337, %v336
      %vm346 = vcmask 257152
      %347 = vst.msk [vmem:[%s204] sm:$0xf] %vm346, %v329
      %348 = vst.msk [vmem:[%s204 + $0x8] sm:$0xf] %vm346, %v330
      %349 = vst.msk [vmem:[%s204 + $0x10] sm:$0xf] %vm346, %v331
      %350 = vst.msk [vmem:[%s204 + $0x18] sm:$0xf] %vm346, %v332
      %351 = vst.msk [vmem:[%s204 + $0x20] sm:$0xf] %vm346, %v333
      %352 = vst.msk [vmem:[%s204 + $0x28] sm:$0xf] %vm346, %v334
      %353 = vst.msk [vmem:[%s204 + $0x30] sm:$0xf] %vm346, %v335
      %354 = vst.msk [vmem:[%s204 + $0x38] sm:$0xf] %vm346, %v336
      %v363 = vunpack.c.l.b16 %v329
      %v364 = vunpack.c.l.b16 %v330
      %v365 = vunpack.c.l.b16 %v331
      %v366 = vunpack.c.l.b16 %v332
      %v367 = vunpack.c.l.b16 %v333
      %v368 = vunpack.c.l.b16 %v334
      %v369 = vunpack.c.l.b16 %v335
      %v370 = vunpack.c.l.b16 %v336
      %v371 = vpack.c.b16 %v363, %v363
      %v372 = vpack.c.b16 %v364, %v364
      %v373 = vpack.c.b16 %v365, %v365
      %v374 = vpack.c.b16 %v366, %v366
      %v375 = vpack.c.b16 %v367, %v367
      %v376 = vpack.c.b16 %v368, %v368
      %v377 = vpack.c.b16 %v369, %v369
      %v378 = vpack.c.b16 %v370, %v370
      %379 = vrot.lane.b32.xlu0 %v371, 96
      %v380 = vpop.permute.xlu0 %379
      %381 = vrot.lane.b32.xlu0 %v372, 96
      %v382 = vpop.permute.xlu0 %381
      %383 = vrot.lane.b32.xlu0 %v373, 96
      %v384 = vpop.permute.xlu0 %383
      %385 = vrot.lane.b32.xlu0 %v374, 96
      %v386 = vpop.permute.xlu0 %385
      %387 = vrot.lane.b32.xlu0 %v375, 96
      %v388 = vpop.permute.xlu0 %387
      %389 = vrot.lane.b32.xlu0 %v376, 96
      %v390 = vpop.permute.xlu0 %389
      %391 = vrot.lane.b32.xlu0 %v377, 96
      %v392 = vpop.permute.xlu0 %391
      %393 = vrot.lane.b32.xlu0 %v378, 96
      %v394 = vpop.permute.xlu0 %393
      %s403 = scalar_lea.vmem %s204, 4
      %404 = vst.msk [vmem:[%s403] sm:$0xf] %vm337, %v380
      %405 = vst.msk [vmem:[%s403 + $0x8] sm:$0xf] %vm337, %v382
      %406 = vst.msk [vmem:[%s403 + $0x10] sm:$0xf] %vm337, %v384
      %407 = vst.msk [vmem:[%s403 + $0x18] sm:$0xf] %vm337, %v386
      %408 = vst.msk [vmem:[%s403 + $0x20] sm:$0xf] %vm337, %v388
      %409 = vst.msk [vmem:[%s403 + $0x28] sm:$0xf] %vm337, %v390
      %410 = vst.msk [vmem:[%s403 + $0x30] sm:$0xf] %vm337, %v392
      %411 = vst.msk [vmem:[%s403 + $0x38] sm:$0xf] %vm337, %v394
      %412 = vst.msk [vmem:[%s403] sm:$0xf] %vm346, %v380
      %413 = vst.msk [vmem:[%s403 + $0x8] sm:$0xf] %vm346, %v382
      %414 = vst.msk [vmem:[%s403 + $0x10] sm:$0xf] %vm346, %v384
      %415 = vst.msk [vmem:[%s403 + $0x18] sm:$0xf] %vm346, %v386
      %416 = vst.msk [vmem:[%s403 + $0x20] sm:$0xf] %vm346, %v388
      %417 = vst.msk [vmem:[%s403 + $0x28] sm:$0xf] %vm346, %v390
      %418 = vst.msk [vmem:[%s403 + $0x30] sm:$0xf] %vm346, %v392
      %419 = vst.msk [vmem:[%s403 + $0x38] sm:$0xf] %vm346, %v394
      %s420 = sadd.s32 %s18, %s19
      %s421 = smul.u32 8, %s420
      %p422 = scmp.lt.s32.totalorder %s421, 15
      %s423 = scalar_select %p422, %s421, 15
      %s424 = smul.addr %s423, 2
      %s425 = smul.addr %s424, 4
      %s426 = scalar_lea.vmem %s3, %s425
      // Predicated region
      $region33: #{unet_block_forward.3} parent=31 // pred_check
        %p427 = pneg %p116
      $region34: #{unet_block_forward.3} parent=31 // pred_check_branch
        %429 = sbr.rel (%p427) target = $region36
      $region35: #{unet_block_forward.3} parent=31 // pred_region
        %s430 = sadd.s32 %s18, %s19
        %s431 = smul.u32 8, %s430
      $region36: #{unet_block_forward.3} parent=31 // pred_fallthru
        _
    $region32: #{unet_block_forward.3} parent=5 // pred_fallthru
      _
    %p432 = scmp.le.s32.totalorder 2, %s9
    // Predicated region
    $region37: #{unet_block_forward.3} parent=5 // pred_check
      %p433 = pneg %p432
    $region38: #{unet_block_forward.3} parent=5 // pred_check_branch
      %435 = sbr.rel (%p433) target = $region40
    $region39: #{unet_block_forward.3} parent=5 // pred_region
      %s436 = ssub.s32 %s9, 2
      // Predicated region
      $region41: #{unet_block_forward.3} parent=39 // pred_check
        %p437 = pneg %p122
      $region42: #{unet_block_forward.3} parent=39 // pred_check_branch
        %439 = sbr.rel (%p437) target = $region44
      $region43: #{unet_block_forward.3} parent=39 // pred_region
        %s440 = sadd.s32 %s20, %s21
        %s441 = smul.u32 8, %s440
        %p442 = scmp.lt.s32.totalorder %s441, 15
        %s443 = scalar_select %p442, %s441, 15
        %s444 = smul.addr %s443, 2
        %s445 = smul.addr %s444, 4
        %s446 = scalar_lea.vmem %s3, %s445
      $region44: #{unet_block_forward.3} parent=39 // pred_fallthru
        _
    $region40: #{unet_block_forward.3} parent=5 // pred_fallthru
      _
  $region6: #{unet_block_forward.3} parent=0 // loop_footer
    %s13 = sadd.s32 1, %s9
  $region7: #{unet_block_forward.3} parent=0 // loop_footer_branch
    %8 = sbr.rel target = $region3
  $region8: #{unet_block_forward.3} parent=0 // loop_exit
    _

// kernel: unet_block_forward.5
$region0: #{unet_block_forward.5}
  #allocation0 [shape = 'u32[]', space=smem, size = 0x4, offset = 0x4, fixed_abs, tag = 'smem constant byte address 0x4 - core index']
  #allocation1 [shape = 'u32[144,128]{1,0:T(1,128)}', space=vmem, size = 0x12000, scoped, tag = 'internal scratch']
  #allocation2 [shape = 'bf16[18,18,32]{2,1,0:T(8,128)(2,1)}', space=vmem, size = 0x1b000, scoped, tag = 'scratch operand']
  #allocation3 [shape = 'bf16[256,288]{1,0:T(16,128)(2,1)}', space=vmem, size = 0x30000, scoped, tag = 'scratch operand']
  %s0 = inlined_call_operand.vmem [shape: bf16[2,16,16,32], index: 0, kind: input, shape index: {}]
  %s1 = inlined_call_operand.vmem [shape: bf16[288,32], index: 1, kind: input, shape index: {}]
  %s2 = inlined_call_operand.vmem [shape: f32[1,32], index: 2, kind: input, shape index: {}]
  %s3 = inlined_call_operand.vmem [shape: f32[1,32], index: 3, kind: input, shape index: {}]
  %s4 = inlined_call_operand.hbm [shape: f32[2,16,16,32], index: 4, kind: output, shape index: {}]
  %s5 = sld [smem:[#allocation0]]
  $region49: #{unet_block_forward.5} parent=0
    _
  %s7 = ssub.s32 1, %s5
  %s8 = scalar_select 0, %s7, %s5
  $region1: #{unet_block_forward.5} parent=0
    #allocation4 [shape = 'u8[262144]{0}', space=vmem, size = 0x40000, scoped, tag = 'output window, operand 0']
    #allocation5 [shape = 's32[2]{0}', space=sflag, size = 0x8, scoped, tag = 'scoped memory for unet_block_forward.5']
    %9 = vsyncpa [#allocation5], 0
    %s10 = scalar_lea.sflag [#allocation5], 1
    %11 = vsyncpa %s10, 0
    loop: start=0, step=1, limit=4
    $region2: #{unet_block_forward.5} parent=1 // loop_pre_header
      _
    $region3: #{unet_block_forward.5} parent=1 // loop_header
      %s13 = sphi 0, %s17
      %p14 = scmp.ge.s32.totalorder %s13, 4
      %s23 = sphi 0, %s25
      %s26 = sphi 0, %s23
      %s27 = sphi 0, %s26
      %s43 = sphi 0, %s27
      %s47 = sphi 0, %s47
      %s49 = sphi 0, %s47
      %s50 = sphi 0, %s49
      %s64 = sphi 0, %s50
      %s68 = sphi 0, %s68
      %s70 = sphi 0, %s68
      %s71 = sphi 0, %s70
      %s85 = sphi 0, %s71
      %s89 = sphi 0, %s89
      %s91 = sphi 0, %s89
      %s92 = sphi 0, %s91
      %s106 = sphi 0, %s92
      %s112 = sphi 0, %s114
      %s115 = sphi 0, %s112
      %s116 = sphi 0, %s115
      %s132 = sphi 0, %s116
    $region4: #{unet_block_forward.5} parent=1 // loop_header_branch
      %16 = sbr.rel (%p14) target = $region8
    $region5: #{unet_block_forward.5} parent=1 // loop_body
      %s18 = ssub.s32 %s13, 1
      %s19 = ssub.s32 %s13, 2
      %s20 = sadd.s32 %s13, 1
      %s21 = ssub.s32 %s13, %s20
      %p22 = scmp.eq.s32.totalorder %s21, 0
      %s24 = sadd.s32 %s23, 1
      %s25 = scalar_select %p22, %s23, %s24
      %p28 = pneg %p22
      %p29 = scmp.eq.s32.totalorder %s13, 1
      %p30 = por %p28, %p29
      %p31 = scmp.ne.s32.totalorder %s23, %s26
      %p32 = scmp.eq.s32.totalorder %s13, 0
      %p33 = por %p31, %p32
      %p34 = scmp.ne.s32.totalorder %s23, %s26
      %p35 = scmp.eq.s32.totalorder %s18, 1
      %p36 = por %p34, %p35
      %p37 = scmp.ne.s32.totalorder %s26, %s27
      %p38 = scmp.eq.s32.totalorder %s18, 0
      %p39 = por %p37, %p38
      %p40 = scmp.ne.s32.totalorder %s26, %s27
      %p41 = scmp.eq.s32.totalorder %s19, 1
      %p42 = por %p40, %p41
      %p44 = scmp.ne.s32.totalorder %s27, %s43
      %p45 = scmp.eq.s32.totalorder %s19, 0
      %p46 = por %p44, %p45
      %s48 = sadd.s32 %s47, 1
      %p51 = scmp.eq.s32.totalorder %s13, 1
      %p52 = scmp.ne.s32.totalorder %s47, %s49
      %p53 = scmp.eq.s32.totalorder %s13, 0
      %p54 = por %p52, %p53
      %p55 = scmp.ne.s32.totalorder %s47, %s49
      %p56 = scmp.eq.s32.totalorder %s18, 1
      %p57 = por %p55, %p56
      %p58 = scmp.ne.s32.totalorder %s49, %s50
      %p59 = scmp.eq.s32.totalorder %s18, 0
      %p60 = por %p58, %p59
      %p61 = scmp.ne.s32.totalorder %s49, %s50
      %p62 = scmp.eq.s32.totalorder %s19, 1
      %p63 = por %p61, %p62
      %p65 = scmp.ne.s32.totalorder %s50, %s64
      %p66 = scmp.eq.s32.totalorder %s19, 0
      %p67 = por %p65, %p66
      %s69 = sadd.s32 %s68, 1
      %p72 = scmp.eq.s32.totalorder %s13, 1
      %p73 = scmp.ne.s32.totalorder %s68, %s70
      %p74 = scmp.eq.s32.totalorder %s13, 0
      %p75 = por %p73, %p74
      %p76 = scmp.ne.s32.totalorder %s68, %s70
      %p77 = scmp.eq.s32.totalorder %s18, 1
      %p78 = por %p76, %p77
      %p79 = scmp.ne.s32.totalorder %s70, %s71
      %p80 = scmp.eq.s32.totalorder %s18, 0
      %p81 = por %p79, %p80
      %p82 = scmp.ne.s32.totalorder %s70, %s71
      %p83 = scmp.eq.s32.totalorder %s19, 1
      %p84 = por %p82, %p83
      %p86 = scmp.ne.s32.totalorder %s71, %s85
      %p87 = scmp.eq.s32.totalorder %s19, 0
      %p88 = por %p86, %p87
      %s90 = sadd.s32 %s89, 1
      %p93 = scmp.eq.s32.totalorder %s13, 1
      %p94 = scmp.ne.s32.totalorder %s89, %s91
      %p95 = scmp.eq.s32.totalorder %s13, 0
      %p96 = por %p94, %p95
      %p97 = scmp.ne.s32.totalorder %s89, %s91
      %p98 = scmp.eq.s32.totalorder %s18, 1
      %p99 = por %p97, %p98
      %p100 = scmp.ne.s32.totalorder %s91, %s92
      %p101 = scmp.eq.s32.totalorder %s18, 0
      %p102 = por %p100, %p101
      %p103 = scmp.ne.s32.totalorder %s91, %s92
      %p104 = scmp.eq.s32.totalorder %s19, 1
      %p105 = por %p103, %p104
      %p107 = scmp.ne.s32.totalorder %s92, %s106
      %p108 = scmp.eq.s32.totalorder %s19, 0
      %p109 = por %p107, %p108
      %s110 = ssub.s32 %s13, %s20
      %p111 = scmp.eq.s32.totalorder %s110, 0
      %s113 = sadd.s32 %s112, 1
      %s114 = scalar_select %p111, %s112, %s113
      %p117 = pneg %p111
      %p118 = scmp.eq.s32.totalorder %s13, 1
      %p119 = por %p117, %p118
      %p120 = scmp.ne.s32.totalorder %s112, %s115
      %p121 = scmp.eq.s32.totalorder %s13, 0
      %p122 = por %p120, %p121
      %p123 = scmp.ne.s32.totalorder %s112, %s115
      %p124 = scmp.eq.s32.totalorder %s18, 1
      %p125 = por %p123, %p124
      %p126 = scmp.ne.s32.totalorder %s115, %s116
      %p127 = scmp.eq.s32.totalorder %s18, 0
      %p128 = por %p126, %p127
      %p129 = scmp.ne.s32.totalorder %s115, %s116
      %p130 = scmp.eq.s32.totalorder %s19, 1
      %p131 = por %p129, %p130
      %p133 = scmp.ne.s32.totalorder %s116, %s132
      %p134 = scmp.eq.s32.totalorder %s19, 0
      %p135 = por %p133, %p134
      %p136 = scmp.le.s32.totalorder 1, %s13
      %p137 = scmp.lt.s32.totalorder %s13, 3
      %p138 = pnand %p136, %p137
      %p139 = pneg %p138
      // Predicated region
      $region9: #{unet_block_forward.5} parent=5 // pred_check
        _
      $region10: #{unet_block_forward.5} parent=5 // pred_check_branch
        %141 = sbr.rel (%p138) target = $region12
      $region11: #{unet_block_forward.5} parent=5 // pred_region
        %s142 = ssub.s32 %s13, 1
        // Predicated region
        $region13: #{unet_block_forward.5} parent=11 // pred_check
          %p143 = pneg %p60
        $region14: #{unet_block_forward.5} parent=11 // pred_check_branch
          %145 = sbr.rel (%p143) target = $region16
        $region15: #{unet_block_forward.5} parent=11 // pred_region
          _
        $region16: #{unet_block_forward.5} parent=11 // pred_fallthru
          _
        // Predicated region
        $region17: #{unet_block_forward.5} parent=11 // pred_check
          %p146 = pneg %p81
        $region18: #{unet_block_forward.5} parent=11 // pred_check_branch
          %148 = sbr.rel (%p146) target = $region20
        $region19: #{unet_block_forward.5} parent=11 // pred_region
          _
        $region20: #{unet_block_forward.5} parent=11 // pred_fallthru
          _
        // Predicated region
        $region21: #{unet_block_forward.5} parent=11 // pred_check
          %p149 = pneg %p102
        $region22: #{unet_block_forward.5} parent=11 // pred_check_branch
          %151 = sbr.rel (%p149) target = $region24
        $region23: #{unet_block_forward.5} parent=11 // pred_region
          _
        $region24: #{unet_block_forward.5} parent=11 // pred_fallthru
          _
      $region12: #{unet_block_forward.5} parent=5 // pred_fallthru
        _
      %p152 = scmp.lt.s32.totalorder %s13, 2
      // Predicated region
      $region25: #{unet_block_forward.5} parent=5 // pred_check
        %p153 = pneg %p152
      $region26: #{unet_block_forward.5} parent=5 // pred_check_branch
        %155 = sbr.rel (%p153) target = $region28
      $region27: #{unet_block_forward.5} parent=5 // pred_region
        // Predicated region
        $region29: #{unet_block_forward.5} parent=27 // pred_check
          %p156 = pneg %p33
        $region30: #{unet_block_forward.5} parent=27 // pred_check_branch
          %158 = sbr.rel (%p156) target = $region32
        $region31: #{unet_block_forward.5} parent=27 // pred_region
          %p159 = scmp.lt.s32.totalorder %s13, 1
          %s160 = scalar_select %p159, %s13, 1
          %s161 = smul.addr %s160, 32
          %s162 = smul.addr %s161, 4
          %s163 = scalar_lea.vmem %s0, %s162
        $region32: #{unet_block_forward.5} parent=27 // pred_fallthru
          _
      $region28: #{unet_block_forward.5} parent=5 // pred_fallthru
        _
      %p164 = scmp.le.s32.totalorder 1, %s13
      %p165 = scmp.lt.s32.totalorder %s13, 3
      %p166 = pnand %p164, %p165
      %p167 = pneg %p166
      // Predicated region
      $region33: #{unet_block_forward.5} parent=5 // pred_check
        _
      $region34: #{unet_block_forward.5} parent=5 // pred_check_branch
        %169 = sbr.rel (%p166) target = $region36
      $region35: #{unet_block_forward.5} parent=5 // pred_region
        %s170 = ssub.s32 %s13, 1
        %p171 = scmp.lt.s32.totalorder %s18, 1
        %s172 = scalar_select %p171, %s18, 1
        %s173 = smul.addr %s172, 32
        %s174 = smul.addr %s173, 4
        %s175 = scalar_lea.vmem %s0, %s174
        %p176 = pneg %p39
        %p177 = pneg %p36
        %p178 = pneg %p60
        %p179 = pneg %p57
        %p180 = pneg %p81
        %p181 = pneg %p78
        %p182 = pneg %p102
        %p183 = pneg %p99
        %p184 = pneg %p128
        %p185 = pneg %p125
        %s186 = sand.u32 %s115, 1
        %s187 = scalar_lea.sflag [#allocation5], %s186
        %s188 = sand.u32 %s115, 1
        %s189 = smul.addr %s188, 256
        %s190 = scalar_lea.vmem [#allocation4], %s189
        %p191 = scmp.lt.s32.totalorder %s18, 1
        %s192 = scalar_select %p191, %s18, 1
        %s193 = smul.addr %s192, 32
        %s194 = smul.addr %s193, 4
        %s195 = scalar_lea.vmem %s0, %s194
        %vm197 = vcmask 257024
        %198 = vst.msk [vmem:[#allocation2] sm:$0xf] %vm197, 0
        %199 = vst.msk [vmem:[#allocation2 + $0x4] sm:$0xf] %vm197, 0
        %vm200 = vcmask 253952
        %201 = vst.msk [vmem:[#allocation2 + $0x8] sm:$0x1] %vm200, 0
        %202 = vst.msk [vmem:[#allocation2 + $0xc] sm:$0xf] %vm197, 0
        %203 = vst.msk [vmem:[#allocation2 + $0x10] sm:$0xf] %vm197, 0
        %204 = vst.msk [vmem:[#allocation2 + $0x14] sm:$0x1] %vm200, 0
        %205 = vst.msk [vmem:[#allocation2 + $0x18] sm:$0xf] %vm197, 0
        %206 = vst.msk [vmem:[#allocation2 + $0x1c] sm:$0xf] %vm197, 0
        %207 = vst.msk [vmem:[#allocation2 + $0x20] sm:$0x1] %vm200, 0
        %208 = vst.msk [vmem:[#allocation2 + $0x24] sm:$0xf] %vm197, 0
        %209 = vst.msk [vmem:[#allocation2 + $0x28] sm:$0xf] %vm197, 0
        %210 = vst.msk [vmem:[#allocation2 + $0x2c] sm:$0x1] %vm200, 0
        %211 = vst.msk [vmem:[#allocation2 + $0x30] sm:$0xf] %vm197, 0
        %212 = vst.msk [vmem:[#allocation2 + $0x34] sm:$0xf] %vm197, 0
        %213 = vst.msk [vmem:[#allocation2 + $0x38] sm:$0x1] %vm200, 0
        %214 = vst.msk [vmem:[#allocation2 + $0x3c] sm:$0xf] %vm197, 0
        %215 = vst.msk [vmem:[#allocation2 + $0x40] sm:$0xf] %vm197, 0
        %216 = vst.msk [vmem:[#allocation2 + $0x44] sm:$0x1] %vm200, 0
        %217 = vst.msk [vmem:[#allocation2 + $0x48] sm:$0xf] %vm197, 0
        %218 = vst.msk [vmem:[#allocation2 + $0x4c] sm:$0xf] %vm197, 0
        %219 = vst.msk [vmem:[#allocation2 + $0x50] sm:$0x1] %vm200, 0
        %220 = vst.msk [vmem:[#allocation2 + $0x54] sm:$0xf] %vm197, 0
        %221 = vst.msk [vmem:[#allocation2 + $0x58] sm:$0xf] %vm197, 0
        %222 = vst.msk [vmem:[#allocation2 + $0x5c] sm:$0x1] %vm200, 0
        %223 = vst.msk [vmem:[#allocation2 + $0x60] sm:$0xf] %vm197, 0
        %224 = vst.msk [vmem:[#allocation2 + $0x64] sm:$0xf] %vm197, 0
        %225 = vst.msk [vmem:[#allocation2 + $0x68] sm:$0x1] %vm200, 0
        %226 = vst.msk [vmem:[#allocation2 + $0x6c] sm:$0xf] %vm197, 0
        %227 = vst.msk [vmem:[#allocation2 + $0x70] sm:$0xf] %vm197, 0
        %228 = vst.msk [vmem:[#allocation2 + $0x74] sm:$0x1] %vm200, 0
        %229 = vst.msk [vmem:[#allocation2 + $0x78] sm:$0xf] %vm197, 0
        %230 = vst.msk [vmem:[#allocation2 + $0x7c] sm:$0xf] %vm197, 0
        %231 = vst.msk [vmem:[#allocation2 + $0x80] sm:$0x1] %vm200, 0
        %232 = vst.msk [vmem:[#allocation2 + $0x84] sm:$0xf] %vm197, 0
        %233 = vst.msk [vmem:[#allocation2 + $0x88] sm:$0xf] %vm197, 0
        %234 = vst.msk [vmem:[#allocation2 + $0x8c] sm:$0x1] %vm200, 0
        %235 = vst.msk [vmem:[#allocation2 + $0x90] sm:$0xf] %vm197, 0
        %236 = vst.msk [vmem:[#allocation2 + $0x94] sm:$0xf] %vm197, 0
        %237 = vst.msk [vmem:[#allocation2 + $0x98] sm:$0x1] %vm200, 0
        %238 = vst.msk [vmem:[#allocation2 + $0x9c] sm:$0xf] %vm197, 0
        %239 = vst.msk [vmem:[#allocation2 + $0xa0] sm:$0xf] %vm197, 0
        %240 = vst.msk [vmem:[#allocation2 + $0xa4] sm:$0x1] %vm200, 0
        %241 = vst.msk [vmem:[#allocation2 + $0xa8] sm:$0xf] %vm197, 0
        %242 = vst.msk [vmem:[#allocation2 + $0xac] sm:$0xf] %vm197, 0
        %243 = vst.msk [vmem:[#allocation2 + $0xb0] sm:$0x1] %vm200, 0
        %244 = vst.msk [vmem:[#allocation2 + $0xb4] sm:$0xf] %vm197, 0
        %245 = vst.msk [vmem:[#allocation2 + $0xb8] sm:$0xf] %vm197, 0
        %246 = vst.msk [vmem:[#allocation2 + $0xbc] sm:$0x1] %vm200, 0
        %247 = vst.msk [vmem:[#allocation2 + $0xc0] sm:$0xf] %vm197, 0
        %248 = vst.msk [vmem:[#allocation2 + $0xc4] sm:$0xf] %vm197, 0
        %249 = vst.msk [vmem:[#allocation2 + $0xc8] sm:$0x1] %vm200, 0
        %250 = vst.msk [vmem:[#allocation2 + $0xcc] sm:$0xf] %vm197, 0
        %251 = vst.msk [vmem:[#allocation2 + $0xd0] sm:$0xf] %vm197, 0
        %252 = vst.msk [vmem:[#allocation2 + $0xd4] sm:$0x1] %vm200, 0
        %v253 = vld [vmem:[%s195] sm:$0xf]
        %v254 = vld [vmem:[%s195 + $0x4] sm:$0xf]
        %v255 = vld [vmem:[%s195 + $0x8] sm:$0xf]
        %v256 = vld [vmem:[%s195 + $0xc] sm:$0xf]
        %v257 = vld [vmem:[%s195 + $0x10] sm:$0xf]
        %v258 = vld [vmem:[%s195 + $0x14] sm:$0xf]
        %v259 = vld [vmem:[%s195 + $0x18] sm:$0xf]
        %v260 = vld [vmem:[%s195 + $0x1c] sm:$0xf]
        %v261 = vld [vmem:[%s195 + $0x20] sm:$0xf]
        %v262 = vld [vmem:[%s195 + $0x24] sm:$0xf]
        %v263 = vld [vmem:[%s195 + $0x28] sm:$0xf]
        %v264 = vld [vmem:[%s195 + $0x2c] sm:$0xf]
        %v265 = vld [vmem:[%s195 + $0x30] sm:$0xf]
        %v266 = vld [vmem:[%s195 + $0x34] sm:$0xf]
        %v267 = vld [vmem:[%s195 + $0x38] sm:$0xf]
        %v268 = vld [vmem:[%s195 + $0x3c] sm:$0xf]
        %v269 = vld [vmem:[%s195 + $0x40] sm:$0xf]
        %v270 = vld [vmem:[%s195 + $0x44] sm:$0xf]
        %v271 = vld [vmem:[%s195 + $0x48] sm:$0xf]
        %v272 = vld [vmem:[%s195 + $0x4c] sm:$0xf]
        %v273 = vld [vmem:[%s195 + $0x50] sm:$0xf]
        %v274 = vld [vmem:[%s195 + $0x54] sm:$0xf]
        %v275 = vld [vmem:[%s195 + $0x58] sm:$0xf]
        %v276 = vld [vmem:[%s195 + $0x5c] sm:$0xf]
        %v277 = vld [vmem:[%s195 + $0x60] sm:$0xf]
        %v278 = vld [vmem:[%s195 + $0x64] sm:$0xf]
        %v279 = vld [vmem:[%s195 + $0x68] sm:$0xf]
        %v280 = vld [vmem:[%s195 + $0x6c] sm:$0xf]
        %v281 = vld [vmem:[%s195 + $0x70] sm:$0xf]
        %v282 = vld [vmem:[%s195 + $0x74] sm:$0xf]
        %v283 = vld [vmem:[%s195 + $0x78] sm:$0xf]
        %v284 = vld [vmem:[%s195 + $0x7c] sm:$0xf]
        %vm285 = vsmask.f32 256
        %vm286 = vsmask.f32 4368
        %vm287 = vmor %vm285, %vm286
        %v289 = vshrl.u32 %v253, 16
        %v291 = vrot.slane %v289, 7
        %v292 = vshll.u32 %v253, 16
        %v294 = vor.u32 %v291, %v292
        %v295 = vrot.slane %v291, 4
        %v297 = vshrl.u32 %v254, 16
        %v299 = vrot.slane %v297, 7
        %v300 = vshll.u32 %v254, 16
        %v302 = vor.u32 %v299, %v300
        %v303 = vsel %vm287, %v295, %v302
        %v304 = vrot.slane %v299, 4
        %v306 = vshrl.u32 %v255, 16
        %v308 = vrot.slane %v306, 7
        %v309 = vshll.u32 %v255, 16
        %v311 = vor.u32 %v308, %v309
        %v312 = vrot.slane %v308, 4
        %v314 = vshrl.u32 %v256, 16
        %v316 = vrot.slane %v314, 7
        %v317 = vshll.u32 %v256, 16
        %v319 = vor.u32 %v316, %v317
        %v320 = vsel %vm287, %v312, %v319
        %v321 = vrot.slane %v316, 4
        %v323 = vshrl.u32 %v257, 16
        %v325 = vrot.slane %v323, 7
        %v326 = vshll.u32 %v257, 16
        %v328 = vor.u32 %v325, %v326
        %v329 = vrot.slane %v325, 4
        %v331 = vshrl.u32 %v258, 16
        %v333 = vrot.slane %v331, 7
        %v334 = vshll.u32 %v258, 16
        %v336 = vor.u32 %v333, %v334
        %v337 = vsel %vm287, %v329, %v336
        %v338 = vrot.slane %v333, 4
        %v340 = vshrl.u32 %v259, 16
        %v342 = vrot.slane %v340, 7
        %v343 = vshll.u32 %v259, 16
        %v345 = vor.u32 %v342, %v343
        %v346 = vrot.slane %v342, 4
        %v348 = vshrl.u32 %v260, 16
        %v350 = vrot.slane %v348, 7
        %v351 = vshll.u32 %v260, 16
        %v353 = vor.u32 %v350, %v351
        %v354 = vsel %vm287, %v346, %v353
        %v355 = vrot.slane %v350, 4
        %v357 = vshrl.u32 %v261, 16
        %v359 = vrot.slane %v357, 7
        %v360 = vshll.u32 %v261, 16
        %v362 = vor.u32 %v359, %v360
        %v363 = vrot.slane %v359, 4
        %v365 = vshrl.u32 %v262, 16
        %v367 = vrot.slane %v365, 7
        %v368 = vshll.u32 %v262, 16
        %v370 = vor.u32 %v367, %v368
        %v371 = vsel %vm287, %v363, %v370
        %v372 = vrot.slane %v367, 4
        %v374 = vshrl.u32 %v263, 16
        %v376 = vrot.slane %v374, 7
        %v377 = vshll.u32 %v263, 16
        %v379 = vor.u32 %v376, %v377
        %v380 = vrot.slane %v376, 4
        %v382 = vshrl.u32 %v264, 16
        %v384 = vrot.slane %v382, 7
        %v385 = vshll.u32 %v264, 16
        %v387 = vor.u32 %v384, %v385
        %v388 = vsel %vm287, %v380, %v387
        %v389 = vrot.slane %v384, 4
        %v391 = vshrl.u32 %v265, 16
        %v393 = vrot.slane %v391, 7
        %v394 = vshll.u32 %v265, 16
        %v396 = vor.u32 %v393, %v394
        %v397 = vrot.slane %v393, 4
        %v399 = vshrl.u32 %v266, 16
        %v401 = vrot.slane %v399, 7
        %v402 = vshll.u32 %v266, 16
        %v404 = vor.u32 %v401, %v402
        %v405 = vsel %vm287, %v397, %v404
        %v406 = vrot.slane %v401, 4
        %v408 = vshrl.u32 %v267, 16
        %v410 = vrot.slane %v408, 7
        %v411 = vshll.u32 %v267, 16
        %v413 = vor.u32 %v410, %v411
        %v414 = vrot.slane %v410, 4
        %v416 = vshrl.u32 %v268, 16
        %v418 = vrot.slane %v416, 7
        %v419 = vshll.u32 %v268, 16
        %v421 = vor.u32 %v418, %v419
        %v422 = vsel %vm287, %v414, %v421
        %v423 = vrot.slane %v418, 4
        %v425 = vshrl.u32 %v269, 16
        %v427 = vrot.slane %v425, 7
        %v428 = vshll.u32 %v269, 16
        %v430 = vor.u32 %v427, %v428
        %v431 = vrot.slane %v427, 4
        %v433 = vshrl.u32 %v270, 16
        %v435 = vrot.slane %v433, 7
        %v436 = vshll.u32 %v270, 16
        %v438 = vor.u32 %v435, %v436
        %v439 = vsel %vm287, %v431, %v438
        %v440 = vrot.slane %v435, 4
        %v442 = vshrl.u32 %v271, 16
        %v444 = vrot.slane %v442, 7
        %v445 = vshll.u32 %v271, 16
        %v447 = vor.u32 %v444, %v445
        %v448 = vrot.slane %v444, 4
        %v450 = vshrl.u32 %v272, 16
        %v452 = vrot.slane %v450, 7
        %v453 = vshll.u32 %v272, 16
        %v455 = vor.u32 %v452, %v453
        %v456 = vsel %vm287, %v448, %v455
        %v457 = vrot.slane %v452, 4
        %v459 = vshrl.u32 %v273, 16
        %v461 = vrot.slane %v459, 7
        %v462 = vshll.u32 %v273, 16
        %v464 = vor.u32 %v461, %v462
        %v465 = vrot.slane %v461, 4
        %v467 = vshrl.u32 %v274, 16
        %v469 = vrot.slane %v467, 7
        %v470 = vshll.u32 %v274, 16
        %v472 = vor.u32 %v469, %v470
        %v473 = vsel %vm287, %v465, %v472
        %v474 = vrot.slane %v469, 4
        %v476 = vshrl.u32 %v275, 16
        %v478 = vrot.slane %v476, 7
        %v479 = vshll.u32 %v275, 16
        %v481 = vor.u32 %v478, %v479
        %v482 = vrot.slane %v478, 4
        %v484 = vshrl.u32 %v276, 16
        %v486 = vrot.slane %v484, 7
        %v487 = vshll.u32 %v276, 16
        %v489 = vor.u32 %v486, %v487
        %v490 = vsel %vm287, %v482, %v489
        %v491 = vrot.slane %v486, 4
        %v493 = vshrl.u32 %v277, 16
        %v495 = vrot.slane %v493, 7
        %v496 = vshll.u32 %v277, 16
        %v498 = vor.u32 %v495, %v496
        %v499 = vrot.slane %v495, 4
        %v501 = vshrl.u32 %v278, 16
        %v503 = vrot.slane %v501, 7
        %v504 = vshll.u32 %v278, 16
        %v506 = vor.u32 %v503, %v504
        %v507 = vsel %vm287, %v499, %v506
        %v508 = vrot.slane %v503, 4
        %v510 = vshrl.u32 %v279, 16
        %v512 = vrot.slane %v510, 7
        %v513 = vshll.u32 %v279, 16
        %v515 = vor.u32 %v512, %v513
        %v516 = vrot.slane %v512, 4
        %v518 = vshrl.u32 %v280, 16
        %v520 = vrot.slane %v518, 7
        %v521 = vshll.u32 %v280, 16
        %v523 = vor.u32 %v520, %v521
        %v524 = vsel %vm287, %v516, %v523
        %v525 = vrot.slane %v520, 4
        %v527 = vshrl.u32 %v281, 16
        %v529 = vrot.slane %v527, 7
        %v530 = vshll.u32 %v281, 16
        %v532 = vor.u32 %v529, %v530
        %v533 = vrot.slane %v529, 4
        %v535 = vshrl.u32 %v282, 16
        %v537 = vrot.slane %v535, 7
        %v538 = vshll.u32 %v282, 16
        %v540 = vor.u32 %v537, %v538
        %v541 = vsel %vm287, %v533, %v540
        %v542 = vrot.slane %v537, 4
        %v544 = vshrl.u32 %v283, 16
        %v546 = vrot.slane %v544, 7
        %v547 = vshll.u32 %v283, 16
        %v549 = vor.u32 %v546, %v547
        %v550 = vrot.slane %v546, 4
        %v552 = vshrl.u32 %v284, 16
        %v554 = vrot.slane %v552, 7
        %v555 = vshll.u32 %v284, 16
        %v557 = vor.u32 %v554, %v555
        %v558 = vsel %vm287, %v550, %v557
        %v559 = vrot.slane %v554, 4
        %s608 = scalar_lea.vmem [#allocation2], 12
        %vm609 = vcmask 257024
        %vm610 = vsmask.f32 7938
        %vm611 = vmand %vm609, %vm610
        %v612 = vld [vmem:[%s608] sm:$0xf]
        %v613 = vsel %vm611, %v294, %v612
        %614 = vst [vmem:[%s608] sm:$0xf] %v613
        %615 = vst.msk [vmem:[%s608 + $0x4] sm:$0xf] %vm197, %v303
        %vm616 = vcmask 253952
        %vm617 = vmand %vm616, %vm285
        %v618 = vld [vmem:[%s608 + $0x8] sm:$0x1]
        %v619 = vsel %vm617, %v304, %v618
        %620 = vst [vmem:[%s608 + $0x8] sm:$0x1] %v619
        %v621 = vld [vmem:[%s608 + $0xc] sm:$0xf]
        %v622 = vsel %vm611, %v311, %v621
        %623 = vst [vmem:[%s608 + $0xc] sm:$0xf] %v622
        %624 = vst.msk [vmem:[%s608 + $0x10] sm:$0xf] %vm197, %v320
        %v625 = vld [vmem:[%s608 + $0x14] sm:$0x1]
        %v626 = vsel %vm617, %v321, %v625
        %627 = vst [vmem:[%s608 + $0x14] sm:$0x1] %v626
        %v628 = vld [vmem:[%s608 + $0x18] sm:$0xf]
        %v629 = vsel %vm611, %v328, %v628
        %630 = vst [vmem:[%s608 + $0x18] sm:$0xf] %v629
        %631 = vst.msk [vmem:[%s608 + $0x1c] sm:$0xf] %vm197, %v337
        %v632 = vld [vmem:[%s608 + $0x20] sm:$0x1]
        %v633 = vsel %vm617, %v338, %v632
        %634 = vst [vmem:[%s608 + $0x20] sm:$0x1] %v633
        %v635 = vld [vmem:[%s608 + $0x24] sm:$0xf]
        %v636 = vsel %vm611, %v345, %v635
        %637 = vst [vmem:[%s608 + $0x24] sm:$0xf] %v636
        %638 = vst.msk [vmem:[%s608 + $0x28] sm:$0xf] %vm197, %v354
        %v639 = vld [vmem:[%s608 + $0x2c] sm:$0x1]
        %v640 = vsel %vm617, %v355, %v639
        %641 = vst [vmem:[%s608 + $0x2c] sm:$0x1] %v640
        %v642 = vld [vmem:[%s608 + $0x30] sm:$0xf]
        %v643 = vsel %vm611, %v362, %v642
        %644 = vst [vmem:[%s608 + $0x30] sm:$0xf] %v643
        %645 = vst.msk [vmem:[%s608 + $0x34] sm:$0xf] %vm197, %v371
        %v646 = vld [vmem:[%s608 + $0x38] sm:$0x1]
        %v647 = vsel %vm617, %v372, %v646
        %648 = vst [vmem:[%s608 + $0x38] sm:$0x1] %v647
        %v649 = vld [vmem:[%s608 + $0x3c] sm:$0xf]
        %v650 = vsel %vm611, %v379, %v649
        %651 = vst [vmem:[%s608 + $0x3c] sm:$0xf] %v650
        %652 = vst.msk [vmem:[%s608 + $0x40] sm:$0xf] %vm197, %v388
        %v653 = vld [vmem:[%s608 + $0x44] sm:$0x1]
        %v654 = vsel %vm617, %v389, %v653
        %655 = vst [vmem:[%s608 + $0x44] sm:$0x1] %v654
        %v656 = vld [vmem:[%s608 + $0x48] sm:$0xf]
        %v657 = vsel %vm611, %v396, %v656
        %658 = vst [vmem:[%s608 + $0x48] sm:$0xf] %v657
        %659 = vst.msk [vmem:[%s608 + $0x4c] sm:$0xf] %vm197, %v405
        %v660 = vld [vmem:[%s608 + $0x50] sm:$0x1]
        %v661 = vsel %vm617, %v406, %v660
        %662 = vst [vmem:[%s608 + $0x50] sm:$0x1] %v661
        %v663 = vld [vmem:[%s608 + $0x54] sm:$0xf]
        %v664 = vsel %vm611, %v413, %v663
        %665 = vst [vmem:[%s608 + $0x54] sm:$0xf] %v664
        %666 = vst.msk [vmem:[%s608 + $0x58] sm:$0xf] %vm197, %v422
        %v667 = vld [vmem:[%s608 + $0x5c] sm:$0x1]
        %v668 = vsel %vm617, %v423, %v667
        %669 = vst [vmem:[%s608 + $0x5c] sm:$0x1] %v668
        %v670 = vld [vmem:[%s608 + $0x60] sm:$0xf]
        %v671 = vsel %vm611, %v430, %v670
        %672 = vst [vmem:[%s608 + $0x60] sm:$0xf] %v671
        %673 = vst.msk [vmem:[%s608 + $0x64] sm:$0xf] %vm197, %v439
        %v674 = vld [vmem:[%s608 + $0x68] sm:$0x1]
        %v675 = vsel %vm617, %v440, %v674
        %676 = vst [vmem:[%s608 + $0x68] sm:$0x1] %v675
        %v677 = vld [vmem:[%s608 + $0x6c] sm:$0xf]
        %v678 = vsel %vm611, %v447, %v677
        %679 = vst [vmem:[%s608 + $0x6c] sm:$0xf] %v678
        %680 = vst.msk [vmem:[%s608 + $0x70] sm:$0xf] %vm197, %v456
        %v681 = vld [vmem:[%s608 + $0x74] sm:$0x1]
        %v682 = vsel %vm617, %v457, %v681
        %683 = vst [vmem:[%s608 + $0x74] sm:$0x1] %v682
        %v684 = vld [vmem:[%s608 + $0x78] sm:$0xf]
        %v685 = vsel %vm611, %v464, %v684
        %686 = vst [vmem:[%s608 + $0x78] sm:$0xf] %v685
        %687 = vst.msk [vmem:[%s608 + $0x7c] sm:$0xf] %vm197, %v473
        %v688 = vld [vmem:[%s608 + $0x80] sm:$0x1]
        %v689 = vsel %vm617, %v474, %v688
        %690 = vst [vmem:[%s608 + $0x80] sm:$0x1] %v689
        %v691 = vld [vmem:[%s608 + $0x84] sm:$0xf]
        %v692 = vsel %vm611, %v481, %v691
        %693 = vst [vmem:[%s608 + $0x84] sm:$0xf] %v692
        %694 = vst.msk [vmem:[%s608 + $0x88] sm:$0xf] %vm197, %v490
        %v695 = vld [vmem:[%s608 + $0x8c] sm:$0x1]
        %v696 = vsel %vm617, %v491, %v695
        %697 = vst [vmem:[%s608 + $0x8c] sm:$0x1] %v696
        %v698 = vld [vmem:[%s608 + $0x90] sm:$0xf]
        %v699 = vsel %vm611, %v498, %v698
        %700 = vst [vmem:[%s608 + $0x90] sm:$0xf] %v699
        %701 = vst.msk [vmem:[%s608 + $0x94] sm:$0xf] %vm197, %v507
        %v702 = vld [vmem:[%s608 + $0x98] sm:$0x1]
        %v703 = vsel %vm617, %v508, %v702
        %704 = vst [vmem:[%s608 + $0x98] sm:$0x1] %v703
        %v705 = vld [vmem:[%s608 + $0x9c] sm:$0xf]
        %v706 = vsel %vm611, %v515, %v705
        %707 = vst [vmem:[%s608 + $0x9c] sm:$0xf] %v706
        %708 = vst.msk [vmem:[%s608 + $0xa0] sm:$0xf] %vm197, %v524
        %v709 = vld [vmem:[%s608 + $0xa4] sm:$0x1]
        %v710 = vsel %vm617, %v525, %v709
        %711 = vst [vmem:[%s608 + $0xa4] sm:$0x1] %v710
        %v712 = vld [vmem:[%s608 + $0xa8] sm:$0xf]
        %v713 = vsel %vm611, %v532, %v712
        %714 = vst [vmem:[%s608 + $0xa8] sm:$0xf] %v713
        %715 = vst.msk [vmem:[%s608 + $0xac] sm:$0xf] %vm197, %v541
        %v716 = vld [vmem:[%s608 + $0xb0] sm:$0x1]
        %v717 = vsel %vm617, %v542, %v716
        %718 = vst [vmem:[%s608 + $0xb0] sm:$0x1] %v717
        %v719 = vld [vmem:[%s608 + $0xb4] sm:$0xf]
        %v720 = vsel %vm611, %v549, %v719
        %721 = vst [vmem:[%s608 + $0xb4] sm:$0xf] %v720
        %722 = vst.msk [vmem:[%s608 + $0xb8] sm:$0xf] %vm197, %v558
        %v723 = vld [vmem:[%s608 + $0xbc] sm:$0x1]
        %v724 = vsel %vm617, %v559, %v723
        %725 = vst [vmem:[%s608 + $0xbc] sm:$0x1] %v724
        %v726 = vld [vmem:[#allocation2] sm:$0xf]
        %v727 = vld [vmem:[#allocation2 + $0x4] sm:$0xf]
        %v728 = vld [vmem:[#allocation2 + $0x8] sm:$0x1]
        %v729 = vld [vmem:[#allocation2 + $0xc] sm:$0xf]
        %v730 = vld [vmem:[#allocation2 + $0x10] sm:$0xf]
        %v731 = vld [vmem:[#allocation2 + $0x14] sm:$0x1]
        %v732 = vld [vmem:[#allocation2 + $0x18] sm:$0xf]
        %v733 = vld [vmem:[#allocation2 + $0x1c] sm:$0xf]
        %v734 = vld [vmem:[#allocation2 + $0x20] sm:$0x1]
        %v735 = vld [vmem:[#allocation2 + $0x24] sm:$0xf]
        %v736 = vld [vmem:[#allocation2 + $0x28] sm:$0xf]
        %v737 = vld [vmem:[#allocation2 + $0x2c] sm:$0x1]
        %v738 = vld [vmem:[#allocation2 + $0x30] sm:$0xf]
        %v739 = vld [vmem:[#allocation2 + $0x34] sm:$0xf]
        %v740 = vld [vmem:[#allocation2 + $0x38] sm:$0x1]
        %v741 = vld [vmem:[#allocation2 + $0x3c] sm:$0xf]
        %v742 = vld [vmem:[#allocation2 + $0x40] sm:$0xf]
        %v743 = vld [vmem:[#allocation2 + $0x44] sm:$0x1]
        %v744 = vld [vmem:[#allocation2 + $0x48] sm:$0xf]
        %v745 = vld [vmem:[#allocation2 + $0x4c] sm:$0xf]
        %v746 = vld [vmem:[#allocation2 + $0x50] sm:$0x1]
        %v747 = vld [vmem:[#allocation2 + $0x54] sm:$0xf]
        %v748 = vld [vmem:[#allocation2 + $0x58] sm:$0xf]
        %v749 = vld [vmem:[#allocation2 + $0x5c] sm:$0x1]
        %v750 = vld [vmem:[#allocation2 + $0x60] sm:$0xf]
        %v751 = vld [vmem:[#allocation2 + $0x64] sm:$0xf]
        %v752 = vld [vmem:[#allocation2 + $0x68] sm:$0x1]
        %v753 = vld [vmem:[#allocation2 + $0x6c] sm:$0xf]
        %v754 = vld [vmem:[#allocation2 + $0x70] sm:$0xf]
        %v755 = vld [vmem:[#allocation2 + $0x74] sm:$0x1]
        %v756 = vld [vmem:[#allocation2 + $0x78] sm:$0xf]
        %v757 = vld [vmem:[#allocation2 + $0x7c] sm:$0xf]
        %v758 = vld [vmem:[#allocation2 + $0x80] sm:$0x1]
        %v759 = vld [vmem:[#allocation2 + $0x84] sm:$0xf]
        %v760 = vld [vmem:[#allocation2 + $0x88] sm:$0xf]
        %v761 = vld [vmem:[#allocation2 + $0x8c] sm:$0x1]
        %v762 = vld [vmem:[#allocation2 + $0x90] sm:$0xf]
        %v763 = vld [vmem:[#allocation2 + $0x94] sm:$0xf]
        %v764 = vld [vmem:[#allocation2 + $0x98] sm:$0x1]
        %v765 = vld [vmem:[#allocation2 + $0x9c] sm:$0xf]
        %v766 = vld [vmem:[#allocation2 + $0xa0] sm:$0xf]
        %v767 = vld [vmem:[#allocation2 + $0xa4] sm:$0x1]
        %v768 = vld [vmem:[#allocation2 + $0xa8] sm:$0xf]
        %v769 = vld [vmem:[#allocation2 + $0xac] sm:$0xf]
        %v770 = vld [vmem:[#allocation2 + $0xb0] sm:$0x1]
        %v771 = vld [vmem:[#allocation2 + $0xb4] sm:$0xf]
        %v772 = vld [vmem:[#allocation2 + $0xb8] sm:$0xf]
        %v773 = vld [vmem:[#allocation2 + $0xbc] sm:$0x1]
        %v774 = vld [vmem:[#allocation2 + $0xc0] sm:$0xf]
        %v775 = vld [vmem:[#allocation2 + $0xc4] sm:$0xf]
        %v776 = vld [vmem:[#allocation2 + $0xc8] sm:$0x1]
        %v777 = vld [vmem:[#allocation2 + $0xcc] sm:$0xf]
        %v778 = vld [vmem:[#allocation2 + $0xd0] sm:$0xf]
        %v779 = vld [vmem:[#allocation2 + $0xd4] sm:$0x1]
        %v812 = vunpack.c.l.b16 %v726
        %v813 = vunpack.c.l.b16 %v727
        %v814 = vunpack.c.l.b16 %v729
        %v815 = vunpack.c.l.b16 %v730
        %v816 = vunpack.c.l.b16 %v732
        %v817 = vunpack.c.l.b16 %v733
        %v818 = vunpack.c.l.b16 %v735
        %v819 = vunpack.c.l.b16 %v736
        %v820 = vunpack.c.l.b16 %v738
        %v821 = vunpack.c.l.b16 %v739
        %v822 = vunpack.c.l.b16 %v741
        %v823 = vunpack.c.l.b16 %v742
        %v824 = vunpack.c.l.b16 %v744
        %v825 = vunpack.c.l.b16 %v745
        %v826 = vunpack.c.l.b16 %v747
        %v827 = vunpack.c.l.b16 %v748
        %v828 = vunpack.c.l.b16 %v750
        %v829 = vunpack.c.l.b16 %v751
        %v830 = vunpack.c.l.b16 %v753
        %v831 = vunpack.c.l.b16 %v754
        %v832 = vunpack.c.l.b16 %v756
        %v833 = vunpack.c.l.b16 %v757
        %v834 = vunpack.c.l.b16 %v759
        %v835 = vunpack.c.l.b16 %v760
        %v836 = vunpack.c.l.b16 %v762
        %v837 = vunpack.c.l.b16 %v763
        %v838 = vunpack.c.l.b16 %v765
        %v839 = vunpack.c.l.b16 %v766
        %v840 = vunpack.c.l.b16 %v768
        %v841 = vunpack.c.l.b16 %v769
        %v842 = vunpack.c.l.b16 %v771
        %v843 = vunpack.c.l.b16 %v772
        %v844 = vpack.c.b16 %v813, %v812
        %v845 = vpack.c.b16 %v815, %v814
        %v846 = vpack.c.b16 %v817, %v816
        %v847 = vpack.c.b16 %v819, %v818
        %v848 = vpack.c.b16 %v821, %v820
        %v849 = vpack.c.b16 %v823, %v822
        %v850 = vpack.c.b16 %v825, %v824
        %v851 = vpack.c.b16 %v827, %v826
        %v852 = vpack.c.b16 %v829, %v828
        %v853 = vpack.c.b16 %v831, %v830
        %v854 = vpack.c.b16 %v833, %v832
        %v855 = vpack.c.b16 %v835, %v834
        %v856 = vpack.c.b16 %v837, %v836
        %v857 = vpack.c.b16 %v839, %v838
        %v858 = vpack.c.b16 %v841, %v840
        %v859 = vpack.c.b16 %v843, %v842
        %vm876 = vcmask 261120
        %877 = vst.msk [vmem:[#allocation3] sm:$0xff] %vm876, %v844
        %878 = vst.msk [vmem:[#allocation3 + $0x18] sm:$0xff] %vm876, %v845
        %879 = vst.msk [vmem:[#allocation3 + $0x30] sm:$0xff] %vm876, %v846
        %880 = vst.msk [vmem:[#allocation3 + $0x48] sm:$0xff] %vm876, %v847
        %881 = vst.msk [vmem:[#allocation3 + $0x60] sm:$0xff] %vm876, %v848
        %882 = vst.msk [vmem:[#allocation3 + $0x78] sm:$0xff] %vm876, %v849
        %883 = vst.msk [vmem:[#allocation3 + $0x90] sm:$0xff] %vm876, %v850
        %884 = vst.msk [vmem:[#allocation3 + $0xa8] sm:$0xff] %vm876, %v851
        %885 = vst.msk [vmem:[#allocation3 + $0xc0] sm:$0xff] %vm876, %v852
        %886 = vst.msk [vmem:[#allocation3 + $0xd8] sm:$0xff] %vm876, %v853
        %887 = vst.msk [vmem:[#allocation3 + $0xf0] sm:$0xff] %vm876, %v854
        %888 = vst.msk [vmem:[#allocation3 + $0x108] sm:$0xff] %vm876, %v855
        %889 = vst.msk [vmem:[#allocation3 + $0x120] sm:$0xff] %vm876, %v856
        %890 = vst.msk [vmem:[#allocation3 + $0x138] sm:$0xff] %vm876, %v857
        %891 = vst.msk [vmem:[#allocation3 + $0x150] sm:$0xff] %vm876, %v858
        %892 = vst.msk [vmem:[#allocation3 + $0x168] sm:$0xff] %vm876, %v859
        %vm893 = vsmask.f32 3328
        %vm894 = vsmask.f32 7440
        %vm895 = vmor %vm893, %vm894
        %v897 = vshrl.u32 %v726, 16
        %v899 = vrot.slane %v897, 4
        %v900 = vshll.u32 %v726, 16
        %v902 = vrot.slane %v900, 5
        %v903 = vor.u32 %v899, %v902
        %v904 = vrot.slane %v903, 4
        %v906 = vshll.u32 %v727, 16
        %v908 = vrot.slane %v906, 5
        %v909 = vsel %vm895, %v904, %v908
        %v910 = vshrl.u32 %v727, 16
        %v912 = vrot.slane %v910, 4
        %v913 = vor.u32 %v912, %v908
        %v914 = vrot.slane %v913, 4
        %v916 = vshll.u32 %v728, 16
        %v918 = vrot.slane %v916, 5
        %v919 = vsel %vm895, %v914, %v918
        %v921 = vshrl.u32 %v729, 16
        %v923 = vrot.slane %v921, 4
        %v924 = vshll.u32 %v729, 16
        %v926 = vrot.slane %v924, 5
        %v927 = vor.u32 %v923, %v926
        %v928 = vrot.slane %v927, 4
        %v930 = vshll.u32 %v730, 16
        %v932 = vrot.slane %v930, 5
        %v933 = vsel %vm895, %v928, %v932
        %v934 = vshrl.u32 %v730, 16
        %v936 = vrot.slane %v934, 4
        %v937 = vor.u32 %v936, %v932
        %v938 = vrot.slane %v937, 4
        %v940 = vshll.u32 %v731, 16
        %v942 = vrot.slane %v940, 5
        %v943 = vsel %vm895, %v938, %v942
        %v945 = vshrl.u32 %v732, 16
        %v947 = vrot.slane %v945, 4
        %v948 = vshll.u32 %v732, 16
        %v950 = vrot.slane %v948, 5
        %v951 = vor.u32 %v947, %v950
        %v952 = vrot.slane %v951, 4
        %v954 = vshll.u32 %v733, 16
        %v956 = vrot.slane %v954, 5
        %v957 = vsel %vm895, %v952, %v956
        %v958 = vshrl.u32 %v733, 16
        %v960 = vrot.slane %v958, 4
        %v961 = vor.u32 %v960, %v956
        %v962 = vrot.slane %v961, 4
        %v964 = vshll.u32 %v734, 16
        %v966 = vrot.slane %v964, 5
        %v967 = vsel %vm895, %v962, %v966
        %v969 = vshrl.u32 %v735, 16
        %v971 = vrot.slane %v969, 4
        %v972 = vshll.u32 %v735, 16
        %v974 = vrot.slane %v972, 5
        %v975 = vor.u32 %v971, %v974
        %v976 = vrot.slane %v975, 4
        %v978 = vshll.u32 %v736, 16
        %v980 = vrot.slane %v978, 5
        %v981 = vsel %vm895, %v976, %v980
        %v982 = vshrl.u32 %v736, 16
        %v984 = vrot.slane %v982, 4
        %v985 = vor.u32 %v984, %v980
        %v986 = vrot.slane %v985, 4
        %v988 = vshll.u32 %v737, 16
        %v990 = vrot.slane %v988, 5
        %v991 = vsel %vm895, %v986, %v990
        %v993 = vshrl.u32 %v738, 16
        %v995 = vrot.slane %v993, 4
        %v996 = vshll.u32 %v738, 16
        %v998 = vrot.slane %v996, 5
        %v999 = vor.u32 %v995, %v998
        %v1000 = vrot.slane %v999, 4
        %v1002 = vshll.u32 %v739, 16
        %v1004 = vrot.slane %v1002, 5
        %v1005 = vsel %vm895, %v1000, %v1004
        %v1006 = vshrl.u32 %v739, 16
        %v1008 = vrot.slane %v1006, 4
        %v1009 = vor.u32 %v1008, %v1004
        %v1010 = vrot.slane %v1009, 4
        %v1012 = vshll.u32 %v740, 16
        %v1014 = vrot.slane %v1012, 5
        %v1015 = vsel %vm895, %v1010, %v1014
        %v1017 = vshrl.u32 %v741, 16
        %v1019 = vrot.slane %v1017, 4
        %v1020 = vshll.u32 %v741, 16
        %v1022 = vrot.slane %v1020, 5
        %v1023 = vor.u32 %v1019, %v1022
        %v1024 = vrot.slane %v1023, 4
        %v1026 = vshll.u32 %v742, 16
        %v1028 = vrot.slane %v1026, 5
        %v1029 = vsel %vm895, %v1024, %v1028
        %v1030 = vshrl.u32 %v742, 16
        %v1032 = vrot.slane %v1030, 4
        %v1033 = vor.u32 %v1032, %v1028
        %v1034 = vrot.slane %v1033, 4
        %v1036 = vshll.u32 %v743, 16
        %v1038 = vrot.slane %v1036, 5
        %v1039 = vsel %vm895, %v1034, %v1038
        %v1041 = vshrl.u32 %v744, 16
        %v1043 = vrot.slane %v1041, 4
        %v1044 = vshll.u32 %v744, 16
        %v1046 = vrot.slane %v1044, 5
        %v1047 = vor.u32 %v1043, %v1046
        %v1048 = vrot.slane %v1047, 4
        %v1050 = vshll.u32 %v745, 16
        %v1052 = vrot.slane %v1050, 5
        %v1053 = vsel %vm895, %v1048, %v1052
        %v1054 = vshrl.u32 %v745, 16
        %v1056 = vrot.slane %v1054, 4
        %v1057 = vor.u32 %v1056, %v1052
        %v1058 = vrot.slane %v1057, 4
        %v1060 = vshll.u32 %v746, 16
        %v1062 = vrot.slane %v1060, 5
        %v1063 = vsel %vm895, %v1058, %v1062
        %v1065 = vshrl.u32 %v747, 16
        %v1067 = vrot.slane %v1065, 4
        %v1068 = vshll.u32 %v747, 16
        %v1070 = vrot.slane %v1068, 5
        %v1071 = vor.u32 %v1067, %v1070
        %v1072 = vrot.slane %v1071, 4
        %v1074 = vshll.u32 %v748, 16
        %v1076 = vrot.slane %v1074, 5
        %v1077 = vsel %vm895, %v1072, %v1076
        %v1078 = vshrl.u32 %v748, 16
        %v1080 = vrot.slane %v1078, 4
        %v1081 = vor.u32 %v1080, %v1076
        %v1082 = vrot.slane %v1081, 4
        %v1084 = vshll.u32 %v749, 16
        %v1086 = vrot.slane %v1084, 5
        %v1087 = vsel %vm895, %v1082, %v1086
        %v1089 = vshrl.u32 %v750, 16
        %v1091 = vrot.slane %v1089, 4
        %v1092 = vshll.u32 %v750, 16
        %v1094 = vrot.slane %v1092, 5
        %v1095 = vor.u32 %v1091, %v1094
        %v1096 = vrot.slane %v1095, 4
        %v1098 = vshll.u32 %v751, 16
        %v1100 = vrot.slane %v1098, 5
        %v1101 = vsel %vm895, %v1096, %v1100
        %v1102 = vshrl.u32 %v751, 16
        %v1104 = vrot.slane %v1102, 4
        %v1105 = vor.u32 %v1104, %v1100
        %v1106 = vrot.slane %v1105, 4
        %v1108 = vshll.u32 %v752, 16
        %v1110 = vrot.slane %v1108, 5
        %v1111 = vsel %vm895, %v1106, %v1110
        %v1113 = vshrl.u32 %v753, 16
        %v1115 = vrot.slane %v1113, 4
        %v1116 = vshll.u32 %v753, 16
        %v1118 = vrot.slane %v1116, 5
        %v1119 = vor.u32 %v1115, %v1118
        %v1120 = vrot.slane %v1119, 4
        %v1122 = vshll.u32 %v754, 16
        %v1124 = vrot.slane %v1122, 5
        %v1125 = vsel %vm895, %v1120, %v1124
        %v1126 = vshrl.u32 %v754, 16
        %v1128 = vrot.slane %v1126, 4
        %v1129 = vor.u32 %v1128, %v1124
        %v1130 = vrot.slane %v1129, 4
        %v1132 = vshll.u32 %v755, 16
        %v1134 = vrot.slane %v1132, 5
        %v1135 = vsel %vm895, %v1130, %v1134
        %v1137 = vshrl.u32 %v756, 16
        %v1139 = vrot.slane %v1137, 4
        %v1140 = vshll.u32 %v756, 16
        %v1142 = vrot.slane %v1140, 5
        %v1143 = vor.u32 %v1139, %v1142
        %v1144 = vrot.slane %v1143, 4
        %v1146 = vshll.u32 %v757, 16
        %v1148 = vrot.slane %v1146, 5
        %v1149 = vsel %vm895, %v1144, %v1148
        %v1150 = vshrl.u32 %v757, 16
        %v1152 = vrot.slane %v1150, 4
        %v1153 = vor.u32 %v1152, %v1148
        %v1154 = vrot.slane %v1153, 4
        %v1156 = vshll.u32 %v758, 16
        %v1158 = vrot.slane %v1156, 5
        %v1159 = vsel %vm895, %v1154, %v1158
        %v1161 = vshrl.u32 %v759, 16
        %v1163 = vrot.slane %v1161, 4
        %v1164 = vshll.u32 %v759, 16
        %v1166 = vrot.slane %v1164, 5
        %v1167 = vor.u32 %v1163, %v1166
        %v1168 = vrot.slane %v1167, 4
        %v1170 = vshll.u32 %v760, 16
        %v1172 = vrot.slane %v1170, 5
        %v1173 = vsel %vm895, %v1168, %v1172
        %v1174 = vshrl.u32 %v760, 16
        %v1176 = vrot.slane %v1174, 4
        %v1177 = vor.u32 %v1176, %v1172
        %v1178 = vrot.slane %v1177, 4
        %v1180 = vshll.u32 %v761, 16
        %v1182 = vrot.slane %v1180, 5
        %v1183 = vsel %vm895, %v1178, %v1182
        %v1185 = vshrl.u32 %v762, 16
        %v1187 = vrot.slane %v1185, 4
        %v1188 = vshll.u32 %v762, 16
        %v1190 = vrot.slane %v1188, 5
        %v1191 = vor.u32 %v1187, %v1190
        %v1192 = vrot.slane %v1191, 4
        %v1194 = vshll.u32 %v763, 16
        %v1196 = vrot.slane %v1194, 5
        %v1197 = vsel %vm895, %v1192, %v1196
        %v1198 = vshrl.u32 %v763, 16
        %v1200 = vrot.slane %v1198, 4
        %v1201 = vor.u32 %v1200, %v1196
        %v1202 = vrot.slane %v1201, 4
        %v1204 = vshll.u32 %v764, 16
        %v1206 = vrot.slane %v1204, 5
        %v1207 = vsel %vm895, %v1202, %v1206
        %v1209 = vshrl.u32 %v765, 16
        %v1211 = vrot.slane %v1209, 4
        %v1212 = vshll.u32 %v765, 16
        %v1214 = vrot.slane %v1212, 5
        %v1215 = vor.u32 %v1211, %v1214
        %v1216 = vrot.slane %v1215, 4
        %v1218 = vshll.u32 %v766, 16
        %v1220 = vrot.slane %v1218, 5
        %v1221 = vsel %vm895, %v1216, %v1220
        %v1222 = vshrl.u32 %v766, 16
        %v1224 = vrot.slane %v1222, 4
        %v1225 = vor.u32 %v1224, %v1220
        %v1226 = vrot.slane %v1225, 4
        %v1228 = vshll.u32 %v767, 16
        %v1230 = vrot.slane %v1228, 5
        %v1231 = vsel %vm895, %v1226, %v1230
        %v1233 = vshrl.u32 %v768, 16
        %v1235 = vrot.slane %v1233, 4
        %v1236 = vshll.u32 %v768, 16
        %v1238 = vrot.slane %v1236, 5
        %v1239 = vor.u32 %v1235, %v1238
        %v1240 = vrot.slane %v1239, 4
        %v1242 = vshll.u32 %v769, 16
        %v1244 = vrot.slane %v1242, 5
        %v1245 = vsel %vm895, %v1240, %v1244
        %v1246 = vshrl.u32 %v769, 16
        %v1248 = vrot.slane %v1246, 4
        %v1249 = vor.u32 %v1248, %v1244
        %v1250 = vrot.slane %v1249, 4
        %v1252 = vshll.u32 %v770, 16
        %v1254 = vrot.slane %v1252, 5
        %v1255 = vsel %vm895, %v1250, %v1254
        %v1257 = vshrl.u32 %v771, 16
        %v1259 = vrot.slane %v1257, 4
        %v1260 = vshll.u32 %v771, 16
        %v1262 = vrot.slane %v1260, 5
        %v1263 = vor.u32 %v1259, %v1262
        %v1264 = vrot.slane %v1263, 4
        %v1266 = vshll.u32 %v772, 16
        %v1268 = vrot.slane %v1266, 5
        %v1269 = vsel %vm895, %v1264, %v1268
        %v1270 = vshrl.u32 %v772, 16
        %v1272 = vrot.slane %v1270, 4
        %v1273 = vor.u32 %v1272, %v1268
        %v1274 = vrot.slane %v1273, 4
        %v1276 = vshll.u32 %v773, 16
        %v1278 = vrot.slane %v1276, 5
        %v1279 = vsel %vm895, %v1274, %v1278
        %v1280 = vunpack.c.l.b16 %v909
        %v1281 = vunpack.c.l.b16 %v919
        %v1282 = vunpack.c.l.b16 %v933
        %v1283 = vunpack.c.l.b16 %v943
        %v1284 = vunpack.c.l.b16 %v957
        %v1285 = vunpack.c.l.b16 %v967
        %v1286 = vunpack.c.l.b16 %v981
        %v1287 = vunpack.c.l.b16 %v991
        %v1288 = vunpack.c.l.b16 %v1005
        %v1289 = vunpack.c.l.b16 %v1015
        %v1290 = vunpack.c.l.b16 %v1029
        %v1291 = vunpack.c.l.b16 %v1039
        %v1292 = vunpack.c.l.b16 %v1053
        %v1293 = vunpack.c.l.b16 %v1063
        %v1294 = vunpack.c.l.b16 %v1077
        %v1295 = vunpack.c.l.b16 %v1087
        %v1296 = vunpack.c.l.b16 %v1101
        %v1297 = vunpack.c.l.b16 %v1111
        %v1298 = vunpack.c.l.b16 %v1125
        %v1299 = vunpack.c.l.b16 %v1135
        %v1300 = vunpack.c.l.b16 %v1149
        %v1301 = vunpack.c.l.b16 %v1159
        %v1302 = vunpack.c.l.b16 %v1173
        %v1303 = vunpack.c.l.b16 %v1183
        %v1304 = vunpack.c.l.b16 %v1197
        %v1305 = vunpack.c.l.b16 %v1207
        %v1306 = vunpack.c.l.b16 %v1221
        %v1307 = vunpack.c.l.b16 %v1231
        %v1308 = vunpack.c.l.b16 %v1245
        %v1309 = vunpack.c.l.b16 %v1255
        %v1310 = vunpack.c.l.b16 %v1269
        %v1311 = vunpack.c.l.b16 %v1279
        %v1312 = vpack.c.b16 %v1281, %v1280
        %v1313 = vpack.c.b16 %v1283, %v1282
        %v1314 = vpack.c.b16 %v1285, %v1284
        %v1315 = vpack.c.b16 %v1287, %v1286
        %v1316 = vpack.c.b16 %v1289, %v1288
        %v1317 = vpack.c.b16 %v1291, %v1290
        %v1318 = vpack.c.b16 %v1293, %v1292
        %v1319 = vpack.c.b16 %v1295, %v1294
        %v1320 = vpack.c.b16 %v1297, %v1296
        %v1321 = vpack.c.b16 %v1299, %v1298
        %v1322 = vpack.c.b16 %v1301, %v1300
        %v1323 = vpack.c.b16 %v1303, %v1302
        %v1324 = vpack.c.b16 %v1305, %v1304
        %v1325 = vpack.c.b16 %v1307, %v1306
        %v1326 = vpack.c.b16 %v1309, %v1308
        %v1327 = vpack.c.b16 %v1311, %v1310
        %1328 = vrot.lane.b32.xlu0 %v1312, 32
        %v1329 = vpop.permute.xlu0 %1328
        %1330 = vrot.lane.b32.xlu0 %v1313, 32
        %v1331 = vpop.permute.xlu0 %1330
        %1332 = vrot.lane.b32.xlu0 %v1314, 32
        %v1333 = vpop.permute.xlu0 %1332
        %1334 = vrot.lane.b32.xlu0 %v1315, 32
        %v1335 = vpop.permute.xlu0 %1334
        %1336 = vrot.lane.b32.xlu0 %v1316, 32
        %v1337 = vpop.permute.xlu0 %1336
        %1338 = vrot.lane.b32.xlu0 %v1317, 32
        %v1339 = vpop.permute.xlu0 %1338
        %1340 = vrot.lane.b32.xlu0 %v1318, 32
        %v1341 = vpop.permute.xlu0 %1340
        %1342 = vrot.lane.b32.xlu0 %v1319, 32
        %v1343 = vpop.permute.xlu0 %1342
        %1344 = vrot.lane.b32.xlu0 %v1320, 32
        %v1345 = vpop.permute.xlu0 %1344
        %1346 = vrot.lane.b32.xlu0 %v1321, 32
        %v1347 = vpop.permute.xlu0 %1346
        %1348 = vrot.lane.b32.xlu0 %v1322, 32
        %v1349 = vpop.permute.xlu0 %1348
        %1350 = vrot.lane.b32.xlu0 %v1323, 32
        %v1351 = vpop.permute.xlu0 %1350
        %1352 = vrot.lane.b32.xlu0 %v1324, 32
        %v1353 = vpop.permute.xlu0 %1352
        %1354 = vrot.lane.b32.xlu0 %v1325, 32
        %v1355 = vpop.permute.xlu0 %1354
        %1356 = vrot.lane.b32.xlu0 %v1326, 32
        %v1357 = vpop.permute.xlu0 %1356
        %1358 = vrot.lane.b32.xlu0 %v1327, 32
        %v1359 = vpop.permute.xlu0 %1358
        %vm1376 = vcmask 523520
        %1377 = vst.msk [vmem:[#allocation3] sm:$0xff] %vm1376, %v1329
        %1378 = vst.msk [vmem:[#allocation3 + $0x18] sm:$0xff] %vm1376, %v1331
        %1379 = vst.msk [vmem:[#allocation3 + $0x30] sm:$0xff] %vm1376, %v1333
        %1380 = vst.msk [vmem:[#allocation3 + $0x48] sm:$0xff] %vm1376, %v1335
        %1381 = vst.msk [vmem:[#allocation3 + $0x60] sm:$0xff] %vm1376, %v1337
        %1382 = vst.msk [vmem:[#allocation3 + $0x78] sm:$0xff] %vm1376, %v1339
        %1383 = vst.msk [vmem:[#allocation3 + $0x90] sm:$0xff] %vm1376, %v1341
        %1384 = vst.msk [vmem:[#allocation3 + $0xa8] sm:$0xff] %vm1376, %v1343
        %1385 = vst.msk [vmem:[#allocation3 + $0xc0] sm:$0xff] %vm1376, %v1345
        %1386 = vst.msk [vmem:[#allocation3 + $0xd8] sm:$0xff] %vm1376, %v1347
        %1387 = vst.msk [vmem:[#allocation3 + $0xf0] sm:$0xff] %vm1376, %v1349
        %1388 = vst.msk [vmem:[#allocation3 + $0x108] sm:$0xff] %vm1376, %v1351
        %1389 = vst.msk [vmem:[#allocation3 + $0x120] sm:$0xff] %vm1376, %v1353
        %1390 = vst.msk [vmem:[#allocation3 + $0x138] sm:$0xff] %vm1376, %v1355
        %1391 = vst.msk [vmem:[#allocation3 + $0x150] sm:$0xff] %vm1376, %v1357
        %1392 = vst.msk [vmem:[#allocation3 + $0x168] sm:$0xff] %vm1376, %v1359
        %vm1409 = vcmask 1042432
        %vm1410 = vcmask 1046532
        %vm1411 = vmor %vm1409, %vm1410
        %v1412 = vrot.slane %v726, 5
        %v1413 = vrot.slane %v1412, 4
        %v1414 = vrot.slane %v727, 5
        %v1415 = vsel %vm1411, %v1413, %v1414
        %v1416 = vrot.slane %v1414, 4
        %v1417 = vrot.slane %v728, 5
        %v1418 = vsel %vm1411, %v1416, %v1417
        %v1419 = vrot.slane %v729, 5
        %v1420 = vrot.slane %v1419, 4
        %v1421 = vrot.slane %v730, 5
        %v1422 = vsel %vm1411, %v1420, %v1421
        %v1423 = vrot.slane %v1421, 4
        %v1424 = vrot.slane %v731, 5
        %v1425 = vsel %vm1411, %v1423, %v1424
        %v1426 = vrot.slane %v732, 5
        %v1427 = vrot.slane %v1426, 4
        %v1428 = vrot.slane %v733, 5
        %v1429 = vsel %vm1411, %v1427, %v1428
        %v1430 = vrot.slane %v1428, 4
        %v1431 = vrot.slane %v734, 5
        %v1432 = vsel %vm1411, %v1430, %v1431
        %v1433 = vrot.slane %v735, 5
        %v1434 = vrot.slane %v1433, 4
        %v1435 = vrot.slane %v736, 5
        %v1436 = vsel %vm1411, %v1434, %v1435
        %v1437 = vrot.slane %v1435, 4
        %v1438 = vrot.slane %v737, 5
        %v1439 = vsel %vm1411, %v1437, %v1438
        %v1440 = vrot.slane %v738, 5
        %v1441 = vrot.slane %v1440, 4
        %v1442 = vrot.slane %v739, 5
        %v1443 = vsel %vm1411, %v1441, %v1442
        %v1444 = vrot.slane %v1442, 4
        %v1445 = vrot.slane %v740, 5
        %v1446 = vsel %vm1411, %v1444, %v1445
        %v1447 = vrot.slane %v741, 5
        %v1448 = vrot.slane %v1447, 4
        %v1449 = vrot.slane %v742, 5
        %v1450 = vsel %vm1411, %v1448, %v1449
        %v1451 = vrot.slane %v1449, 4
        %v1452 = vrot.slane %v743, 5
        %v1453 = vsel %vm1411, %v1451, %v1452
        %v1454 = vrot.slane %v744, 5
        %v1455 = vrot.slane %v1454, 4
        %v1456 = vrot.slane %v745, 5
        %v1457 = vsel %vm1411, %v1455, %v1456
        %v1458 = vrot.slane %v1456, 4
        %v1459 = vrot.slane %v746, 5
        %v1460 = vsel %vm1411, %v1458, %v1459
        %v1461 = vrot.slane %v747, 5
        %v1462 = vrot.slane %v1461, 4
        %v1463 = vrot.slane %v748, 5
        %v1464 = vsel %vm1411, %v1462, %v1463
        %v1465 = vrot.slane %v1463, 4
        %v1466 = vrot.slane %v749, 5
        %v1467 = vsel %vm1411, %v1465, %v1466
        %v1468 = vrot.slane %v750, 5
        %v1469 = vrot.slane %v1468, 4
        %v1470 = vrot.slane %v751, 5
        %v1471 = vsel %vm1411, %v1469, %v1470
        %v1472 = vrot.slane %v1470, 4
        %v1473 = vrot.slane %v752, 5
        %v1474 = vsel %vm1411, %v1472, %v1473
        %v1475 = vrot.slane %v753, 5
        %v1476 = vrot.slane %v1475, 4
        %v1477 = vrot.slane %v754, 5
        %v1478 = vsel %vm1411, %v1476, %v1477
        %v1479 = vrot.slane %v1477, 4
        %v1480 = vrot.slane %v755, 5
        %v1481 = vsel %vm1411, %v1479, %v1480
        %v1482 = vrot.slane %v756, 5
        %v1483 = vrot.slane %v1482, 4
        %v1484 = vrot.slane %v757, 5
        %v1485 = vsel %vm1411, %v1483, %v1484
        %v1486 = vrot.slane %v1484, 4
        %v1487 = vrot.slane %v758, 5
        %v1488 = vsel %vm1411, %v1486, %v1487
        %v1489 = vrot.slane %v759, 5
        %v1490 = vrot.slane %v1489, 4
        %v1491 = vrot.slane %v760, 5
        %v1492 = vsel %vm1411, %v1490, %v1491
        %v1493 = vrot.slane %v1491, 4
        %v1494 = vrot.slane %v761, 5
        %v1495 = vsel %vm1411, %v1493, %v1494
        %v1496 = vrot.slane %v762, 5
        %v1497 = vrot.slane %v1496, 4
        %v1498 = vrot.slane %v763, 5
        %v1499 = vsel %vm1411, %v1497, %v1498
        %v1500 = vrot.slane %v1498, 4
        %v1501 = vrot.slane %v764, 5
        %v1502 = vsel %vm1411, %v1500, %v1501
        %v1503 = vrot.slane %v765, 5
        %v1504 = vrot.slane %v1503, 4
        %v1505 = vrot.slane %v766, 5
        %v1506 = vsel %vm1411, %v1504, %v1505
        %v1507 = vrot.slane %v1505, 4
        %v1508 = vrot.slane %v767, 5
        %v1509 = vsel %vm1411, %v1507, %v1508
        %v1510 = vrot.slane %v768, 5
        %v1511 = vrot.slane %v1510, 4
        %v1512 = vrot.slane %v769, 5
        %v1513 = vsel %vm1411, %v1511, %v1512
        %v1514 = vrot.slane %v1512, 4
        %v1515 = vrot.slane %v770, 5
        %v1516 = vsel %vm1411, %v1514, %v1515
        %v1517 = vrot.slane %v771, 5
        %v1518 = vrot.slane %v1517, 4
        %v1519 = vrot.slane %v772, 5
        %v1520 = vsel %vm1411, %v1518, %v1519
        %v1521 = vrot.slane %v1519, 4
        %v1522 = vrot.slane %v773, 5
        %v1523 = vsel %vm1411, %v1521, %v1522
        %v1524 = vunpack.c.l.b16 %v1415
        %v1525 = vunpack.c.l.b16 %v1418
        %v1526 = vunpack.c.l.b16 %v1422
        %v1527 = vunpack.c.l.b16 %v1425
        %v1528 = vunpack.c.l.b16 %v1429
        %v1529 = vunpack.c.l.b16 %v1432
        %v1530 = vunpack.c.l.b16 %v1436
        %v1531 = vunpack.c.l.b16 %v1439
        %v1532 = vunpack.c.l.b16 %v1443
        %v1533 = vunpack.c.l.b16 %v1446
        %v1534 = vunpack.c.l.b16 %v1450
        %v1535 = vunpack.c.l.b16 %v1453
        %v1536 = vunpack.c.l.b16 %v1457
        %v1537 = vunpack.c.l.b16 %v1460
        %v1538 = vunpack.c.l.b16 %v1464
        %v1539 = vunpack.c.l.b16 %v1467
        %v1540 = vunpack.c.l.b16 %v1471
        %v1541 = vunpack.c.l.b16 %v1474
        %v1542 = vunpack.c.l.b16 %v1478
        %v1543 = vunpack.c.l.b16 %v1481
        %v1544 = vunpack.c.l.b16 %v1485
        %v1545 = vunpack.c.l.b16 %v1488
        %v1546 = vunpack.c.l.b16 %v1492
        %v1547 = vunpack.c.l.b16 %v1495
        %v1548 = vunpack.c.l.b16 %v1499
        %v1549 = vunpack.c.l.b16 %v1502
        %v1550 = vunpack.c.l.b16 %v1506
        %v1551 = vunpack.c.l.b16 %v1509
        %v1552 = vunpack.c.l.b16 %v1513
        %v1553 = vunpack.c.l.b16 %v1516
        %v1554 = vunpack.c.l.b16 %v1520
        %v1555 = vunpack.c.l.b16 %v1523
        %v1556 = vpack.c.b16 %v1525, %v1524
        %v1557 = vpack.c.b16 %v1527, %v1526
        %v1558 = vpack.c.b16 %v1529, %v1528
        %v1559 = vpack.c.b16 %v1531, %v1530
        %v1560 = vpack.c.b16 %v1533, %v1532
        %v1561 = vpack.c.b16 %v1535, %v1534
        %v1562 = vpack.c.b16 %v1537, %v1536
        %v1563 = vpack.c.b16 %v1539, %v1538
        %v1564 = vpack.c.b16 %v1541, %v1540
        %v1565 = vpack.c.b16 %v1543, %v1542
        %v1566 = vpack.c.b16 %v1545, %v1544
        %v1567 = vpack.c.b16 %v1547, %v1546
        %v1568 = vpack.c.b16 %v1549, %v1548
        %v1569 = vpack.c.b16 %v1551, %v1550
        %v1570 = vpack.c.b16 %v1553, %v1552
        %v1571 = vpack.c.b16 %v1555, %v1554
        %1572 = vrot.lane.b32.xlu0 %v1556, 64
        %v1573 = vpop.permute.xlu0 %1572
        %1574 = vrot.lane.b32.xlu0 %v1557, 64
        %v1575 = vpop.permute.xlu0 %1574
        %1576 = vrot.lane.b32.xlu0 %v1558, 64
        %v1577 = vpop.permute.xlu0 %1576
        %1578 = vrot.lane.b32.xlu0 %v1559, 64
        %v1579 = vpop.permute.xlu0 %1578
        %1580 = vrot.lane.b32.xlu0 %v1560, 64
        %v1581 = vpop.permute.xlu0 %1580
        %1582 = vrot.lane.b32.xlu0 %v1561, 64
        %v1583 = vpop.permute.xlu0 %1582
        %1584 = vrot.lane.b32.xlu0 %v1562, 64
        %v1585 = vpop.permute.xlu0 %1584
        %1586 = vrot.lane.b32.xlu0 %v1563, 64
        %v1587 = vpop.permute.xlu0 %1586
        %1588 = vrot.lane.b32.xlu0 %v1564, 64
        %v1589 = vpop.permute.xlu0 %1588
        %1590 = vrot.lane.b32.xlu0 %v1565, 64
        %v1591 = vpop.permute.xlu0 %1590
        %1592 = vrot.lane.b32.xlu0 %v1566, 64
        %v1593 = vpop.permute.xlu0 %1592
        %1594 = vrot.lane.b32.xlu0 %v1567, 64
        %v1595 = vpop.permute.xlu0 %1594
        %1596 = vrot.lane.b32.xlu0 %v1568, 64
        %v1597 = vpop.permute.xlu0 %1596
        %1598 = vrot.lane.b32.xlu0 %v1569, 64
        %v1599 = vpop.permute.xlu0 %1598
        %1600 = vrot.lane.b32.xlu0 %v1570, 64
        %v1601 = vpop.permute.xlu0 %1600
        %1602 = vrot.lane.b32.xlu0 %v1571, 64
        %v1603 = vpop.permute.xlu0 %1602
        %vm1620 = vcmask 785920
        %1621 = vst.msk [vmem:[#allocation3] sm:$0xff] %vm1620, %v1573
        %1622 = vst.msk [vmem:[#allocation3 + $0x18] sm:$0xff] %vm1620, %v1575
        %1623 = vst.msk [vmem:[#allocation3 + $0x30] sm:$0xff] %vm1620, %v1577
        %1624 = vst.msk [vmem:[#allocation3 + $0x48] sm:$0xff] %vm1620, %v1579
        %1625 = vst.msk [vmem:[#allocation3 + $0x60] sm:$0xff] %vm1620, %v1581
        %1626 = vst.msk [vmem:[#allocation3 + $0x78] sm:$0xff] %vm1620, %v1583
        %1627 = vst.msk [vmem:[#allocation3 + $0x90] sm:$0xff] %vm1620, %v1585
        %1628 = vst.msk [vmem:[#allocation3 + $0xa8] sm:$0xff] %vm1620, %v1587
        %1629 = vst.msk [vmem:[#allocation3 + $0xc0] sm:$0xff] %vm1620, %v1589
        %1630 = vst.msk [vmem:[#allocation3 + $0xd8] sm:$0xff] %vm1620, %v1591
        %1631 = vst.msk [vmem:[#allocation3 + $0xf0] sm:$0xff] %vm1620, %v1593
        %1632 = vst.msk [vmem:[#allocation3 + $0x108] sm:$0xff] %vm1620, %v1595
        %1633 = vst.msk [vmem:[#allocation3 + $0x120] sm:$0xff] %vm1620, %v1597
        %1634 = vst.msk [vmem:[#allocation3 + $0x138] sm:$0xff] %vm1620, %v1599
        %1635 = vst.msk [vmem:[#allocation3 + $0x150] sm:$0xff] %vm1620, %v1601
        %1636 = vst.msk [vmem:[#allocation3 + $0x168] sm:$0xff] %vm1620, %v1603
        %v1639 = vunpack.c.l.b16 %v774
        %v1640 = vunpack.c.l.b16 %v775
        %v1641 = vpack.c.b16 %v1640, %v1639
        %1642 = vrot.lane.b32.xlu0 %v845, 96
        %v1643 = vpop.permute.xlu0 %1642
        %1644 = vrot.lane.b32.xlu0 %v846, 96
        %v1645 = vpop.permute.xlu0 %1644
        %1646 = vrot.lane.b32.xlu0 %v847, 96
        %v1647 = vpop.permute.xlu0 %1646
        %1648 = vrot.lane.b32.xlu0 %v848, 96
        %v1649 = vpop.permute.xlu0 %1648
        %1650 = vrot.lane.b32.xlu0 %v849, 96
        %v1651 = vpop.permute.xlu0 %1650
        %1652 = vrot.lane.b32.xlu0 %v850, 96
        %v1653 = vpop.permute.xlu0 %1652
        %1654 = vrot.lane.b32.xlu0 %v851, 96
        %v1655 = vpop.permute.xlu0 %1654
        %1656 = vrot.lane.b32.xlu0 %v852, 96
        %v1657 = vpop.permute.xlu0 %1656
        %1658 = vrot.lane.b32.xlu0 %v853, 96
        %v1659 = vpop.permute.xlu0 %1658
        %1660 = vrot.lane.b32.xlu0 %v854, 96
        %v1661 = vpop.permute.xlu0 %1660
        %1662 = vrot.lane.b32.xlu0 %v855, 96
        %v1663 = vpop.permute.xlu0 %1662
        %1664 = vrot.lane.b32.xlu0 %v856, 96
        %v1665 = vpop.permute.xlu0 %1664
        %1666 = vrot.lane.b32.xlu0 %v857, 96
        %v1667 = vpop.permute.xlu0 %1666
        %1668 = vrot.lane.b32.xlu0 %v858, 96
        %v1669 = vpop.permute.xlu0 %1668
        %1670 = vrot.lane.b32.xlu0 %v859, 96
        %v1671 = vpop.permute.xlu0 %1670
        %1672 = vrot.lane.b32.xlu0 %v1641, 96
        %v1673 = vpop.permute.xlu0 %1672
        %vm1690 = vcmask 1048320
        %1691 = vst.msk [vmem:[#allocation3] sm:$0xff] %vm1690, %v1643
        %1692 = vst.msk [vmem:[#allocation3 + $0x18] sm:$0xff] %vm1690, %v1645
        %1693 = vst.msk [vmem:[#allocation3 + $0x30] sm:$0xff] %vm1690, %v1647
        %1694 = vst.msk [vmem:[#allocation3 + $0x48] sm:$0xff] %vm1690, %v1649
        %1695 = vst.msk [vmem:[#allocation3 + $0x60] sm:$0xff] %vm1690, %v1651
        %1696 = vst.msk [vmem:[#allocation3 + $0x78] sm:$0xff] %vm1690, %v1653
        %1697 = vst.msk [vmem:[#allocation3 + $0x90] sm:$0xff] %vm1690, %v1655
        %1698 = vst.msk [vmem:[#allocation3 + $0xa8] sm:$0xff] %vm1690, %v1657
        %1699 = vst.msk [vmem:[#allocation3 + $0xc0] sm:$0xff] %vm1690, %v1659
        %1700 = vst.msk [vmem:[#allocation3 + $0xd8] sm:$0xff] %vm1690, %v1661
        %1701 = vst.msk [vmem:[#allocation3 + $0xf0] sm:$0xff] %vm1690, %v1663
        %1702 = vst.msk [vmem:[#allocation3 + $0x108] sm:$0xff] %vm1690, %v1665
        %1703 = vst.msk [vmem:[#allocation3 + $0x120] sm:$0xff] %vm1690, %v1667
        %1704 = vst.msk [vmem:[#allocation3 + $0x138] sm:$0xff] %vm1690, %v1669
        %1705 = vst.msk [vmem:[#allocation3 + $0x150] sm:$0xff] %vm1690, %v1671
        %1706 = vst.msk [vmem:[#allocation3 + $0x168] sm:$0xff] %vm1690, %v1673
        %v1708 = vshrl.u32 %v774, 16
        %v1710 = vrot.slane %v1708, 4
        %v1711 = vshll.u32 %v774, 16
        %v1713 = vrot.slane %v1711, 5
        %v1714 = vor.u32 %v1710, %v1713
        %v1715 = vrot.slane %v1714, 4
        %v1717 = vshll.u32 %v775, 16
        %v1719 = vrot.slane %v1717, 5
        %v1720 = vsel %vm895, %v1715, %v1719
        %v1721 = vshrl.u32 %v775, 16
        %v1723 = vrot.slane %v1721, 4
        %v1724 = vor.u32 %v1723, %v1719
        %v1725 = vrot.slane %v1724, 4
        %v1727 = vshll.u32 %v776, 16
        %v1729 = vrot.slane %v1727, 5
        %v1730 = vsel %vm895, %v1725, %v1729
        %v1731 = vunpack.c.l.b16 %v1720
        %v1732 = vunpack.c.l.b16 %v1730
        %v1733 = vpack.c.b16 %v1732, %v1731
        %1750 = vst.msk [vmem:[#allocation3 + $0x8] sm:$0xff] %vm876, %v1313
        %1751 = vst.msk [vmem:[#allocation3 + $0x20] sm:$0xff] %vm876, %v1314
        %1752 = vst.msk [vmem:[#allocation3 + $0x38] sm:$0xff] %vm876, %v1315
        %1753 = vst.msk [vmem:[#allocation3 + $0x50] sm:$0xff] %vm876, %v1316
        %1754 = vst.msk [vmem:[#allocation3 + $0x68] sm:$0xff] %vm876, %v1317
        %1755 = vst.msk [vmem:[#allocation3 + $0x80] sm:$0xff] %vm876, %v1318
        %1756 = vst.msk [vmem:[#allocation3 + $0x98] sm:$0xff] %vm876, %v1319
        %1757 = vst.msk [vmem:[#allocation3 + $0xb0] sm:$0xff] %vm876, %v1320
        %1758 = vst.msk [vmem:[#allocation3 + $0xc8] sm:$0xff] %vm876, %v1321
        %1759 = vst.msk [vmem:[#allocation3 + $0xe0] sm:$0xff] %vm876, %v1322
        %1760 = vst.msk [vmem:[#allocation3 + $0xf8] sm:$0xff] %vm876, %v1323
        %1761 = vst.msk [vmem:[#allocation3 + $0x110] sm:$0xff] %vm876, %v1324
        %1762 = vst.msk [vmem:[#allocation3 + $0x128] sm:$0xff] %vm876, %v1325
        %1763 = vst.msk [vmem:[#allocation3 + $0x140] sm:$0xff] %vm876, %v1326
        %1764 = vst.msk [vmem:[#allocation3 + $0x158] sm:$0xff] %vm876, %v1327
        %1765 = vst.msk [vmem:[#allocation3 + $0x170] sm:$0xff] %vm876, %v1733
        %v1767 = vrot.slane %v774, 5
        %v1768 = vrot.slane %v1767, 4
        %v1769 = vrot.slane %v775, 5
        %v1770 = vsel %vm1411, %v1768, %v1769
        %v1771 = vrot.slane %v1769, 4
        %v1772 = vrot.slane %v776, 5
        %v1773 = vsel %vm1411, %v1771, %v1772
        %v1774 = vunpack.c.l.b16 %v1770
        %v1775 = vunpack.c.l.b16 %v1773
        %v1776 = vpack.c.b16 %v1775, %v1774
        %1777 = vrot.lane.b32.xlu0 %v1557, 32
        %v1778 = vpop.permute.xlu0 %1777
        %1779 = vrot.lane.b32.xlu0 %v1558, 32
        %v1780 = vpop.permute.xlu0 %1779
        %1781 = vrot.lane.b32.xlu0 %v1559, 32
        %v1782 = vpop.permute.xlu0 %1781
        %1783 = vrot.lane.b32.xlu0 %v1560, 32
        %v1784 = vpop.permute.xlu0 %1783
        %1785 = vrot.lane.b32.xlu0 %v1561, 32
        %v1786 = vpop.permute.xlu0 %1785
        %1787 = vrot.lane.b32.xlu0 %v1562, 32
        %v1788 = vpop.permute.xlu0 %1787
        %1789 = vrot.lane.b32.xlu0 %v1563, 32
        %v1790 = vpop.permute.xlu0 %1789
        %1791 = vrot.lane.b32.xlu0 %v1564, 32
        %v1792 = vpop.permute.xlu0 %1791
        %1793 = vrot.lane.b32.xlu0 %v1565, 32
        %v1794 = vpop.permute.xlu0 %1793
        %1795 = vrot.lane.b32.xlu0 %v1566, 32
        %v1796 = vpop.permute.xlu0 %1795
        %1797 = vrot.lane.b32.xlu0 %v1567, 32
        %v1798 = vpop.permute.xlu0 %1797
        %1799 = vrot.lane.b32.xlu0 %v1568, 32
        %v1800 = vpop.permute.xlu0 %1799
        %1801 = vrot.lane.b32.xlu0 %v1569, 32
        %v1802 = vpop.permute.xlu0 %1801
        %1803 = vrot.lane.b32.xlu0 %v1570, 32
        %v1804 = vpop.permute.xlu0 %1803
        %1805 = vrot.lane.b32.xlu0 %v1571, 32
        %v1806 = vpop.permute.xlu0 %1805
        %1807 = vrot.lane.b32.xlu0 %v1776, 32
        %v1808 = vpop.permute.xlu0 %1807
        %1825 = vst.msk [vmem:[#allocation3 + $0x8] sm:$0xff] %vm1376, %v1778
        %1826 = vst.msk [vmem:[#allocation3 + $0x20] sm:$0xff] %vm1376, %v1780
        %1827 = vst.msk [vmem:[#allocation3 + $0x38] sm:$0xff] %vm1376, %v1782
        %1828 = vst.msk [vmem:[#allocation3 + $0x50] sm:$0xff] %vm1376, %v1784
        %1829 = vst.msk [vmem:[#allocation3 + $0x68] sm:$0xff] %vm1376, %v1786
        %1830 = vst.msk [vmem:[#allocation3 + $0x80] sm:$0xff] %vm1376, %v1788
        %1831 = vst.msk [vmem:[#allocation3 + $0x98] sm:$0xff] %vm1376, %v1790
        %1832 = vst.msk [vmem:[#allocation3 + $0xb0] sm:$0xff] %vm1376, %v1792
        %1833 = vst.msk [vmem:[#allocation3 + $0xc8] sm:$0xff] %vm1376, %v1794
        %1834 = vst.msk [vmem:[#allocation3 + $0xe0] sm:$0xff] %vm1376, %v1796
        %1835 = vst.msk [vmem:[#allocation3 + $0xf8] sm:$0xff] %vm1376, %v1798
        %1836 = vst.msk [vmem:[#allocation3 + $0x110] sm:$0xff] %vm1376, %v1800
        %1837 = vst.msk [vmem:[#allocation3 + $0x128] sm:$0xff] %vm1376, %v1802
        %1838 = vst.msk [vmem:[#allocation3 + $0x140] sm:$0xff] %vm1376, %v1804
        %1839 = vst.msk [vmem:[#allocation3 + $0x158] sm:$0xff] %vm1376, %v1806
        %1840 = vst.msk [vmem:[#allocation3 + $0x170] sm:$0xff] %vm1376, %v1808
        %v1843 = vunpack.c.l.b16 %v777
        %v1844 = vunpack.c.l.b16 %v778
        %v1845 = vpack.c.b16 %v1844, %v1843
        %1846 = vrot.lane.b32.xlu0 %v846, 64
        %v1847 = vpop.permute.xlu0 %1846
        %1848 = vrot.lane.b32.xlu0 %v847, 64
        %v1849 = vpop.permute.xlu0 %1848
        %1850 = vrot.lane.b32.xlu0 %v848, 64
        %v1851 = vpop.permute.xlu0 %1850
        %1852 = vrot.lane.b32.xlu0 %v849, 64
        %v1853 = vpop.permute.xlu0 %1852
        %1854 = vrot.lane.b32.xlu0 %v850, 64
        %v1855 = vpop.permute.xlu0 %1854
        %1856 = vrot.lane.b32.xlu0 %v851, 64
        %v1857 = vpop.permute.xlu0 %1856
        %1858 = vrot.lane.b32.xlu0 %v852, 64
        %v1859 = vpop.permute.xlu0 %1858
        %1860 = vrot.lane.b32.xlu0 %v853, 64
        %v1861 = vpop.permute.xlu0 %1860
        %1862 = vrot.lane.b32.xlu0 %v854, 64
        %v1863 = vpop.permute.xlu0 %1862
        %1864 = vrot.lane.b32.xlu0 %v855, 64
        %v1865 = vpop.permute.xlu0 %1864
        %1866 = vrot.lane.b32.xlu0 %v856, 64
        %v1867 = vpop.permute.xlu0 %1866
        %1868 = vrot.lane.b32.xlu0 %v857, 64
        %v1869 = vpop.permute.xlu0 %1868
        %1870 = vrot.lane.b32.xlu0 %v858, 64
        %v1871 = vpop.permute.xlu0 %1870
        %1872 = vrot.lane.b32.xlu0 %v859, 64
        %v1873 = vpop.permute.xlu0 %1872
        %1874 = vrot.lane.b32.xlu0 %v1641, 64
        %v1875 = vpop.permute.xlu0 %1874
        %1876 = vrot.lane.b32.xlu0 %v1845, 64
        %v1877 = vpop.permute.xlu0 %1876
        %1894 = vst.msk [vmem:[#allocation3 + $0x8] sm:$0xff] %vm1620, %v1847
        %1895 = vst.msk [vmem:[#allocation3 + $0x20] sm:$0xff] %vm1620, %v1849
        %1896 = vst.msk [vmem:[#allocation3 + $0x38] sm:$0xff] %vm1620, %v1851
        %1897 = vst.msk [vmem:[#allocation3 + $0x50] sm:$0xff] %vm1620, %v1853
        %1898 = vst.msk [vmem:[#allocation3 + $0x68] sm:$0xff] %vm1620, %v1855
        %1899 = vst.msk [vmem:[#allocation3 + $0x80] sm:$0xff] %vm1620, %v1857
        %1900 = vst.msk [vmem:[#allocation3 + $0x98] sm:$0xff] %vm1620, %v1859
        %1901 = vst.msk [vmem:[#allocation3 + $0xb0] sm:$0xff] %vm1620, %v1861
        %1902 = vst.msk [vmem:[#allocation3 + $0xc8] sm:$0xff] %vm1620, %v1863
        %1903 = vst.msk [vmem:[#allocation3 + $0xe0] sm:$0xff] %vm1620, %v1865
        %1904 = vst.msk [vmem:[#allocation3 + $0xf8] sm:$0xff] %vm1620, %v1867
        %1905 = vst.msk [vmem:[#allocation3 + $0x110] sm:$0xff] %vm1620, %v1869
        %1906 = vst.msk [vmem:[#allocation3 + $0x128] sm:$0xff] %vm1620, %v1871
        %1907 = vst.msk [vmem:[#allocation3 + $0x140] sm:$0xff] %vm1620, %v1873
        %1908 = vst.msk [vmem:[#allocation3 + $0x158] sm:$0xff] %vm1620, %v1875
        %1909 = vst.msk [vmem:[#allocation3 + $0x170] sm:$0xff] %vm1620, %v1877
        %v1911 = vshrl.u32 %v777, 16
        %v1913 = vrot.slane %v1911, 4
        %v1914 = vshll.u32 %v777, 16
        %v1916 = vrot.slane %v1914, 5
        %v1917 = vor.u32 %v1913, %v1916
        %v1918 = vrot.slane %v1917, 4
        %v1920 = vshll.u32 %v778, 16
        %v1922 = vrot.slane %v1920, 5
        %v1923 = vsel %vm895, %v1918, %v1922
        %v1924 = vshrl.u32 %v778, 16
        %v1926 = vrot.slane %v1924, 4
        %v1927 = vor.u32 %v1926, %v1922
        %v1928 = vrot.slane %v1927, 4
        %v1930 = vshll.u32 %v779, 16
        %v1932 = vrot.slane %v1930, 5
        %v1933 = vsel %vm895, %v1928, %v1932
        %v1934 = vunpack.c.l.b16 %v1923
        %v1935 = vunpack.c.l.b16 %v1933
        %v1936 = vpack.c.b16 %v1935, %v1934
        %1937 = vrot.lane.b32.xlu0 %v1314, 96
        %v1938 = vpop.permute.xlu0 %1937
        %1939 = vrot.lane.b32.xlu0 %v1315, 96
        %v1940 = vpop.permute.xlu0 %1939
        %1941 = vrot.lane.b32.xlu0 %v1316, 96
        %v1942 = vpop.permute.xlu0 %1941
        %1943 = vrot.lane.b32.xlu0 %v1317, 96
        %v1944 = vpop.permute.xlu0 %1943
        %1945 = vrot.lane.b32.xlu0 %v1318, 96
        %v1946 = vpop.permute.xlu0 %1945
        %1947 = vrot.lane.b32.xlu0 %v1319, 96
        %v1948 = vpop.permute.xlu0 %1947
        %1949 = vrot.lane.b32.xlu0 %v1320, 96
        %v1950 = vpop.permute.xlu0 %1949
        %1951 = vrot.lane.b32.xlu0 %v1321, 96
        %v1952 = vpop.permute.xlu0 %1951
        %1953 = vrot.lane.b32.xlu0 %v1322, 96
        %v1954 = vpop.permute.xlu0 %1953
        %1955 = vrot.lane.b32.xlu0 %v1323, 96
        %v1956 = vpop.permute.xlu0 %1955
        %1957 = vrot.lane.b32.xlu0 %v1324, 96
        %v1958 = vpop.permute.xlu0 %1957
        %1959 = vrot.lane.b32.xlu0 %v1325, 96
        %v1960 = vpop.permute.xlu0 %1959
        %1961 = vrot.lane.b32.xlu0 %v1326, 96
        %v1962 = vpop.permute.xlu0 %1961
        %1963 = vrot.lane.b32.xlu0 %v1327, 96
        %v1964 = vpop.permute.xlu0 %1963
        %1965 = vrot.lane.b32.xlu0 %v1733, 96
        %v1966 = vpop.permute.xlu0 %1965
        %1967 = vrot.lane.b32.xlu0 %v1936, 96
        %v1968 = vpop.permute.xlu0 %1967
        %1985 = vst.msk [vmem:[#allocation3 + $0x8] sm:$0xff] %vm1690, %v1938
        %1986 = vst.msk [vmem:[#allocation3 + $0x20] sm:$0xff] %vm1690, %v1940
        %1987 = vst.msk [vmem:[#allocation3 + $0x38] sm:$0xff] %vm1690, %v1942
        %1988 = vst.msk [vmem:[#allocation3 + $0x50] sm:$0xff] %vm1690, %v1944
        %1989 = vst.msk [vmem:[#allocation3 + $0x68] sm:$0xff] %vm1690, %v1946
        %1990 = vst.msk [vmem:[#allocation3 + $0x80] sm:$0xff] %vm1690, %v1948
        %1991 = vst.msk [vmem:[#allocation3 + $0x98] sm:$0xff] %vm1690, %v1950
        %1992 = vst.msk [vmem:[#allocation3 + $0xb0] sm:$0xff] %vm1690, %v1952
        %1993 = vst.msk [vmem:[#allocation3 + $0xc8] sm:$0xff] %vm1690, %v1954
        %1994 = vst.msk [vmem:[#allocation3 + $0xe0] sm:$0xff] %vm1690, %v1956
        %1995 = vst.msk [vmem:[#allocation3 + $0xf8] sm:$0xff] %vm1690, %v1958
        %1996 = vst.msk [vmem:[#allocation3 + $0x110] sm:$0xff] %vm1690, %v1960
        %1997 = vst.msk [vmem:[#allocation3 + $0x128] sm:$0xff] %vm1690, %v1962
        %1998 = vst.msk [vmem:[#allocation3 + $0x140] sm:$0xff] %vm1690, %v1964
        %1999 = vst.msk [vmem:[#allocation3 + $0x158] sm:$0xff] %vm1690, %v1966
        %2000 = vst.msk [vmem:[#allocation3 + $0x170] sm:$0xff] %vm1690, %v1968
        %v2002 = vrot.slane %v777, 5
        %v2003 = vrot.slane %v2002, 4
        %v2004 = vrot.slane %v778, 5
        %v2005 = vsel %vm1411, %v2003, %v2004
        %v2006 = vrot.slane %v2004, 4
        %v2007 = vrot.slane %v779, 5
        %v2008 = vsel %vm1411, %v2006, %v2007
        %v2009 = vunpack.c.l.b16 %v2005
        %v2010 = vunpack.c.l.b16 %v2008
        %v2011 = vpack.c.b16 %v2010, %v2009
        %2028 = vst.msk [vmem:[#allocation3 + $0x10] sm:$0xff] %vm876, %v1558
        %2029 = vst.msk [vmem:[#allocation3 + $0x28] sm:$0xff] %vm876, %v1559
        %2030 = vst.msk [vmem:[#allocation3 + $0x40] sm:$0xff] %vm876, %v1560
        %2031 = vst.msk [vmem:[#allocation3 + $0x58] sm:$0xff] %vm876, %v1561
        %2032 = vst.msk [vmem:[#allocation3 + $0x70] sm:$0xff] %vm876, %v1562
        %2033 = vst.msk [vmem:[#allocation3 + $0x88] sm:$0xff] %vm876, %v1563
        %2034 = vst.msk [vmem:[#allocation3 + $0xa0] sm:$0xff] %vm876, %v1564
        %2035 = vst.msk [vmem:[#allocation3 + $0xb8] sm:$0xff] %vm876, %v1565
        %2036 = vst.msk [vmem:[#allocation3 + $0xd0] sm:$0xff] %vm876, %v1566
        %2037 = vst.msk [vmem:[#allocation3 + $0xe8] sm:$0xff] %vm876, %v1567
        %2038 = vst.msk [vmem:[#allocation3 + $0x100] sm:$0xff] %vm876, %v1568
        %2039 = vst.msk [vmem:[#allocation3 + $0x118] sm:$0xff] %vm876, %v1569
        %2040 = vst.msk [vmem:[#allocation3 + $0x130] sm:$0xff] %vm876, %v1570
        %2041 = vst.msk [vmem:[#allocation3 + $0x148] sm:$0xff] %vm876, %v1571
        %2042 = vst.msk [vmem:[#allocation3 + $0x160] sm:$0xff] %vm876, %v1776
        %2043 = vst.msk [vmem:[#allocation3 + $0x178] sm:$0xff] %vm876, %v2011
        %v2044 = vld [vmem:[#allocation3] sm:$0xff]
        %v2045 = vld [vmem:[#allocation3 + $0x8] sm:$0xff]
        %v2046 = vld [vmem:[#allocation3 + $0x10] sm:$0xff]
        %v2047 = vld [vmem:[#allocation3 + $0x18] sm:$0xff]
        %v2048 = vld [vmem:[#allocation3 + $0x20] sm:$0xff]
        %v2049 = vld [vmem:[#allocation3 + $0x28] sm:$0xff]
        %v2050 = vld [vmem:[#allocation3 + $0x30] sm:$0xff]
        %v2051 = vld [vmem:[#allocation3 + $0x38] sm:$0xff]
        %v2052 = vld [vmem:[#allocation3 + $0x40] sm:$0xff]
        %v2053 = vld [vmem:[#allocation3 + $0x48] sm:$0xff]
        %v2054 = vld [vmem:[#allocation3 + $0x50] sm:$0xff]
        %v2055 = vld [vmem:[#allocation3 + $0x58] sm:$0xff]
        %v2056 = vld [vmem:[#allocation3 + $0x60] sm:$0xff]
        %v2057 = vld [vmem:[#allocation3 + $0x68] sm:$0xff]
        %v2058 = vld [vmem:[#allocation3 + $0x70] sm:$0xff]
        %v2059 = vld [vmem:[#allocation3 + $0x78] sm:$0xff]
        %v2060 = vld [vmem:[#allocation3 + $0x80] sm:$0xff]
        %v2061 = vld [vmem:[#allocation3 + $0x88] sm:$0xff]
        %v2062 = vld [vmem:[#allocation3 + $0x90] sm:$0xff]
        %v2063 = vld [vmem:[#allocation3 + $0x98] sm:$0xff]
        %v2064 = vld [vmem:[#allocation3 + $0xa0] sm:$0xff]
        %v2065 = vld [vmem:[#allocation3 + $0xa8] sm:$0xff]
        %v2066 = vld [vmem:[#allocation3 + $0xb0] sm:$0xff]
        %v2067 = vld [vmem:[#allocation3 + $0xb8] sm:$0xff]
        %v2068 = vld [vmem:[#allocation3 + $0xc0] sm:$0xff]
        %v2069 = vld [vmem:[#allocation3 + $0xc8] sm:$0xff]
        %v2070 = vld [vmem:[#allocation3 + $0xd0] sm:$0xff]
        %v2071 = vld [vmem:[#allocation3 + $0xd8] sm:$0xff]
        %v2072 = vld [vmem:[#allocation3 + $0xe0] sm:$0xff]
        %v2073 = vld [vmem:[#allocation3 + $0xe8] sm:$0xff]
        %v2074 = vld [vmem:[#allocation3 + $0xf0] sm:$0xff]
        %v2075 = vld [vmem:[#allocation3 + $0xf8] sm:$0xff]
        %v2076 = vld [vmem:[#allocation3 + $0x100] sm:$0xff]
        %v2077 = vld [vmem:[#allocation3 + $0x108] sm:$0xff]
        %v2078 = vld [vmem:[#allocation3 + $0x110] sm:$0xff]
        %v2079 = vld [vmem:[#allocation3 + $0x118] sm:$0xff]
        %v2080 = vld [vmem:[#allocation3 + $0x120] sm:$0xff]
        %v2081 = vld [vmem:[#allocation3 + $0x128] sm:$0xff]
        %v2082 = vld [vmem:[#allocation3 + $0x130] sm:$0xff]
        %v2083 = vld [vmem:[#allocation3 + $0x138] sm:$0xff]
        %v2084 = vld [vmem:[#allocation3 + $0x140] sm:$0xff]
        %v2085 = vld [vmem:[#allocation3 + $0x148] sm:$0xff]
        %v2086 = vld [vmem:[#allocation3 + $0x150] sm:$0xff]
        %v2087 = vld [vmem:[#allocation3 + $0x158] sm:$0xff]
        %v2088 = vld [vmem:[#allocation3 + $0x160] sm:$0xff]
        %v2089 = vld [vmem:[#allocation3 + $0x168] sm:$0xff]
        %v2090 = vld [vmem:[#allocation3 + $0x170] sm:$0xff]
        %v2091 = vld [vmem:[#allocation3 + $0x178] sm:$0xff]
        %v2092 = vld [vmem:[%s1] sm:$0xf]
        %v2093 = vld [vmem:[%s1 + $0x4] sm:$0xf]
        %v2094 = vld [vmem:[%s1 + $0x8] sm:$0xf]
        %v2095 = vld [vmem:[%s1 + $0xc] sm:$0xf]
        %v2096 = vld [vmem:[%s1 + $0x10] sm:$0xf]
        %v2097 = vld [vmem:[%s1 + $0x14] sm:$0xf]
        %v2098 = vld [vmem:[%s1 + $0x18] sm:$0xf]
        %v2099 = vld [vmem:[%s1 + $0x1c] sm:$0xf]
        %v2100 = vld [vmem:[%s1 + $0x20] sm:$0xf]
        %v2101 = vld [vmem:[%s1 + $0x24] sm:$0xf]
        %v2102 = vld [vmem:[%s1 + $0x28] sm:$0xf]
        %v2103 = vld [vmem:[%s1 + $0x2c] sm:$0xf]
        %v2104 = vld [vmem:[%s1 + $0x30] sm:$0xf]
        %v2105 = vld [vmem:[%s1 + $0x34] sm:$0xf]
        %v2106 = vld [vmem:[%s1 + $0x38] sm:$0xf]
        %v2107 = vld [vmem:[%s1 + $0x3c] sm:$0xf]
        %v2108 = vld [vmem:[%s1 + $0x40] sm:$0xf]
        %v2109 = vld [vmem:[%s1 + $0x44] sm:$0xf]
        %v2110 = vld [vmem:[%s1 + $0x48] sm:$0xf]
        %v2111 = vld [vmem:[%s1 + $0x4c] sm:$0xf]
        %v2112 = vld [vmem:[%s1 + $0x50] sm:$0xf]
        %v2113 = vld [vmem:[%s1 + $0x54] sm:$0xf]
        %v2114 = vld [vmem:[%s1 + $0x58] sm:$0xf]
        %v2115 = vld [vmem:[%s1 + $0x5c] sm:$0xf]
        %v2116 = vld [vmem:[%s1 + $0x60] sm:$0xf]
        %v2117 = vld [vmem:[%s1 + $0x64] sm:$0xf]
        %v2118 = vld [vmem:[%s1 + $0x68] sm:$0xf]
        %v2119 = vld [vmem:[%s1 + $0x6c] sm:$0xf]
        %v2120 = vld [vmem:[%s1 + $0x70] sm:$0xf]
        %v2121 = vld [vmem:[%s1 + $0x74] sm:$0xf]
        %v2122 = vld [vmem:[%s1 + $0x78] sm:$0xf]
        %v2123 = vld [vmem:[%s1 + $0x7c] sm:$0xf]
        %v2124 = vld [vmem:[%s1 + $0x80] sm:$0xf]
        %v2125 = vld [vmem:[%s1 + $0x84] sm:$0xf]
        %v2126 = vld [vmem:[%s1 + $0x88] sm:$0xf]
        %v2127 = vld [vmem:[%s1 + $0x8c] sm:$0xf]
        %v2164 = vunpack.c.l.b16 %v2092
        %v2165 = vunpack.c.l.b16 %v2093
        %v2166 = vunpack.c.l.b16 %v2094
        %v2167 = vunpack.c.l.b16 %v2095
        %v2168 = vunpack.c.l.b16 %v2096
        %v2169 = vunpack.c.l.b16 %v2097
        %v2170 = vunpack.c.l.b16 %v2098
        %v2171 = vunpack.c.l.b16 %v2099
        %v2172 = vunpack.c.l.b16 %v2100
        %v2173 = vunpack.c.l.b16 %v2101
        %v2174 = vunpack.c.l.b16 %v2102
        %v2175 = vunpack.c.l.b16 %v2103
        %v2176 = vunpack.c.l.b16 %v2104
        %v2177 = vunpack.c.l.b16 %v2105
        %v2178 = vunpack.c.l.b16 %v2106
        %v2179 = vunpack.c.l.b16 %v2107
        %v2180 = vunpack.c.l.b16 %v2108
        %v2181 = vunpack.c.l.b16 %v2109
        %v2182 = vunpack.c.l.b16 %v2110
        %v2183 = vunpack.c.l.b16 %v2111
        %v2184 = vunpack.c.l.b16 %v2112
        %v2185 = vunpack.c.l.b16 %v2113
        %v2186 = vunpack.c.l.b16 %v2114
        %v2187 = vunpack.c.l.b16 %v2115
        %v2188 = vunpack.c.l.b16 %v2116
        %v2189 = vunpack.c.l.b16 %v2117
        %v2190 = vunpack.c.l.b16 %v2118
        %v2191 = vunpack.c.l.b16 %v2119
        %v2192 = vunpack.c.l.b16 %v2120
        %v2193 = vunpack.c.l.b16 %v2121
        %v2194 = vunpack.c.l.b16 %v2122
        %v2195 = vunpack.c.l.b16 %v2123
        %v2196 = vunpack.c.l.b16 %v2124
        %v2197 = vunpack.c.l.b16 %v2125
        %v2198 = vunpack.c.l.b16 %v2126
        %v2199 = vunpack.c.l.b16 %v2127
        %v2200 = vpack.c.b16 %v2165, %v2164
        %v2201 = vpack.c.b16 %v2167, %v2166
        %v2202 = vpack.c.b16 %v2169, %v2168
        %v2203 = vpack.c.b16 %v2171, %v2170
        %v2204 = vpack.c.b16 %v2173, %v2172
        %v2205 = vpack.c.b16 %v2175, %v2174
        %v2206 = vpack.c.b16 %v2177, %v2176
        %v2207 = vpack.c.b16 %v2179, %v2178
        %v2208 = vpack.c.b16 %v2181, %v2180
        %v2209 = vpack.c.b16 %v2183, %v2182
        %v2210 = vpack.c.b16 %v2185, %v2184
        %v2211 = vpack.c.b16 %v2187, %v2186
        %v2212 = vpack.c.b16 %v2189, %v2188
        %v2213 = vpack.c.b16 %v2191, %v2190
        %v2214 = vpack.c.b16 %v2193, %v2192
        %v2215 = vpack.c.b16 %v2195, %v2194
        %v2216 = vpack.c.b16 %v2197, %v2196
        %v2217 = vpack.c.b16 %v2199, %v2198
        %v2237 = vsel %vm876, %v2046, 0
        %v2240 = vsel %vm876, %v2049, 0
        %v2243 = vsel %vm876, %v2052, 0
        %v2246 = vsel %vm876, %v2055, 0
        %v2249 = vsel %vm876, %v2058, 0
        %v2252 = vsel %vm876, %v2061, 0
        %v2255 = vsel %vm876, %v2064, 0
        %v2258 = vsel %vm876, %v2067, 0
        %v2261 = vsel %vm876, %v2070, 0
        %v2264 = vsel %vm876, %v2073, 0
        %v2267 = vsel %vm876, %v2076, 0
        %v2270 = vsel %vm876, %v2079, 0
        %v2273 = vsel %vm876, %v2082, 0
        %v2276 = vsel %vm876, %v2085, 0
        %v2279 = vsel %vm876, %v2088, 0
        %v2282 = vsel %vm876, %v2091, 0
        %2284 = vmatprep.subr.bf16.mxu0 0
        %2285 = vmatpush1.bf16.msra.mxu0 %v2200
        %2286 = vmatprep.subr.bf16.mxu0 0
        %2287 = vmatpush1.bf16.msra.mxu0 %v2201
        %2288 = vmatprep.subr.bf16.mxu0 0
        %2289 = vmatpush1.bf16.msra.mxu0 %v2202
        %2290 = vmatprep.subr.bf16.mxu0 0
        %2291 = vmatpush1.bf16.msra.mxu0 %v2203
        %2292 = vmatprep.subr.bf16.mxu0 0
        %2293 = vmatpush1.bf16.msra.mxu0 %v2204
        %2294 = vmatprep.subr.bf16.mxu0 0
        %2295 = vmatpush1.bf16.msra.mxu0 %v2205
        %2296 = vmatprep.subr.bf16.mxu0 0
        %2297 = vmatpush1.bf16.msra.mxu0 %v2206
        %2298 = vmatprep.subr.bf16.mxu0 0
        %2299 = vmatpush1.bf16.msra.mxu0 %v2207
        %2300 = vmatprep.subr.bf16.mxu0 0
        %2301 = vmatpush1.bf16.msra.mxu0 %v2208
        %2302 = vmatprep.subr.bf16.mxu0 0
        %2303 = vmatpush1.bf16.msra.mxu0 %v2209
        %2304 = vmatprep.subr.bf16.mxu0 0
        %2305 = vmatpush1.bf16.msra.mxu0 %v2210
        %2306 = vmatprep.subr.bf16.mxu0 0
        %2307 = vmatpush1.bf16.msra.mxu0 %v2211
        %2308 = vmatprep.subr.bf16.mxu0 0
        %2309 = vmatpush1.bf16.msra.mxu0 %v2212
        %2310 = vmatprep.subr.bf16.mxu0 0
        %2311 = vmatpush1.bf16.msra.mxu0 %v2213
        %2312 = vmatprep.subr.bf16.mxu0 0
        %2313 = vmatpush1.bf16.msra.mxu0 %v2214
        %2314 = vmatprep.subr.bf16.mxu0 0
        %2315 = vmatpush1.bf16.msra.mxu0 %v2215
        %2316 = vmatprep.mubr.bf16.mxu0 %v2045
        %2317 = vmatmul.mubr.bf16.gmra.mrb[0].mxu0 %v2044
        %v2318 = vpop.f32.mrb[0].mxu0
        %v2319 = vadd.f32 0.0, %v2318
        %v2320 = vpop.f32.mrb[0].mxu0
        %v2321 = vpop.f32.mrb[0].mxu0
        %v2322 = vadd.f32 0.0, %v2321
        %v2323 = vpop.f32.mrb[0].mxu0
        %2324 = vmatprep.mubr.bf16.mxu0 %v2048
        %2325 = vmatmul.mubr.bf16.gmra.mrb[0].mxu0 %v2047
        %v2326 = vpop.f32.mrb[0].mxu0
        %v2327 = vadd.f32 0.0, %v2326
        %v2328 = vpop.f32.mrb[0].mxu0
        %v2329 = vpop.f32.mrb[0].mxu0
        %v2330 = vadd.f32 0.0, %v2329
        %v2331 = vpop.f32.mrb[0].mxu0
        %2332 = vmatprep.mubr.bf16.mxu0 %v2051
        %2333 = vmatmul.mubr.bf16.gmra.mrb[0].mxu0 %v2050
        %v2334 = vpop.f32.mrb[0].mxu0
        %v2335 = vadd.f32 0.0, %v2334
        %v2336 = vpop.f32.mrb[0].mxu0
        %v2337 = vpop.f32.mrb[0].mxu0
        %v2338 = vadd.f32 0.0, %v2337
        %v2339 = vpop.f32.mrb[0].mxu0
        %2340 = vmatprep.mubr.bf16.mxu0 %v2054
        %2341 = vmatmul.mubr.bf16.gmra.mrb[0].mxu0 %v2053
        %v2342 = vpop.f32.mrb[0].mxu0
        %v2343 = vadd.f32 0.0, %v2342
        %v2344 = vpop.f32.mrb[0].mxu0
        %v2345 = vpop.f32.mrb[0].mxu0
        %v2346 = vadd.f32 0.0, %v2345
        %v2347 = vpop.f32.mrb[0].mxu0
        %2348 = vmatprep.mubr.bf16.mxu0 %v2057
        %2349 = vmatmul.mubr.bf16.gmra.mrb[0].mxu0 %v2056
        %v2350 = vpop.f32.mrb[0].mxu0
        %v2351 = vadd.f32 0.0, %v2350
        %v2352 = vpop.f32.mrb[0].mxu0
        %v2353 = vpop.f32.mrb[0].mxu0
        %v2354 = vadd.f32 0.0, %v2353
        %v2355 = vpop.f32.mrb[0].mxu0
        %2356 = vmatprep.mubr.bf16.mxu0 %v2060
        %2357 = vmatmul.mubr.bf16.gmra.mrb[0].mxu0 %v2059
        %v2358 = vpop.f32.mrb[0].mxu0
        %v2359 = vadd.f32 0.0, %v2358
        %v2360 = vpop.f32.mrb[0].mxu0
        %v2361 = vpop.f32.mrb[0].mxu0
        %v2362 = vadd.f32 0.0, %v2361
        %v2363 = vpop.f32.mrb[0].mxu0
        %2364 = vmatprep.mubr.bf16.mxu0 %v2063
        %2365 = vmatmul.mubr.bf16.gmra.mrb[0].mxu0 %v2062
        %v2366 = vpop.f32.mrb[0].mxu0
        %v2367 = vadd.f32 0.0, %v2366
        %v2368 = vpop.f32.mrb[0].mxu0
        %v2369 = vpop.f32.mrb[0].mxu0
        %v2370 = vadd.f32 0.0, %v2369
        %v2371 = vpop.f32.mrb[0].mxu0
        %2372 = vmatprep.mubr.bf16.mxu0 %v2066
        %2373 = vmatmul.mubr.bf16.gmra.mrb[0].mxu0 %v2065
        %v2374 = vpop.f32.mrb[0].mxu0
        %v2375 = vadd.f32 0.0, %v2374
        %v2376 = vpop.f32.mrb[0].mxu0
        %v2377 = vpop.f32.mrb[0].mxu0
        %v2378 = vadd.f32 0.0, %v2377
        %v2379 = vpop.f32.mrb[0].mxu0
        %2380 = vmatprep.mubr.bf16.mxu0 %v2069
        %2381 = vmatmul.mubr.bf16.gmra.mrb[0].mxu0 %v2068
        %v2382 = vpop.f32.mrb[0].mxu0
        %v2383 = vadd.f32 0.0, %v2382
        %v2384 = vpop.f32.mrb[0].mxu0
        %v2385 = vpop.f32.mrb[0].mxu0
        %v2386 = vadd.f32 0.0, %v2385
        %v2387 = vpop.f32.mrb[0].mxu0
        %2388 = vmatprep.mubr.bf16.mxu0 %v2072
        %2389 = vmatmul.mubr.bf16.gmra.mrb[0].mxu0 %v2071
        %v2390 = vpop.f32.mrb[0].mxu0
        %v2391 = vadd.f32 0.0, %v2390
        %v2392 = vpop.f32.mrb[0].mxu0
        %v2393 = vpop.f32.mrb[0].mxu0
        %v2394 = vadd.f32 0.0, %v2393
        %v2395 = vpop.f32.mrb[0].mxu0
        %2396 = vmatprep.mubr.bf16.mxu0 %v2075
        %2397 = vmatmul.mubr.bf16.gmra.mrb[0].mxu0 %v2074
        %v2398 = vpop.f32.mrb[0].mxu0
        %v2399 = vadd.f32 0.0, %v2398
        %v2400 = vpop.f32.mrb[0].mxu0
        %v2401 = vpop.f32.mrb[0].mxu0
        %v2402 = vadd.f32 0.0, %v2401
        %v2403 = vpop.f32.mrb[0].mxu0
        %2404 = vmatprep.mubr.bf16.mxu0 %v2078
        %2405 = vmatmul.mubr.bf16.gmra.mrb[0].mxu0 %v2077
        %v2406 = vpop.f32.mrb[0].mxu0
        %v2407 = vadd.f32 0.0, %v2406
        %v2408 = vpop.f32.mrb[0].mxu0
        %v2409 = vpop.f32.mrb[0].mxu0
        %v2410 = vadd.f32 0.0, %v2409
        %v2411 = vpop.f32.mrb[0].mxu0
        %2412 = vmatprep.mubr.bf16.mxu0 %v2081
        %2413 = vmatmul.mubr.bf16.gmra.mrb[0].mxu0 %v2080
        %v2414 = vpop.f32.mrb[0].mxu0
        %v2415 = vadd.f32 0.0, %v2414
        %v2416 = vpop.f32.mrb[0].mxu0
        %v2417 = vpop.f32.mrb[0].mxu0
        %v2418 = vadd.f32 0.0, %v2417
        %v2419 = vpop.f32.mrb[0].mxu0
        %2420 = vmatprep.mubr.bf16.mxu0 %v2084
        %2421 = vmatmul.mubr.bf16.gmra.mrb[0].mxu0 %v2083
        %v2422 = vpop.f32.mrb[0].mxu0
        %v2423 = vadd.f32 0.0, %v2422
        %v2424 = vpop.f32.mrb[0].mxu0
        %v2425 = vpop.f32.mrb[0].mxu0
        %v2426 = vadd.f32 0.0, %v2425
        %v2427 = vpop.f32.mrb[0].mxu0
        %2428 = vmatprep.mubr.bf16.mxu0 %v2087
        %2429 = vmatmul.mubr.bf16.gmra.mrb[0].mxu0 %v2086
        %v2430 = vpop.f32.mrb[0].mxu0
        %v2431 = vadd.f32 0.0, %v2430
        %v2432 = vpop.f32.mrb[0].mxu0
        %v2433 = vpop.f32.mrb[0].mxu0
        %v2434 = vadd.f32 0.0, %v2433
        %v2435 = vpop.f32.mrb[0].mxu0
        %2436 = vmatprep.mubr.bf16.mxu0 %v2090
        %2437 = vmatmul.mubr.bf16.gmra.mrb[0].mxu0 %v2089
        %v2438 = vpop.f32.mrb[0].mxu0
        %v2439 = vadd.f32 0.0, %v2438
        %v2440 = vpop.f32.mrb[0].mxu0
        %v2441 = vpop.f32.mrb[0].mxu0
        %v2442 = vadd.f32 0.0, %v2441
        %v2443 = vpop.f32.mrb[0].mxu0
        %2444 = vdwg.mxu0
        %2445 = vmatprep.subr.bf16.mxu0 0
        %2446 = vmatpush1.bf16.msra.mxu0 %v2216
        %2447 = vmatprep.subr.bf16.mxu0 0
        %2448 = vmatpush1.bf16.msra.mxu0 %v2217
        %2449 = vmatprep.subr.bf16.mxu0 0
        %2450 = vmatpush1.bf16.msra.mxu0 0
        %2451 = vmatprep.subr.bf16.mxu0 0
        %2452 = vmatpush1.bf16.msra.mxu0 0
        %2453 = vmatprep.subr.bf16.mxu0 0
        %2454 = vmatpush1.bf16.msra.mxu0 0
        %2455 = vmatprep.subr.bf16.mxu0 0
        %2456 = vmatpush1.bf16.msra.mxu0 0
        %2457 = vmatprep.subr.bf16.mxu0 0
        %2458 = vmatpush1.bf16.msra.mxu0 0
        %2459 = vmatprep.subr.bf16.mxu0 0
        %2460 = vmatpush1.bf16.msra.mxu0 0
        %2461 = vmatprep.subr.bf16.mxu0 0
        %2462 = vmatpush1.bf16.msra.mxu0 0
        %2463 = vmatprep.subr.bf16.mxu0 0
        %2464 = vmatpush1.bf16.msra.mxu0 0
        %2465 = vmatprep.subr.bf16.mxu0 0
        %2466 = vmatpush1.bf16.msra.mxu0 0
        %2467 = vmatprep.subr.bf16.mxu0 0
        %2468 = vmatpush1.bf16.msra.mxu0 0
        %2469 = vmatprep.subr.bf16.mxu0 0
        %2470 = vmatpush1.bf16.msra.mxu0 0
        %2471 = vmatprep.subr.bf16.mxu0 0
        %2472 = vmatpush1.bf16.msra.mxu0 0
        %2473 = vmatprep.subr.bf16.mxu0 0
        %2474 = vmatpush1.bf16.msra.mxu0 0
        %2475 = vmatprep.subr.bf16.mxu0 0
        %2476 = vmatpush1.bf16.msra.mxu0 0
        %2477 = vmatprep.mubr.bf16.mxu0 0
        %2478 = vmatmul.mubr.bf16.gmra.mrb[0].mxu0 %v2237
        %v2479 = vpop.f32.mrb[0].mxu0
        %v2480 = vadd.f32 %v2319, %v2479
        %v2481 = vpop.f32.mrb[0].mxu0
        %v2482 = vpop.f32.mrb[0].mxu0
        %v2483 = vadd.f32 %v2322, %v2482
        %v2484 = vpop.f32.mrb[0].mxu0
        %2485 = vmatprep.mubr.bf16.mxu0 0
        %2486 = vmatmul.mubr.bf16.gmra.mrb[0].mxu0 %v2240
        %v2487 = vpop.f32.mrb[0].mxu0
        %v2488 = vadd.f32 %v2327, %v2487
        %v2489 = vpop.f32.mrb[0].mxu0
        %v2490 = vpop.f32.mrb[0].mxu0
        %v2491 = vadd.f32 %v2330, %v2490
        %v2492 = vpop.f32.mrb[0].mxu0
        %2493 = vmatprep.mubr.bf16.mxu0 0
        %2494 = vmatmul.mubr.bf16.gmra.mrb[0].mxu0 %v2243
        %v2495 = vpop.f32.mrb[0].mxu0
        %v2496 = vadd.f32 %v2335, %v2495
        %v2497 = vpop.f32.mrb[0].mxu0
        %v2498 = vpop.f32.mrb[0].mxu0
        %v2499 = vadd.f32 %v2338, %v2498
        %v2500 = vpop.f32.mrb[0].mxu0
        %2501 = vmatprep.mubr.bf16.mxu0 0
        %2502 = vmatmul.mubr.bf16.gmra.mrb[0].mxu0 %v2246
        %v2503 = vpop.f32.mrb[0].mxu0
        %v2504 = vadd.f32 %v2343, %v2503
        %v2505 = vpop.f32.mrb[0].mxu0
        %v2506 = vpop.f32.mrb[0].mxu0
        %v2507 = vadd.f32 %v2346, %v2506
        %v2508 = vpop.f32.mrb[0].mxu0
        %2509 = vmatprep.mubr.bf16.mxu0 0
        %2510 = vmatmul.mubr.bf16.gmra.mrb[0].mxu0 %v2249
        %v2511 = vpop.f32.mrb[0].mxu0
        %v2512 = vadd.f32 %v2351, %v2511
        %v2513 = vpop.f32.mrb[0].mxu0
        %v2514 = vpop.f32.mrb[0].mxu0
        %v2515 = vadd.f32 %v2354, %v2514
        %v2516 = vpop.f32.mrb[0].mxu0
        %2517 = vmatprep.mubr.bf16.mxu0 0
        %2518 = vmatmul.mubr.bf16.gmra.mrb[0].mxu0 %v2252
        %v2519 = vpop.f32.mrb[0].mxu0
        %v2520 = vadd.f32 %v2359, %v2519
        %v2521 = vpop.f32.mrb[0].mxu0
        %v2522 = vpop.f32.mrb[0].mxu0
        %v2523 = vadd.f32 %v2362, %v2522
        %v2524 = vpop.f32.mrb[0].mxu0
        %2525 = vmatprep.mubr.bf16.mxu0 0
        %2526 = vmatmul.mubr.bf16.gmra.mrb[0].mxu0 %v2255
        %v2527 = vpop.f32.mrb[0].mxu0
        %v2528 = vadd.f32 %v2367, %v2527
        %v2529 = vpop.f32.mrb[0].mxu0
        %v2530 = vpop.f32.mrb[0].mxu0
        %v2531 = vadd.f32 %v2370, %v2530
        %v2532 = vpop.f32.mrb[0].mxu0
        %2533 = vmatprep.mubr.bf16.mxu0 0
        %2534 = vmatmul.mubr.bf16.gmra.mrb[0].mxu0 %v2258
        %v2535 = vpop.f32.mrb[0].mxu0
        %v2536 = vadd.f32 %v2375, %v2535
        %v2537 = vpop.f32.mrb[0].mxu0
        %v2538 = vpop.f32.mrb[0].mxu0
        %v2539 = vadd.f32 %v2378, %v2538
        %v2540 = vpop.f32.mrb[0].mxu0
        %2541 = vmatprep.mubr.bf16.mxu0 0
        %2542 = vmatmul.mubr.bf16.gmra.mrb[0].mxu0 %v2261
        %v2543 = vpop.f32.mrb[0].mxu0
        %v2544 = vadd.f32 %v2383, %v2543
        %v2545 = vpop.f32.mrb[0].mxu0
        %v2546 = vpop.f32.mrb[0].mxu0
        %v2547 = vadd.f32 %v2386, %v2546
        %v2548 = vpop.f32.mrb[0].mxu0
        %2549 = vmatprep.mubr.bf16.mxu0 0
        %2550 = vmatmul.mubr.bf16.gmra.mrb[0].mxu0 %v2264
        %v2551 = vpop.f32.mrb[0].mxu0
        %v2552 = vadd.f32 %v2391, %v2551
        %v2553 = vpop.f32.mrb[0].mxu0
        %v2554 = vpop.f32.mrb[0].mxu0
        %v2555 = vadd.f32 %v2394, %v2554
        %v2556 = vpop.f32.mrb[0].mxu0
        %2557 = vmatprep.mubr.bf16.mxu0 0
        %2558 = vmatmul.mubr.bf16.gmra.mrb[0].mxu0 %v2267
        %v2559 = vpop.f32.mrb[0].mxu0
        %v2560 = vadd.f32 %v2399, %v2559
        %v2561 = vpop.f32.mrb[0].mxu0
        %v2562 = vpop.f32.mrb[0].mxu0
        %v2563 = vadd.f32 %v2402, %v2562
        %v2564 = vpop.f32.mrb[0].mxu0
        %2565 = vmatprep.mubr.bf16.mxu0 0
        %2566 = vmatmul.mubr.bf16.gmra.mrb[0].mxu0 %v2270
        %v2567 = vpop.f32.mrb[0].mxu0
        %v2568 = vadd.f32 %v2407, %v2567
        %v2569 = vpop.f32.mrb[0].mxu0
        %v2570 = vpop.f32.mrb[0].mxu0
        %v2571 = vadd.f32 %v2410, %v2570
        %v2572 = vpop.f32.mrb[0].mxu0
        %2573 = vmatprep.mubr.bf16.mxu0 0
        %2574 = vmatmul.mubr.bf16.gmra.mrb[0].mxu0 %v2273
        %v2575 = vpop.f32.mrb[0].mxu0
        %v2576 = vadd.f32 %v2415, %v2575
        %v2577 = vpop.f32.mrb[0].mxu0
        %v2578 = vpop.f32.mrb[0].mxu0
        %v2579 = vadd.f32 %v2418, %v2578
        %v2580 = vpop.f32.mrb[0].mxu0
        %2581 = vmatprep.mubr.bf16.mxu0 0
        %2582 = vmatmul.mubr.bf16.gmra.mrb[0].mxu0 %v2276
        %v2583 = vpop.f32.mrb[0].mxu0
        %v2584 = vadd.f32 %v2423, %v2583
        %v2585 = vpop.f32.mrb[0].mxu0
        %v2586 = vpop.f32.mrb[0].mxu0
        %v2587 = vadd.f32 %v2426, %v2586
        %v2588 = vpop.f32.mrb[0].mxu0
        %2589 = vmatprep.mubr.bf16.mxu0 0
        %2590 = vmatmul.mubr.bf16.gmra.mrb[0].mxu0 %v2279
        %v2591 = vpop.f32.mrb[0].mxu0
        %v2592 = vadd.f32 %v2431, %v2591
        %v2593 = vpop.f32.mrb[0].mxu0
        %v2594 = vpop.f32.mrb[0].mxu0
        %v2595 = vadd.f32 %v2434, %v2594
        %v2596 = vpop.f32.mrb[0].mxu0
        %2597 = vmatprep.mubr.bf16.mxu0 0
        %2598 = vmatmul.mubr.bf16.gmra.mrb[0].mxu0 %v2282
        %v2599 = vpop.f32.mrb[0].mxu0
        %v2600 = vadd.f32 %v2439, %v2599
        %v2601 = vpop.f32.mrb[0].mxu0
        %v2602 = vpop.f32.mrb[0].mxu0
        %v2603 = vadd.f32 %v2442, %v2602
        %v2604 = vpop.f32.mrb[0].mxu0
        %2605 = vdwg.mxu0
        %v2606 = vmax.f32 %v2480, 0.0
        %v2607 = vmax.f32 %v2483, 0.0
        %v2608 = vmax.f32 %v2488, 0.0
        %v2609 = vmax.f32 %v2491, 0.0
        %v2610 = vmax.f32 %v2496, 0.0
        %v2611 = vmax.f32 %v2499, 0.0
        %v2612 = vmax.f32 %v2504, 0.0
        %v2613 = vmax.f32 %v2507, 0.0
        %v2614 = vmax.f32 %v2512, 0.0
        %v2615 = vmax.f32 %v2515, 0.0
        %v2616 = vmax.f32 %v2520, 0.0
        %v2617 = vmax.f32 %v2523, 0.0
        %v2618 = vmax.f32 %v2528, 0.0
        %v2619 = vmax.f32 %v2531, 0.0
        %v2620 = vmax.f32 %v2536, 0.0
        %v2621 = vmax.f32 %v2539, 0.0
        %v2622 = vmax.f32 %v2544, 0.0
        %v2623 = vmax.f32 %v2547, 0.0
        %v2624 = vmax.f32 %v2552, 0.0
        %v2625 = vmax.f32 %v2555, 0.0
        %v2626 = vmax.f32 %v2560, 0.0
        %v2627 = vmax.f32 %v2563, 0.0
        %v2628 = vmax.f32 %v2568, 0.0
        %v2629 = vmax.f32 %v2571, 0.0
        %v2630 = vmax.f32 %v2576, 0.0
        %v2631 = vmax.f32 %v2579, 0.0
        %v2632 = vmax.f32 %v2584, 0.0
        %v2633 = vmax.f32 %v2587, 0.0
        %v2634 = vmax.f32 %v2592, 0.0
        %v2635 = vmax.f32 %v2595, 0.0
        %v2636 = vmax.f32 %v2600, 0.0
        %v2637 = vmax.f32 %v2603, 0.0
        %v2638 = vld [vmem:[%s2] sm:$0x1]
        %v2640 = vlaneseq
        %v2641 = vshrl.u32 %v2640, 7
        %v2642 = vsub.s32 0, %v2641
        %v2643 = vrot.slane %v2638, %v2642
        %v2645 = vmul.f32 %v2606, %v2643
        %v2646 = vmul.f32 %v2607, %v2643
        %v2647 = vmul.f32 %v2608, %v2643
        %v2648 = vmul.f32 %v2609, %v2643
        %v2649 = vmul.f32 %v2610, %v2643
        %v2650 = vmul.f32 %v2611, %v2643
        %v2651 = vmul.f32 %v2612, %v2643
        %v2652 = vmul.f32 %v2613, %v2643
        %v2653 = vmul.f32 %v2614, %v2643
        %v2654 = vmul.f32 %v2615, %v2643
        %v2655 = vmul.f32 %v2616, %v2643
        %v2656 = vmul.f32 %v2617, %v2643
        %v2657 = vmul.f32 %v2618, %v2643
        %v2658 = vmul.f32 %v2619, %v2643
        %v2659 = vmul.f32 %v2620, %v2643
        %v2660 = vmul.f32 %v2621, %v2643
        %v2661 = vmul.f32 %v2622, %v2643
        %v2662 = vmul.f32 %v2623, %v2643
        %v2663 = vmul.f32 %v2624, %v2643
        %v2664 = vmul.f32 %v2625, %v2643
        %v2665 = vmul.f32 %v2626, %v2643
        %v2666 = vmul.f32 %v2627, %v2643
        %v2667 = vmul.f32 %v2628, %v2643
        %v2668 = vmul.f32 %v2629, %v2643
        %v2669 = vmul.f32 %v2630, %v2643
        %v2670 = vmul.f32 %v2631, %v2643
        %v2671 = vmul.f32 %v2632, %v2643
        %v2672 = vmul.f32 %v2633, %v2643
        %v2673 = vmul.f32 %v2634, %v2643
        %v2674 = vmul.f32 %v2635, %v2643
        %v2675 = vmul.f32 %v2636, %v2643
        %v2676 = vmul.f32 %v2637, %v2643
        %v2677 = vld [vmem:[%s3] sm:$0x1]
        %v2679 = vlaneseq
        %v2680 = vshrl.u32 %v2679, 7
        %v2681 = vsub.s32 0, %v2680
        %v2682 = vrot.slane %v2677, %v2681
        %v2684 = vadd.f32 %v2645, %v2682
        %v2685 = vadd.f32 %v2646, %v2682
        %v2686 = vadd.f32 %v2647, %v2682
        %v2687 = vadd.f32 %v2648, %v2682
        %v2688 = vadd.f32 %v2649, %v2682
        %v2689 = vadd.f32 %v2650, %v2682
        %v2690 = vadd.f32 %v2651, %v2682
        %v2691 = vadd.f32 %v2652, %v2682
        %v2692 = vadd.f32 %v2653, %v2682
        %v2693 = vadd.f32 %v2654, %v2682
        %v2694 = vadd.f32 %v2655, %v2682
        %v2695 = vadd.f32 %v2656, %v2682
        %v2696 = vadd.f32 %v2657, %v2682
        %v2697 = vadd.f32 %v2658, %v2682
        %v2698 = vadd.f32 %v2659, %v2682
        %v2699 = vadd.f32 %v2660, %v2682
        %v2700 = vadd.f32 %v2661, %v2682
        %v2701 = vadd.f32 %v2662, %v2682
        %v2702 = vadd.f32 %v2663, %v2682
        %v2703 = vadd.f32 %v2664, %v2682
        %v2704 = vadd.f32 %v2665, %v2682
        %v2705 = vadd.f32 %v2666, %v2682
        %v2706 = vadd.f32 %v2667, %v2682
        %v2707 = vadd.f32 %v2668, %v2682
        %v2708 = vadd.f32 %v2669, %v2682
        %v2709 = vadd.f32 %v2670, %v2682
        %v2710 = vadd.f32 %v2671, %v2682
        %v2711 = vadd.f32 %v2672, %v2682
        %v2712 = vadd.f32 %v2673, %v2682
        %v2713 = vadd.f32 %v2674, %v2682
        %v2714 = vadd.f32 %v2675, %v2682
        %v2715 = vadd.f32 %v2676, %v2682
        %2716 = vst.msk [vmem:[%s190] sm:$0xff] %vm876, %v2684
        %2717 = vst.msk [vmem:[%s190 + $0x8] sm:$0xff] %vm876, %v2685
        %2718 = vst.msk [vmem:[%s190 + $0x10] sm:$0xff] %vm876, %v2686
        %2719 = vst.msk [vmem:[%s190 + $0x18] sm:$0xff] %vm876, %v2687
        %2720 = vst.msk [vmem:[%s190 + $0x20] sm:$0xff] %vm876, %v2688
        %2721 = vst.msk [vmem:[%s190 + $0x28] sm:$0xff] %vm876, %v2689
        %2722 = vst.msk [vmem:[%s190 + $0x30] sm:$0xff] %vm876, %v2690
        %2723 = vst.msk [vmem:[%s190 + $0x38] sm:$0xff] %vm876, %v2691
        %2724 = vst.msk [vmem:[%s190 + $0x40] sm:$0xff] %vm876, %v2692
        %2725 = vst.msk [vmem:[%s190 + $0x48] sm:$0xff] %vm876, %v2693
        %2726 = vst.msk [vmem:[%s190 + $0x50] sm:$0xff] %vm876, %v2694
        %2727 = vst.msk [vmem:[%s190 + $0x58] sm:$0xff] %vm876, %v2695
        %2728 = vst.msk [vmem:[%s190 + $0x60] sm:$0xff] %vm876, %v2696
        %2729 = vst.msk [vmem:[%s190 + $0x68] sm:$0xff] %vm876, %v2697
        %2730 = vst.msk [vmem:[%s190 + $0x70] sm:$0xff] %vm876, %v2698
        %2731 = vst.msk [vmem:[%s190 + $0x78] sm:$0xff] %vm876, %v2699
        %2732 = vst.msk [vmem:[%s190 + $0x80] sm:$0xff] %vm876, %v2700
        %2733 = vst.msk [vmem:[%s190 + $0x88] sm:$0xff] %vm876, %v2701
        %2734 = vst.msk [vmem:[%s190 + $0x90] sm:$0xff] %vm876, %v2702
        %2735 = vst.msk [vmem:[%s190 + $0x98] sm:$0xff] %vm876, %v2703
        %2736 = vst.msk [vmem:[%s190 + $0xa0] sm:$0xff] %vm876, %v2704
        %2737 = vst.msk [vmem:[%s190 + $0xa8] sm:$0xff] %vm876, %v2705
        %2738 = vst.msk [vmem:[%s190 + $0xb0] sm:$0xff] %vm876, %v2706
        %2739 = vst.msk [vmem:[%s190 + $0xb8] sm:$0xff] %vm876, %v2707
        %2740 = vst.msk [vmem:[%s190 + $0xc0] sm:$0xff] %vm876, %v2708
        %2741 = vst.msk [vmem:[%s190 + $0xc8] sm:$0xff] %vm876, %v2709
        %2742 = vst.msk [vmem:[%s190 + $0xd0] sm:$0xff] %vm876, %v2710
        %2743 = vst.msk [vmem:[%s190 + $0xd8] sm:$0xff] %vm876, %v2711
        %2744 = vst.msk [vmem:[%s190 + $0xe0] sm:$0xff] %vm876, %v2712
        %2745 = vst.msk [vmem:[%s190 + $0xe8] sm:$0xff] %vm876, %v2713
        %2746 = vst.msk [vmem:[%s190 + $0xf0] sm:$0xff] %vm876, %v2714
        %2747 = vst.msk [vmem:[%s190 + $0xf8] sm:$0xff] %vm876, %v2715
        %s2748 = sand.u32 %s115, 1
        %s2749 = scalar_lea.sflag [#allocation5], %s2748
        %s2750 = sand.u32 %s115, 1
        %s2751 = smul.addr %s2750, 256
        %s2752 = scalar_lea.vmem [#allocation4], %s2751
        // Predicated region
        $region37: #{unet_block_forward.5} parent=35 // pred_check
          %p2753 = pneg %p125
        $region38: #{unet_block_forward.5} parent=35 // pred_check_branch
          %2755 = sbr.rel (%p2753) target = $region40
        $region39: #{unet_block_forward.5} parent=35 // pred_region
          %s2757 = ssub.s32 4096, 4096
          %2758 = vsyncadd %s2749, %s2757
          %s2759 = smul.addr %s18, 32
          %s2760 = smul.addr %s2759, 128
          %s2761 = scalar_lea.hbm %s4, %s2760
          %s2762 = sshll.u32 %s2752, 4
          %s2763 = int_to_ptr.vmem [resolvable:$true] %s2762
          %2768 = dma.vmem_to_hbm [thread:$0]  %s2763, 4096, %s2761, %s2749, 128, 128, 8
        $region40: #{unet_block_forward.5} parent=35 // pred_fallthru
          _
      $region36: #{unet_block_forward.5} parent=5 // pred_fallthru
        _
      %p2769 = scmp.le.s32.totalorder 2, %s13
      // Predicated region
      $region41: #{unet_block_forward.5} parent=5 // pred_check
        %p2770 = pneg %p2769
      $region42: #{unet_block_forward.5} parent=5 // pred_check_branch
        %2772 = sbr.rel (%p2770) target = $region44
      $region43: #{unet_block_forward.5} parent=5 // pred_region
        %s2773 = ssub.s32 %s13, 2
        // Predicated region
        $region45: #{unet_block_forward.5} parent=43 // pred_check
          %p2774 = pneg %p131
        $region46: #{unet_block_forward.5} parent=43 // pred_check_branch
          %2776 = sbr.rel (%p2774) target = $region48
        $region47: #{unet_block_forward.5} parent=43 // pred_region
          %s2777 = sand.u32 %s116, 1
          %s2778 = scalar_lea.sflag [#allocation5], %s2777
          %s2779 = sand.u32 %s116, 1
          %s2780 = smul.addr %s2779, 256
          %s2781 = scalar_lea.vmem [#allocation4], %s2780
          %2782 = dma.done %s2778, 4096
        $region48: #{unet_block_forward.5} parent=43 // pred_fallthru
          _
      $region44: #{unet_block_forward.5} parent=5 // pred_fallthru
        _
    $region6: #{unet_block_forward.5} parent=1 // loop_footer
      %s17 = sadd.s32 1, %s13
    $region7: #{unet_block_forward.5} parent=1 // loop_footer_branch
      %12 = sbr.rel target = $region3
    $region8: #{unet_block_forward.5} parent=1 // loop_exit
      _
    %2783 = vsyncpa [#allocation5], 1
    %s2784 = scalar_lea.sflag [#allocation5], 1
    %2785 = vsyncpa %s2784, 1

// kernel: unet_block_forward.4
$region0: #{unet_block_forward.4}
  #allocation0 [shape = 'u32[]', space=smem, size = 0x4, offset = 0x4, fixed_abs, tag = 'smem constant byte address 0x4 - core index']
  #allocation1 [shape = 'u32[144,128]{1,0:T(1,128)}', space=vmem, size = 0x12000, scoped, tag = 'internal scratch']
  #allocation2 [shape = 'bf16[18,18,32]{2,1,0:T(8,128)(2,1)}', space=vmem, size = 0x1b000, scoped, tag = 'scratch operand']
  #allocation3 [shape = 'bf16[256,288]{1,0:T(16,128)(2,1)}', space=vmem, size = 0x30000, scoped, tag = 'scratch operand']
  %s0 = inlined_call_operand.vmem [shape: bf16[2,16,16,16], index: 0, kind: input, shape index: {}]
  %s1 = inlined_call_operand.vmem [shape: f32[2,16,16,16], index: 1, kind: input, shape index: {}]
  %s2 = inlined_call_operand.vmem [shape: f32[1,1,16], index: 2, kind: input, shape index: {}]
  %s3 = inlined_call_operand.vmem [shape: f32[1,1,16], index: 3, kind: input, shape index: {}]
  %s4 = inlined_call_operand.vmem [shape: bf16[288,32], index: 4, kind: input, shape index: {}]
  %s5 = inlined_call_operand.vmem [shape: f32[1,32], index: 5, kind: input, shape index: {}]
  %s6 = inlined_call_operand.vmem [shape: f32[1,32], index: 6, kind: input, shape index: {}]
  %s7 = inlined_call_operand.vmem [shape: bf16[2,16,16,32], index: 7, kind: output, shape index: {}]
  %s8 = sld [smem:[#allocation0]]
  $region61: #{unet_block_forward.4} parent=0
    _
  %s10 = ssub.s32 1, %s8
  %s11 = scalar_select 0, %s10, %s8
  loop: start=0, step=1, limit=4
  $region2: #{unet_block_forward.4} parent=0 // loop_pre_header
    _
  $region3: #{unet_block_forward.4} parent=0 // loop_header
    %s13 = sphi 0, %s17
    %p14 = scmp.ge.s32.totalorder %s13, 4
    %s23 = sphi 0, %s25
    %s26 = sphi 0, %s23
    %s27 = sphi 0, %s26
    %s43 = sphi 0, %s27
    %s49 = sphi 0, %s51
    %s52 = sphi 0, %s49
    %s53 = sphi 0, %s52
    %s69 = sphi 0, %s53
    %s73 = sphi 0, %s73
    %s75 = sphi 0, %s73
    %s76 = sphi 0, %s75
    %s90 = sphi 0, %s76
    %s94 = sphi 0, %s94
    %s96 = sphi 0, %s94
    %s97 = sphi 0, %s96
    %s111 = sphi 0, %s97
    %s115 = sphi 0, %s115
    %s117 = sphi 0, %s115
    %s118 = sphi 0, %s117
    %s132 = sphi 0, %s118
    %s136 = sphi 0, %s136
    %s138 = sphi 0, %s136
    %s139 = sphi 0, %s138
    %s153 = sphi 0, %s139
    %s157 = sphi 0, %s157
    %s159 = sphi 0, %s157
    %s160 = sphi 0, %s159
    %s174 = sphi 0, %s160
    %s180 = sphi 0, %s182
    %s183 = sphi 0, %s180
    %s184 = sphi 0, %s183
    %s200 = sphi 0, %s184
  $region4: #{unet_block_forward.4} parent=0 // loop_header_branch
    %16 = sbr.rel (%p14) target = $region8
  $region5: #{unet_block_forward.4} parent=0 // loop_body
    %s18 = ssub.s32 %s13, 1
    %s19 = ssub.s32 %s13, 2
    %s20 = sadd.s32 %s13, 1
    %s21 = ssub.s32 %s13, %s20
    %p22 = scmp.eq.s32.totalorder %s21, 0
    %s24 = sadd.s32 %s23, 1
    %s25 = scalar_select %p22, %s23, %s24
    %p28 = pneg %p22
    %p29 = scmp.eq.s32.totalorder %s13, 1
    %p30 = por %p28, %p29
    %p31 = scmp.ne.s32.totalorder %s23, %s26
    %p32 = scmp.eq.s32.totalorder %s13, 0
    %p33 = por %p31, %p32
    %p34 = scmp.ne.s32.totalorder %s23, %s26
    %p35 = scmp.eq.s32.totalorder %s18, 1
    %p36 = por %p34, %p35
    %p37 = scmp.ne.s32.totalorder %s26, %s27
    %p38 = scmp.eq.s32.totalorder %s18, 0
    %p39 = por %p37, %p38
    %p40 = scmp.ne.s32.totalorder %s26, %s27
    %p41 = scmp.eq.s32.totalorder %s19, 1
    %p42 = por %p40, %p41
    %p44 = scmp.ne.s32.totalorder %s27, %s43
    %p45 = scmp.eq.s32.totalorder %s19, 0
    %p46 = por %p44, %p45
    %s47 = ssub.s32 %s13, %s20
    %p48 = scmp.eq.s32.totalorder %s47, 0
    %s50 = sadd.s32 %s49, 1
    %s51 = scalar_select %p48, %s49, %s50
    %p54 = pneg %p48
    %p55 = scmp.eq.s32.totalorder %s13, 1
    %p56 = por %p54, %p55
    %p57 = scmp.ne.s32.totalorder %s49, %s52
    %p58 = scmp.eq.s32.totalorder %s13, 0
    %p59 = por %p57, %p58
    %p60 = scmp.ne.s32.totalorder %s49, %s52
    %p61 = scmp.eq.s32.totalorder %s18, 1
    %p62 = por %p60, %p61
    %p63 = scmp.ne.s32.totalorder %s52, %s53
    %p64 = scmp.eq.s32.totalorder %s18, 0
    %p65 = por %p63, %p64
    %p66 = scmp.ne.s32.totalorder %s52, %s53
    %p67 = scmp.eq.s32.totalorder %s19, 1
    %p68 = por %p66, %p67
    %p70 = scmp.ne.s32.totalorder %s53, %s69
    %p71 = scmp.eq.s32.totalorder %s19, 0
    %p72 = por %p70, %p71
    %s74 = sadd.s32 %s73, 1
    %p77 = scmp.eq.s32.totalorder %s13, 1
    %p78 = scmp.ne.s32.totalorder %s73, %s75
    %p79 = scmp.eq.s32.totalorder %s13, 0
    %p80 = por %p78, %p79
    %p81 = scmp.ne.s32.totalorder %s73, %s75
    %p82 = scmp.eq.s32.totalorder %s18, 1
    %p83 = por %p81, %p82
    %p84 = scmp.ne.s32.totalorder %s75, %s76
    %p85 = scmp.eq.s32.totalorder %s18, 0
    %p86 = por %p84, %p85
    %p87 = scmp.ne.s32.totalorder %s75, %s76
    %p88 = scmp.eq.s32.totalorder %s19, 1
    %p89 = por %p87, %p88
    %p91 = scmp.ne.s32.totalorder %s76, %s90
    %p92 = scmp.eq.s32.totalorder %s19, 0
    %p93 = por %p91, %p92
    %s95 = sadd.s32 %s94, 1
    %p98 = scmp.eq.s32.totalorder %s13, 1
    %p99 = scmp.ne.s32.totalorder %s94, %s96
    %p100 = scmp.eq.s32.totalorder %s13, 0
    %p101 = por %p99, %p100
    %p102 = scmp.ne.s32.totalorder %s94, %s96
    %p103 = scmp.eq.s32.totalorder %s18, 1
    %p104 = por %p102, %p103
    %p105 = scmp.ne.s32.totalorder %s96, %s97
    %p106 = scmp.eq.s32.totalorder %s18, 0
    %p107 = por %p105, %p106
    %p108 = scmp.ne.s32.totalorder %s96, %s97
    %p109 = scmp.eq.s32.totalorder %s19, 1
    %p110 = por %p108, %p109
    %p112 = scmp.ne.s32.totalorder %s97, %s111
    %p113 = scmp.eq.s32.totalorder %s19, 0
    %p114 = por %p112, %p113
    %s116 = sadd.s32 %s115, 1
    %p119 = scmp.eq.s32.totalorder %s13, 1
    %p120 = scmp.ne.s32.totalorder %s115, %s117
    %p121 = scmp.eq.s32.totalorder %s13, 0
    %p122 = por %p120, %p121
    %p123 = scmp.ne.s32.totalorder %s115, %s117
    %p124 = scmp.eq.s32.totalorder %s18, 1
    %p125 = por %p123, %p124
    %p126 = scmp.ne.s32.totalorder %s117, %s118
    %p127 = scmp.eq.s32.totalorder %s18, 0
    %p128 = por %p126, %p127
    %p129 = scmp.ne.s32.totalorder %s117, %s118
    %p130 = scmp.eq.s32.totalorder %s19, 1
    %p131 = por %p129, %p130
    %p133 = scmp.ne.s32.totalorder %s118, %s132
    %p134 = scmp.eq.s32.totalorder %s19, 0
    %p135 = por %p133, %p134
    %s137 = sadd.s32 %s136, 1
    %p140 = scmp.eq.s32.totalorder %s13, 1
    %p141 = scmp.ne.s32.totalorder %s136, %s138
    %p142 = scmp.eq.s32.totalorder %s13, 0
    %p143 = por %p141, %p142
    %p144 = scmp.ne.s32.totalorder %s136, %s138
    %p145 = scmp.eq.s32.totalorder %s18, 1
    %p146 = por %p144, %p145
    %p147 = scmp.ne.s32.totalorder %s138, %s139
    %p148 = scmp.eq.s32.totalorder %s18, 0
    %p149 = por %p147, %p148
    %p150 = scmp.ne.s32.totalorder %s138, %s139
    %p151 = scmp.eq.s32.totalorder %s19, 1
    %p152 = por %p150, %p151
    %p154 = scmp.ne.s32.totalorder %s139, %s153
    %p155 = scmp.eq.s32.totalorder %s19, 0
    %p156 = por %p154, %p155
    %s158 = sadd.s32 %s157, 1
    %p161 = scmp.eq.s32.totalorder %s13, 1
    %p162 = scmp.ne.s32.totalorder %s157, %s159
    %p163 = scmp.eq.s32.totalorder %s13, 0
    %p164 = por %p162, %p163
    %p165 = scmp.ne.s32.totalorder %s157, %s159
    %p166 = scmp.eq.s32.totalorder %s18, 1
    %p167 = por %p165, %p166
    %p168 = scmp.ne.s32.totalorder %s159, %s160
    %p169 = scmp.eq.s32.totalorder %s18, 0
    %p170 = por %p168, %p169
    %p171 = scmp.ne.s32.totalorder %s159, %s160
    %p172 = scmp.eq.s32.totalorder %s19, 1
    %p173 = por %p171, %p172
    %p175 = scmp.ne.s32.totalorder %s160, %s174
    %p176 = scmp.eq.s32.totalorder %s19, 0
    %p177 = por %p175, %p176
    %s178 = ssub.s32 %s13, %s20
    %p179 = scmp.eq.s32.totalorder %s178, 0
    %s181 = sadd.s32 %s180, 1
    %s182 = scalar_select %p179, %s180, %s181
    %p185 = pneg %p179
    %p186 = scmp.eq.s32.totalorder %s13, 1
    %p187 = por %p185, %p186
    %p188 = scmp.ne.s32.totalorder %s180, %s183
    %p189 = scmp.eq.s32.totalorder %s13, 0
    %p190 = por %p188, %p189
    %p191 = scmp.ne.s32.totalorder %s180, %s183
    %p192 = scmp.eq.s32.totalorder %s18, 1
    %p193 = por %p191, %p192
    %p194 = scmp.ne.s32.totalorder %s183, %s184
    %p195 = scmp.eq.s32.totalorder %s18, 0
    %p196 = por %p194, %p195
    %p197 = scmp.ne.s32.totalorder %s183, %s184
    %p198 = scmp.eq.s32.totalorder %s19, 1
    %p199 = por %p197, %p198
    %p201 = scmp.ne.s32.totalorder %s184, %s200
    %p202 = scmp.eq.s32.totalorder %s19, 0
    %p203 = por %p201, %p202
    %p204 = scmp.le.s32.totalorder 1, %s13
    %p205 = scmp.lt.s32.totalorder %s13, 3
    %p206 = pnand %p204, %p205
    %p207 = pneg %p206
    // Predicated region
    $region9: #{unet_block_forward.4} parent=5 // pred_check
      _
    $region10: #{unet_block_forward.4} parent=5 // pred_check_branch
      %209 = sbr.rel (%p206) target = $region12
    $region11: #{unet_block_forward.4} parent=5 // pred_region
      %s210 = ssub.s32 %s13, 1
      // Predicated region
      $region13: #{unet_block_forward.4} parent=11 // pred_check
        %p211 = pneg %p86
      $region14: #{unet_block_forward.4} parent=11 // pred_check_branch
        %213 = sbr.rel (%p211) target = $region16
      $region15: #{unet_block_forward.4} parent=11 // pred_region
        _
      $region16: #{unet_block_forward.4} parent=11 // pred_fallthru
        _
      // Predicated region
      $region17: #{unet_block_forward.4} parent=11 // pred_check
        %p214 = pneg %p107
      $region18: #{unet_block_forward.4} parent=11 // pred_check_branch
        %216 = sbr.rel (%p214) target = $region20
      $region19: #{unet_block_forward.4} parent=11 // pred_region
        _
      $region20: #{unet_block_forward.4} parent=11 // pred_fallthru
        _
      // Predicated region
      $region21: #{unet_block_forward.4} parent=11 // pred_check
        %p217 = pneg %p128
      $region22: #{unet_block_forward.4} parent=11 // pred_check_branch
        %219 = sbr.rel (%p217) target = $region24
      $region23: #{unet_block_forward.4} parent=11 // pred_region
        _
      $region24: #{unet_block_forward.4} parent=11 // pred_fallthru
        _
      // Predicated region
      $region25: #{unet_block_forward.4} parent=11 // pred_check
        %p220 = pneg %p149
      $region26: #{unet_block_forward.4} parent=11 // pred_check_branch
        %222 = sbr.rel (%p220) target = $region28
      $region27: #{unet_block_forward.4} parent=11 // pred_region
        _
      $region28: #{unet_block_forward.4} parent=11 // pred_fallthru
        _
      // Predicated region
      $region29: #{unet_block_forward.4} parent=11 // pred_check
        %p223 = pneg %p170
      $region30: #{unet_block_forward.4} parent=11 // pred_check_branch
        %225 = sbr.rel (%p223) target = $region32
      $region31: #{unet_block_forward.4} parent=11 // pred_region
        _
      $region32: #{unet_block_forward.4} parent=11 // pred_fallthru
        _
    $region12: #{unet_block_forward.4} parent=5 // pred_fallthru
      _
    %p226 = scmp.lt.s32.totalorder %s13, 2
    // Predicated region
    $region33: #{unet_block_forward.4} parent=5 // pred_check
      %p227 = pneg %p226
    $region34: #{unet_block_forward.4} parent=5 // pred_check_branch
      %229 = sbr.rel (%p227) target = $region36
    $region35: #{unet_block_forward.4} parent=5 // pred_region
      // Predicated region
      $region37: #{unet_block_forward.4} parent=35 // pred_check
        %p230 = pneg %p33
      $region38: #{unet_block_forward.4} parent=35 // pred_check_branch
        %232 = sbr.rel (%p230) target = $region40
      $region39: #{unet_block_forward.4} parent=35 // pred_region
        %p233 = scmp.lt.s32.totalorder %s13, 1
        %s234 = scalar_select %p233, %s13, 1
        %s235 = smul.addr %s234, 32
        %s236 = smul.addr %s235, 4
        %s237 = scalar_lea.vmem %s0, %s236
      $region40: #{unet_block_forward.4} parent=35 // pred_fallthru
        _
      // Predicated region
      $region41: #{unet_block_forward.4} parent=35 // pred_check
        %p238 = pneg %p59
      $region42: #{unet_block_forward.4} parent=35 // pred_check_branch
        %240 = sbr.rel (%p238) target = $region44
      $region43: #{unet_block_forward.4} parent=35 // pred_region
        %p241 = scmp.lt.s32.totalorder %s13, 1
        %s242 = scalar_select %p241, %s13, 1
        %s243 = smul.addr %s242, 32
        %s244 = smul.addr %s243, 8
        %s245 = scalar_lea.vmem %s1, %s244
      $region44: #{unet_block_forward.4} parent=35 // pred_fallthru
        _
    $region36: #{unet_block_forward.4} parent=5 // pred_fallthru
      _
    %p246 = scmp.le.s32.totalorder 1, %s13
    %p247 = scmp.lt.s32.totalorder %s13, 3
    %p248 = pnand %p246, %p247
    %p249 = pneg %p248
    // Predicated region
    $region45: #{unet_block_forward.4} parent=5 // pred_check
      _
    $region46: #{unet_block_forward.4} parent=5 // pred_check_branch
      %251 = sbr.rel (%p248) target = $region48
    $region47: #{unet_block_forward.4} parent=5 // pred_region
      %s252 = ssub.s32 %s13, 1
      %p253 = scmp.lt.s32.totalorder %s18, 1
      %s254 = scalar_select %p253, %s18, 1
      %s255 = smul.addr %s254, 32
      %s256 = smul.addr %s255, 4
      %s257 = scalar_lea.vmem %s0, %s256
      %p258 = pneg %p39
      %p259 = pneg %p36
      %p260 = scmp.lt.s32.totalorder %s18, 1
      %s261 = scalar_select %p260, %s18, 1
      %s262 = smul.addr %s261, 32
      %s263 = smul.addr %s262, 8
      %s264 = scalar_lea.vmem %s1, %s263
      %p265 = pneg %p65
      %p266 = pneg %p62
      %p267 = pneg %p86
      %p268 = pneg %p83
      %p269 = pneg %p107
      %p270 = pneg %p104
      %p271 = pneg %p128
      %p272 = pneg %p125
      %p273 = pneg %p149
      %p274 = pneg %p146
      %p275 = pneg %p170
      %p276 = pneg %p167
      %p277 = pneg %p196
      %p278 = pneg %p193
      %p279 = scmp.lt.s32.totalorder %s18, 1
      %s280 = scalar_select %p279, %s18, 1
      %s281 = smul.addr %s280, 32
      %s282 = smul.addr %s281, 4
      %s283 = scalar_lea.vmem %s7, %s282
      %p284 = scmp.lt.s32.totalorder %s18, 1
      %s285 = scalar_select %p284, %s18, 1
      %s286 = smul.addr %s285, 32
      %s287 = smul.addr %s286, 4
      %s288 = scalar_lea.vmem %s0, %s287
      %p289 = scmp.lt.s32.totalorder %s18, 1
      %s290 = scalar_select %p289, %s18, 1
      %s291 = smul.addr %s290, 32
      %s292 = smul.addr %s291, 8
      %s293 = scalar_lea.vmem %s1, %s292
      %p294 = scmp.lt.s32.totalorder %s18, 1
      %s295 = scalar_select %p294, %s18, 1
      %s296 = smul.addr %s295, 32
      %s297 = smul.addr %s296, 4
      %s298 = scalar_lea.vmem %s7, %s297
      %v300 = vld [vmem:[%s288] sm:$0xf]
      %v301 = vld [vmem:[%s288 + $0x4] sm:$0xf]
      %v302 = vld [vmem:[%s288 + $0x8] sm:$0xf]
      %v303 = vld [vmem:[%s288 + $0xc] sm:$0xf]
      %v304 = vld [vmem:[%s288 + $0x10] sm:$0xf]
      %v305 = vld [vmem:[%s288 + $0x14] sm:$0xf]
      %v306 = vld [vmem:[%s288 + $0x18] sm:$0xf]
      %v307 = vld [vmem:[%s288 + $0x1c] sm:$0xf]
      %v308 = vld [vmem:[%s288 + $0x20] sm:$0xf]
      %v309 = vld [vmem:[%s288 + $0x24] sm:$0xf]
      %v310 = vld [vmem:[%s288 + $0x28] sm:$0xf]
      %v311 = vld [vmem:[%s288 + $0x2c] sm:$0xf]
      %v312 = vld [vmem:[%s288 + $0x30] sm:$0xf]
      %v313 = vld [vmem:[%s288 + $0x34] sm:$0xf]
      %v314 = vld [vmem:[%s288 + $0x38] sm:$0xf]
      %v315 = vld [vmem:[%s288 + $0x3c] sm:$0xf]
      %v316 = vld [vmem:[%s288 + $0x40] sm:$0xf]
      %v317 = vld [vmem:[%s288 + $0x44] sm:$0xf]
      %v318 = vld [vmem:[%s288 + $0x48] sm:$0xf]
      %v319 = vld [vmem:[%s288 + $0x4c] sm:$0xf]
      %v320 = vld [vmem:[%s288 + $0x50] sm:$0xf]
      %v321 = vld [vmem:[%s288 + $0x54] sm:$0xf]
      %v322 = vld [vmem:[%s288 + $0x58] sm:$0xf]
      %v323 = vld [vmem:[%s288 + $0x5c] sm:$0xf]
      %v324 = vld [vmem:[%s288 + $0x60] sm:$0xf]
      %v325 = vld [vmem:[%s288 + $0x64] sm:$0xf]
      %v326 = vld [vmem:[%s288 + $0x68] sm:$0xf]
      %v327 = vld [vmem:[%s288 + $0x6c] sm:$0xf]
      %v328 = vld [vmem:[%s288 + $0x70] sm:$0xf]
      %v329 = vld [vmem:[%s288 + $0x74] sm:$0xf]
      %v330 = vld [vmem:[%s288 + $0x78] sm:$0xf]
      %v331 = vld [vmem:[%s288 + $0x7c] sm:$0xf]
      %v332 = vunpack.c.l.bf16 %v300
      %v333 = vunpack.c.l.bf16 %v301
      %v334 = vunpack.c.l.bf16 %v302
      %v335 = vunpack.c.l.bf16 %v303
      %v336 = vunpack.c.l.bf16 %v304
      %v337 = vunpack.c.l.bf16 %v305
      %v338 = vunpack.c.l.bf16 %v306
      %v339 = vunpack.c.l.bf16 %v307
      %v340 = vunpack.c.l.bf16 %v308
      %v341 = vunpack.c.l.bf16 %v309
      %v342 = vunpack.c.l.bf16 %v310
      %v343 = vunpack.c.l.bf16 %v311
      %v344 = vunpack.c.l.bf16 %v312
      %v345 = vunpack.c.l.bf16 %v313
      %v346 = vunpack.c.l.bf16 %v314
      %v347 = vunpack.c.l.bf16 %v315
      %v348 = vunpack.c.l.bf16 %v316
      %v349 = vunpack.c.l.bf16 %v317
      %v350 = vunpack.c.l.bf16 %v318
      %v351 = vunpack.c.l.bf16 %v319
      %v352 = vunpack.c.l.bf16 %v320
      %v353 = vunpack.c.l.bf16 %v321
      %v354 = vunpack.c.l.bf16 %v322
      %v355 = vunpack.c.l.bf16 %v323
      %v356 = vunpack.c.l.bf16 %v324
      %v357 = vunpack.c.l.bf16 %v325
      %v358 = vunpack.c.l.bf16 %v326
      %v359 = vunpack.c.l.bf16 %v327
      %v360 = vunpack.c.l.bf16 %v328
      %v361 = vunpack.c.l.bf16 %v329
      %v362 = vunpack.c.l.bf16 %v330
      %v363 = vunpack.c.l.bf16 %v331
      %v364 = vmax.f32 %v332, 0.0
      %v365 = vmax.f32 %v333, 0.0
      %v366 = vmax.f32 %v334, 0.0
      %v367 = vmax.f32 %v335, 0.0
      %v368 = vmax.f32 %v336, 0.0
      %v369 = vmax.f32 %v337, 0.0
      %v370 = vmax.f32 %v338, 0.0
      %v371 = vmax.f32 %v339, 0.0
      %v372 = vmax.f32 %v340, 0.0
      %v373 = vmax.f32 %v341, 0.0
      %v374 = vmax.f32 %v342, 0.0
      %v375 = vmax.f32 %v343, 0.0
      %v376 = vmax.f32 %v344, 0.0
      %v377 = vmax.f32 %v345, 0.0
      %v378 = vmax.f32 %v346, 0.0
      %v379 = vmax.f32 %v347, 0.0
      %v380 = vmax.f32 %v348, 0.0
      %v381 = vmax.f32 %v349, 0.0
      %v382 = vmax.f32 %v350, 0.0
      %v383 = vmax.f32 %v351, 0.0
      %v384 = vmax.f32 %v352, 0.0
      %v385 = vmax.f32 %v353, 0.0
      %v386 = vmax.f32 %v354, 0.0
      %v387 = vmax.f32 %v355, 0.0
      %v388 = vmax.f32 %v356, 0.0
      %v389 = vmax.f32 %v357, 0.0
      %v390 = vmax.f32 %v358, 0.0
      %v391 = vmax.f32 %v359, 0.0
      %v392 = vmax.f32 %v360, 0.0
      %v393 = vmax.f32 %v361, 0.0
      %v394 = vmax.f32 %v362, 0.0
      %v395 = vmax.f32 %v363, 0.0
      %v396 = vld [vmem:[%s293] sm:$0xff]
      %v397 = vld [vmem:[%s293 + $0x8] sm:$0xff]
      %v398 = vld [vmem:[%s293 + $0x10] sm:$0xff]
      %v399 = vld [vmem:[%s293 + $0x18] sm:$0xff]
      %v400 = vld [vmem:[%s293 + $0x20] sm:$0xff]
      %v401 = vld [vmem:[%s293 + $0x28] sm:$0xff]
      %v402 = vld [vmem:[%s293 + $0x30] sm:$0xff]
      %v403 = vld [vmem:[%s293 + $0x38] sm:$0xff]
      %v404 = vld [vmem:[%s293 + $0x40] sm:$0xff]
      %v405 = vld [vmem:[%s293 + $0x48] sm:$0xff]
      %v406 = vld [vmem:[%s293 + $0x50] sm:$0xff]
      %v407 = vld [vmem:[%s293 + $0x58] sm:$0xff]
      %v408 = vld [vmem:[%s293 + $0x60] sm:$0xff]
      %v409 = vld [vmem:[%s293 + $0x68] sm:$0xff]
      %v410 = vld [vmem:[%s293 + $0x70] sm:$0xff]
      %v411 = vld [vmem:[%s293 + $0x78] sm:$0xff]
      %v412 = vld [vmem:[%s293 + $0x80] sm:$0xff]
      %v413 = vld [vmem:[%s293 + $0x88] sm:$0xff]
      %v414 = vld [vmem:[%s293 + $0x90] sm:$0xff]
      %v415 = vld [vmem:[%s293 + $0x98] sm:$0xff]
      %v416 = vld [vmem:[%s293 + $0xa0] sm:$0xff]
      %v417 = vld [vmem:[%s293 + $0xa8] sm:$0xff]
      %v418 = vld [vmem:[%s293 + $0xb0] sm:$0xff]
      %v419 = vld [vmem:[%s293 + $0xb8] sm:$0xff]
      %v420 = vld [vmem:[%s293 + $0xc0] sm:$0xff]
      %v421 = vld [vmem:[%s293 + $0xc8] sm:$0xff]
      %v422 = vld [vmem:[%s293 + $0xd0] sm:$0xff]
      %v423 = vld [vmem:[%s293 + $0xd8] sm:$0xff]
      %v424 = vld [vmem:[%s293 + $0xe0] sm:$0xff]
      %v425 = vld [vmem:[%s293 + $0xe8] sm:$0xff]
      %v426 = vld [vmem:[%s293 + $0xf0] sm:$0xff]
      %v427 = vld [vmem:[%s293 + $0xf8] sm:$0xff]
      %v428 = vld [vmem:[%s2] sm:$0x1]
      %v430 = vlaneseq
      %v431 = vshrl.u32 %v430, 7
      %v432 = vsub.s32 0, %v431
      %v433 = vrot.slane %v428, %v432
      %v435 = vmul.f32 %v396, %v433
      %v436 = vmul.f32 %v397, %v433
      %v437 = vmul.f32 %v398, %v433
      %v438 = vmul.f32 %v399, %v433
      %v439 = vmul.f32 %v400, %v433
      %v440 = vmul.f32 %v401, %v433
      %v441 = vmul.f32 %v402, %v433
      %v442 = vmul.f32 %v403, %v433
      %v443 = vmul.f32 %v404, %v433
      %v444 = vmul.f32 %v405, %v433
      %v445 = vmul.f32 %v406, %v433
      %v446 = vmul.f32 %v407, %v433
      %v447 = vmul.f32 %v408, %v433
      %v448 = vmul.f32 %v409, %v433
      %v449 = vmul.f32 %v410, %v433
      %v450 = vmul.f32 %v411, %v433
      %v451 = vmul.f32 %v412, %v433
      %v452 = vmul.f32 %v413, %v433
      %v453 = vmul.f32 %v414, %v433
      %v454 = vmul.f32 %v415, %v433
      %v455 = vmul.f32 %v416, %v433
      %v456 = vmul.f32 %v417, %v433
      %v457 = vmul.f32 %v418, %v433
      %v458 = vmul.f32 %v419, %v433
      %v459 = vmul.f32 %v420, %v433
      %v460 = vmul.f32 %v421, %v433
      %v461 = vmul.f32 %v422, %v433
      %v462 = vmul.f32 %v423, %v433
      %v463 = vmul.f32 %v424, %v433
      %v464 = vmul.f32 %v425, %v433
      %v465 = vmul.f32 %v426, %v433
      %v466 = vmul.f32 %v427, %v433
      %v467 = vld [vmem:[%s3] sm:$0x1]
      %v469 = vlaneseq
      %v470 = vshrl.u32 %v469, 7
      %v471 = vsub.s32 0, %v470
      %v472 = vrot.slane %v467, %v471
      %v474 = vadd.f32 %v435, %v472
      %v475 = vadd.f32 %v436, %v472
      %v476 = vadd.f32 %v437, %v472
      %v477 = vadd.f32 %v438, %v472
      %v478 = vadd.f32 %v439, %v472
      %v479 = vadd.f32 %v440, %v472
      %v480 = vadd.f32 %v441, %v472
      %v481 = vadd.f32 %v442, %v472
      %v482 = vadd.f32 %v443, %v472
      %v483 = vadd.f32 %v444, %v472
      %v484 = vadd.f32 %v445, %v472
      %v485 = vadd.f32 %v446, %v472
      %v486 = vadd.f32 %v447, %v472
      %v487 = vadd.f32 %v448, %v472
      %v488 = vadd.f32 %v449, %v472
      %v489 = vadd.f32 %v450, %v472
      %v490 = vadd.f32 %v451, %v472
      %v491 = vadd.f32 %v452, %v472
      %v492 = vadd.f32 %v453, %v472
      %v493 = vadd.f32 %v454, %v472
      %v494 = vadd.f32 %v455, %v472
      %v495 = vadd.f32 %v456, %v472
      %v496 = vadd.f32 %v457, %v472
      %v497 = vadd.f32 %v458, %v472
      %v498 = vadd.f32 %v459, %v472
      %v499 = vadd.f32 %v460, %v472
      %v500 = vadd.f32 %v461, %v472
      %v501 = vadd.f32 %v462, %v472
      %v502 = vadd.f32 %v463, %v472
      %v503 = vadd.f32 %v464, %v472
      %v504 = vadd.f32 %v465, %v472
      %v505 = vadd.f32 %v466, %v472
      %v506 = vmax.f32 %v474, 0.0
      %v507 = vmax.f32 %v475, 0.0
      %v508 = vmax.f32 %v476, 0.0
      %v509 = vmax.f32 %v477, 0.0
      %v510 = vmax.f32 %v478, 0.0
      %v511 = vmax.f32 %v479, 0.0
      %v512 = vmax.f32 %v480, 0.0
      %v513 = vmax.f32 %v481, 0.0
      %v514 = vmax.f32 %v482, 0.0
      %v515 = vmax.f32 %v483, 0.0
      %v516 = vmax.f32 %v484, 0.0
      %v517 = vmax.f32 %v485, 0.0
      %v518 = vmax.f32 %v486, 0.0
      %v519 = vmax.f32 %v487, 0.0
      %v520 = vmax.f32 %v488, 0.0
      %v521 = vmax.f32 %v489, 0.0
      %v522 = vmax.f32 %v490, 0.0
      %v523 = vmax.f32 %v491, 0.0
      %v524 = vmax.f32 %v492, 0.0
      %v525 = vmax.f32 %v493, 0.0
      %v526 = vmax.f32 %v494, 0.0
      %v527 = vmax.f32 %v495, 0.0
      %v528 = vmax.f32 %v496, 0.0
      %v529 = vmax.f32 %v497, 0.0
      %v530 = vmax.f32 %v498, 0.0
      %v531 = vmax.f32 %v499, 0.0
      %v532 = vmax.f32 %v500, 0.0
      %v533 = vmax.f32 %v501, 0.0
      %v534 = vmax.f32 %v502, 0.0
      %v535 = vmax.f32 %v503, 0.0
      %v536 = vmax.f32 %v504, 0.0
      %v537 = vmax.f32 %v505, 0.0
      %vm538 = vcmask 257024
      %539 = vst.msk [vmem:[#allocation2] sm:$0xf] %vm538, 0
      %540 = vst.msk [vmem:[#allocation2 + $0x4] sm:$0xf] %vm538, 0
      %vm541 = vcmask 253952
      %542 = vst.msk [vmem:[#allocation2 + $0x8] sm:$0x1] %vm541, 0
      %543 = vst.msk [vmem:[#allocation2 + $0xc] sm:$0xf] %vm538, 0
      %544 = vst.msk [vmem:[#allocation2 + $0x10] sm:$0xf] %vm538, 0
      %545 = vst.msk [vmem:[#allocation2 + $0x14] sm:$0x1] %vm541, 0
      %546 = vst.msk [vmem:[#allocation2 + $0x18] sm:$0xf] %vm538, 0
      %547 = vst.msk [vmem:[#allocation2 + $0x1c] sm:$0xf] %vm538, 0
      %548 = vst.msk [vmem:[#allocation2 + $0x20] sm:$0x1] %vm541, 0
      %549 = vst.msk [vmem:[#allocation2 + $0x24] sm:$0xf] %vm538, 0
      %550 = vst.msk [vmem:[#allocation2 + $0x28] sm:$0xf] %vm538, 0
      %551 = vst.msk [vmem:[#allocation2 + $0x2c] sm:$0x1] %vm541, 0
      %552 = vst.msk [vmem:[#allocation2 + $0x30] sm:$0xf] %vm538, 0
      %553 = vst.msk [vmem:[#allocation2 + $0x34] sm:$0xf] %vm538, 0
      %554 = vst.msk [vmem:[#allocation2 + $0x38] sm:$0x1] %vm541, 0
      %555 = vst.msk [vmem:[#allocation2 + $0x3c] sm:$0xf] %vm538, 0
      %556 = vst.msk [vmem:[#allocation2 + $0x40] sm:$0xf] %vm538, 0
      %557 = vst.msk [vmem:[#allocation2 + $0x44] sm:$0x1] %vm541, 0
      %558 = vst.msk [vmem:[#allocation2 + $0x48] sm:$0xf] %vm538, 0
      %559 = vst.msk [vmem:[#allocation2 + $0x4c] sm:$0xf] %vm538, 0
      %560 = vst.msk [vmem:[#allocation2 + $0x50] sm:$0x1] %vm541, 0
      %561 = vst.msk [vmem:[#allocation2 + $0x54] sm:$0xf] %vm538, 0
      %562 = vst.msk [vmem:[#allocation2 + $0x58] sm:$0xf] %vm538, 0
      %563 = vst.msk [vmem:[#allocation2 + $0x5c] sm:$0x1] %vm541, 0
      %564 = vst.msk [vmem:[#allocation2 + $0x60] sm:$0xf] %vm538, 0
      %565 = vst.msk [vmem:[#allocation2 + $0x64] sm:$0xf] %vm538, 0
      %566 = vst.msk [vmem:[#allocation2 + $0x68] sm:$0x1] %vm541, 0
      %567 = vst.msk [vmem:[#allocation2 + $0x6c] sm:$0xf] %vm538, 0
      %568 = vst.msk [vmem:[#allocation2 + $0x70] sm:$0xf] %vm538, 0
      %569 = vst.msk [vmem:[#allocation2 + $0x74] sm:$0x1] %vm541, 0
      %570 = vst.msk [vmem:[#allocation2 + $0x78] sm:$0xf] %vm538, 0
      %571 = vst.msk [vmem:[#allocation2 + $0x7c] sm:$0xf] %vm538, 0
      %572 = vst.msk [vmem:[#allocation2 + $0x80] sm:$0x1] %vm541, 0
      %573 = vst.msk [vmem:[#allocation2 + $0x84] sm:$0xf] %vm538, 0
      %574 = vst.msk [vmem:[#allocation2 + $0x88] sm:$0xf] %vm538, 0
      %575 = vst.msk [vmem:[#allocation2 + $0x8c] sm:$0x1] %vm541, 0
      %576 = vst.msk [vmem:[#allocation2 + $0x90] sm:$0xf] %vm538, 0
      %577 = vst.msk [vmem:[#allocation2 + $0x94] sm:$0xf] %vm538, 0
      %578 = vst.msk [vmem:[#allocation2 + $0x98] sm:$0x1] %vm541, 0
      %579 = vst.msk [vmem:[#allocation2 + $0x9c] sm:$0xf] %vm538, 0
      %580 = vst.msk [vmem:[#allocation2 + $0xa0] sm:$0xf] %vm538, 0
      %581 = vst.msk [vmem:[#allocation2 + $0xa4] sm:$0x1] %vm541, 0
      %582 = vst.msk [vmem:[#allocation2 + $0xa8] sm:$0xf] %vm538, 0
      %583 = vst.msk [vmem:[#allocation2 + $0xac] sm:$0xf] %vm538, 0
      %584 = vst.msk [vmem:[#allocation2 + $0xb0] sm:$0x1] %vm541, 0
      %585 = vst.msk [vmem:[#allocation2 + $0xb4] sm:$0xf] %vm538, 0
      %586 = vst.msk [vmem:[#allocation2 + $0xb8] sm:$0xf] %vm538, 0
      %587 = vst.msk [vmem:[#allocation2 + $0xbc] sm:$0x1] %vm541, 0
      %588 = vst.msk [vmem:[#allocation2 + $0xc0] sm:$0xf] %vm538, 0
      %589 = vst.msk [vmem:[#allocation2 + $0xc4] sm:$0xf] %vm538, 0
      %590 = vst.msk [vmem:[#allocation2 + $0xc8] sm:$0x1] %vm541, 0
      %591 = vst.msk [vmem:[#allocation2 + $0xcc] sm:$0xf] %vm538, 0
      %592 = vst.msk [vmem:[#allocation2 + $0xd0] sm:$0xf] %vm538, 0
      %593 = vst.msk [vmem:[#allocation2 + $0xd4] sm:$0x1] %vm541, 0
      %v594 = vpack.c.bf16 %v365, %v364
      %v595 = vpack.c.bf16 %v367, %v366
      %v596 = vpack.c.bf16 %v369, %v368
      %v597 = vpack.c.bf16 %v371, %v370
      %v598 = vpack.c.bf16 %v373, %v372
      %v599 = vpack.c.bf16 %v375, %v374
      %v600 = vpack.c.bf16 %v377, %v376
      %v601 = vpack.c.bf16 %v379, %v378
      %v602 = vpack.c.bf16 %v381, %v380
      %v603 = vpack.c.bf16 %v383, %v382
      %v604 = vpack.c.bf16 %v385, %v384
      %v605 = vpack.c.bf16 %v387, %v386
      %v606 = vpack.c.bf16 %v389, %v388
      %v607 = vpack.c.bf16 %v391, %v390
      %v608 = vpack.c.bf16 %v393, %v392
      %v609 = vpack.c.bf16 %v395, %v394
      %v626 = vunpack.c.l.b16 %v594
      %v627 = vunpack.c.h.b16 %v594
      %v628 = vunpack.c.l.b16 %v595
      %v629 = vunpack.c.h.b16 %v595
      %v630 = vunpack.c.l.b16 %v596
      %v631 = vunpack.c.h.b16 %v596
      %v632 = vunpack.c.l.b16 %v597
      %v633 = vunpack.c.h.b16 %v597
      %v634 = vunpack.c.l.b16 %v598
      %v635 = vunpack.c.h.b16 %v598
      %v636 = vunpack.c.l.b16 %v599
      %v637 = vunpack.c.h.b16 %v599
      %v638 = vunpack.c.l.b16 %v600
      %v639 = vunpack.c.h.b16 %v600
      %v640 = vunpack.c.l.b16 %v601
      %v641 = vunpack.c.h.b16 %v601
      %v642 = vunpack.c.l.b16 %v602
      %v643 = vunpack.c.h.b16 %v602
      %v644 = vunpack.c.l.b16 %v603
      %v645 = vunpack.c.h.b16 %v603
      %v646 = vunpack.c.l.b16 %v604
      %v647 = vunpack.c.h.b16 %v604
      %v648 = vunpack.c.l.b16 %v605
      %v649 = vunpack.c.h.b16 %v605
      %v650 = vunpack.c.l.b16 %v606
      %v651 = vunpack.c.h.b16 %v606
      %v652 = vunpack.c.l.b16 %v607
      %v653 = vunpack.c.h.b16 %v607
      %v654 = vunpack.c.l.b16 %v608
      %v655 = vunpack.c.h.b16 %v608
      %v656 = vunpack.c.l.b16 %v609
      %v657 = vunpack.c.h.b16 %v609
      %v658 = vpack.c.b16 %v626, %v626
      %v659 = vpack.c.b16 %v627, %v627
      %v660 = vpack.c.b16 %v628, %v628
      %v661 = vpack.c.b16 %v629, %v629
      %v662 = vpack.c.b16 %v630, %v630
      %v663 = vpack.c.b16 %v631, %v631
      %v664 = vpack.c.b16 %v632, %v632
      %v665 = vpack.c.b16 %v633, %v633
      %v666 = vpack.c.b16 %v634, %v634
      %v667 = vpack.c.b16 %v635, %v635
      %v668 = vpack.c.b16 %v636, %v636
      %v669 = vpack.c.b16 %v637, %v637
      %v670 = vpack.c.b16 %v638, %v638
      %v671 = vpack.c.b16 %v639, %v639
      %v672 = vpack.c.b16 %v640, %v640
      %v673 = vpack.c.b16 %v641, %v641
      %v674 = vpack.c.b16 %v642, %v642
      %v675 = vpack.c.b16 %v643, %v643
      %v676 = vpack.c.b16 %v644, %v644
      %v677 = vpack.c.b16 %v645, %v645
      %v678 = vpack.c.b16 %v646, %v646
      %v679 = vpack.c.b16 %v647, %v647
      %v680 = vpack.c.b16 %v648, %v648
      %v681 = vpack.c.b16 %v649, %v649
      %v682 = vpack.c.b16 %v650, %v650
      %v683 = vpack.c.b16 %v651, %v651
      %v684 = vpack.c.b16 %v652, %v652
      %v685 = vpack.c.b16 %v653, %v653
      %v686 = vpack.c.b16 %v654, %v654
      %v687 = vpack.c.b16 %v655, %v655
      %v688 = vpack.c.b16 %v656, %v656
      %v689 = vpack.c.b16 %v657, %v657
      %vm690 = vsmask.f32 256
      %vm691 = vsmask.f32 4368
      %vm692 = vmor %vm690, %vm691
      %v694 = vshrl.u32 %v658, 16
      %v696 = vrot.slane %v694, 7
      %v697 = vshll.u32 %v658, 16
      %v699 = vor.u32 %v696, %v697
      %v700 = vrot.slane %v696, 4
      %v702 = vshrl.u32 %v659, 16
      %v704 = vrot.slane %v702, 7
      %v705 = vshll.u32 %v659, 16
      %v707 = vor.u32 %v704, %v705
      %v708 = vsel %vm692, %v700, %v707
      %v709 = vrot.slane %v704, 4
      %v711 = vshrl.u32 %v660, 16
      %v713 = vrot.slane %v711, 7
      %v714 = vshll.u32 %v660, 16
      %v716 = vor.u32 %v713, %v714
      %v717 = vrot.slane %v713, 4
      %v719 = vshrl.u32 %v661, 16
      %v721 = vrot.slane %v719, 7
      %v722 = vshll.u32 %v661, 16
      %v724 = vor.u32 %v721, %v722
      %v725 = vsel %vm692, %v717, %v724
      %v726 = vrot.slane %v721, 4
      %v728 = vshrl.u32 %v662, 16
      %v730 = vrot.slane %v728, 7
      %v731 = vshll.u32 %v662, 16
      %v733 = vor.u32 %v730, %v731
      %v734 = vrot.slane %v730, 4
      %v736 = vshrl.u32 %v663, 16
      %v738 = vrot.slane %v736, 7
      %v739 = vshll.u32 %v663, 16
      %v741 = vor.u32 %v738, %v739
      %v742 = vsel %vm692, %v734, %v741
      %v743 = vrot.slane %v738, 4
      %v745 = vshrl.u32 %v664, 16
      %v747 = vrot.slane %v745, 7
      %v748 = vshll.u32 %v664, 16
      %v750 = vor.u32 %v747, %v748
      %v751 = vrot.slane %v747, 4
      %v753 = vshrl.u32 %v665, 16
      %v755 = vrot.slane %v753, 7
      %v756 = vshll.u32 %v665, 16
      %v758 = vor.u32 %v755, %v756
      %v759 = vsel %vm692, %v751, %v758
      %v760 = vrot.slane %v755, 4
      %v762 = vshrl.u32 %v666, 16
      %v764 = vrot.slane %v762, 7
      %v765 = vshll.u32 %v666, 16
      %v767 = vor.u32 %v764, %v765
      %v768 = vrot.slane %v764, 4
      %v770 = vshrl.u32 %v667, 16
      %v772 = vrot.slane %v770, 7
      %v773 = vshll.u32 %v667, 16
      %v775 = vor.u32 %v772, %v773
      %v776 = vsel %vm692, %v768, %v775
      %v777 = vrot.slane %v772, 4
      %v779 = vshrl.u32 %v668, 16
      %v781 = vrot.slane %v779, 7
      %v782 = vshll.u32 %v668, 16
      %v784 = vor.u32 %v781, %v782
      %v785 = vrot.slane %v781, 4
      %v787 = vshrl.u32 %v669, 16
      %v789 = vrot.slane %v787, 7
      %v790 = vshll.u32 %v669, 16
      %v792 = vor.u32 %v789, %v790
      %v793 = vsel %vm692, %v785, %v792
      %v794 = vrot.slane %v789, 4
      %v796 = vshrl.u32 %v670, 16
      %v798 = vrot.slane %v796, 7
      %v799 = vshll.u32 %v670, 16
      %v801 = vor.u32 %v798, %v799
      %v802 = vrot.slane %v798, 4
      %v804 = vshrl.u32 %v671, 16
      %v806 = vrot.slane %v804, 7
      %v807 = vshll.u32 %v671, 16
      %v809 = vor.u32 %v806, %v807
      %v810 = vsel %vm692, %v802, %v809
      %v811 = vrot.slane %v806, 4
      %v813 = vshrl.u32 %v672, 16
      %v815 = vrot.slane %v813, 7
      %v816 = vshll.u32 %v672, 16
      %v818 = vor.u32 %v815, %v816
      %v819 = vrot.slane %v815, 4
      %v821 = vshrl.u32 %v673, 16
      %v823 = vrot.slane %v821, 7
      %v824 = vshll.u32 %v673, 16
      %v826 = vor.u32 %v823, %v824
      %v827 = vsel %vm692, %v819, %v826
      %v828 = vrot.slane %v823, 4
      %v830 = vshrl.u32 %v674, 16
      %v832 = vrot.slane %v830, 7
      %v833 = vshll.u32 %v674, 16
      %v835 = vor.u32 %v832, %v833
      %v836 = vrot.slane %v832, 4
      %v838 = vshrl.u32 %v675, 16
      %v840 = vrot.slane %v838, 7
      %v841 = vshll.u32 %v675, 16
      %v843 = vor.u32 %v840, %v841
      %v844 = vsel %vm692, %v836, %v843
      %v845 = vrot.slane %v840, 4
      %v847 = vshrl.u32 %v676, 16
      %v849 = vrot.slane %v847, 7
      %v850 = vshll.u32 %v676, 16
      %v852 = vor.u32 %v849, %v850
      %v853 = vrot.slane %v849, 4
      %v855 = vshrl.u32 %v677, 16
      %v857 = vrot.slane %v855, 7
      %v858 = vshll.u32 %v677, 16
      %v860 = vor.u32 %v857, %v858
      %v861 = vsel %vm692, %v853, %v860
      %v862 = vrot.slane %v857, 4
      %v864 = vshrl.u32 %v678, 16
      %v866 = vrot.slane %v864, 7
      %v867 = vshll.u32 %v678, 16
      %v869 = vor.u32 %v866, %v867
      %v870 = vrot.slane %v866, 4
      %v872 = vshrl.u32 %v679, 16
      %v874 = vrot.slane %v872, 7
      %v875 = vshll.u32 %v679, 16
      %v877 = vor.u32 %v874, %v875
      %v878 = vsel %vm692, %v870, %v877
      %v879 = vrot.slane %v874, 4
      %v881 = vshrl.u32 %v680, 16
      %v883 = vrot.slane %v881, 7
      %v884 = vshll.u32 %v680, 16
      %v886 = vor.u32 %v883, %v884
      %v887 = vrot.slane %v883, 4
      %v889 = vshrl.u32 %v681, 16
      %v891 = vrot.slane %v889, 7
      %v892 = vshll.u32 %v681, 16
      %v894 = vor.u32 %v891, %v892
      %v895 = vsel %vm692, %v887, %v894
      %v896 = vrot.slane %v891, 4
      %v898 = vshrl.u32 %v682, 16
      %v900 = vrot.slane %v898, 7
      %v901 = vshll.u32 %v682, 16
      %v903 = vor.u32 %v900, %v901
      %v904 = vrot.slane %v900, 4
      %v906 = vshrl.u32 %v683, 16
      %v908 = vrot.slane %v906, 7
      %v909 = vshll.u32 %v683, 16
      %v911 = vor.u32 %v908, %v909
      %v912 = vsel %vm692, %v904, %v911
      %v913 = vrot.slane %v908, 4
      %v915 = vshrl.u32 %v684, 16
      %v917 = vrot.slane %v915, 7
      %v918 = vshll.u32 %v684, 16
      %v920 = vor.u32 %v917, %v918
      %v921 = vrot.slane %v917, 4
      %v923 = vshrl.u32 %v685, 16
      %v925 = vrot.slane %v923, 7
      %v926 = vshll.u32 %v685, 16
      %v928 = vor.u32 %v925, %v926
      %v929 = vsel %vm692, %v921, %v928
      %v930 = vrot.slane %v925, 4
      %v932 = vshrl.u32 %v686, 16
      %v934 = vrot.slane %v932, 7
      %v935 = vshll.u32 %v686, 16
      %v937 = vor.u32 %v934, %v935
      %v938 = vrot.slane %v934, 4
      %v940 = vshrl.u32 %v687, 16
      %v942 = vrot.slane %v940, 7
      %v943 = vshll.u32 %v687, 16
      %v945 = vor.u32 %v942, %v943
      %v946 = vsel %vm692, %v938, %v945
      %v947 = vrot.slane %v942, 4
      %v949 = vshrl.u32 %v688, 16
      %v951 = vrot.slane %v949, 7
      %v952 = vshll.u32 %v688, 16
      %v954 = vor.u32 %v951, %v952
      %v955 = vrot.slane %v951, 4
      %v957 = vshrl.u32 %v689, 16
      %v959 = vrot.slane %v957, 7
      %v960 = vshll.u32 %v689, 16
      %v962 = vor.u32 %v959, %v960
      %v963 = vsel %vm692, %v955, %v962
      %v964 = vrot.slane %v959, 4
      %s1013 = scalar_lea.vmem [#allocation2], 12
      %vm1014 = vcmask 125952
      %vm1015 = vsmask.f32 7938
      %vm1016 = vmand %vm1014, %vm1015
      %v1017 = vld [vmem:[%s1013] sm:$0xf]
      %v1018 = vsel %vm1016, %v699, %v1017
      %1019 = vst [vmem:[%s1013] sm:$0xf] %v1018
      %vm1020 = vcmask 125952
      %1021 = vst.msk [vmem:[%s1013 + $0x4] sm:$0xf] %vm1020, %v708
      %vm1022 = vcmask 122880
      %vm1023 = vmand %vm1022, %vm690
      %v1024 = vld [vmem:[%s1013 + $0x8] sm:$0x1]
      %v1025 = vsel %vm1023, %v709, %v1024
      %1026 = vst [vmem:[%s1013 + $0x8] sm:$0x1] %v1025
      %v1027 = vld [vmem:[%s1013 + $0xc] sm:$0xf]
      %v1028 = vsel %vm1016, %v716, %v1027
      %1029 = vst [vmem:[%s1013 + $0xc] sm:$0xf] %v1028
      %1030 = vst.msk [vmem:[%s1013 + $0x10] sm:$0xf] %vm1020, %v725
      %v1031 = vld [vmem:[%s1013 + $0x14] sm:$0x1]
      %v1032 = vsel %vm1023, %v726, %v1031
      %1033 = vst [vmem:[%s1013 + $0x14] sm:$0x1] %v1032
      %v1034 = vld [vmem:[%s1013 + $0x18] sm:$0xf]
      %v1035 = vsel %vm1016, %v733, %v1034
      %1036 = vst [vmem:[%s1013 + $0x18] sm:$0xf] %v1035
      %1037 = vst.msk [vmem:[%s1013 + $0x1c] sm:$0xf] %vm1020, %v742
      %v1038 = vld [vmem:[%s1013 + $0x20] sm:$0x1]
      %v1039 = vsel %vm1023, %v743, %v1038
      %1040 = vst [vmem:[%s1013 + $0x20] sm:$0x1] %v1039
      %v1041 = vld [vmem:[%s1013 + $0x24] sm:$0xf]
      %v1042 = vsel %vm1016, %v750, %v1041
      %1043 = vst [vmem:[%s1013 + $0x24] sm:$0xf] %v1042
      %1044 = vst.msk [vmem:[%s1013 + $0x28] sm:$0xf] %vm1020, %v759
      %v1045 = vld [vmem:[%s1013 + $0x2c] sm:$0x1]
      %v1046 = vsel %vm1023, %v760, %v1045
      %1047 = vst [vmem:[%s1013 + $0x2c] sm:$0x1] %v1046
      %v1048 = vld [vmem:[%s1013 + $0x30] sm:$0xf]
      %v1049 = vsel %vm1016, %v767, %v1048
      %1050 = vst [vmem:[%s1013 + $0x30] sm:$0xf] %v1049
      %1051 = vst.msk [vmem:[%s1013 + $0x34] sm:$0xf] %vm1020, %v776
      %v1052 = vld [vmem:[%s1013 + $0x38] sm:$0x1]
      %v1053 = vsel %vm1023, %v777, %v1052
      %1054 = vst [vmem:[%s1013 + $0x38] sm:$0x1] %v1053
      %v1055 = vld [vmem:[%s1013 + $0x3c] sm:$0xf]
      %v1056 = vsel %vm1016, %v784, %v1055
      %1057 = vst [vmem:[%s1013 + $0x3c] sm:$0xf] %v1056
      %1058 = vst.msk [vmem:[%s1013 + $0x40] sm:$0xf] %vm1020, %v793
      %v1059 = vld [vmem:[%s1013 + $0x44] sm:$0x1]
      %v1060 = vsel %vm1023, %v794, %v1059
      %1061 = vst [vmem:[%s1013 + $0x44] sm:$0x1] %v1060
      %v1062 = vld [vmem:[%s1013 + $0x48] sm:$0xf]
      %v1063 = vsel %vm1016, %v801, %v1062
      %1064 = vst [vmem:[%s1013 + $0x48] sm:$0xf] %v1063
      %1065 = vst.msk [vmem:[%s1013 + $0x4c] sm:$0xf] %vm1020, %v810
      %v1066 = vld [vmem:[%s1013 + $0x50] sm:$0x1]
      %v1067 = vsel %vm1023, %v811, %v1066
      %1068 = vst [vmem:[%s1013 + $0x50] sm:$0x1] %v1067
      %v1069 = vld [vmem:[%s1013 + $0x54] sm:$0xf]
      %v1070 = vsel %vm1016, %v818, %v1069
      %1071 = vst [vmem:[%s1013 + $0x54] sm:$0xf] %v1070
      %1072 = vst.msk [vmem:[%s1013 + $0x58] sm:$0xf] %vm1020, %v827
      %v1073 = vld [vmem:[%s1013 + $0x5c] sm:$0x1]
      %v1074 = vsel %vm1023, %v828, %v1073
      %1075 = vst [vmem:[%s1013 + $0x5c] sm:$0x1] %v1074
      %v1076 = vld [vmem:[%s1013 + $0x60] sm:$0xf]
      %v1077 = vsel %vm1016, %v835, %v1076
      %1078 = vst [vmem:[%s1013 + $0x60] sm:$0xf] %v1077
      %1079 = vst.msk [vmem:[%s1013 + $0x64] sm:$0xf] %vm1020, %v844
      %v1080 = vld [vmem:[%s1013 + $0x68] sm:$0x1]
      %v1081 = vsel %vm1023, %v845, %v1080
      %1082 = vst [vmem:[%s1013 + $0x68] sm:$0x1] %v1081
      %v1083 = vld [vmem:[%s1013 + $0x6c] sm:$0xf]
      %v1084 = vsel %vm1016, %v852, %v1083
      %1085 = vst [vmem:[%s1013 + $0x6c] sm:$0xf] %v1084
      %1086 = vst.msk [vmem:[%s1013 + $0x70] sm:$0xf] %vm1020, %v861
      %v1087 = vld [vmem:[%s1013 + $0x74] sm:$0x1]
      %v1088 = vsel %vm1023, %v862, %v1087
      %1089 = vst [vmem:[%s1013 + $0x74] sm:$0x1] %v1088
      %v1090 = vld [vmem:[%s1013 + $0x78] sm:$0xf]
      %v1091 = vsel %vm1016, %v869, %v1090
      %1092 = vst [vmem:[%s1013 + $0x78] sm:$0xf] %v1091
      %1093 = vst.msk [vmem:[%s1013 + $0x7c] sm:$0xf] %vm1020, %v878
      %v1094 = vld [vmem:[%s1013 + $0x80] sm:$0x1]
      %v1095 = vsel %vm1023, %v879, %v1094
      %1096 = vst [vmem:[%s1013 + $0x80] sm:$0x1] %v1095
      %v1097 = vld [vmem:[%s1013 + $0x84] sm:$0xf]
      %v1098 = vsel %vm1016, %v886, %v1097
      %1099 = vst [vmem:[%s1013 + $0x84] sm:$0xf] %v1098
      %1100 = vst.msk [vmem:[%s1013 + $0x88] sm:$0xf] %vm1020, %v895
      %v1101 = vld [vmem:[%s1013 + $0x8c] sm:$0x1]
      %v1102 = vsel %vm1023, %v896, %v1101
      %1103 = vst [vmem:[%s1013 + $0x8c] sm:$0x1] %v1102
      %v1104 = vld [vmem:[%s1013 + $0x90] sm:$0xf]
      %v1105 = vsel %vm1016, %v903, %v1104
      %1106 = vst [vmem:[%s1013 + $0x90] sm:$0xf] %v1105
      %1107 = vst.msk [vmem:[%s1013 + $0x94] sm:$0xf] %vm1020, %v912
      %v1108 = vld [vmem:[%s1013 + $0x98] sm:$0x1]
      %v1109 = vsel %vm1023, %v913, %v1108
      %1110 = vst [vmem:[%s1013 + $0x98] sm:$0x1] %v1109
      %v1111 = vld [vmem:[%s1013 + $0x9c] sm:$0xf]
      %v1112 = vsel %vm1016, %v920, %v1111
      %1113 = vst [vmem:[%s1013 + $0x9c] sm:$0xf] %v1112
      %1114 = vst.msk [vmem:[%s1013 + $0xa0] sm:$0xf] %vm1020, %v929
      %v1115 = vld [vmem:[%s1013 + $0xa4] sm:$0x1]
      %v1116 = vsel %vm1023, %v930, %v1115
      %1117 = vst [vmem:[%s1013 + $0xa4] sm:$0x1] %v1116
      %v1118 = vld [vmem:[%s1013 + $0xa8] sm:$0xf]
      %v1119 = vsel %vm1016, %v937, %v1118
      %1120 = vst [vmem:[%s1013 + $0xa8] sm:$0xf] %v1119
      %1121 = vst.msk [vmem:[%s1013 + $0xac] sm:$0xf] %vm1020, %v946
      %v1122 = vld [vmem:[%s1013 + $0xb0] sm:$0x1]
      %v1123 = vsel %vm1023, %v947, %v1122
      %1124 = vst [vmem:[%s1013 + $0xb0] sm:$0x1] %v1123
      %v1125 = vld [vmem:[%s1013 + $0xb4] sm:$0xf]
      %v1126 = vsel %vm1016, %v954, %v1125
      %1127 = vst [vmem:[%s1013 + $0xb4] sm:$0xf] %v1126
      %1128 = vst.msk [vmem:[%s1013 + $0xb8] sm:$0xf] %vm1020, %v963
      %v1129 = vld [vmem:[%s1013 + $0xbc] sm:$0x1]
      %v1130 = vsel %vm1023, %v964, %v1129
      %1131 = vst [vmem:[%s1013 + $0xbc] sm:$0x1] %v1130
      %v1132 = vpack.c.bf16 %v507, %v506
      %v1133 = vpack.c.bf16 %v509, %v508
      %v1134 = vpack.c.bf16 %v511, %v510
      %v1135 = vpack.c.bf16 %v513, %v512
      %v1136 = vpack.c.bf16 %v515, %v514
      %v1137 = vpack.c.bf16 %v517, %v516
      %v1138 = vpack.c.bf16 %v519, %v518
      %v1139 = vpack.c.bf16 %v521, %v520
      %v1140 = vpack.c.bf16 %v523, %v522
      %v1141 = vpack.c.bf16 %v525, %v524
      %v1142 = vpack.c.bf16 %v527, %v526
      %v1143 = vpack.c.bf16 %v529, %v528
      %v1144 = vpack.c.bf16 %v531, %v530
      %v1145 = vpack.c.bf16 %v533, %v532
      %v1146 = vpack.c.bf16 %v535, %v534
      %v1147 = vpack.c.bf16 %v537, %v536
      %v1164 = vunpack.c.l.b16 %v1132
      %v1165 = vunpack.c.h.b16 %v1132
      %v1166 = vunpack.c.l.b16 %v1133
      %v1167 = vunpack.c.h.b16 %v1133
      %v1168 = vunpack.c.l.b16 %v1134
      %v1169 = vunpack.c.h.b16 %v1134
      %v1170 = vunpack.c.l.b16 %v1135
      %v1171 = vunpack.c.h.b16 %v1135
      %v1172 = vunpack.c.l.b16 %v1136
      %v1173 = vunpack.c.h.b16 %v1136
      %v1174 = vunpack.c.l.b16 %v1137
      %v1175 = vunpack.c.h.b16 %v1137
      %v1176 = vunpack.c.l.b16 %v1138
      %v1177 = vunpack.c.h.b16 %v1138
      %v1178 = vunpack.c.l.b16 %v1139
      %v1179 = vunpack.c.h.b16 %v1139
      %v1180 = vunpack.c.l.b16 %v1140
      %v1181 = vunpack.c.h.b16 %v1140
      %v1182 = vunpack.c.l.b16 %v1141
      %v1183 = vunpack.c.h.b16 %v1141
      %v1184 = vunpack.c.l.b16 %v1142
      %v1185 = vunpack.c.h.b16 %v1142
      %v1186 = vunpack.c.l.b16 %v1143
      %v1187 = vunpack.c.h.b16 %v1143
      %v1188 = vunpack.c.l.b16 %v1144
      %v1189 = vunpack.c.h.b16 %v1144
      %v1190 = vunpack.c.l.b16 %v1145
      %v1191 = vunpack.c.h.b16 %v1145
      %v1192 = vunpack.c.l.b16 %v1146
      %v1193 = vunpack.c.h.b16 %v1146
      %v1194 = vunpack.c.l.b16 %v1147
      %v1195 = vunpack.c.h.b16 %v1147
      %v1196 = vpack.c.b16 %v1164, %v1164
      %v1197 = vpack.c.b16 %v1165, %v1165
      %v1198 = vpack.c.b16 %v1166, %v1166
      %v1199 = vpack.c.b16 %v1167, %v1167
      %v1200 = vpack.c.b16 %v1168, %v1168
      %v1201 = vpack.c.b16 %v1169, %v1169
      %v1202 = vpack.c.b16 %v1170, %v1170
      %v1203 = vpack.c.b16 %v1171, %v1171
      %v1204 = vpack.c.b16 %v1172, %v1172
      %v1205 = vpack.c.b16 %v1173, %v1173
      %v1206 = vpack.c.b16 %v1174, %v1174
      %v1207 = vpack.c.b16 %v1175, %v1175
      %v1208 = vpack.c.b16 %v1176, %v1176
      %v1209 = vpack.c.b16 %v1177, %v1177
      %v1210 = vpack.c.b16 %v1178, %v1178
      %v1211 = vpack.c.b16 %v1179, %v1179
      %v1212 = vpack.c.b16 %v1180, %v1180
      %v1213 = vpack.c.b16 %v1181, %v1181
      %v1214 = vpack.c.b16 %v1182, %v1182
      %v1215 = vpack.c.b16 %v1183, %v1183
      %v1216 = vpack.c.b16 %v1184, %v1184
      %v1217 = vpack.c.b16 %v1185, %v1185
      %v1218 = vpack.c.b16 %v1186, %v1186
      %v1219 = vpack.c.b16 %v1187, %v1187
      %v1220 = vpack.c.b16 %v1188, %v1188
      %v1221 = vpack.c.b16 %v1189, %v1189
      %v1222 = vpack.c.b16 %v1190, %v1190
      %v1223 = vpack.c.b16 %v1191, %v1191
      %v1224 = vpack.c.b16 %v1192, %v1192
      %v1225 = vpack.c.b16 %v1193, %v1193
      %v1226 = vpack.c.b16 %v1194, %v1194
      %v1227 = vpack.c.b16 %v1195, %v1195
      %v1229 = vshrl.u32 %v1196, 16
      %v1231 = vrot.slane %v1229, 7
      %v1232 = vshll.u32 %v1196, 16
      %v1234 = vor.u32 %v1231, %v1232
      %v1235 = vrot.slane %v1231, 4
      %v1237 = vshrl.u32 %v1197, 16
      %v1239 = vrot.slane %v1237, 7
      %v1240 = vshll.u32 %v1197, 16
      %v1242 = vor.u32 %v1239, %v1240
      %v1243 = vsel %vm692, %v1235, %v1242
      %v1244 = vrot.slane %v1239, 4
      %v1246 = vshrl.u32 %v1198, 16
      %v1248 = vrot.slane %v1246, 7
      %v1249 = vshll.u32 %v1198, 16
      %v1251 = vor.u32 %v1248, %v1249
      %v1252 = vrot.slane %v1248, 4
      %v1254 = vshrl.u32 %v1199, 16
      %v1256 = vrot.slane %v1254, 7
      %v1257 = vshll.u32 %v1199, 16
      %v1259 = vor.u32 %v1256, %v1257
      %v1260 = vsel %vm692, %v1252, %v1259
      %v1261 = vrot.slane %v1256, 4
      %v1263 = vshrl.u32 %v1200, 16
      %v1265 = vrot.slane %v1263, 7
      %v1266 = vshll.u32 %v1200, 16
      %v1268 = vor.u32 %v1265, %v1266
      %v1269 = vrot.slane %v1265, 4
      %v1271 = vshrl.u32 %v1201, 16
      %v1273 = vrot.slane %v1271, 7
      %v1274 = vshll.u32 %v1201, 16
      %v1276 = vor.u32 %v1273, %v1274
      %v1277 = vsel %vm692, %v1269, %v1276
      %v1278 = vrot.slane %v1273, 4
      %v1280 = vshrl.u32 %v1202, 16
      %v1282 = vrot.slane %v1280, 7
      %v1283 = vshll.u32 %v1202, 16
      %v1285 = vor.u32 %v1282, %v1283
      %v1286 = vrot.slane %v1282, 4
      %v1288 = vshrl.u32 %v1203, 16
      %v1290 = vrot.slane %v1288, 7
      %v1291 = vshll.u32 %v1203, 16
      %v1293 = vor.u32 %v1290, %v1291
      %v1294 = vsel %vm692, %v1286, %v1293
      %v1295 = vrot.slane %v1290, 4
      %v1297 = vshrl.u32 %v1204, 16
      %v1299 = vrot.slane %v1297, 7
      %v1300 = vshll.u32 %v1204, 16
      %v1302 = vor.u32 %v1299, %v1300
      %v1303 = vrot.slane %v1299, 4
      %v1305 = vshrl.u32 %v1205, 16
      %v1307 = vrot.slane %v1305, 7
      %v1308 = vshll.u32 %v1205, 16
      %v1310 = vor.u32 %v1307, %v1308
      %v1311 = vsel %vm692, %v1303, %v1310
      %v1312 = vrot.slane %v1307, 4
      %v1314 = vshrl.u32 %v1206, 16
      %v1316 = vrot.slane %v1314, 7
      %v1317 = vshll.u32 %v1206, 16
      %v1319 = vor.u32 %v1316, %v1317
      %v1320 = vrot.slane %v1316, 4
      %v1322 = vshrl.u32 %v1207, 16
      %v1324 = vrot.slane %v1322, 7
      %v1325 = vshll.u32 %v1207, 16
      %v1327 = vor.u32 %v1324, %v1325
      %v1328 = vsel %vm692, %v1320, %v1327
      %v1329 = vrot.slane %v1324, 4
      %v1331 = vshrl.u32 %v1208, 16
      %v1333 = vrot.slane %v1331, 7
      %v1334 = vshll.u32 %v1208, 16
      %v1336 = vor.u32 %v1333, %v1334
      %v1337 = vrot.slane %v1333, 4
      %v1339 = vshrl.u32 %v1209, 16
      %v1341 = vrot.slane %v1339, 7
      %v1342 = vshll.u32 %v1209, 16
      %v1344 = vor.u32 %v1341, %v1342
      %v1345 = vsel %vm692, %v1337, %v1344
      %v1346 = vrot.slane %v1341, 4
      %v1348 = vshrl.u32 %v1210, 16
      %v1350 = vrot.slane %v1348, 7
      %v1351 = vshll.u32 %v1210, 16
      %v1353 = vor.u32 %v1350, %v1351
      %v1354 = vrot.slane %v1350, 4
      %v1356 = vshrl.u32 %v1211, 16
      %v1358 = vrot.slane %v1356, 7
      %v1359 = vshll.u32 %v1211, 16
      %v1361 = vor.u32 %v1358, %v1359
      %v1362 = vsel %vm692, %v1354, %v1361
      %v1363 = vrot.slane %v1358, 4
      %v1365 = vshrl.u32 %v1212, 16
      %v1367 = vrot.slane %v1365, 7
      %v1368 = vshll.u32 %v1212, 16
      %v1370 = vor.u32 %v1367, %v1368
      %v1371 = vrot.slane %v1367, 4
      %v1373 = vshrl.u32 %v1213, 16
      %v1375 = vrot.slane %v1373, 7
      %v1376 = vshll.u32 %v1213, 16
      %v1378 = vor.u32 %v1375, %v1376
      %v1379 = vsel %vm692, %v1371, %v1378
      %v1380 = vrot.slane %v1375, 4
      %v1382 = vshrl.u32 %v1214, 16
      %v1384 = vrot.slane %v1382, 7
      %v1385 = vshll.u32 %v1214, 16
      %v1387 = vor.u32 %v1384, %v1385
      %v1388 = vrot.slane %v1384, 4
      %v1390 = vshrl.u32 %v1215, 16
      %v1392 = vrot.slane %v1390, 7
      %v1393 = vshll.u32 %v1215, 16
      %v1395 = vor.u32 %v1392, %v1393
      %v1396 = vsel %vm692, %v1388, %v1395
      %v1397 = vrot.slane %v1392, 4
      %v1399 = vshrl.u32 %v1216, 16
      %v1401 = vrot.slane %v1399, 7
      %v1402 = vshll.u32 %v1216, 16
      %v1404 = vor.u32 %v1401, %v1402
      %v1405 = vrot.slane %v1401, 4
      %v1407 = vshrl.u32 %v1217, 16
      %v1409 = vrot.slane %v1407, 7
      %v1410 = vshll.u32 %v1217, 16
      %v1412 = vor.u32 %v1409, %v1410
      %v1413 = vsel %vm692, %v1405, %v1412
      %v1414 = vrot.slane %v1409, 4
      %v1416 = vshrl.u32 %v1218, 16
      %v1418 = vrot.slane %v1416, 7
      %v1419 = vshll.u32 %v1218, 16
      %v1421 = vor.u32 %v1418, %v1419
      %v1422 = vrot.slane %v1418, 4
      %v1424 = vshrl.u32 %v1219, 16
      %v1426 = vrot.slane %v1424, 7
      %v1427 = vshll.u32 %v1219, 16
      %v1429 = vor.u32 %v1426, %v1427
      %v1430 = vsel %vm692, %v1422, %v1429
      %v1431 = vrot.slane %v1426, 4
      %v1433 = vshrl.u32 %v1220, 16
      %v1435 = vrot.slane %v1433, 7
      %v1436 = vshll.u32 %v1220, 16
      %v1438 = vor.u32 %v1435, %v1436
      %v1439 = vrot.slane %v1435, 4
      %v1441 = vshrl.u32 %v1221, 16
      %v1443 = vrot.slane %v1441, 7
      %v1444 = vshll.u32 %v1221, 16
      %v1446 = vor.u32 %v1443, %v1444
      %v1447 = vsel %vm692, %v1439, %v1446
      %v1448 = vrot.slane %v1443, 4
      %v1450 = vshrl.u32 %v1222, 16
      %v1452 = vrot.slane %v1450, 7
      %v1453 = vshll.u32 %v1222, 16
      %v1455 = vor.u32 %v1452, %v1453
      %v1456 = vrot.slane %v1452, 4
      %v1458 = vshrl.u32 %v1223, 16
      %v1460 = vrot.slane %v1458, 7
      %v1461 = vshll.u32 %v1223, 16
      %v1463 = vor.u32 %v1460, %v1461
      %v1464 = vsel %vm692, %v1456, %v1463
      %v1465 = vrot.slane %v1460, 4
      %v1467 = vshrl.u32 %v1224, 16
      %v1469 = vrot.slane %v1467, 7
      %v1470 = vshll.u32 %v1224, 16
      %v1472 = vor.u32 %v1469, %v1470
      %v1473 = vrot.slane %v1469, 4
      %v1475 = vshrl.u32 %v1225, 16
      %v1477 = vrot.slane %v1475, 7
      %v1478 = vshll.u32 %v1225, 16
      %v1480 = vor.u32 %v1477, %v1478
      %v1481 = vsel %vm692, %v1473, %v1480
      %v1482 = vrot.slane %v1477, 4
      %v1484 = vshrl.u32 %v1226, 16
      %v1486 = vrot.slane %v1484, 7
      %v1487 = vshll.u32 %v1226, 16
      %v1489 = vor.u32 %v1486, %v1487
      %v1490 = vrot.slane %v1486, 4
      %v1492 = vshrl.u32 %v1227, 16
      %v1494 = vrot.slane %v1492, 7
      %v1495 = vshll.u32 %v1227, 16
      %v1497 = vor.u32 %v1494, %v1495
      %v1498 = vsel %vm692, %v1490, %v1497
      %v1499 = vrot.slane %v1494, 4
      %1500 = vrot.lane.b32.xlu0 %v1234, 16
      %v1501 = vpop.permute.xlu0 %1500
      %1502 = vrot.lane.b32.xlu0 %v1243, 16
      %v1503 = vpop.permute.xlu0 %1502
      %1504 = vrot.lane.b32.xlu0 %v1244, 16
      %v1505 = vpop.permute.xlu0 %1504
      %1506 = vrot.lane.b32.xlu0 %v1251, 16
      %v1507 = vpop.permute.xlu0 %1506
      %1508 = vrot.lane.b32.xlu0 %v1260, 16
      %v1509 = vpop.permute.xlu0 %1508
      %1510 = vrot.lane.b32.xlu0 %v1261, 16
      %v1511 = vpop.permute.xlu0 %1510
      %1512 = vrot.lane.b32.xlu0 %v1268, 16
      %v1513 = vpop.permute.xlu0 %1512
      %1514 = vrot.lane.b32.xlu0 %v1277, 16
      %v1515 = vpop.permute.xlu0 %1514
      %1516 = vrot.lane.b32.xlu0 %v1278, 16
      %v1517 = vpop.permute.xlu0 %1516
      %1518 = vrot.lane.b32.xlu0 %v1285, 16
      %v1519 = vpop.permute.xlu0 %1518
      %1520 = vrot.lane.b32.xlu0 %v1294, 16
      %v1521 = vpop.permute.xlu0 %1520
      %1522 = vrot.lane.b32.xlu0 %v1295, 16
      %v1523 = vpop.permute.xlu0 %1522
      %1524 = vrot.lane.b32.xlu0 %v1302, 16
      %v1525 = vpop.permute.xlu0 %1524
      %1526 = vrot.lane.b32.xlu0 %v1311, 16
      %v1527 = vpop.permute.xlu0 %1526
      %1528 = vrot.lane.b32.xlu0 %v1312, 16
      %v1529 = vpop.permute.xlu0 %1528
      %1530 = vrot.lane.b32.xlu0 %v1319, 16
      %v1531 = vpop.permute.xlu0 %1530
      %1532 = vrot.lane.b32.xlu0 %v1328, 16
      %v1533 = vpop.permute.xlu0 %1532
      %1534 = vrot.lane.b32.xlu0 %v1329, 16
      %v1535 = vpop.permute.xlu0 %1534
      %1536 = vrot.lane.b32.xlu0 %v1336, 16
      %v1537 = vpop.permute.xlu0 %1536
      %1538 = vrot.lane.b32.xlu0 %v1345, 16
      %v1539 = vpop.permute.xlu0 %1538
      %1540 = vrot.lane.b32.xlu0 %v1346, 16
      %v1541 = vpop.permute.xlu0 %1540
      %1542 = vrot.lane.b32.xlu0 %v1353, 16
      %v1543 = vpop.permute.xlu0 %1542
      %1544 = vrot.lane.b32.xlu0 %v1362, 16
      %v1545 = vpop.permute.xlu0 %1544
      %1546 = vrot.lane.b32.xlu0 %v1363, 16
      %v1547 = vpop.permute.xlu0 %1546
      %1548 = vrot.lane.b32.xlu0 %v1370, 16
      %v1549 = vpop.permute.xlu0 %1548
      %1550 = vrot.lane.b32.xlu0 %v1379, 16
      %v1551 = vpop.permute.xlu0 %1550
      %1552 = vrot.lane.b32.xlu0 %v1380, 16
      %v1553 = vpop.permute.xlu0 %1552
      %1554 = vrot.lane.b32.xlu0 %v1387, 16
      %v1555 = vpop.permute.xlu0 %1554
      %1556 = vrot.lane.b32.xlu0 %v1396, 16
      %v1557 = vpop.permute.xlu0 %1556
      %1558 = vrot.lane.b32.xlu0 %v1397, 16
      %v1559 = vpop.permute.xlu0 %1558
      %1560 = vrot.lane.b32.xlu0 %v1404, 16
      %v1561 = vpop.permute.xlu0 %1560
      %1562 = vrot.lane.b32.xlu0 %v1413, 16
      %v1563 = vpop.permute.xlu0 %1562
      %1564 = vrot.lane.b32.xlu0 %v1414, 16
      %v1565 = vpop.permute.xlu0 %1564
      %1566 = vrot.lane.b32.xlu0 %v1421, 16
      %v1567 = vpop.permute.xlu0 %1566
      %1568 = vrot.lane.b32.xlu0 %v1430, 16
      %v1569 = vpop.permute.xlu0 %1568
      %1570 = vrot.lane.b32.xlu0 %v1431, 16
      %v1571 = vpop.permute.xlu0 %1570
      %1572 = vrot.lane.b32.xlu0 %v1438, 16
      %v1573 = vpop.permute.xlu0 %1572
      %1574 = vrot.lane.b32.xlu0 %v1447, 16
      %v1575 = vpop.permute.xlu0 %1574
      %1576 = vrot.lane.b32.xlu0 %v1448, 16
      %v1577 = vpop.permute.xlu0 %1576
      %1578 = vrot.lane.b32.xlu0 %v1455, 16
      %v1579 = vpop.permute.xlu0 %1578
      %1580 = vrot.lane.b32.xlu0 %v1464, 16
      %v1581 = vpop.permute.xlu0 %1580
      %1582 = vrot.lane.b32.xlu0 %v1465, 16
      %v1583 = vpop.permute.xlu0 %1582
      %1584 = vrot.lane.b32.xlu0 %v1472, 16
      %v1585 = vpop.permute.xlu0 %1584
      %1586 = vrot.lane.b32.xlu0 %v1481, 16
      %v1587 = vpop.permute.xlu0 %1586
      %1588 = vrot.lane.b32.xlu0 %v1482, 16
      %v1589 = vpop.permute.xlu0 %1588
      %1590 = vrot.lane.b32.xlu0 %v1489, 16
      %v1591 = vpop.permute.xlu0 %1590
      %1592 = vrot.lane.b32.xlu0 %v1498, 16
      %v1593 = vpop.permute.xlu0 %1592
      %1594 = vrot.lane.b32.xlu0 %v1499, 16
      %v1595 = vpop.permute.xlu0 %1594
      %vm1644 = vcmask 257152
      %vm1645 = vmand %vm1644, %vm1015
      %v1646 = vld [vmem:[%s1013] sm:$0xf]
      %v1647 = vsel %vm1645, %v1501, %v1646
      %1648 = vst [vmem:[%s1013] sm:$0xf] %v1647
      %vm1649 = vcmask 257152
      %1650 = vst.msk [vmem:[%s1013 + $0x4] sm:$0xf] %vm1649, %v1503
      %vm1651 = vcmask 254080
      %vm1652 = vmand %vm1651, %vm690
      %v1653 = vld [vmem:[%s1013 + $0x8] sm:$0x1]
      %v1654 = vsel %vm1652, %v1505, %v1653
      %1655 = vst [vmem:[%s1013 + $0x8] sm:$0x1] %v1654
      %v1656 = vld [vmem:[%s1013 + $0xc] sm:$0xf]
      %v1657 = vsel %vm1645, %v1507, %v1656
      %1658 = vst [vmem:[%s1013 + $0xc] sm:$0xf] %v1657
      %1659 = vst.msk [vmem:[%s1013 + $0x10] sm:$0xf] %vm1649, %v1509
      %v1660 = vld [vmem:[%s1013 + $0x14] sm:$0x1]
      %v1661 = vsel %vm1652, %v1511, %v1660
      %1662 = vst [vmem:[%s1013 + $0x14] sm:$0x1] %v1661
      %v1663 = vld [vmem:[%s1013 + $0x18] sm:$0xf]
      %v1664 = vsel %vm1645, %v1513, %v1663
      %1665 = vst [vmem:[%s1013 + $0x18] sm:$0xf] %v1664
      %1666 = vst.msk [vmem:[%s1013 + $0x1c] sm:$0xf] %vm1649, %v1515
      %v1667 = vld [vmem:[%s1013 + $0x20] sm:$0x1]
      %v1668 = vsel %vm1652, %v1517, %v1667
      %1669 = vst [vmem:[%s1013 + $0x20] sm:$0x1] %v1668
      %v1670 = vld [vmem:[%s1013 + $0x24] sm:$0xf]
      %v1671 = vsel %vm1645, %v1519, %v1670
      %1672 = vst [vmem:[%s1013 + $0x24] sm:$0xf] %v1671
      %1673 = vst.msk [vmem:[%s1013 + $0x28] sm:$0xf] %vm1649, %v1521
      %v1674 = vld [vmem:[%s1013 + $0x2c] sm:$0x1]
      %v1675 = vsel %vm1652, %v1523, %v1674
      %1676 = vst [vmem:[%s1013 + $0x2c] sm:$0x1] %v1675
      %v1677 = vld [vmem:[%s1013 + $0x30] sm:$0xf]
      %v1678 = vsel %vm1645, %v1525, %v1677
      %1679 = vst [vmem:[%s1013 + $0x30] sm:$0xf] %v1678
      %1680 = vst.msk [vmem:[%s1013 + $0x34] sm:$0xf] %vm1649, %v1527
      %v1681 = vld [vmem:[%s1013 + $0x38] sm:$0x1]
      %v1682 = vsel %vm1652, %v1529, %v1681
      %1683 = vst [vmem:[%s1013 + $0x38] sm:$0x1] %v1682
      %v1684 = vld [vmem:[%s1013 + $0x3c] sm:$0xf]
      %v1685 = vsel %vm1645, %v1531, %v1684
      %1686 = vst [vmem:[%s1013 + $0x3c] sm:$0xf] %v1685
      %1687 = vst.msk [vmem:[%s1013 + $0x40] sm:$0xf] %vm1649, %v1533
      %v1688 = vld [vmem:[%s1013 + $0x44] sm:$0x1]
      %v1689 = vsel %vm1652, %v1535, %v1688
      %1690 = vst [vmem:[%s1013 + $0x44] sm:$0x1] %v1689
      %v1691 = vld [vmem:[%s1013 + $0x48] sm:$0xf]
      %v1692 = vsel %vm1645, %v1537, %v1691
      %1693 = vst [vmem:[%s1013 + $0x48] sm:$0xf] %v1692
      %1694 = vst.msk [vmem:[%s1013 + $0x4c] sm:$0xf] %vm1649, %v1539
      %v1695 = vld [vmem:[%s1013 + $0x50] sm:$0x1]
      %v1696 = vsel %vm1652, %v1541, %v1695
      %1697 = vst [vmem:[%s1013 + $0x50] sm:$0x1] %v1696
      %v1698 = vld [vmem:[%s1013 + $0x54] sm:$0xf]
      %v1699 = vsel %vm1645, %v1543, %v1698
      %1700 = vst [vmem:[%s1013 + $0x54] sm:$0xf] %v1699
      %1701 = vst.msk [vmem:[%s1013 + $0x58] sm:$0xf] %vm1649, %v1545
      %v1702 = vld [vmem:[%s1013 + $0x5c] sm:$0x1]
      %v1703 = vsel %vm1652, %v1547, %v1702
      %1704 = vst [vmem:[%s1013 + $0x5c] sm:$0x1] %v1703
      %v1705 = vld [vmem:[%s1013 + $0x60] sm:$0xf]
      %v1706 = vsel %vm1645, %v1549, %v1705
      %1707 = vst [vmem:[%s1013 + $0x60] sm:$0xf] %v1706
      %1708 = vst.msk [vmem:[%s1013 + $0x64] sm:$0xf] %vm1649, %v1551
      %v1709 = vld [vmem:[%s1013 + $0x68] sm:$0x1]
      %v1710 = vsel %vm1652, %v1553, %v1709
      %1711 = vst [vmem:[%s1013 + $0x68] sm:$0x1] %v1710
      %v1712 = vld [vmem:[%s1013 + $0x6c] sm:$0xf]
      %v1713 = vsel %vm1645, %v1555, %v1712
      %1714 = vst [vmem:[%s1013 + $0x6c] sm:$0xf] %v1713
      %1715 = vst.msk [vmem:[%s1013 + $0x70] sm:$0xf] %vm1649, %v1557
      %v1716 = vld [vmem:[%s1013 + $0x74] sm:$0x1]
      %v1717 = vsel %vm1652, %v1559, %v1716
      %1718 = vst [vmem:[%s1013 + $0x74] sm:$0x1] %v1717
      %v1719 = vld [vmem:[%s1013 + $0x78] sm:$0xf]
      %v1720 = vsel %vm1645, %v1561, %v1719
      %1721 = vst [vmem:[%s1013 + $0x78] sm:$0xf] %v1720
      %1722 = vst.msk [vmem:[%s1013 + $0x7c] sm:$0xf] %vm1649, %v1563
      %v1723 = vld [vmem:[%s1013 + $0x80] sm:$0x1]
      %v1724 = vsel %vm1652, %v1565, %v1723
      %1725 = vst [vmem:[%s1013 + $0x80] sm:$0x1] %v1724
      %v1726 = vld [vmem:[%s1013 + $0x84] sm:$0xf]
      %v1727 = vsel %vm1645, %v1567, %v1726
      %1728 = vst [vmem:[%s1013 + $0x84] sm:$0xf] %v1727
      %1729 = vst.msk [vmem:[%s1013 + $0x88] sm:$0xf] %vm1649, %v1569
      %v1730 = vld [vmem:[%s1013 + $0x8c] sm:$0x1]
      %v1731 = vsel %vm1652, %v1571, %v1730
      %1732 = vst [vmem:[%s1013 + $0x8c] sm:$0x1] %v1731
      %v1733 = vld [vmem:[%s1013 + $0x90] sm:$0xf]
      %v1734 = vsel %vm1645, %v1573, %v1733
      %1735 = vst [vmem:[%s1013 + $0x90] sm:$0xf] %v1734
      %1736 = vst.msk [vmem:[%s1013 + $0x94] sm:$0xf] %vm1649, %v1575
      %v1737 = vld [vmem:[%s1013 + $0x98] sm:$0x1]
      %v1738 = vsel %vm1652, %v1577, %v1737
      %1739 = vst [vmem:[%s1013 + $0x98] sm:$0x1] %v1738
      %v1740 = vld [vmem:[%s1013 + $0x9c] sm:$0xf]
      %v1741 = vsel %vm1645, %v1579, %v1740
      %1742 = vst [vmem:[%s1013 + $0x9c] sm:$0xf] %v1741
      %1743 = vst.msk [vmem:[%s1013 + $0xa0] sm:$0xf] %vm1649, %v1581
      %v1744 = vld [vmem:[%s1013 + $0xa4] sm:$0x1]
      %v1745 = vsel %vm1652, %v1583, %v1744
      %1746 = vst [vmem:[%s1013 + $0xa4] sm:$0x1] %v1745
      %v1747 = vld [vmem:[%s1013 + $0xa8] sm:$0xf]
      %v1748 = vsel %vm1645, %v1585, %v1747
      %1749 = vst [vmem:[%s1013 + $0xa8] sm:$0xf] %v1748
      %1750 = vst.msk [vmem:[%s1013 + $0xac] sm:$0xf] %vm1649, %v1587
      %v1751 = vld [vmem:[%s1013 + $0xb0] sm:$0x1]
      %v1752 = vsel %vm1652, %v1589, %v1751
      %1753 = vst [vmem:[%s1013 + $0xb0] sm:$0x1] %v1752
      %v1754 = vld [vmem:[%s1013 + $0xb4] sm:$0xf]
      %v1755 = vsel %vm1645, %v1591, %v1754
      %1756 = vst [vmem:[%s1013 + $0xb4] sm:$0xf] %v1755
      %1757 = vst.msk [vmem:[%s1013 + $0xb8] sm:$0xf] %vm1649, %v1593
      %v1758 = vld [vmem:[%s1013 + $0xbc] sm:$0x1]
      %v1759 = vsel %vm1652, %v1595, %v1758
      %1760 = vst [vmem:[%s1013 + $0xbc] sm:$0x1] %v1759
      %v1761 = vld [vmem:[#allocation2] sm:$0xf]
      %v1762 = vld [vmem:[#allocation2 + $0x4] sm:$0xf]
      %v1763 = vld [vmem:[#allocation2 + $0x8] sm:$0x1]
      %v1764 = vld [vmem:[#allocation2 + $0xc] sm:$0xf]
      %v1765 = vld [vmem:[#allocation2 + $0x10] sm:$0xf]
      %v1766 = vld [vmem:[#allocation2 + $0x14] sm:$0x1]
      %v1767 = vld [vmem:[#allocation2 + $0x18] sm:$0xf]
      %v1768 = vld [vmem:[#allocation2 + $0x1c] sm:$0xf]
      %v1769 = vld [vmem:[#allocation2 + $0x20] sm:$0x1]
      %v1770 = vld [vmem:[#allocation2 + $0x24] sm:$0xf]
      %v1771 = vld [vmem:[#allocation2 + $0x28] sm:$0xf]
      %v1772 = vld [vmem:[#allocation2 + $0x2c] sm:$0x1]
      %v1773 = vld [vmem:[#allocation2 + $0x30] sm:$0xf]
      %v1774 = vld [vmem:[#allocation2 + $0x34] sm:$0xf]
      %v1775 = vld [vmem:[#allocation2 + $0x38] sm:$0x1]
      %v1776 = vld [vmem:[#allocation2 + $0x3c] sm:$0xf]
      %v1777 = vld [vmem:[#allocation2 + $0x40] sm:$0xf]
      %v1778 = vld [vmem:[#allocation2 + $0x44] sm:$0x1]
      %v1779 = vld [vmem:[#allocation2 + $0x48] sm:$0xf]
      %v1780 = vld [vmem:[#allocation2 + $0x4c] sm:$0xf]
      %v1781 = vld [vmem:[#allocation2 + $0x50] sm:$0x1]
      %v1782 = vld [vmem:[#allocation2 + $0x54] sm:$0xf]
      %v1783 = vld [vmem:[#allocation2 + $0x58] sm:$0xf]
      %v1784 = vld [vmem:[#allocation2 + $0x5c] sm:$0x1]
      %v1785 = vld [vmem:[#allocation2 + $0x60] sm:$0xf]
      %v1786 = vld [vmem:[#allocation2 + $0x64] sm:$0xf]
      %v1787 = vld [vmem:[#allocation2 + $0x68] sm:$0x1]
      %v1788 = vld [vmem:[#allocation2 + $0x6c] sm:$0xf]
      %v1789 = vld [vmem:[#allocation2 + $0x70] sm:$0xf]
      %v1790 = vld [vmem:[#allocation2 + $0x74] sm:$0x1]
      %v1791 = vld [vmem:[#allocation2 + $0x78] sm:$0xf]
      %v1792 = vld [vmem:[#allocation2 + $0x7c] sm:$0xf]
      %v1793 = vld [vmem:[#allocation2 + $0x80] sm:$0x1]
      %v1794 = vld [vmem:[#allocation2 + $0x84] sm:$0xf]
      %v1795 = vld [vmem:[#allocation2 + $0x88] sm:$0xf]
      %v1796 = vld [vmem:[#allocation2 + $0x8c] sm:$0x1]
      %v1797 = vld [vmem:[#allocation2 + $0x90] sm:$0xf]
      %v1798 = vld [vmem:[#allocation2 + $0x94] sm:$0xf]
      %v1799 = vld [vmem:[#allocation2 + $0x98] sm:$0x1]
      %v1800 = vld [vmem:[#allocation2 + $0x9c] sm:$0xf]
      %v1801 = vld [vmem:[#allocation2 + $0xa0] sm:$0xf]
      %v1802 = vld [vmem:[#allocation2 + $0xa4] sm:$0x1]
      %v1803 = vld [vmem:[#allocation2 + $0xa8] sm:$0xf]
      %v1804 = vld [vmem:[#allocation2 + $0xac] sm:$0xf]
      %v1805 = vld [vmem:[#allocation2 + $0xb0] sm:$0x1]
      %v1806 = vld [vmem:[#allocation2 + $0xb4] sm:$0xf]
      %v1807 = vld [vmem:[#allocation2 + $0xb8] sm:$0xf]
      %v1808 = vld [vmem:[#allocation2 + $0xbc] sm:$0x1]
      %v1809 = vld [vmem:[#allocation2 + $0xc0] sm:$0xf]
      %v1810 = vld [vmem:[#allocation2 + $0xc4] sm:$0xf]
      %v1811 = vld [vmem:[#allocation2 + $0xc8] sm:$0x1]
      %v1812 = vld [vmem:[#allocation2 + $0xcc] sm:$0xf]
      %v1813 = vld [vmem:[#allocation2 + $0xd0] sm:$0xf]
      %v1814 = vld [vmem:[#allocation2 + $0xd4] sm:$0x1]
      %v1847 = vunpack.c.l.b16 %v1761
      %v1848 = vunpack.c.l.b16 %v1762
      %v1849 = vunpack.c.l.b16 %v1764
      %v1850 = vunpack.c.l.b16 %v1765
      %v1851 = vunpack.c.l.b16 %v1767
      %v1852 = vunpack.c.l.b16 %v1768
      %v1853 = vunpack.c.l.b16 %v1770
      %v1854 = vunpack.c.l.b16 %v1771
      %v1855 = vunpack.c.l.b16 %v1773
      %v1856 = vunpack.c.l.b16 %v1774
      %v1857 = vunpack.c.l.b16 %v1776
      %v1858 = vunpack.c.l.b16 %v1777
      %v1859 = vunpack.c.l.b16 %v1779
      %v1860 = vunpack.c.l.b16 %v1780
      %v1861 = vunpack.c.l.b16 %v1782
      %v1862 = vunpack.c.l.b16 %v1783
      %v1863 = vunpack.c.l.b16 %v1785
      %v1864 = vunpack.c.l.b16 %v1786
      %v1865 = vunpack.c.l.b16 %v1788
      %v1866 = vunpack.c.l.b16 %v1789
      %v1867 = vunpack.c.l.b16 %v1791
      %v1868 = vunpack.c.l.b16 %v1792
      %v1869 = vunpack.c.l.b16 %v1794
      %v1870 = vunpack.c.l.b16 %v1795
      %v1871 = vunpack.c.l.b16 %v1797
      %v1872 = vunpack.c.l.b16 %v1798
      %v1873 = vunpack.c.l.b16 %v1800
      %v1874 = vunpack.c.l.b16 %v1801
      %v1875 = vunpack.c.l.b16 %v1803
      %v1876 = vunpack.c.l.b16 %v1804
      %v1877 = vunpack.c.l.b16 %v1806
      %v1878 = vunpack.c.l.b16 %v1807
      %v1879 = vpack.c.b16 %v1848, %v1847
      %v1880 = vpack.c.b16 %v1850, %v1849
      %v1881 = vpack.c.b16 %v1852, %v1851
      %v1882 = vpack.c.b16 %v1854, %v1853
      %v1883 = vpack.c.b16 %v1856, %v1855
      %v1884 = vpack.c.b16 %v1858, %v1857
      %v1885 = vpack.c.b16 %v1860, %v1859
      %v1886 = vpack.c.b16 %v1862, %v1861
      %v1887 = vpack.c.b16 %v1864, %v1863
      %v1888 = vpack.c.b16 %v1866, %v1865
      %v1889 = vpack.c.b16 %v1868, %v1867
      %v1890 = vpack.c.b16 %v1870, %v1869
      %v1891 = vpack.c.b16 %v1872, %v1871
      %v1892 = vpack.c.b16 %v1874, %v1873
      %v1893 = vpack.c.b16 %v1876, %v1875
      %v1894 = vpack.c.b16 %v1878, %v1877
      %vm1911 = vcmask 261120
      %1912 = vst.msk [vmem:[#allocation3] sm:$0xff] %vm1911, %v1879
      %1913 = vst.msk [vmem:[#allocation3 + $0x18] sm:$0xff] %vm1911, %v1880
      %1914 = vst.msk [vmem:[#allocation3 + $0x30] sm:$0xff] %vm1911, %v1881
      %1915 = vst.msk [vmem:[#allocation3 + $0x48] sm:$0xff] %vm1911, %v1882
      %1916 = vst.msk [vmem:[#allocation3 + $0x60] sm:$0xff] %vm1911, %v1883
      %1917 = vst.msk [vmem:[#allocation3 + $0x78] sm:$0xff] %vm1911, %v1884
      %1918 = vst.msk [vmem:[#allocation3 + $0x90] sm:$0xff] %vm1911, %v1885
      %1919 = vst.msk [vmem:[#allocation3 + $0xa8] sm:$0xff] %vm1911, %v1886
      %1920 = vst.msk [vmem:[#allocation3 + $0xc0] sm:$0xff] %vm1911, %v1887
      %1921 = vst.msk [vmem:[#allocation3 + $0xd8] sm:$0xff] %vm1911, %v1888
      %1922 = vst.msk [vmem:[#allocation3 + $0xf0] sm:$0xff] %vm1911, %v1889
      %1923 = vst.msk [vmem:[#allocation3 + $0x108] sm:$0xff] %vm1911, %v1890
      %1924 = vst.msk [vmem:[#allocation3 + $0x120] sm:$0xff] %vm1911, %v1891
      %1925 = vst.msk [vmem:[#allocation3 + $0x138] sm:$0xff] %vm1911, %v1892
      %1926 = vst.msk [vmem:[#allocation3 + $0x150] sm:$0xff] %vm1911, %v1893
      %1927 = vst.msk [vmem:[#allocation3 + $0x168] sm:$0xff] %vm1911, %v1894
      %vm1928 = vsmask.f32 3328
      %vm1929 = vsmask.f32 7440
      %vm1930 = vmor %vm1928, %vm1929
      %v1932 = vshrl.u32 %v1761, 16
      %v1934 = vrot.slane %v1932, 4
      %v1935 = vshll.u32 %v1761, 16
      %v1937 = vrot.slane %v1935, 5
      %v1938 = vor.u32 %v1934, %v1937
      %v1939 = vrot.slane %v1938, 4
      %v1941 = vshll.u32 %v1762, 16
      %v1943 = vrot.slane %v1941, 5
      %v1944 = vsel %vm1930, %v1939, %v1943
      %v1945 = vshrl.u32 %v1762, 16
      %v1947 = vrot.slane %v1945, 4
      %v1948 = vor.u32 %v1947, %v1943
      %v1949 = vrot.slane %v1948, 4
      %v1951 = vshll.u32 %v1763, 16
      %v1953 = vrot.slane %v1951, 5
      %v1954 = vsel %vm1930, %v1949, %v1953
      %v1956 = vshrl.u32 %v1764, 16
      %v1958 = vrot.slane %v1956, 4
      %v1959 = vshll.u32 %v1764, 16
      %v1961 = vrot.slane %v1959, 5
      %v1962 = vor.u32 %v1958, %v1961
      %v1963 = vrot.slane %v1962, 4
      %v1965 = vshll.u32 %v1765, 16
      %v1967 = vrot.slane %v1965, 5
      %v1968 = vsel %vm1930, %v1963, %v1967
      %v1969 = vshrl.u32 %v1765, 16
      %v1971 = vrot.slane %v1969, 4
      %v1972 = vor.u32 %v1971, %v1967
      %v1973 = vrot.slane %v1972, 4
      %v1975 = vshll.u32 %v1766, 16
      %v1977 = vrot.slane %v1975, 5
      %v1978 = vsel %vm1930, %v1973, %v1977
      %v1980 = vshrl.u32 %v1767, 16
      %v1982 = vrot.slane %v1980, 4
      %v1983 = vshll.u32 %v1767, 16
      %v1985 = vrot.slane %v1983, 5
      %v1986 = vor.u32 %v1982, %v1985
      %v1987 = vrot.slane %v1986, 4
      %v1989 = vshll.u32 %v1768, 16
      %v1991 = vrot.slane %v1989, 5
      %v1992 = vsel %vm1930, %v1987, %v1991
      %v1993 = vshrl.u32 %v1768, 16
      %v1995 = vrot.slane %v1993, 4
      %v1996 = vor.u32 %v1995, %v1991
      %v1997 = vrot.slane %v1996, 4
      %v1999 = vshll.u32 %v1769, 16
      %v2001 = vrot.slane %v1999, 5
      %v2002 = vsel %vm1930, %v1997, %v2001
      %v2004 = vshrl.u32 %v1770, 16
      %v2006 = vrot.slane %v2004, 4
      %v2007 = vshll.u32 %v1770, 16
      %v2009 = vrot.slane %v2007, 5
      %v2010 = vor.u32 %v2006, %v2009
      %v2011 = vrot.slane %v2010, 4
      %v2013 = vshll.u32 %v1771, 16
      %v2015 = vrot.slane %v2013, 5
      %v2016 = vsel %vm1930, %v2011, %v2015
      %v2017 = vshrl.u32 %v1771, 16
      %v2019 = vrot.slane %v2017, 4
      %v2020 = vor.u32 %v2019, %v2015
      %v2021 = vrot.slane %v2020, 4
      %v2023 = vshll.u32 %v1772, 16
      %v2025 = vrot.slane %v2023, 5
      %v2026 = vsel %vm1930, %v2021, %v2025
      %v2028 = vshrl.u32 %v1773, 16
      %v2030 = vrot.slane %v2028, 4
      %v2031 = vshll.u32 %v1773, 16
      %v2033 = vrot.slane %v2031, 5
      %v2034 = vor.u32 %v2030, %v2033
      %v2035 = vrot.slane %v2034, 4
      %v2037 = vshll.u32 %v1774, 16
      %v2039 = vrot.slane %v2037, 5
      %v2040 = vsel %vm1930, %v2035, %v2039
      %v2041 = vshrl.u32 %v1774, 16
      %v2043 = vrot.slane %v2041, 4
      %v2044 = vor.u32 %v2043, %v2039
      %v2045 = vrot.slane %v2044, 4
      %v2047 = vshll.u32 %v1775, 16
      %v2049 = vrot.slane %v2047, 5
      %v2050 = vsel %vm1930, %v2045, %v2049
      %v2052 = vshrl.u32 %v1776, 16
      %v2054 = vrot.slane %v2052, 4
      %v2055 = vshll.u32 %v1776, 16
      %v2057 = vrot.slane %v2055, 5
      %v2058 = vor.u32 %v2054, %v2057
      %v2059 = vrot.slane %v2058, 4
      %v2061 = vshll.u32 %v1777, 16
      %v2063 = vrot.slane %v2061, 5
      %v2064 = vsel %vm1930, %v2059, %v2063
      %v2065 = vshrl.u32 %v1777, 16
      %v2067 = vrot.slane %v2065, 4
      %v2068 = vor.u32 %v2067, %v2063
      %v2069 = vrot.slane %v2068, 4
      %v2071 = vshll.u32 %v1778, 16
      %v2073 = vrot.slane %v2071, 5
      %v2074 = vsel %vm1930, %v2069, %v2073
      %v2076 = vshrl.u32 %v1779, 16
      %v2078 = vrot.slane %v2076, 4
      %v2079 = vshll.u32 %v1779, 16
      %v2081 = vrot.slane %v2079, 5
      %v2082 = vor.u32 %v2078, %v2081
      %v2083 = vrot.slane %v2082, 4
      %v2085 = vshll.u32 %v1780, 16
      %v2087 = vrot.slane %v2085, 5
      %v2088 = vsel %vm1930, %v2083, %v2087
      %v2089 = vshrl.u32 %v1780, 16
      %v2091 = vrot.slane %v2089, 4
      %v2092 = vor.u32 %v2091, %v2087
      %v2093 = vrot.slane %v2092, 4
      %v2095 = vshll.u32 %v1781, 16
      %v2097 = vrot.slane %v2095, 5
      %v2098 = vsel %vm1930, %v2093, %v2097
      %v2100 = vshrl.u32 %v1782, 16
      %v2102 = vrot.slane %v2100, 4
      %v2103 = vshll.u32 %v1782, 16
      %v2105 = vrot.slane %v2103, 5
      %v2106 = vor.u32 %v2102, %v2105
      %v2107 = vrot.slane %v2106, 4
      %v2109 = vshll.u32 %v1783, 16
      %v2111 = vrot.slane %v2109, 5
      %v2112 = vsel %vm1930, %v2107, %v2111
      %v2113 = vshrl.u32 %v1783, 16
      %v2115 = vrot.slane %v2113, 4
      %v2116 = vor.u32 %v2115, %v2111
      %v2117 = vrot.slane %v2116, 4
      %v2119 = vshll.u32 %v1784, 16
      %v2121 = vrot.slane %v2119, 5
      %v2122 = vsel %vm1930, %v2117, %v2121
      %v2124 = vshrl.u32 %v1785, 16
      %v2126 = vrot.slane %v2124, 4
      %v2127 = vshll.u32 %v1785, 16
      %v2129 = vrot.slane %v2127, 5
      %v2130 = vor.u32 %v2126, %v2129
      %v2131 = vrot.slane %v2130, 4
      %v2133 = vshll.u32 %v1786, 16
      %v2135 = vrot.slane %v2133, 5
      %v2136 = vsel %vm1930, %v2131, %v2135
      %v2137 = vshrl.u32 %v1786, 16
      %v2139 = vrot.slane %v2137, 4
      %v2140 = vor.u32 %v2139, %v2135
      %v2141 = vrot.slane %v2140, 4
      %v2143 = vshll.u32 %v1787, 16
      %v2145 = vrot.slane %v2143, 5
      %v2146 = vsel %vm1930, %v2141, %v2145
      %v2148 = vshrl.u32 %v1788, 16
      %v2150 = vrot.slane %v2148, 4
      %v2151 = vshll.u32 %v1788, 16
      %v2153 = vrot.slane %v2151, 5
      %v2154 = vor.u32 %v2150, %v2153
      %v2155 = vrot.slane %v2154, 4
      %v2157 = vshll.u32 %v1789, 16
      %v2159 = vrot.slane %v2157, 5
      %v2160 = vsel %vm1930, %v2155, %v2159
      %v2161 = vshrl.u32 %v1789, 16
      %v2163 = vrot.slane %v2161, 4
      %v2164 = vor.u32 %v2163, %v2159
      %v2165 = vrot.slane %v2164, 4
      %v2167 = vshll.u32 %v1790, 16
      %v2169 = vrot.slane %v2167, 5
      %v2170 = vsel %vm1930, %v2165, %v2169
      %v2172 = vshrl.u32 %v1791, 16
      %v2174 = vrot.slane %v2172, 4
      %v2175 = vshll.u32 %v1791, 16
      %v2177 = vrot.slane %v2175, 5
      %v2178 = vor.u32 %v2174, %v2177
      %v2179 = vrot.slane %v2178, 4
      %v2181 = vshll.u32 %v1792, 16
      %v2183 = vrot.slane %v2181, 5
      %v2184 = vsel %vm1930, %v2179, %v2183
      %v2185 = vshrl.u32 %v1792, 16
      %v2187 = vrot.slane %v2185, 4
      %v2188 = vor.u32 %v2187, %v2183
      %v2189 = vrot.slane %v2188, 4
      %v2191 = vshll.u32 %v1793, 16
      %v2193 = vrot.slane %v2191, 5
      %v2194 = vsel %vm1930, %v2189, %v2193
      %v2196 = vshrl.u32 %v1794, 16
      %v2198 = vrot.slane %v2196, 4
      %v2199 = vshll.u32 %v1794, 16
      %v2201 = vrot.slane %v2199, 5
      %v2202 = vor.u32 %v2198, %v2201
      %v2203 = vrot.slane %v2202, 4
      %v2205 = vshll.u32 %v1795, 16
      %v2207 = vrot.slane %v2205, 5
      %v2208 = vsel %vm1930, %v2203, %v2207
      %v2209 = vshrl.u32 %v1795, 16
      %v2211 = vrot.slane %v2209, 4
      %v2212 = vor.u32 %v2211, %v2207
      %v2213 = vrot.slane %v2212, 4
      %v2215 = vshll.u32 %v1796, 16
      %v2217 = vrot.slane %v2215, 5
      %v2218 = vsel %vm1930, %v2213, %v2217
      %v2220 = vshrl.u32 %v1797, 16
      %v2222 = vrot.slane %v2220, 4
      %v2223 = vshll.u32 %v1797, 16
      %v2225 = vrot.slane %v2223, 5
      %v2226 = vor.u32 %v2222, %v2225
      %v2227 = vrot.slane %v2226, 4
      %v2229 = vshll.u32 %v1798, 16
      %v2231 = vrot.slane %v2229, 5
      %v2232 = vsel %vm1930, %v2227, %v2231
      %v2233 = vshrl.u32 %v1798, 16
      %v2235 = vrot.slane %v2233, 4
      %v2236 = vor.u32 %v2235, %v2231
      %v2237 = vrot.slane %v2236, 4
      %v2239 = vshll.u32 %v1799, 16
      %v2241 = vrot.slane %v2239, 5
      %v2242 = vsel %vm1930, %v2237, %v2241
      %v2244 = vshrl.u32 %v1800, 16
      %v2246 = vrot.slane %v2244, 4
      %v2247 = vshll.u32 %v1800, 16
      %v2249 = vrot.slane %v2247, 5
      %v2250 = vor.u32 %v2246, %v2249
      %v2251 = vrot.slane %v2250, 4
      %v2253 = vshll.u32 %v1801, 16
      %v2255 = vrot.slane %v2253, 5
      %v2256 = vsel %vm1930, %v2251, %v2255
      %v2257 = vshrl.u32 %v1801, 16
      %v2259 = vrot.slane %v2257, 4
      %v2260 = vor.u32 %v2259, %v2255
      %v2261 = vrot.slane %v2260, 4
      %v2263 = vshll.u32 %v1802, 16
      %v2265 = vrot.slane %v2263, 5
      %v2266 = vsel %vm1930, %v2261, %v2265
      %v2268 = vshrl.u32 %v1803, 16
      %v2270 = vrot.slane %v2268, 4
      %v2271 = vshll.u32 %v1803, 16
      %v2273 = vrot.slane %v2271, 5
      %v2274 = vor.u32 %v2270, %v2273
      %v2275 = vrot.slane %v2274, 4
      %v2277 = vshll.u32 %v1804, 16
      %v2279 = vrot.slane %v2277, 5
      %v2280 = vsel %vm1930, %v2275, %v2279
      %v2281 = vshrl.u32 %v1804, 16
      %v2283 = vrot.slane %v2281, 4
      %v2284 = vor.u32 %v2283, %v2279
      %v2285 = vrot.slane %v2284, 4
      %v2287 = vshll.u32 %v1805, 16
      %v2289 = vrot.slane %v2287, 5
      %v2290 = vsel %vm1930, %v2285, %v2289
      %v2292 = vshrl.u32 %v1806, 16
      %v2294 = vrot.slane %v2292, 4
      %v2295 = vshll.u32 %v1806, 16
      %v2297 = vrot.slane %v2295, 5
      %v2298 = vor.u32 %v2294, %v2297
      %v2299 = vrot.slane %v2298, 4
      %v2301 = vshll.u32 %v1807, 16
      %v2303 = vrot.slane %v2301, 5
      %v2304 = vsel %vm1930, %v2299, %v2303
      %v2305 = vshrl.u32 %v1807, 16
      %v2307 = vrot.slane %v2305, 4
      %v2308 = vor.u32 %v2307, %v2303
      %v2309 = vrot.slane %v2308, 4
      %v2311 = vshll.u32 %v1808, 16
      %v2313 = vrot.slane %v2311, 5
      %v2314 = vsel %vm1930, %v2309, %v2313
      %v2315 = vunpack.c.l.b16 %v1944
      %v2316 = vunpack.c.l.b16 %v1954
      %v2317 = vunpack.c.l.b16 %v1968
      %v2318 = vunpack.c.l.b16 %v1978
      %v2319 = vunpack.c.l.b16 %v1992
      %v2320 = vunpack.c.l.b16 %v2002
      %v2321 = vunpack.c.l.b16 %v2016
      %v2322 = vunpack.c.l.b16 %v2026
      %v2323 = vunpack.c.l.b16 %v2040
      %v2324 = vunpack.c.l.b16 %v2050
      %v2325 = vunpack.c.l.b16 %v2064
      %v2326 = vunpack.c.l.b16 %v2074
      %v2327 = vunpack.c.l.b16 %v2088
      %v2328 = vunpack.c.l.b16 %v2098
      %v2329 = vunpack.c.l.b16 %v2112
      %v2330 = vunpack.c.l.b16 %v2122
      %v2331 = vunpack.c.l.b16 %v2136
      %v2332 = vunpack.c.l.b16 %v2146
      %v2333 = vunpack.c.l.b16 %v2160
      %v2334 = vunpack.c.l.b16 %v2170
      %v2335 = vunpack.c.l.b16 %v2184
      %v2336 = vunpack.c.l.b16 %v2194
      %v2337 = vunpack.c.l.b16 %v2208
      %v2338 = vunpack.c.l.b16 %v2218
      %v2339 = vunpack.c.l.b16 %v2232
      %v2340 = vunpack.c.l.b16 %v2242
      %v2341 = vunpack.c.l.b16 %v2256
      %v2342 = vunpack.c.l.b16 %v2266
      %v2343 = vunpack.c.l.b16 %v2280
      %v2344 = vunpack.c.l.b16 %v2290
      %v2345 = vunpack.c.l.b16 %v2304
      %v2346 = vunpack.c.l.b16 %v2314
      %v2347 = vpack.c.b16 %v2316, %v2315
      %v2348 = vpack.c.b16 %v2318, %v2317
      %v2349 = vpack.c.b16 %v2320, %v2319
      %v2350 = vpack.c.b16 %v2322, %v2321
      %v2351 = vpack.c.b16 %v2324, %v2323
      %v2352 = vpack.c.b16 %v2326, %v2325
      %v2353 = vpack.c.b16 %v2328, %v2327
      %v2354 = vpack.c.b16 %v2330, %v2329
      %v2355 = vpack.c.b16 %v2332, %v2331
      %v2356 = vpack.c.b16 %v2334, %v2333
      %v2357 = vpack.c.b16 %v2336, %v2335
      %v2358 = vpack.c.b16 %v2338, %v2337
      %v2359 = vpack.c.b16 %v2340, %v2339
      %v2360 = vpack.c.b16 %v2342, %v2341
      %v2361 = vpack.c.b16 %v2344, %v2343
      %v2362 = vpack.c.b16 %v2346, %v2345
      %2363 = vrot.lane.b32.xlu0 %v2347, 32
      %v2364 = vpop.permute.xlu0 %2363
      %2365 = vrot.lane.b32.xlu0 %v2348, 32
      %v2366 = vpop.permute.xlu0 %2365
      %2367 = vrot.lane.b32.xlu0 %v2349, 32
      %v2368 = vpop.permute.xlu0 %2367
      %2369 = vrot.lane.b32.xlu0 %v2350, 32
      %v2370 = vpop.permute.xlu0 %2369
      %2371 = vrot.lane.b32.xlu0 %v2351, 32
      %v2372 = vpop.permute.xlu0 %2371
      %2373 = vrot.lane.b32.xlu0 %v2352, 32
      %v2374 = vpop.permute.xlu0 %2373
      %2375 = vrot.lane.b32.xlu0 %v2353, 32
      %v2376 = vpop.permute.xlu0 %2375
      %2377 = vrot.lane.b32.xlu0 %v2354, 32
      %v2378 = vpop.permute.xlu0 %2377
      %2379 = vrot.lane.b32.xlu0 %v2355, 32
      %v2380 = vpop.permute.xlu0 %2379
      %2381 = vrot.lane.b32.xlu0 %v2356, 32
      %v2382 = vpop.permute.xlu0 %2381
      %2383 = vrot.lane.b32.xlu0 %v2357, 32
      %v2384 = vpop.permute.xlu0 %2383
      %2385 = vrot.lane.b32.xlu0 %v2358, 32
      %v2386 = vpop.permute.xlu0 %2385
      %2387 = vrot.lane.b32.xlu0 %v2359, 32
      %v2388 = vpop.permute.xlu0 %2387
      %2389 = vrot.lane.b32.xlu0 %v2360, 32
      %v2390 = vpop.permute.xlu0 %2389
      %2391 = vrot.lane.b32.xlu0 %v2361, 32
      %v2392 = vpop.permute.xlu0 %2391
      %2393 = vrot.lane.b32.xlu0 %v2362, 32
      %v2394 = vpop.permute.xlu0 %2393
      %vm2411 = vcmask 523520
      %2412 = vst.msk [vmem:[#allocation3] sm:$0xff] %vm2411, %v2364
      %2413 = vst.msk [vmem:[#allocation3 + $0x18] sm:$0xff] %vm2411, %v2366
      %2414 = vst.msk [vmem:[#allocation3 + $0x30] sm:$0xff] %vm2411, %v2368
      %2415 = vst.msk [vmem:[#allocation3 + $0x48] sm:$0xff] %vm2411, %v2370
      %2416 = vst.msk [vmem:[#allocation3 + $0x60] sm:$0xff] %vm2411, %v2372
      %2417 = vst.msk [vmem:[#allocation3 + $0x78] sm:$0xff] %vm2411, %v2374
      %2418 = vst.msk [vmem:[#allocation3 + $0x90] sm:$0xff] %vm2411, %v2376
      %2419 = vst.msk [vmem:[#allocation3 + $0xa8] sm:$0xff] %vm2411, %v2378
      %2420 = vst.msk [vmem:[#allocation3 + $0xc0] sm:$0xff] %vm2411, %v2380
      %2421 = vst.msk [vmem:[#allocation3 + $0xd8] sm:$0xff] %vm2411, %v2382
      %2422 = vst.msk [vmem:[#allocation3 + $0xf0] sm:$0xff] %vm2411, %v2384
      %2423 = vst.msk [vmem:[#allocation3 + $0x108] sm:$0xff] %vm2411, %v2386
      %2424 = vst.msk [vmem:[#allocation3 + $0x120] sm:$0xff] %vm2411, %v2388
      %2425 = vst.msk [vmem:[#allocation3 + $0x138] sm:$0xff] %vm2411, %v2390
      %2426 = vst.msk [vmem:[#allocation3 + $0x150] sm:$0xff] %vm2411, %v2392
      %2427 = vst.msk [vmem:[#allocation3 + $0x168] sm:$0xff] %vm2411, %v2394
      %vm2444 = vcmask 1042432
      %vm2445 = vcmask 1046532
      %vm2446 = vmor %vm2444, %vm2445
      %v2447 = vrot.slane %v1761, 5
      %v2448 = vrot.slane %v2447, 4
      %v2449 = vrot.slane %v1762, 5
      %v2450 = vsel %vm2446, %v2448, %v2449
      %v2451 = vrot.slane %v2449, 4
      %v2452 = vrot.slane %v1763, 5
      %v2453 = vsel %vm2446, %v2451, %v2452
      %v2454 = vrot.slane %v1764, 5
      %v2455 = vrot.slane %v2454, 4
      %v2456 = vrot.slane %v1765, 5
      %v2457 = vsel %vm2446, %v2455, %v2456
      %v2458 = vrot.slane %v2456, 4
      %v2459 = vrot.slane %v1766, 5
      %v2460 = vsel %vm2446, %v2458, %v2459
      %v2461 = vrot.slane %v1767, 5
      %v2462 = vrot.slane %v2461, 4
      %v2463 = vrot.slane %v1768, 5
      %v2464 = vsel %vm2446, %v2462, %v2463
      %v2465 = vrot.slane %v2463, 4
      %v2466 = vrot.slane %v1769, 5
      %v2467 = vsel %vm2446, %v2465, %v2466
      %v2468 = vrot.slane %v1770, 5
      %v2469 = vrot.slane %v2468, 4
      %v2470 = vrot.slane %v1771, 5
      %v2471 = vsel %vm2446, %v2469, %v2470
      %v2472 = vrot.slane %v2470, 4
      %v2473 = vrot.slane %v1772, 5
      %v2474 = vsel %vm2446, %v2472, %v2473
      %v2475 = vrot.slane %v1773, 5
      %v2476 = vrot.slane %v2475, 4
      %v2477 = vrot.slane %v1774, 5
      %v2478 = vsel %vm2446, %v2476, %v2477
      %v2479 = vrot.slane %v2477, 4
      %v2480 = vrot.slane %v1775, 5
      %v2481 = vsel %vm2446, %v2479, %v2480
      %v2482 = vrot.slane %v1776, 5
      %v2483 = vrot.slane %v2482, 4
      %v2484 = vrot.slane %v1777, 5
      %v2485 = vsel %vm2446, %v2483, %v2484
      %v2486 = vrot.slane %v2484, 4
      %v2487 = vrot.slane %v1778, 5
      %v2488 = vsel %vm2446, %v2486, %v2487
      %v2489 = vrot.slane %v1779, 5
      %v2490 = vrot.slane %v2489, 4
      %v2491 = vrot.slane %v1780, 5
      %v2492 = vsel %vm2446, %v2490, %v2491
      %v2493 = vrot.slane %v2491, 4
      %v2494 = vrot.slane %v1781, 5
      %v2495 = vsel %vm2446, %v2493, %v2494
      %v2496 = vrot.slane %v1782, 5
      %v2497 = vrot.slane %v2496, 4
      %v2498 = vrot.slane %v1783, 5
      %v2499 = vsel %vm2446, %v2497, %v2498
      %v2500 = vrot.slane %v2498, 4
      %v2501 = vrot.slane %v1784, 5
      %v2502 = vsel %vm2446, %v2500, %v2501
      %v2503 = vrot.slane %v1785, 5
      %v2504 = vrot.slane %v2503, 4
      %v2505 = vrot.slane %v1786, 5
      %v2506 = vsel %vm2446, %v2504, %v2505
      %v2507 = vrot.slane %v2505, 4
      %v2508 = vrot.slane %v1787, 5
      %v2509 = vsel %vm2446, %v2507, %v2508
      %v2510 = vrot.slane %v1788, 5
      %v2511 = vrot.slane %v2510, 4
      %v2512 = vrot.slane %v1789, 5
      %v2513 = vsel %vm2446, %v2511, %v2512
      %v2514 = vrot.slane %v2512, 4
      %v2515 = vrot.slane %v1790, 5
      %v2516 = vsel %vm2446, %v2514, %v2515
      %v2517 = vrot.slane %v1791, 5
      %v2518 = vrot.slane %v2517, 4
      %v2519 = vrot.slane %v1792, 5
      %v2520 = vsel %vm2446, %v2518, %v2519
      %v2521 = vrot.slane %v2519, 4
      %v2522 = vrot.slane %v1793, 5
      %v2523 = vsel %vm2446, %v2521, %v2522
      %v2524 = vrot.slane %v1794, 5
      %v2525 = vrot.slane %v2524, 4
      %v2526 = vrot.slane %v1795, 5
      %v2527 = vsel %vm2446, %v2525, %v2526
      %v2528 = vrot.slane %v2526, 4
      %v2529 = vrot.slane %v1796, 5
      %v2530 = vsel %vm2446, %v2528, %v2529
      %v2531 = vrot.slane %v1797, 5
      %v2532 = vrot.slane %v2531, 4
      %v2533 = vrot.slane %v1798, 5
      %v2534 = vsel %vm2446, %v2532, %v2533
      %v2535 = vrot.slane %v2533, 4
      %v2536 = vrot.slane %v1799, 5
      %v2537 = vsel %vm2446, %v2535, %v2536
      %v2538 = vrot.slane %v1800, 5
      %v2539 = vrot.slane %v2538, 4
      %v2540 = vrot.slane %v1801, 5
      %v2541 = vsel %vm2446, %v2539, %v2540
      %v2542 = vrot.slane %v2540, 4
      %v2543 = vrot.slane %v1802, 5
      %v2544 = vsel %vm2446, %v2542, %v2543
      %v2545 = vrot.slane %v1803, 5
      %v2546 = vrot.slane %v2545, 4
      %v2547 = vrot.slane %v1804, 5
      %v2548 = vsel %vm2446, %v2546, %v2547
      %v2549 = vrot.slane %v2547, 4
      %v2550 = vrot.slane %v1805, 5
      %v2551 = vsel %vm2446, %v2549, %v2550
      %v2552 = vrot.slane %v1806, 5
      %v2553 = vrot.slane %v2552, 4
      %v2554 = vrot.slane %v1807, 5
      %v2555 = vsel %vm2446, %v2553, %v2554
      %v2556 = vrot.slane %v2554, 4
      %v2557 = vrot.slane %v1808, 5
      %v2558 = vsel %vm2446, %v2556, %v2557
      %v2559 = vunpack.c.l.b16 %v2450
      %v2560 = vunpack.c.l.b16 %v2453
      %v2561 = vunpack.c.l.b16 %v2457
      %v2562 = vunpack.c.l.b16 %v2460
      %v2563 = vunpack.c.l.b16 %v2464
      %v2564 = vunpack.c.l.b16 %v2467
      %v2565 = vunpack.c.l.b16 %v2471
      %v2566 = vunpack.c.l.b16 %v2474
      %v2567 = vunpack.c.l.b16 %v2478
      %v2568 = vunpack.c.l.b16 %v2481
      %v2569 = vunpack.c.l.b16 %v2485
      %v2570 = vunpack.c.l.b16 %v2488
      %v2571 = vunpack.c.l.b16 %v2492
      %v2572 = vunpack.c.l.b16 %v2495
      %v2573 = vunpack.c.l.b16 %v2499
      %v2574 = vunpack.c.l.b16 %v2502
      %v2575 = vunpack.c.l.b16 %v2506
      %v2576 = vunpack.c.l.b16 %v2509
      %v2577 = vunpack.c.l.b16 %v2513
      %v2578 = vunpack.c.l.b16 %v2516
      %v2579 = vunpack.c.l.b16 %v2520
      %v2580 = vunpack.c.l.b16 %v2523
      %v2581 = vunpack.c.l.b16 %v2527
      %v2582 = vunpack.c.l.b16 %v2530
      %v2583 = vunpack.c.l.b16 %v2534
      %v2584 = vunpack.c.l.b16 %v2537
      %v2585 = vunpack.c.l.b16 %v2541
      %v2586 = vunpack.c.l.b16 %v2544
      %v2587 = vunpack.c.l.b16 %v2548
      %v2588 = vunpack.c.l.b16 %v2551
      %v2589 = vunpack.c.l.b16 %v2555
      %v2590 = vunpack.c.l.b16 %v2558
      %v2591 = vpack.c.b16 %v2560, %v2559
      %v2592 = vpack.c.b16 %v2562, %v2561
      %v2593 = vpack.c.b16 %v2564, %v2563
      %v2594 = vpack.c.b16 %v2566, %v2565
      %v2595 = vpack.c.b16 %v2568, %v2567
      %v2596 = vpack.c.b16 %v2570, %v2569
      %v2597 = vpack.c.b16 %v2572, %v2571
      %v2598 = vpack.c.b16 %v2574, %v2573
      %v2599 = vpack.c.b16 %v2576, %v2575
      %v2600 = vpack.c.b16 %v2578, %v2577
      %v2601 = vpack.c.b16 %v2580, %v2579
      %v2602 = vpack.c.b16 %v2582, %v2581
      %v2603 = vpack.c.b16 %v2584, %v2583
      %v2604 = vpack.c.b16 %v2586, %v2585
      %v2605 = vpack.c.b16 %v2588, %v2587
      %v2606 = vpack.c.b16 %v2590, %v2589
      %2607 = vrot.lane.b32.xlu0 %v2591, 64
      %v2608 = vpop.permute.xlu0 %2607
      %2609 = vrot.lane.b32.xlu0 %v2592, 64
      %v2610 = vpop.permute.xlu0 %2609
      %2611 = vrot.lane.b32.xlu0 %v2593, 64
      %v2612 = vpop.permute.xlu0 %2611
      %2613 = vrot.lane.b32.xlu0 %v2594, 64
      %v2614 = vpop.permute.xlu0 %2613
      %2615 = vrot.lane.b32.xlu0 %v2595, 64
      %v2616 = vpop.permute.xlu0 %2615
      %2617 = vrot.lane.b32.xlu0 %v2596, 64
      %v2618 = vpop.permute.xlu0 %2617
      %2619 = vrot.lane.b32.xlu0 %v2597, 64
      %v2620 = vpop.permute.xlu0 %2619
      %2621 = vrot.lane.b32.xlu0 %v2598, 64
      %v2622 = vpop.permute.xlu0 %2621
      %2623 = vrot.lane.b32.xlu0 %v2599, 64
      %v2624 = vpop.permute.xlu0 %2623
      %2625 = vrot.lane.b32.xlu0 %v2600, 64
      %v2626 = vpop.permute.xlu0 %2625
      %2627 = vrot.lane.b32.xlu0 %v2601, 64
      %v2628 = vpop.permute.xlu0 %2627
      %2629 = vrot.lane.b32.xlu0 %v2602, 64
      %v2630 = vpop.permute.xlu0 %2629
      %2631 = vrot.lane.b32.xlu0 %v2603, 64
      %v2632 = vpop.permute.xlu0 %2631
      %2633 = vrot.lane.b32.xlu0 %v2604, 64
      %v2634 = vpop.permute.xlu0 %2633
      %2635 = vrot.lane.b32.xlu0 %v2605, 64
      %v2636 = vpop.permute.xlu0 %2635
      %2637 = vrot.lane.b32.xlu0 %v2606, 64
      %v2638 = vpop.permute.xlu0 %2637
      %vm2655 = vcmask 785920
      %2656 = vst.msk [vmem:[#allocation3] sm:$0xff] %vm2655, %v2608
      %2657 = vst.msk [vmem:[#allocation3 + $0x18] sm:$0xff] %vm2655, %v2610
      %2658 = vst.msk [vmem:[#allocation3 + $0x30] sm:$0xff] %vm2655, %v2612
      %2659 = vst.msk [vmem:[#allocation3 + $0x48] sm:$0xff] %vm2655, %v2614
      %2660 = vst.msk [vmem:[#allocation3 + $0x60] sm:$0xff] %vm2655, %v2616
      %2661 = vst.msk [vmem:[#allocation3 + $0x78] sm:$0xff] %vm2655, %v2618
      %2662 = vst.msk [vmem:[#allocation3 + $0x90] sm:$0xff] %vm2655, %v2620
      %2663 = vst.msk [vmem:[#allocation3 + $0xa8] sm:$0xff] %vm2655, %v2622
      %2664 = vst.msk [vmem:[#allocation3 + $0xc0] sm:$0xff] %vm2655, %v2624
      %2665 = vst.msk [vmem:[#allocation3 + $0xd8] sm:$0xff] %vm2655, %v2626
      %2666 = vst.msk [vmem:[#allocation3 + $0xf0] sm:$0xff] %vm2655, %v2628
      %2667 = vst.msk [vmem:[#allocation3 + $0x108] sm:$0xff] %vm2655, %v2630
      %2668 = vst.msk [vmem:[#allocation3 + $0x120] sm:$0xff] %vm2655, %v2632
      %2669 = vst.msk [vmem:[#allocation3 + $0x138] sm:$0xff] %vm2655, %v2634
      %2670 = vst.msk [vmem:[#allocation3 + $0x150] sm:$0xff] %vm2655, %v2636
      %2671 = vst.msk [vmem:[#allocation3 + $0x168] sm:$0xff] %vm2655, %v2638
      %v2674 = vunpack.c.l.b16 %v1809
      %v2675 = vunpack.c.l.b16 %v1810
      %v2676 = vpack.c.b16 %v2675, %v2674
      %2677 = vrot.lane.b32.xlu0 %v1880, 96
      %v2678 = vpop.permute.xlu0 %2677
      %2679 = vrot.lane.b32.xlu0 %v1881, 96
      %v2680 = vpop.permute.xlu0 %2679
      %2681 = vrot.lane.b32.xlu0 %v1882, 96
      %v2682 = vpop.permute.xlu0 %2681
      %2683 = vrot.lane.b32.xlu0 %v1883, 96
      %v2684 = vpop.permute.xlu0 %2683
      %2685 = vrot.lane.b32.xlu0 %v1884, 96
      %v2686 = vpop.permute.xlu0 %2685
      %2687 = vrot.lane.b32.xlu0 %v1885, 96
      %v2688 = vpop.permute.xlu0 %2687
      %2689 = vrot.lane.b32.xlu0 %v1886, 96
      %v2690 = vpop.permute.xlu0 %2689
      %2691 = vrot.lane.b32.xlu0 %v1887, 96
      %v2692 = vpop.permute.xlu0 %2691
      %2693 = vrot.lane.b32.xlu0 %v1888, 96
      %v2694 = vpop.permute.xlu0 %2693
      %2695 = vrot.lane.b32.xlu0 %v1889, 96
      %v2696 = vpop.permute.xlu0 %2695
      %2697 = vrot.lane.b32.xlu0 %v1890, 96
      %v2698 = vpop.permute.xlu0 %2697
      %2699 = vrot.lane.b32.xlu0 %v1891, 96
      %v2700 = vpop.permute.xlu0 %2699
      %2701 = vrot.lane.b32.xlu0 %v1892, 96
      %v2702 = vpop.permute.xlu0 %2701
      %2703 = vrot.lane.b32.xlu0 %v1893, 96
      %v2704 = vpop.permute.xlu0 %2703
      %2705 = vrot.lane.b32.xlu0 %v1894, 96
      %v2706 = vpop.permute.xlu0 %2705
      %2707 = vrot.lane.b32.xlu0 %v2676, 96
      %v2708 = vpop.permute.xlu0 %2707
      %vm2725 = vcmask 1048320
      %2726 = vst.msk [vmem:[#allocation3] sm:$0xff] %vm2725, %v2678
      %2727 = vst.msk [vmem:[#allocation3 + $0x18] sm:$0xff] %vm2725, %v2680
      %2728 = vst.msk [vmem:[#allocation3 + $0x30] sm:$0xff] %vm2725, %v2682
      %2729 = vst.msk [vmem:[#allocation3 + $0x48] sm:$0xff] %vm2725, %v2684
      %2730 = vst.msk [vmem:[#allocation3 + $0x60] sm:$0xff] %vm2725, %v2686
      %2731 = vst.msk [vmem:[#allocation3 + $0x78] sm:$0xff] %vm2725, %v2688
      %2732 = vst.msk [vmem:[#allocation3 + $0x90] sm:$0xff] %vm2725, %v2690
      %2733 = vst.msk [vmem:[#allocation3 + $0xa8] sm:$0xff] %vm2725, %v2692
      %2734 = vst.msk [vmem:[#allocation3 + $0xc0] sm:$0xff] %vm2725, %v2694
      %2735 = vst.msk [vmem:[#allocation3 + $0xd8] sm:$0xff] %vm2725, %v2696
      %2736 = vst.msk [vmem:[#allocation3 + $0xf0] sm:$0xff] %vm2725, %v2698
      %2737 = vst.msk [vmem:[#allocation3 + $0x108] sm:$0xff] %vm2725, %v2700
      %2738 = vst.msk [vmem:[#allocation3 + $0x120] sm:$0xff] %vm2725, %v2702
      %2739 = vst.msk [vmem:[#allocation3 + $0x138] sm:$0xff] %vm2725, %v2704
      %2740 = vst.msk [vmem:[#allocation3 + $0x150] sm:$0xff] %vm2725, %v2706
      %2741 = vst.msk [vmem:[#allocation3 + $0x168] sm:$0xff] %vm2725, %v2708
      %v2743 = vshrl.u32 %v1809, 16
      %v2745 = vrot.slane %v2743, 4
      %v2746 = vshll.u32 %v1809, 16
      %v2748 = vrot.slane %v2746, 5
      %v2749 = vor.u32 %v2745, %v2748
      %v2750 = vrot.slane %v2749, 4
      %v2752 = vshll.u32 %v1810, 16
      %v2754 = vrot.slane %v2752, 5
      %v2755 = vsel %vm1930, %v2750, %v2754
      %v2756 = vshrl.u32 %v1810, 16
      %v2758 = vrot.slane %v2756, 4
      %v2759 = vor.u32 %v2758, %v2754
      %v2760 = vrot.slane %v2759, 4
      %v2762 = vshll.u32 %v1811, 16
      %v2764 = vrot.slane %v2762, 5
      %v2765 = vsel %vm1930, %v2760, %v2764
      %v2766 = vunpack.c.l.b16 %v2755
      %v2767 = vunpack.c.l.b16 %v2765
      %v2768 = vpack.c.b16 %v2767, %v2766
      %2785 = vst.msk [vmem:[#allocation3 + $0x8] sm:$0xff] %vm1911, %v2348
      %2786 = vst.msk [vmem:[#allocation3 + $0x20] sm:$0xff] %vm1911, %v2349
      %2787 = vst.msk [vmem:[#allocation3 + $0x38] sm:$0xff] %vm1911, %v2350
      %2788 = vst.msk [vmem:[#allocation3 + $0x50] sm:$0xff] %vm1911, %v2351
      %2789 = vst.msk [vmem:[#allocation3 + $0x68] sm:$0xff] %vm1911, %v2352
      %2790 = vst.msk [vmem:[#allocation3 + $0x80] sm:$0xff] %vm1911, %v2353
      %2791 = vst.msk [vmem:[#allocation3 + $0x98] sm:$0xff] %vm1911, %v2354
      %2792 = vst.msk [vmem:[#allocation3 + $0xb0] sm:$0xff] %vm1911, %v2355
      %2793 = vst.msk [vmem:[#allocation3 + $0xc8] sm:$0xff] %vm1911, %v2356
      %2794 = vst.msk [vmem:[#allocation3 + $0xe0] sm:$0xff] %vm1911, %v2357
      %2795 = vst.msk [vmem:[#allocation3 + $0xf8] sm:$0xff] %vm1911, %v2358
      %2796 = vst.msk [vmem:[#allocation3 + $0x110] sm:$0xff] %vm1911, %v2359
      %2797 = vst.msk [vmem:[#allocation3 + $0x128] sm:$0xff] %vm1911, %v2360
      %2798 = vst.msk [vmem:[#allocation3 + $0x140] sm:$0xff] %vm1911, %v2361
      %2799 = vst.msk [vmem:[#allocation3 + $0x158] sm:$0xff] %vm1911, %v2362
      %2800 = vst.msk [vmem:[#allocation3 + $0x170] sm:$0xff] %vm1911, %v2768
      %v2802 = vrot.slane %v1809, 5
      %v2803 = vrot.slane %v2802, 4
      %v2804 = vrot.slane %v1810, 5
      %v2805 = vsel %vm2446, %v2803, %v2804
      %v2806 = vrot.slane %v2804, 4
      %v2807 = vrot.slane %v1811, 5
      %v2808 = vsel %vm2446, %v2806, %v2807
      %v2809 = vunpack.c.l.b16 %v2805
      %v2810 = vunpack.c.l.b16 %v2808
      %v2811 = vpack.c.b16 %v2810, %v2809
      %2812 = vrot.lane.b32.xlu0 %v2592, 32
      %v2813 = vpop.permute.xlu0 %2812
      %2814 = vrot.lane.b32.xlu0 %v2593, 32
      %v2815 = vpop.permute.xlu0 %2814
      %2816 = vrot.lane.b32.xlu0 %v2594, 32
      %v2817 = vpop.permute.xlu0 %2816
      %2818 = vrot.lane.b32.xlu0 %v2595, 32
      %v2819 = vpop.permute.xlu0 %2818
      %2820 = vrot.lane.b32.xlu0 %v2596, 32
      %v2821 = vpop.permute.xlu0 %2820
      %2822 = vrot.lane.b32.xlu0 %v2597, 32
      %v2823 = vpop.permute.xlu0 %2822
      %2824 = vrot.lane.b32.xlu0 %v2598, 32
      %v2825 = vpop.permute.xlu0 %2824
      %2826 = vrot.lane.b32.xlu0 %v2599, 32
      %v2827 = vpop.permute.xlu0 %2826
      %2828 = vrot.lane.b32.xlu0 %v2600, 32
      %v2829 = vpop.permute.xlu0 %2828
      %2830 = vrot.lane.b32.xlu0 %v2601, 32
      %v2831 = vpop.permute.xlu0 %2830
      %2832 = vrot.lane.b32.xlu0 %v2602, 32
      %v2833 = vpop.permute.xlu0 %2832
      %2834 = vrot.lane.b32.xlu0 %v2603, 32
      %v2835 = vpop.permute.xlu0 %2834
      %2836 = vrot.lane.b32.xlu0 %v2604, 32
      %v2837 = vpop.permute.xlu0 %2836
      %2838 = vrot.lane.b32.xlu0 %v2605, 32
      %v2839 = vpop.permute.xlu0 %2838
      %2840 = vrot.lane.b32.xlu0 %v2606, 32
      %v2841 = vpop.permute.xlu0 %2840
      %2842 = vrot.lane.b32.xlu0 %v2811, 32
      %v2843 = vpop.permute.xlu0 %2842
      %2860 = vst.msk [vmem:[#allocation3 + $0x8] sm:$0xff] %vm2411, %v2813
      %2861 = vst.msk [vmem:[#allocation3 + $0x20] sm:$0xff] %vm2411, %v2815
      %2862 = vst.msk [vmem:[#allocation3 + $0x38] sm:$0xff] %vm2411, %v2817
      %2863 = vst.msk [vmem:[#allocation3 + $0x50] sm:$0xff] %vm2411, %v2819
      %2864 = vst.msk [vmem:[#allocation3 + $0x68] sm:$0xff] %vm2411, %v2821
      %2865 = vst.msk [vmem:[#allocation3 + $0x80] sm:$0xff] %vm2411, %v2823
      %2866 = vst.msk [vmem:[#allocation3 + $0x98] sm:$0xff] %vm2411, %v2825
      %2867 = vst.msk [vmem:[#allocation3 + $0xb0] sm:$0xff] %vm2411, %v2827
      %2868 = vst.msk [vmem:[#allocation3 + $0xc8] sm:$0xff] %vm2411, %v2829
      %2869 = vst.msk [vmem:[#allocation3 + $0xe0] sm:$0xff] %vm2411, %v2831
      %2870 = vst.msk [vmem:[#allocation3 + $0xf8] sm:$0xff] %vm2411, %v2833
      %2871 = vst.msk [vmem:[#allocation3 + $0x110] sm:$0xff] %vm2411, %v2835
      %2872 = vst.msk [vmem:[#allocation3 + $0x128] sm:$0xff] %vm2411, %v2837
      %2873 = vst.msk [vmem:[#allocation3 + $0x140] sm:$0xff] %vm2411, %v2839
      %2874 = vst.msk [vmem:[#allocation3 + $0x158] sm:$0xff] %vm2411, %v2841
      %2875 = vst.msk [vmem:[#allocation3 + $0x170] sm:$0xff] %vm2411, %v2843
      %v2878 = vunpack.c.l.b16 %v1812
      %v2879 = vunpack.c.l.b16 %v1813
      %v2880 = vpack.c.b16 %v2879, %v2878
      %2881 = vrot.lane.b32.xlu0 %v1881, 64
      %v2882 = vpop.permute.xlu0 %2881
      %2883 = vrot.lane.b32.xlu0 %v1882, 64
      %v2884 = vpop.permute.xlu0 %2883
      %2885 = vrot.lane.b32.xlu0 %v1883, 64
      %v2886 = vpop.permute.xlu0 %2885
      %2887 = vrot.lane.b32.xlu0 %v1884, 64
      %v2888 = vpop.permute.xlu0 %2887
      %2889 = vrot.lane.b32.xlu0 %v1885, 64
      %v2890 = vpop.permute.xlu0 %2889
      %2891 = vrot.lane.b32.xlu0 %v1886, 64
      %v2892 = vpop.permute.xlu0 %2891
      %2893 = vrot.lane.b32.xlu0 %v1887, 64
      %v2894 = vpop.permute.xlu0 %2893
      %2895 = vrot.lane.b32.xlu0 %v1888, 64
      %v2896 = vpop.permute.xlu0 %2895
      %2897 = vrot.lane.b32.xlu0 %v1889, 64
      %v2898 = vpop.permute.xlu0 %2897
      %2899 = vrot.lane.b32.xlu0 %v1890, 64
      %v2900 = vpop.permute.xlu0 %2899
      %2901 = vrot.lane.b32.xlu0 %v1891, 64
      %v2902 = vpop.permute.xlu0 %2901
      %2903 = vrot.lane.b32.xlu0 %v1892, 64
      %v2904 = vpop.permute.xlu0 %2903
      %2905 = vrot.lane.b32.xlu0 %v1893, 64
      %v2906 = vpop.permute.xlu0 %2905
      %2907 = vrot.lane.b32.xlu0 %v1894, 64
      %v2908 = vpop.permute.xlu0 %2907
      %2909 = vrot.lane.b32.xlu0 %v2676, 64
      %v2910 = vpop.permute.xlu0 %2909
      %2911 = vrot.lane.b32.xlu0 %v2880, 64
      %v2912 = vpop.permute.xlu0 %2911
      %2929 = vst.msk [vmem:[#allocation3 + $0x8] sm:$0xff] %vm2655, %v2882
      %2930 = vst.msk [vmem:[#allocation3 + $0x20] sm:$0xff] %vm2655, %v2884
      %2931 = vst.msk [vmem:[#allocation3 + $0x38] sm:$0xff] %vm2655, %v2886
      %2932 = vst.msk [vmem:[#allocation3 + $0x50] sm:$0xff] %vm2655, %v2888
      %2933 = vst.msk [vmem:[#allocation3 + $0x68] sm:$0xff] %vm2655, %v2890
      %2934 = vst.msk [vmem:[#allocation3 + $0x80] sm:$0xff] %vm2655, %v2892
      %2935 = vst.msk [vmem:[#allocation3 + $0x98] sm:$0xff] %vm2655, %v2894
      %2936 = vst.msk [vmem:[#allocation3 + $0xb0] sm:$0xff] %vm2655, %v2896
      %2937 = vst.msk [vmem:[#allocation3 + $0xc8] sm:$0xff] %vm2655, %v2898
      %2938 = vst.msk [vmem:[#allocation3 + $0xe0] sm:$0xff] %vm2655, %v2900
      %2939 = vst.msk [vmem:[#allocation3 + $0xf8] sm:$0xff] %vm2655, %v2902
      %2940 = vst.msk [vmem:[#allocation3 + $0x110] sm:$0xff] %vm2655, %v2904
      %2941 = vst.msk [vmem:[#allocation3 + $0x128] sm:$0xff] %vm2655, %v2906
      %2942 = vst.msk [vmem:[#allocation3 + $0x140] sm:$0xff] %vm2655, %v2908
      %2943 = vst.msk [vmem:[#allocation3 + $0x158] sm:$0xff] %vm2655, %v2910
      %2944 = vst.msk [vmem:[#allocation3 + $0x170] sm:$0xff] %vm2655, %v2912
      %v2946 = vshrl.u32 %v1812, 16
      %v2948 = vrot.slane %v2946, 4
      %v2949 = vshll.u32 %v1812, 16
      %v2951 = vrot.slane %v2949, 5
      %v2952 = vor.u32 %v2948, %v2951
      %v2953 = vrot.slane %v2952, 4
      %v2955 = vshll.u32 %v1813, 16
      %v2957 = vrot.slane %v2955, 5
      %v2958 = vsel %vm1930, %v2953, %v2957
      %v2959 = vshrl.u32 %v1813, 16
      %v2961 = vrot.slane %v2959, 4
      %v2962 = vor.u32 %v2961, %v2957
      %v2963 = vrot.slane %v2962, 4
      %v2965 = vshll.u32 %v1814, 16
      %v2967 = vrot.slane %v2965, 5
      %v2968 = vsel %vm1930, %v2963, %v2967
      %v2969 = vunpack.c.l.b16 %v2958
      %v2970 = vunpack.c.l.b16 %v2968
      %v2971 = vpack.c.b16 %v2970, %v2969
      %2972 = vrot.lane.b32.xlu0 %v2349, 96
      %v2973 = vpop.permute.xlu0 %2972
      %2974 = vrot.lane.b32.xlu0 %v2350, 96
      %v2975 = vpop.permute.xlu0 %2974
      %2976 = vrot.lane.b32.xlu0 %v2351, 96
      %v2977 = vpop.permute.xlu0 %2976
      %2978 = vrot.lane.b32.xlu0 %v2352, 96
      %v2979 = vpop.permute.xlu0 %2978
      %2980 = vrot.lane.b32.xlu0 %v2353, 96
      %v2981 = vpop.permute.xlu0 %2980
      %2982 = vrot.lane.b32.xlu0 %v2354, 96
      %v2983 = vpop.permute.xlu0 %2982
      %2984 = vrot.lane.b32.xlu0 %v2355, 96
      %v2985 = vpop.permute.xlu0 %2984
      %2986 = vrot.lane.b32.xlu0 %v2356, 96
      %v2987 = vpop.permute.xlu0 %2986
      %2988 = vrot.lane.b32.xlu0 %v2357, 96
      %v2989 = vpop.permute.xlu0 %2988
      %2990 = vrot.lane.b32.xlu0 %v2358, 96
      %v2991 = vpop.permute.xlu0 %2990
      %2992 = vrot.lane.b32.xlu0 %v2359, 96
      %v2993 = vpop.permute.xlu0 %2992
      %2994 = vrot.lane.b32.xlu0 %v2360, 96
      %v2995 = vpop.permute.xlu0 %2994
      %2996 = vrot.lane.b32.xlu0 %v2361, 96
      %v2997 = vpop.permute.xlu0 %2996
      %2998 = vrot.lane.b32.xlu0 %v2362, 96
      %v2999 = vpop.permute.xlu0 %2998
      %3000 = vrot.lane.b32.xlu0 %v2768, 96
      %v3001 = vpop.permute.xlu0 %3000
      %3002 = vrot.lane.b32.xlu0 %v2971, 96
      %v3003 = vpop.permute.xlu0 %3002
      %3020 = vst.msk [vmem:[#allocation3 + $0x8] sm:$0xff] %vm2725, %v2973
      %3021 = vst.msk [vmem:[#allocation3 + $0x20] sm:$0xff] %vm2725, %v2975
      %3022 = vst.msk [vmem:[#allocation3 + $0x38] sm:$0xff] %vm2725, %v2977
      %3023 = vst.msk [vmem:[#allocation3 + $0x50] sm:$0xff] %vm2725, %v2979
      %3024 = vst.msk [vmem:[#allocation3 + $0x68] sm:$0xff] %vm2725, %v2981
      %3025 = vst.msk [vmem:[#allocation3 + $0x80] sm:$0xff] %vm2725, %v2983
      %3026 = vst.msk [vmem:[#allocation3 + $0x98] sm:$0xff] %vm2725, %v2985
      %3027 = vst.msk [vmem:[#allocation3 + $0xb0] sm:$0xff] %vm2725, %v2987
      %3028 = vst.msk [vmem:[#allocation3 + $0xc8] sm:$0xff] %vm2725, %v2989
      %3029 = vst.msk [vmem:[#allocation3 + $0xe0] sm:$0xff] %vm2725, %v2991
      %3030 = vst.msk [vmem:[#allocation3 + $0xf8] sm:$0xff] %vm2725, %v2993
      %3031 = vst.msk [vmem:[#allocation3 + $0x110] sm:$0xff] %vm2725, %v2995
      %3032 = vst.msk [vmem:[#allocation3 + $0x128] sm:$0xff] %vm2725, %v2997
      %3033 = vst.msk [vmem:[#allocation3 + $0x140] sm:$0xff] %vm2725, %v2999
      %3034 = vst.msk [vmem:[#allocation3 + $0x158] sm:$0xff] %vm2725, %v3001
      %3035 = vst.msk [vmem:[#allocation3 + $0x170] sm:$0xff] %vm2725, %v3003
      %v3037 = vrot.slane %v1812, 5
      %v3038 = vrot.slane %v3037, 4
      %v3039 = vrot.slane %v1813, 5
      %v3040 = vsel %vm2446, %v3038, %v3039
      %v3041 = vrot.slane %v3039, 4
      %v3042 = vrot.slane %v1814, 5
      %v3043 = vsel %vm2446, %v3041, %v3042
      %v3044 = vunpack.c.l.b16 %v3040
      %v3045 = vunpack.c.l.b16 %v3043
      %v3046 = vpack.c.b16 %v3045, %v3044
      %3063 = vst.msk [vmem:[#allocation3 + $0x10] sm:$0xff] %vm1911, %v2593
      %3064 = vst.msk [vmem:[#allocation3 + $0x28] sm:$0xff] %vm1911, %v2594
      %3065 = vst.msk [vmem:[#allocation3 + $0x40] sm:$0xff] %vm1911, %v2595
      %3066 = vst.msk [vmem:[#allocation3 + $0x58] sm:$0xff] %vm1911, %v2596
      %3067 = vst.msk [vmem:[#allocation3 + $0x70] sm:$0xff] %vm1911, %v2597
      %3068 = vst.msk [vmem:[#allocation3 + $0x88] sm:$0xff] %vm1911, %v2598
      %3069 = vst.msk [vmem:[#allocation3 + $0xa0] sm:$0xff] %vm1911, %v2599
      %3070 = vst.msk [vmem:[#allocation3 + $0xb8] sm:$0xff] %vm1911, %v2600
      %3071 = vst.msk [vmem:[#allocation3 + $0xd0] sm:$0xff] %vm1911, %v2601
      %3072 = vst.msk [vmem:[#allocation3 + $0xe8] sm:$0xff] %vm1911, %v2602
      %3073 = vst.msk [vmem:[#allocation3 + $0x100] sm:$0xff] %vm1911, %v2603
      %3074 = vst.msk [vmem:[#allocation3 + $0x118] sm:$0xff] %vm1911, %v2604
      %3075 = vst.msk [vmem:[#allocation3 + $0x130] sm:$0xff] %vm1911, %v2605
      %3076 = vst.msk [vmem:[#allocation3 + $0x148] sm:$0xff] %vm1911, %v2606
      %3077 = vst.msk [vmem:[#allocation3 + $0x160] sm:$0xff] %vm1911, %v2811
      %3078 = vst.msk [vmem:[#allocation3 + $0x178] sm:$0xff] %vm1911, %v3046
      %v3079 = vld [vmem:[#allocation3] sm:$0xff]
      %v3080 = vld [vmem:[#allocation3 + $0x8] sm:$0xff]
      %v3081 = vld [vmem:[#allocation3 + $0x10] sm:$0xff]
      %v3082 = vld [vmem:[#allocation3 + $0x18] sm:$0xff]
      %v3083 = vld [vmem:[#allocation3 + $0x20] sm:$0xff]
      %v3084 = vld [vmem:[#allocation3 + $0x28] sm:$0xff]
      %v3085 = vld [vmem:[#allocation3 + $0x30] sm:$0xff]
      %v3086 = vld [vmem:[#allocation3 + $0x38] sm:$0xff]
      %v3087 = vld [vmem:[#allocation3 + $0x40] sm:$0xff]
      %v3088 = vld [vmem:[#allocation3 + $0x48] sm:$0xff]
      %v3089 = vld [vmem:[#allocation3 + $0x50] sm:$0xff]
      %v3090 = vld [vmem:[#allocation3 + $0x58] sm:$0xff]
      %v3091 = vld [vmem:[#allocation3 + $0x60] sm:$0xff]
      %v3092 = vld [vmem:[#allocation3 + $0x68] sm:$0xff]
      %v3093 = vld [vmem:[#allocation3 + $0x70] sm:$0xff]
      %v3094 = vld [vmem:[#allocation3 + $0x78] sm:$0xff]
      %v3095 = vld [vmem:[#allocation3 + $0x80] sm:$0xff]
      %v3096 = vld [vmem:[#allocation3 + $0x88] sm:$0xff]
      %v3097 = vld [vmem:[#allocation3 + $0x90] sm:$0xff]
      %v3098 = vld [vmem:[#allocation3 + $0x98] sm:$0xff]
      %v3099 = vld [vmem:[#allocation3 + $0xa0] sm:$0xff]
      %v3100 = vld [vmem:[#allocation3 + $0xa8] sm:$0xff]
      %v3101 = vld [vmem:[#allocation3 + $0xb0] sm:$0xff]
      %v3102 = vld [vmem:[#allocation3 + $0xb8] sm:$0xff]
      %v3103 = vld [vmem:[#allocation3 + $0xc0] sm:$0xff]
      %v3104 = vld [vmem:[#allocation3 + $0xc8] sm:$0xff]
      %v3105 = vld [vmem:[#allocation3 + $0xd0] sm:$0xff]
      %v3106 = vld [vmem:[#allocation3 + $0xd8] sm:$0xff]
      %v3107 = vld [vmem:[#allocation3 + $0xe0] sm:$0xff]
      %v3108 = vld [vmem:[#allocation3 + $0xe8] sm:$0xff]
      %v3109 = vld [vmem:[#allocation3 + $0xf0] sm:$0xff]
      %v3110 = vld [vmem:[#allocation3 + $0xf8] sm:$0xff]
      %v3111 = vld [vmem:[#allocation3 + $0x100] sm:$0xff]
      %v3112 = vld [vmem:[#allocation3 + $0x108] sm:$0xff]
      %v3113 = vld [vmem:[#allocation3 + $0x110] sm:$0xff]
      %v3114 = vld [vmem:[#allocation3 + $0x118] sm:$0xff]
      %v3115 = vld [vmem:[#allocation3 + $0x120] sm:$0xff]
      %v3116 = vld [vmem:[#allocation3 + $0x128] sm:$0xff]
      %v3117 = vld [vmem:[#allocation3 + $0x130] sm:$0xff]
      %v3118 = vld [vmem:[#allocation3 + $0x138] sm:$0xff]
      %v3119 = vld [vmem:[#allocation3 + $0x140] sm:$0xff]
      %v3120 = vld [vmem:[#allocation3 + $0x148] sm:$0xff]
      %v3121 = vld [vmem:[#allocation3 + $0x150] sm:$0xff]
      %v3122 = vld [vmem:[#allocation3 + $0x158] sm:$0xff]
      %v3123 = vld [vmem:[#allocation3 + $0x160] sm:$0xff]
      %v3124 = vld [vmem:[#allocation3 + $0x168] sm:$0xff]
      %v3125 = vld [vmem:[#allocation3 + $0x170] sm:$0xff]
      %v3126 = vld [vmem:[#allocation3 + $0x178] sm:$0xff]
      %v3127 = vld [vmem:[%s4] sm:$0xf]
      %v3128 = vld [vmem:[%s4 + $0x4] sm:$0xf]
      %v3129 = vld [vmem:[%s4 + $0x8] sm:$0xf]
      %v3130 = vld [vmem:[%s4 + $0xc] sm:$0xf]
      %v3131 = vld [vmem:[%s4 + $0x10] sm:$0xf]
      %v3132 = vld [vmem:[%s4 + $0x14] sm:$0xf]
      %v3133 = vld [vmem:[%s4 + $0x18] sm:$0xf]
      %v3134 = vld [vmem:[%s4 + $0x1c] sm:$0xf]
      %v3135 = vld [vmem:[%s4 + $0x20] sm:$0xf]
      %v3136 = vld [vmem:[%s4 + $0x24] sm:$0xf]
      %v3137 = vld [vmem:[%s4 + $0x28] sm:$0xf]
      %v3138 = vld [vmem:[%s4 + $0x2c] sm:$0xf]
      %v3139 = vld [vmem:[%s4 + $0x30] sm:$0xf]
      %v3140 = vld [vmem:[%s4 + $0x34] sm:$0xf]
      %v3141 = vld [vmem:[%s4 + $0x38] sm:$0xf]
      %v3142 = vld [vmem:[%s4 + $0x3c] sm:$0xf]
      %v3143 = vld [vmem:[%s4 + $0x40] sm:$0xf]
      %v3144 = vld [vmem:[%s4 + $0x44] sm:$0xf]
      %v3145 = vld [vmem:[%s4 + $0x48] sm:$0xf]
      %v3146 = vld [vmem:[%s4 + $0x4c] sm:$0xf]
      %v3147 = vld [vmem:[%s4 + $0x50] sm:$0xf]
      %v3148 = vld [vmem:[%s4 + $0x54] sm:$0xf]
      %v3149 = vld [vmem:[%s4 + $0x58] sm:$0xf]
      %v3150 = vld [vmem:[%s4 + $0x5c] sm:$0xf]
      %v3151 = vld [vmem:[%s4 + $0x60] sm:$0xf]
      %v3152 = vld [vmem:[%s4 + $0x64] sm:$0xf]
      %v3153 = vld [vmem:[%s4 + $0x68] sm:$0xf]
      %v3154 = vld [vmem:[%s4 + $0x6c] sm:$0xf]
      %v3155 = vld [vmem:[%s4 + $0x70] sm:$0xf]
      %v3156 = vld [vmem:[%s4 + $0x74] sm:$0xf]
      %v3157 = vld [vmem:[%s4 + $0x78] sm:$0xf]
      %v3158 = vld [vmem:[%s4 + $0x7c] sm:$0xf]
      %v3159 = vld [vmem:[%s4 + $0x80] sm:$0xf]
      %v3160 = vld [vmem:[%s4 + $0x84] sm:$0xf]
      %v3161 = vld [vmem:[%s4 + $0x88] sm:$0xf]
      %v3162 = vld [vmem:[%s4 + $0x8c] sm:$0xf]
      %v3199 = vunpack.c.l.b16 %v3127
      %v3200 = vunpack.c.l.b16 %v3128
      %v3201 = vunpack.c.l.b16 %v3129
      %v3202 = vunpack.c.l.b16 %v3130
      %v3203 = vunpack.c.l.b16 %v3131
      %v3204 = vunpack.c.l.b16 %v3132
      %v3205 = vunpack.c.l.b16 %v3133
      %v3206 = vunpack.c.l.b16 %v3134
      %v3207 = vunpack.c.l.b16 %v3135
      %v3208 = vunpack.c.l.b16 %v3136
      %v3209 = vunpack.c.l.b16 %v3137
      %v3210 = vunpack.c.l.b16 %v3138
      %v3211 = vunpack.c.l.b16 %v3139
      %v3212 = vunpack.c.l.b16 %v3140
      %v3213 = vunpack.c.l.b16 %v3141
      %v3214 = vunpack.c.l.b16 %v3142
      %v3215 = vunpack.c.l.b16 %v3143
      %v3216 = vunpack.c.l.b16 %v3144
      %v3217 = vunpack.c.l.b16 %v3145
      %v3218 = vunpack.c.l.b16 %v3146
      %v3219 = vunpack.c.l.b16 %v3147
      %v3220 = vunpack.c.l.b16 %v3148
      %v3221 = vunpack.c.l.b16 %v3149
      %v3222 = vunpack.c.l.b16 %v3150
      %v3223 = vunpack.c.l.b16 %v3151
      %v3224 = vunpack.c.l.b16 %v3152
      %v3225 = vunpack.c.l.b16 %v3153
      %v3226 = vunpack.c.l.b16 %v3154
      %v3227 = vunpack.c.l.b16 %v3155
      %v3228 = vunpack.c.l.b16 %v3156
      %v3229 = vunpack.c.l.b16 %v3157
      %v3230 = vunpack.c.l.b16 %v3158
      %v3231 = vunpack.c.l.b16 %v3159
      %v3232 = vunpack.c.l.b16 %v3160
      %v3233 = vunpack.c.l.b16 %v3161
      %v3234 = vunpack.c.l.b16 %v3162
      %v3235 = vpack.c.b16 %v3200, %v3199
      %v3236 = vpack.c.b16 %v3202, %v3201
      %v3237 = vpack.c.b16 %v3204, %v3203
      %v3238 = vpack.c.b16 %v3206, %v3205
      %v3239 = vpack.c.b16 %v3208, %v3207
      %v3240 = vpack.c.b16 %v3210, %v3209
      %v3241 = vpack.c.b16 %v3212, %v3211
      %v3242 = vpack.c.b16 %v3214, %v3213
      %v3243 = vpack.c.b16 %v3216, %v3215
      %v3244 = vpack.c.b16 %v3218, %v3217
      %v3245 = vpack.c.b16 %v3220, %v3219
      %v3246 = vpack.c.b16 %v3222, %v3221
      %v3247 = vpack.c.b16 %v3224, %v3223
      %v3248 = vpack.c.b16 %v3226, %v3225
      %v3249 = vpack.c.b16 %v3228, %v3227
      %v3250 = vpack.c.b16 %v3230, %v3229
      %v3251 = vpack.c.b16 %v3232, %v3231
      %v3252 = vpack.c.b16 %v3234, %v3233
      %v3272 = vsel %vm1911, %v3081, 0
      %v3275 = vsel %vm1911, %v3084, 0
      %v3278 = vsel %vm1911, %v3087, 0
      %v3281 = vsel %vm1911, %v3090, 0
      %v3284 = vsel %vm1911, %v3093, 0
      %v3287 = vsel %vm1911, %v3096, 0
      %v3290 = vsel %vm1911, %v3099, 0
      %v3293 = vsel %vm1911, %v3102, 0
      %v3296 = vsel %vm1911, %v3105, 0
      %v3299 = vsel %vm1911, %v3108, 0
      %v3302 = vsel %vm1911, %v3111, 0
      %v3305 = vsel %vm1911, %v3114, 0
      %v3308 = vsel %vm1911, %v3117, 0
      %v3311 = vsel %vm1911, %v3120, 0
      %v3314 = vsel %vm1911, %v3123, 0
      %v3317 = vsel %vm1911, %v3126, 0
      %3319 = vmatprep.subr.bf16.mxu0 0
      %3320 = vmatpush1.bf16.msra.mxu0 %v3235
      %3321 = vmatprep.subr.bf16.mxu0 0
      %3322 = vmatpush1.bf16.msra.mxu0 %v3236
      %3323 = vmatprep.subr.bf16.mxu0 0
      %3324 = vmatpush1.bf16.msra.mxu0 %v3237
      %3325 = vmatprep.subr.bf16.mxu0 0
      %3326 = vmatpush1.bf16.msra.mxu0 %v3238
      %3327 = vmatprep.subr.bf16.mxu0 0
      %3328 = vmatpush1.bf16.msra.mxu0 %v3239
      %3329 = vmatprep.subr.bf16.mxu0 0
      %3330 = vmatpush1.bf16.msra.mxu0 %v3240
      %3331 = vmatprep.subr.bf16.mxu0 0
      %3332 = vmatpush1.bf16.msra.mxu0 %v3241
      %3333 = vmatprep.subr.bf16.mxu0 0
      %3334 = vmatpush1.bf16.msra.mxu0 %v3242
      %3335 = vmatprep.subr.bf16.mxu0 0
      %3336 = vmatpush1.bf16.msra.mxu0 %v3243
      %3337 = vmatprep.subr.bf16.mxu0 0
      %3338 = vmatpush1.bf16.msra.mxu0 %v3244
      %3339 = vmatprep.subr.bf16.mxu0 0
      %3340 = vmatpush1.bf16.msra.mxu0 %v3245
      %3341 = vmatprep.subr.bf16.mxu0 0
      %3342 = vmatpush1.bf16.msra.mxu0 %v3246
      %3343 = vmatprep.subr.bf16.mxu0 0
      %3344 = vmatpush1.bf16.msra.mxu0 %v3247
      %3345 = vmatprep.subr.bf16.mxu0 0
      %3346 = vmatpush1.bf16.msra.mxu0 %v3248
      %3347 = vmatprep.subr.bf16.mxu0 0
      %3348 = vmatpush1.bf16.msra.mxu0 %v3249
      %3349 = vmatprep.subr.bf16.mxu0 0
      %3350 = vmatpush1.bf16.msra.mxu0 %v3250
      %3351 = vmatprep.mubr.bf16.mxu0 %v3080
      %3352 = vmatmul.mubr.bf16.gmra.mrb[0].mxu0 %v3079
      %v3353 = vpop.f32.mrb[0].mxu0
      %v3354 = vadd.f32 0.0, %v3353
      %v3355 = vpop.f32.mrb[0].mxu0
      %v3356 = vpop.f32.mrb[0].mxu0
      %v3357 = vadd.f32 0.0, %v3356
      %v3358 = vpop.f32.mrb[0].mxu0
      %3359 = vmatprep.mubr.bf16.mxu0 %v3083
      %3360 = vmatmul.mubr.bf16.gmra.mrb[0].mxu0 %v3082
      %v3361 = vpop.f32.mrb[0].mxu0
      %v3362 = vadd.f32 0.0, %v3361
      %v3363 = vpop.f32.mrb[0].mxu0
      %v3364 = vpop.f32.mrb[0].mxu0
      %v3365 = vadd.f32 0.0, %v3364
      %v3366 = vpop.f32.mrb[0].mxu0
      %3367 = vmatprep.mubr.bf16.mxu0 %v3086
      %3368 = vmatmul.mubr.bf16.gmra.mrb[0].mxu0 %v3085
      %v3369 = vpop.f32.mrb[0].mxu0
      %v3370 = vadd.f32 0.0, %v3369
      %v3371 = vpop.f32.mrb[0].mxu0
      %v3372 = vpop.f32.mrb[0].mxu0
      %v3373 = vadd.f32 0.0, %v3372
      %v3374 = vpop.f32.mrb[0].mxu0
      %3375 = vmatprep.mubr.bf16.mxu0 %v3089
      %3376 = vmatmul.mubr.bf16.gmra.mrb[0].mxu0 %v3088
      %v3377 = vpop.f32.mrb[0].mxu0
      %v3378 = vadd.f32 0.0, %v3377
      %v3379 = vpop.f32.mrb[0].mxu0
      %v3380 = vpop.f32.mrb[0].mxu0
      %v3381 = vadd.f32 0.0, %v3380
      %v3382 = vpop.f32.mrb[0].mxu0
      %3383 = vmatprep.mubr.bf16.mxu0 %v3092
      %3384 = vmatmul.mubr.bf16.gmra.mrb[0].mxu0 %v3091
      %v3385 = vpop.f32.mrb[0].mxu0
      %v3386 = vadd.f32 0.0, %v3385
      %v3387 = vpop.f32.mrb[0].mxu0
      %v3388 = vpop.f32.mrb[0].mxu0
      %v3389 = vadd.f32 0.0, %v3388
      %v3390 = vpop.f32.mrb[0].mxu0
      %3391 = vmatprep.mubr.bf16.mxu0 %v3095
      %3392 = vmatmul.mubr.bf16.gmra.mrb[0].mxu0 %v3094
      %v3393 = vpop.f32.mrb[0].mxu0
      %v3394 = vadd.f32 0.0, %v3393
      %v3395 = vpop.f32.mrb[0].mxu0
      %v3396 = vpop.f32.mrb[0].mxu0
      %v3397 = vadd.f32 0.0, %v3396
      %v3398 = vpop.f32.mrb[0].mxu0
      %3399 = vmatprep.mubr.bf16.mxu0 %v3098
      %3400 = vmatmul.mubr.bf16.gmra.mrb[0].mxu0 %v3097
      %v3401 = vpop.f32.mrb[0].mxu0
      %v3402 = vadd.f32 0.0, %v3401
      %v3403 = vpop.f32.mrb[0].mxu0
      %v3404 = vpop.f32.mrb[0].mxu0
      %v3405 = vadd.f32 0.0, %v3404
      %v3406 = vpop.f32.mrb[0].mxu0
      %3407 = vmatprep.mubr.bf16.mxu0 %v3101
      %3408 = vmatmul.mubr.bf16.gmra.mrb[0].mxu0 %v3100
      %v3409 = vpop.f32.mrb[0].mxu0
      %v3410 = vadd.f32 0.0, %v3409
      %v3411 = vpop.f32.mrb[0].mxu0
      %v3412 = vpop.f32.mrb[0].mxu0
      %v3413 = vadd.f32 0.0, %v3412
      %v3414 = vpop.f32.mrb[0].mxu0
      %3415 = vmatprep.mubr.bf16.mxu0 %v3104
      %3416 = vmatmul.mubr.bf16.gmra.mrb[0].mxu0 %v3103
      %v3417 = vpop.f32.mrb[0].mxu0
      %v3418 = vadd.f32 0.0, %v3417
      %v3419 = vpop.f32.mrb[0].mxu0
      %v3420 = vpop.f32.mrb[0].mxu0
      %v3421 = vadd.f32 0.0, %v3420
      %v3422 = vpop.f32.mrb[0].mxu0
      %3423 = vmatprep.mubr.bf16.mxu0 %v3107
      %3424 = vmatmul.mubr.bf16.gmra.mrb[0].mxu0 %v3106
      %v3425 = vpop.f32.mrb[0].mxu0
      %v3426 = vadd.f32 0.0, %v3425
      %v3427 = vpop.f32.mrb[0].mxu0
      %v3428 = vpop.f32.mrb[0].mxu0
      %v3429 = vadd.f32 0.0, %v3428
      %v3430 = vpop.f32.mrb[0].mxu0
      %3431 = vmatprep.mubr.bf16.mxu0 %v3110
      %3432 = vmatmul.mubr.bf16.gmra.mrb[0].mxu0 %v3109
      %v3433 = vpop.f32.mrb[0].mxu0
      %v3434 = vadd.f32 0.0, %v3433
      %v3435 = vpop.f32.mrb[0].mxu0
      %v3436 = vpop.f32.mrb[0].mxu0
      %v3437 = vadd.f32 0.0, %v3436
      %v3438 = vpop.f32.mrb[0].mxu0
      %3439 = vmatprep.mubr.bf16.mxu0 %v3113
      %3440 = vmatmul.mubr.bf16.gmra.mrb[0].mxu0 %v3112
      %v3441 = vpop.f32.mrb[0].mxu0
      %v3442 = vadd.f32 0.0, %v3441
      %v3443 = vpop.f32.mrb[0].mxu0
      %v3444 = vpop.f32.mrb[0].mxu0
      %v3445 = vadd.f32 0.0, %v3444
      %v3446 = vpop.f32.mrb[0].mxu0
      %3447 = vmatprep.mubr.bf16.mxu0 %v3116
      %3448 = vmatmul.mubr.bf16.gmra.mrb[0].mxu0 %v3115
      %v3449 = vpop.f32.mrb[0].mxu0
      %v3450 = vadd.f32 0.0, %v3449
      %v3451 = vpop.f32.mrb[0].mxu0
      %v3452 = vpop.f32.mrb[0].mxu0
      %v3453 = vadd.f32 0.0, %v3452
      %v3454 = vpop.f32.mrb[0].mxu0
      %3455 = vmatprep.mubr.bf16.mxu0 %v3119
      %3456 = vmatmul.mubr.bf16.gmra.mrb[0].mxu0 %v3118
      %v3457 = vpop.f32.mrb[0].mxu0
      %v3458 = vadd.f32 0.0, %v3457
      %v3459 = vpop.f32.mrb[0].mxu0
      %v3460 = vpop.f32.mrb[0].mxu0
      %v3461 = vadd.f32 0.0, %v3460
      %v3462 = vpop.f32.mrb[0].mxu0
      %3463 = vmatprep.mubr.bf16.mxu0 %v3122
      %3464 = vmatmul.mubr.bf16.gmra.mrb[0].mxu0 %v3121
      %v3465 = vpop.f32.mrb[0].mxu0
      %v3466 = vadd.f32 0.0, %v3465
      %v3467 = vpop.f32.mrb[0].mxu0
      %v3468 = vpop.f32.mrb[0].mxu0
      %v3469 = vadd.f32 0.0, %v3468
      %v3470 = vpop.f32.mrb[0].mxu0
      %3471 = vmatprep.mubr.bf16.mxu0 %v3125
      %3472 = vmatmul.mubr.bf16.gmra.mrb[0].mxu0 %v3124
      %v3473 = vpop.f32.mrb[0].mxu0
      %v3474 = vadd.f32 0.0, %v3473
      %v3475 = vpop.f32.mrb[0].mxu0
      %v3476 = vpop.f32.mrb[0].mxu0
      %v3477 = vadd.f32 0.0, %v3476
      %v3478 = vpop.f32.mrb[0].mxu0
      %3479 = vdwg.mxu0
      %3480 = vmatprep.subr.bf16.mxu0 0
      %3481 = vmatpush1.bf16.msra.mxu0 %v3251
      %3482 = vmatprep.subr.bf16.mxu0 0
      %3483 = vmatpush1.bf16.msra.mxu0 %v3252
      %3484 = vmatprep.subr.bf16.mxu0 0
      %3485 = vmatpush1.bf16.msra.mxu0 0
      %3486 = vmatprep.subr.bf16.mxu0 0
      %3487 = vmatpush1.bf16.msra.mxu0 0
      %3488 = vmatprep.subr.bf16.mxu0 0
      %3489 = vmatpush1.bf16.msra.mxu0 0
      %3490 = vmatprep.subr.bf16.mxu0 0
      %3491 = vmatpush1.bf16.msra.mxu0 0
      %3492 = vmatprep.subr.bf16.mxu0 0
      %3493 = vmatpush1.bf16.msra.mxu0 0
      %3494 = vmatprep.subr.bf16.mxu0 0
      %3495 = vmatpush1.bf16.msra.mxu0 0
      %3496 = vmatprep.subr.bf16.mxu0 0
      %3497 = vmatpush1.bf16.msra.mxu0 0
      %3498 = vmatprep.subr.bf16.mxu0 0
      %3499 = vmatpush1.bf16.msra.mxu0 0
      %3500 = vmatprep.subr.bf16.mxu0 0
      %3501 = vmatpush1.bf16.msra.mxu0 0
      %3502 = vmatprep.subr.bf16.mxu0 0
      %3503 = vmatpush1.bf16.msra.mxu0 0
      %3504 = vmatprep.subr.bf16.mxu0 0
      %3505 = vmatpush1.bf16.msra.mxu0 0
      %3506 = vmatprep.subr.bf16.mxu0 0
      %3507 = vmatpush1.bf16.msra.mxu0 0
      %3508 = vmatprep.subr.bf16.mxu0 0
      %3509 = vmatpush1.bf16.msra.mxu0 0
      %3510 = vmatprep.subr.bf16.mxu0 0
      %3511 = vmatpush1.bf16.msra.mxu0 0
      %3512 = vmatprep.mubr.bf16.mxu0 0
      %3513 = vmatmul.mubr.bf16.gmra.mrb[0].mxu0 %v3272
      %v3514 = vpop.f32.mrb[0].mxu0
      %v3515 = vadd.f32 %v3354, %v3514
      %v3516 = vpop.f32.mrb[0].mxu0
      %v3517 = vpop.f32.mrb[0].mxu0
      %v3518 = vadd.f32 %v3357, %v3517
      %v3519 = vpop.f32.mrb[0].mxu0
      %3520 = vmatprep.mubr.bf16.mxu0 0
      %3521 = vmatmul.mubr.bf16.gmra.mrb[0].mxu0 %v3275
      %v3522 = vpop.f32.mrb[0].mxu0
      %v3523 = vadd.f32 %v3362, %v3522
      %v3524 = vpop.f32.mrb[0].mxu0
      %v3525 = vpop.f32.mrb[0].mxu0
      %v3526 = vadd.f32 %v3365, %v3525
      %v3527 = vpop.f32.mrb[0].mxu0
      %3528 = vmatprep.mubr.bf16.mxu0 0
      %3529 = vmatmul.mubr.bf16.gmra.mrb[0].mxu0 %v3278
      %v3530 = vpop.f32.mrb[0].mxu0
      %v3531 = vadd.f32 %v3370, %v3530
      %v3532 = vpop.f32.mrb[0].mxu0
      %v3533 = vpop.f32.mrb[0].mxu0
      %v3534 = vadd.f32 %v3373, %v3533
      %v3535 = vpop.f32.mrb[0].mxu0
      %3536 = vmatprep.mubr.bf16.mxu0 0
      %3537 = vmatmul.mubr.bf16.gmra.mrb[0].mxu0 %v3281
      %v3538 = vpop.f32.mrb[0].mxu0
      %v3539 = vadd.f32 %v3378, %v3538
      %v3540 = vpop.f32.mrb[0].mxu0
      %v3541 = vpop.f32.mrb[0].mxu0
      %v3542 = vadd.f32 %v3381, %v3541
      %v3543 = vpop.f32.mrb[0].mxu0
      %3544 = vmatprep.mubr.bf16.mxu0 0
      %3545 = vmatmul.mubr.bf16.gmra.mrb[0].mxu0 %v3284
      %v3546 = vpop.f32.mrb[0].mxu0
      %v3547 = vadd.f32 %v3386, %v3546
      %v3548 = vpop.f32.mrb[0].mxu0
      %v3549 = vpop.f32.mrb[0].mxu0
      %v3550 = vadd.f32 %v3389, %v3549
      %v3551 = vpop.f32.mrb[0].mxu0
      %3552 = vmatprep.mubr.bf16.mxu0 0
      %3553 = vmatmul.mubr.bf16.gmra.mrb[0].mxu0 %v3287
      %v3554 = vpop.f32.mrb[0].mxu0
      %v3555 = vadd.f32 %v3394, %v3554
      %v3556 = vpop.f32.mrb[0].mxu0
      %v3557 = vpop.f32.mrb[0].mxu0
      %v3558 = vadd.f32 %v3397, %v3557
      %v3559 = vpop.f32.mrb[0].mxu0
      %3560 = vmatprep.mubr.bf16.mxu0 0
      %3561 = vmatmul.mubr.bf16.gmra.mrb[0].mxu0 %v3290
      %v3562 = vpop.f32.mrb[0].mxu0
      %v3563 = vadd.f32 %v3402, %v3562
      %v3564 = vpop.f32.mrb[0].mxu0
      %v3565 = vpop.f32.mrb[0].mxu0
      %v3566 = vadd.f32 %v3405, %v3565
      %v3567 = vpop.f32.mrb[0].mxu0
      %3568 = vmatprep.mubr.bf16.mxu0 0
      %3569 = vmatmul.mubr.bf16.gmra.mrb[0].mxu0 %v3293
      %v3570 = vpop.f32.mrb[0].mxu0
      %v3571 = vadd.f32 %v3410, %v3570
      %v3572 = vpop.f32.mrb[0].mxu0
      %v3573 = vpop.f32.mrb[0].mxu0
      %v3574 = vadd.f32 %v3413, %v3573
      %v3575 = vpop.f32.mrb[0].mxu0
      %3576 = vmatprep.mubr.bf16.mxu0 0
      %3577 = vmatmul.mubr.bf16.gmra.mrb[0].mxu0 %v3296
      %v3578 = vpop.f32.mrb[0].mxu0
      %v3579 = vadd.f32 %v3418, %v3578
      %v3580 = vpop.f32.mrb[0].mxu0
      %v3581 = vpop.f32.mrb[0].mxu0
      %v3582 = vadd.f32 %v3421, %v3581
      %v3583 = vpop.f32.mrb[0].mxu0
      %3584 = vmatprep.mubr.bf16.mxu0 0
      %3585 = vmatmul.mubr.bf16.gmra.mrb[0].mxu0 %v3299
      %v3586 = vpop.f32.mrb[0].mxu0
      %v3587 = vadd.f32 %v3426, %v3586
      %v3588 = vpop.f32.mrb[0].mxu0
      %v3589 = vpop.f32.mrb[0].mxu0
      %v3590 = vadd.f32 %v3429, %v3589
      %v3591 = vpop.f32.mrb[0].mxu0
      %3592 = vmatprep.mubr.bf16.mxu0 0
      %3593 = vmatmul.mubr.bf16.gmra.mrb[0].mxu0 %v3302
      %v3594 = vpop.f32.mrb[0].mxu0
      %v3595 = vadd.f32 %v3434, %v3594
      %v3596 = vpop.f32.mrb[0].mxu0
      %v3597 = vpop.f32.mrb[0].mxu0
      %v3598 = vadd.f32 %v3437, %v3597
      %v3599 = vpop.f32.mrb[0].mxu0
      %3600 = vmatprep.mubr.bf16.mxu0 0
      %3601 = vmatmul.mubr.bf16.gmra.mrb[0].mxu0 %v3305
      %v3602 = vpop.f32.mrb[0].mxu0
      %v3603 = vadd.f32 %v3442, %v3602
      %v3604 = vpop.f32.mrb[0].mxu0
      %v3605 = vpop.f32.mrb[0].mxu0
      %v3606 = vadd.f32 %v3445, %v3605
      %v3607 = vpop.f32.mrb[0].mxu0
      %3608 = vmatprep.mubr.bf16.mxu0 0
      %3609 = vmatmul.mubr.bf16.gmra.mrb[0].mxu0 %v3308
      %v3610 = vpop.f32.mrb[0].mxu0
      %v3611 = vadd.f32 %v3450, %v3610
      %v3612 = vpop.f32.mrb[0].mxu0
      %v3613 = vpop.f32.mrb[0].mxu0
      %v3614 = vadd.f32 %v3453, %v3613
      %v3615 = vpop.f32.mrb[0].mxu0
      %3616 = vmatprep.mubr.bf16.mxu0 0
      %3617 = vmatmul.mubr.bf16.gmra.mrb[0].mxu0 %v3311
      %v3618 = vpop.f32.mrb[0].mxu0
      %v3619 = vadd.f32 %v3458, %v3618
      %v3620 = vpop.f32.mrb[0].mxu0
      %v3621 = vpop.f32.mrb[0].mxu0
      %v3622 = vadd.f32 %v3461, %v3621
      %v3623 = vpop.f32.mrb[0].mxu0
      %3624 = vmatprep.mubr.bf16.mxu0 0
      %3625 = vmatmul.mubr.bf16.gmra.mrb[0].mxu0 %v3314
      %v3626 = vpop.f32.mrb[0].mxu0
      %v3627 = vadd.f32 %v3466, %v3626
      %v3628 = vpop.f32.mrb[0].mxu0
      %v3629 = vpop.f32.mrb[0].mxu0
      %v3630 = vadd.f32 %v3469, %v3629
      %v3631 = vpop.f32.mrb[0].mxu0
      %3632 = vmatprep.mubr.bf16.mxu0 0
      %3633 = vmatmul.mubr.bf16.gmra.mrb[0].mxu0 %v3317
      %v3634 = vpop.f32.mrb[0].mxu0
      %v3635 = vadd.f32 %v3474, %v3634
      %v3636 = vpop.f32.mrb[0].mxu0
      %v3637 = vpop.f32.mrb[0].mxu0
      %v3638 = vadd.f32 %v3477, %v3637
      %v3639 = vpop.f32.mrb[0].mxu0
      %3640 = vdwg.mxu0
      %v3641 = vmax.f32 %v3515, 0.0
      %v3642 = vmax.f32 %v3518, 0.0
      %v3643 = vmax.f32 %v3523, 0.0
      %v3644 = vmax.f32 %v3526, 0.0
      %v3645 = vmax.f32 %v3531, 0.0
      %v3646 = vmax.f32 %v3534, 0.0
      %v3647 = vmax.f32 %v3539, 0.0
      %v3648 = vmax.f32 %v3542, 0.0
      %v3649 = vmax.f32 %v3547, 0.0
      %v3650 = vmax.f32 %v3550, 0.0
      %v3651 = vmax.f32 %v3555, 0.0
      %v3652 = vmax.f32 %v3558, 0.0
      %v3653 = vmax.f32 %v3563, 0.0
      %v3654 = vmax.f32 %v3566, 0.0
      %v3655 = vmax.f32 %v3571, 0.0
      %v3656 = vmax.f32 %v3574, 0.0
      %v3657 = vmax.f32 %v3579, 0.0
      %v3658 = vmax.f32 %v3582, 0.0
      %v3659 = vmax.f32 %v3587, 0.0
      %v3660 = vmax.f32 %v3590, 0.0
      %v3661 = vmax.f32 %v3595, 0.0
      %v3662 = vmax.f32 %v3598, 0.0
      %v3663 = vmax.f32 %v3603, 0.0
      %v3664 = vmax.f32 %v3606, 0.0
      %v3665 = vmax.f32 %v3611, 0.0
      %v3666 = vmax.f32 %v3614, 0.0
      %v3667 = vmax.f32 %v3619, 0.0
      %v3668 = vmax.f32 %v3622, 0.0
      %v3669 = vmax.f32 %v3627, 0.0
      %v3670 = vmax.f32 %v3630, 0.0
      %v3671 = vmax.f32 %v3635, 0.0
      %v3672 = vmax.f32 %v3638, 0.0
      %v3673 = vld [vmem:[%s5] sm:$0x1]
      %v3675 = vlaneseq
      %v3676 = vshrl.u32 %v3675, 7
      %v3677 = vsub.s32 0, %v3676
      %v3678 = vrot.slane %v3673, %v3677
      %v3680 = vmul.f32 %v3641, %v3678
      %v3681 = vmul.f32 %v3642, %v3678
      %v3682 = vmul.f32 %v3643, %v3678
      %v3683 = vmul.f32 %v3644, %v3678
      %v3684 = vmul.f32 %v3645, %v3678
      %v3685 = vmul.f32 %v3646, %v3678
      %v3686 = vmul.f32 %v3647, %v3678
      %v3687 = vmul.f32 %v3648, %v3678
      %v3688 = vmul.f32 %v3649, %v3678
      %v3689 = vmul.f32 %v3650, %v3678
      %v3690 = vmul.f32 %v3651, %v3678
      %v3691 = vmul.f32 %v3652, %v3678
      %v3692 = vmul.f32 %v3653, %v3678
      %v3693 = vmul.f32 %v3654, %v3678
      %v3694 = vmul.f32 %v3655, %v3678
      %v3695 = vmul.f32 %v3656, %v3678
      %v3696 = vmul.f32 %v3657, %v3678
      %v3697 = vmul.f32 %v3658, %v3678
      %v3698 = vmul.f32 %v3659, %v3678
      %v3699 = vmul.f32 %v3660, %v3678
      %v3700 = vmul.f32 %v3661, %v3678
      %v3701 = vmul.f32 %v3662, %v3678
      %v3702 = vmul.f32 %v3663, %v3678
      %v3703 = vmul.f32 %v3664, %v3678
      %v3704 = vmul.f32 %v3665, %v3678
      %v3705 = vmul.f32 %v3666, %v3678
      %v3706 = vmul.f32 %v3667, %v3678
      %v3707 = vmul.f32 %v3668, %v3678
      %v3708 = vmul.f32 %v3669, %v3678
      %v3709 = vmul.f32 %v3670, %v3678
      %v3710 = vmul.f32 %v3671, %v3678
      %v3711 = vmul.f32 %v3672, %v3678
      %v3712 = vld [vmem:[%s6] sm:$0x1]
      %v3714 = vlaneseq
      %v3715 = vshrl.u32 %v3714, 7
      %v3716 = vsub.s32 0, %v3715
      %v3717 = vrot.slane %v3712, %v3716
      %v3719 = vadd.f32 %v3680, %v3717
      %v3720 = vadd.f32 %v3681, %v3717
      %v3721 = vadd.f32 %v3682, %v3717
      %v3722 = vadd.f32 %v3683, %v3717
      %v3723 = vadd.f32 %v3684, %v3717
      %v3724 = vadd.f32 %v3685, %v3717
      %v3725 = vadd.f32 %v3686, %v3717
      %v3726 = vadd.f32 %v3687, %v3717
      %v3727 = vadd.f32 %v3688, %v3717
      %v3728 = vadd.f32 %v3689, %v3717
      %v3729 = vadd.f32 %v3690, %v3717
      %v3730 = vadd.f32 %v3691, %v3717
      %v3731 = vadd.f32 %v3692, %v3717
      %v3732 = vadd.f32 %v3693, %v3717
      %v3733 = vadd.f32 %v3694, %v3717
      %v3734 = vadd.f32 %v3695, %v3717
      %v3735 = vadd.f32 %v3696, %v3717
      %v3736 = vadd.f32 %v3697, %v3717
      %v3737 = vadd.f32 %v3698, %v3717
      %v3738 = vadd.f32 %v3699, %v3717
      %v3739 = vadd.f32 %v3700, %v3717
      %v3740 = vadd.f32 %v3701, %v3717
      %v3741 = vadd.f32 %v3702, %v3717
      %v3742 = vadd.f32 %v3703, %v3717
      %v3743 = vadd.f32 %v3704, %v3717
      %v3744 = vadd.f32 %v3705, %v3717
      %v3745 = vadd.f32 %v3706, %v3717
      %v3746 = vadd.f32 %v3707, %v3717
      %v3747 = vadd.f32 %v3708, %v3717
      %v3748 = vadd.f32 %v3709, %v3717
      %v3749 = vadd.f32 %v3710, %v3717
      %v3750 = vadd.f32 %v3711, %v3717
      %v3751 = vpack.c.bf16 %v3720, %v3719
      %v3752 = vpack.c.bf16 %v3722, %v3721
      %v3753 = vpack.c.bf16 %v3724, %v3723
      %v3754 = vpack.c.bf16 %v3726, %v3725
      %v3755 = vpack.c.bf16 %v3728, %v3727
      %v3756 = vpack.c.bf16 %v3730, %v3729
      %v3757 = vpack.c.bf16 %v3732, %v3731
      %v3758 = vpack.c.bf16 %v3734, %v3733
      %v3759 = vpack.c.bf16 %v3736, %v3735
      %v3760 = vpack.c.bf16 %v3738, %v3737
      %v3761 = vpack.c.bf16 %v3740, %v3739
      %v3762 = vpack.c.bf16 %v3742, %v3741
      %v3763 = vpack.c.bf16 %v3744, %v3743
      %v3764 = vpack.c.bf16 %v3746, %v3745
      %v3765 = vpack.c.bf16 %v3748, %v3747
      %v3766 = vpack.c.bf16 %v3750, %v3749
      %v3783 = vunpack.c.l.b16 %v3751
      %v3784 = vunpack.c.h.b16 %v3751
      %v3785 = vunpack.c.l.b16 %v3752
      %v3786 = vunpack.c.h.b16 %v3752
      %v3787 = vunpack.c.l.b16 %v3753
      %v3788 = vunpack.c.h.b16 %v3753
      %v3789 = vunpack.c.l.b16 %v3754
      %v3790 = vunpack.c.h.b16 %v3754
      %v3791 = vunpack.c.l.b16 %v3755
      %v3792 = vunpack.c.h.b16 %v3755
      %v3793 = vunpack.c.l.b16 %v3756
      %v3794 = vunpack.c.h.b16 %v3756
      %v3795 = vunpack.c.l.b16 %v3757
      %v3796 = vunpack.c.h.b16 %v3757
      %v3797 = vunpack.c.l.b16 %v3758
      %v3798 = vunpack.c.h.b16 %v3758
      %v3799 = vunpack.c.l.b16 %v3759
      %v3800 = vunpack.c.h.b16 %v3759
      %v3801 = vunpack.c.l.b16 %v3760
      %v3802 = vunpack.c.h.b16 %v3760
      %v3803 = vunpack.c.l.b16 %v3761
      %v3804 = vunpack.c.h.b16 %v3761
      %v3805 = vunpack.c.l.b16 %v3762
      %v3806 = vunpack.c.h.b16 %v3762
      %v3807 = vunpack.c.l.b16 %v3763
      %v3808 = vunpack.c.h.b16 %v3763
      %v3809 = vunpack.c.l.b16 %v3764
      %v3810 = vunpack.c.h.b16 %v3764
      %v3811 = vunpack.c.l.b16 %v3765
      %v3812 = vunpack.c.h.b16 %v3765
      %v3813 = vunpack.c.l.b16 %v3766
      %v3814 = vunpack.c.h.b16 %v3766
      %v3815 = vpack.c.b16 %v3783, %v3783
      %v3816 = vpack.c.b16 %v3784, %v3784
      %v3817 = vpack.c.b16 %v3785, %v3785
      %v3818 = vpack.c.b16 %v3786, %v3786
      %v3819 = vpack.c.b16 %v3787, %v3787
      %v3820 = vpack.c.b16 %v3788, %v3788
      %v3821 = vpack.c.b16 %v3789, %v3789
      %v3822 = vpack.c.b16 %v3790, %v3790
      %v3823 = vpack.c.b16 %v3791, %v3791
      %v3824 = vpack.c.b16 %v3792, %v3792
      %v3825 = vpack.c.b16 %v3793, %v3793
      %v3826 = vpack.c.b16 %v3794, %v3794
      %v3827 = vpack.c.b16 %v3795, %v3795
      %v3828 = vpack.c.b16 %v3796, %v3796
      %v3829 = vpack.c.b16 %v3797, %v3797
      %v3830 = vpack.c.b16 %v3798, %v3798
      %v3831 = vpack.c.b16 %v3799, %v3799
      %v3832 = vpack.c.b16 %v3800, %v3800
      %v3833 = vpack.c.b16 %v3801, %v3801
      %v3834 = vpack.c.b16 %v3802, %v3802
      %v3835 = vpack.c.b16 %v3803, %v3803
      %v3836 = vpack.c.b16 %v3804, %v3804
      %v3837 = vpack.c.b16 %v3805, %v3805
      %v3838 = vpack.c.b16 %v3806, %v3806
      %v3839 = vpack.c.b16 %v3807, %v3807
      %v3840 = vpack.c.b16 %v3808, %v3808
      %v3841 = vpack.c.b16 %v3809, %v3809
      %v3842 = vpack.c.b16 %v3810, %v3810
      %v3843 = vpack.c.b16 %v3811, %v3811
      %v3844 = vpack.c.b16 %v3812, %v3812
      %v3845 = vpack.c.b16 %v3813, %v3813
      %v3846 = vpack.c.b16 %v3814, %v3814
      %3879 = vst.msk [vmem:[%s298] sm:$0xf] %vm538, %v3815
      %3880 = vst.msk [vmem:[%s298 + $0x4] sm:$0xf] %vm538, %v3816
      %3881 = vst.msk [vmem:[%s298 + $0x8] sm:$0xf] %vm538, %v3817
      %3882 = vst.msk [vmem:[%s298 + $0xc] sm:$0xf] %vm538, %v3818
      %3883 = vst.msk [vmem:[%s298 + $0x10] sm:$0xf] %vm538, %v3819
      %3884 = vst.msk [vmem:[%s298 + $0x14] sm:$0xf] %vm538, %v3820
      %3885 = vst.msk [vmem:[%s298 + $0x18] sm:$0xf] %vm538, %v3821
      %3886 = vst.msk [vmem:[%s298 + $0x1c] sm:$0xf] %vm538, %v3822
      %3887 = vst.msk [vmem:[%s298 + $0x20] sm:$0xf] %vm538, %v3823
      %3888 = vst.msk [vmem:[%s298 + $0x24] sm:$0xf] %vm538, %v3824
      %3889 = vst.msk [vmem:[%s298 + $0x28] sm:$0xf] %vm538, %v3825
      %3890 = vst.msk [vmem:[%s298 + $0x2c] sm:$0xf] %vm538, %v3826
      %3891 = vst.msk [vmem:[%s298 + $0x30] sm:$0xf] %vm538, %v3827
      %3892 = vst.msk [vmem:[%s298 + $0x34] sm:$0xf] %vm538, %v3828
      %3893 = vst.msk [vmem:[%s298 + $0x38] sm:$0xf] %vm538, %v3829
      %3894 = vst.msk [vmem:[%s298 + $0x3c] sm:$0xf] %vm538, %v3830
      %3895 = vst.msk [vmem:[%s298 + $0x40] sm:$0xf] %vm538, %v3831
      %3896 = vst.msk [vmem:[%s298 + $0x44] sm:$0xf] %vm538, %v3832
      %3897 = vst.msk [vmem:[%s298 + $0x48] sm:$0xf] %vm538, %v3833
      %3898 = vst.msk [vmem:[%s298 + $0x4c] sm:$0xf] %vm538, %v3834
      %3899 = vst.msk [vmem:[%s298 + $0x50] sm:$0xf] %vm538, %v3835
      %3900 = vst.msk [vmem:[%s298 + $0x54] sm:$0xf] %vm538, %v3836
      %3901 = vst.msk [vmem:[%s298 + $0x58] sm:$0xf] %vm538, %v3837
      %3902 = vst.msk [vmem:[%s298 + $0x5c] sm:$0xf] %vm538, %v3838
      %3903 = vst.msk [vmem:[%s298 + $0x60] sm:$0xf] %vm538, %v3839
      %3904 = vst.msk [vmem:[%s298 + $0x64] sm:$0xf] %vm538, %v3840
      %3905 = vst.msk [vmem:[%s298 + $0x68] sm:$0xf] %vm538, %v3841
      %3906 = vst.msk [vmem:[%s298 + $0x6c] sm:$0xf] %vm538, %v3842
      %3907 = vst.msk [vmem:[%s298 + $0x70] sm:$0xf] %vm538, %v3843
      %3908 = vst.msk [vmem:[%s298 + $0x74] sm:$0xf] %vm538, %v3844
      %3909 = vst.msk [vmem:[%s298 + $0x78] sm:$0xf] %vm538, %v3845
      %3910 = vst.msk [vmem:[%s298 + $0x7c] sm:$0xf] %vm538, %v3846
      %p3911 = scmp.lt.s32.totalorder %s18, 1
      %s3912 = scalar_select %p3911, %s18, 1
      %s3913 = smul.addr %s3912, 32
      %s3914 = smul.addr %s3913, 4
      %s3915 = scalar_lea.vmem %s7, %s3914
      // Predicated region
      $region49: #{unet_block_forward.4} parent=47 // pred_check
        %p3916 = pneg %p193
      $region50: #{unet_block_forward.4} parent=47 // pred_check_branch
        %3918 = sbr.rel (%p3916) target = $region52
      $region51: #{unet_block_forward.4} parent=47 // pred_region
        _
      $region52: #{unet_block_forward.4} parent=47 // pred_fallthru
        _
    $region48: #{unet_block_forward.4} parent=5 // pred_fallthru
      _
    %p3919 = scmp.le.s32.totalorder 2, %s13
    // Predicated region
    $region53: #{unet_block_forward.4} parent=5 // pred_check
      %p3920 = pneg %p3919
    $region54: #{unet_block_forward.4} parent=5 // pred_check_branch
      %3922 = sbr.rel (%p3920) target = $region56
    $region55: #{unet_block_forward.4} parent=5 // pred_region
      %s3923 = ssub.s32 %s13, 2
      // Predicated region
      $region57: #{unet_block_forward.4} parent=55 // pred_check
        %p3924 = pneg %p199
      $region58: #{unet_block_forward.4} parent=55 // pred_check_branch
        %3926 = sbr.rel (%p3924) target = $region60
      $region59: #{unet_block_forward.4} parent=55 // pred_region
        %p3927 = scmp.lt.s32.totalorder %s19, 1
        %s3928 = scalar_select %p3927, %s19, 1
        %s3929 = smul.addr %s3928, 32
        %s3930 = smul.addr %s3929, 4
        %s3931 = scalar_lea.vmem %s7, %s3930
      $region60: #{unet_block_forward.4} parent=55 // pred_fallthru
        _
    $region56: #{unet_block_forward.4} parent=5 // pred_fallthru
      _
  $region6: #{unet_block_forward.4} parent=0 // loop_footer
    %s17 = sadd.s32 1, %s13
  $region7: #{unet_block_forward.4} parent=0 // loop_footer_branch
    %12 = sbr.rel target = $region3
  $region8: #{unet_block_forward.4} parent=0 // loop_exit
    _

</llo_original>
